<compile_context>
chip_gen: v5e
topology: v5e:2x2
jax: 0.10.0
libtpu: 0.0.40
codegen_flags: <defaults>
</compile_context>

<pallas_src>
import functools

import jax
import jax.numpy as jnp
from jax import lax
from jax.experimental import pallas as pl
from jax.experimental.pallas import tpu as pltpu


# Padded widths.  Conv/fc intermediates never leave VMEM, so they are padded
# only far enough to keep zero-padding overhead in the matmul K dims small;
# the single HBM output is padded to a full 128-lane store.
C1P = 32     # conv1 out channels 20 -> 32
C2P = 64     # conv2 out channels 50 -> 64
F1P = 512    # fc1 out features 500 -> 512
CLSP = 128   # num_classes -> 128 (padded logits masked via -inf bias)

_NEG_INF = -1e30


# ---------------------------------------------------------------------------
# Fused kernel: conv1+relu+pool1 -> conv2+relu+pool2 -> fc1+relu -> fc2+logsm
# ---------------------------------------------------------------------------

def _lenet_fused_kernel(cols1_ref, w1_ref, b1_ref, w2_ref, b2_ref,
                        wfc1_ref, bfc1_ref, wfc2_ref, bfc2_ref,
                        out_ref, p1s_ref):
    f32 = jnp.float32

    # Even/odd row selectors for W-direction 2x2 pooling (pool-as-matmul).
    def even_odd_selectors(npool, nin):
        ii = lax.broadcasted_iota(jnp.int32, (npool, nin), 0)
        jj = lax.broadcasted_iota(jnp.int32, (npool, nin), 1)
        return (jj == 2 * ii).astype(f32), (jj == 2 * ii + 1).astype(f32)

    sel_a1, sel_b1 = even_odd_selectors(12, 24)   # pool1: 24 -> 12 along W
    sel_a2, sel_b2 = even_odd_selectors(4, 8)     # pool2:  8 ->  4 along W

    w1 = w1_ref[...]          # (25*Cin, C1P)
    b1 = b1_ref[...]          # (1, C1P)

    # ---- conv1 (5x5 valid, im2col matmul) + ReLU + 2x2 maxpool -------------
    # Processed per pooled output row: one (48, 25*Cin) @ (25*Cin, C1P) matmul
    # covers the two conv rows feeding that pooled row; pooling happens in
    # registers and only the (12, C1P) pooled row is written to VMEM scratch.
    for oh in range(12):
        cols = cols1_ref[0, pl.ds(48 * oh, 48), :]               # (48, 25*Cin)
        act = jnp.dot(cols, w1, preferred_element_type=f32) + b1
        act = jnp.maximum(act, 0.0)                               # (48, C1P)
        r = jnp.maximum(act[0:24, :], act[24:48, :])              # pool along H
        prow = jnp.maximum(jnp.dot(sel_a1, r, preferred_element_type=f32),
                           jnp.dot(sel_b1, r, preferred_element_type=f32))
        p1s_ref[oh] = prow                                        # (12, C1P)

    # ---- conv2 (5x5 valid) + ReLU: im2col built in VMEM --------------------
    # 25 statically shifted (8,8,C1P) windows of the pooled map, each flattened
    # to (64, C1P) and accumulated through the MXU.
    acc2 = jnp.zeros((64, C2P), f32)
    for k in range(25):
        ki, kj = k // 5, k % 5
        win = p1s_ref[pl.ds(ki, 8), pl.ds(kj, 8), :].reshape(64, C1P)
        acc2 = acc2 + jnp.dot(win, w2_ref[k], preferred_element_type=f32)
    h2 = jnp.maximum(acc2 + b2_ref[...], 0.0)                     # (64, C2P)

    # ---- 2x2 maxpool on conv2 + fc1 (flatten folded into 16 small dots) ----
    acc_fc1 = jnp.zeros((1, F1P), f32)
    for oh2 in range(4):
        ra = h2[16 * oh2: 16 * oh2 + 8, :]                        # conv row 2*oh2
        rb = h2[16 * oh2 + 8: 16 * oh2 + 16, :]                   # conv row 2*oh2+1
        r = jnp.maximum(ra, rb)                                   # (8, C2P)
        prow = jnp.maximum(jnp.dot(sel_a2, r, preferred_element_type=f32),
                           jnp.dot(sel_b2, r, preferred_element_type=f32))
        for ow2 in range(4):                                      # (4, C2P)
            v = prow[ow2:ow2 + 1, :]                              # (1, C2P)
            acc_fc1 = acc_fc1 + jnp.dot(v, wfc1_ref[oh2 * 4 + ow2],
                                        preferred_element_type=f32)
    y1 = jnp.maximum(acc_fc1 + bfc1_ref[...], 0.0)                # (1, F1P)

    # ---- fc2 + log-softmax (padded classes carry a -1e30 bias) -------------
    logits = (jnp.dot(y1, wfc2_ref[...], preferred_element_type=f32)
              + bfc2_ref[...])                                    # (1, CLSP)
    m = jnp.max(logits, axis=-1, keepdims=True)
    lse = m + jnp.log(jnp.sum(jnp.exp(logits - m), axis=-1, keepdims=True))
    out_ref[0] = logits - lse                                     # (1, CLSP)


# ---------------------------------------------------------------------------
# Wrapper glue: one-time weight packing + conv1 patch extraction + pallas_call
# ---------------------------------------------------------------------------

def _pad_to(x, shape):
    pads = [(0, t - s) for s, t in zip(x.shape, shape)]
    return jnp.pad(x, pads)


def pack_params(params, num_channels):
    """One-time layout permutation + zero-padding of PyTorch-layout weights."""
    cin = num_channels
    k1 = 25 * cin
    ncls = params["fc2_b"].shape[0]

    # conv1: (Cout,Cin,KH,KW) -> ((KH,KW,Cin), Cout), Cout padded to C1P.
    w1 = params["conv1_w"].transpose(2, 3, 1, 0).reshape(k1, 20)
    # conv2: (Cout,Cin,KH,KW) -> (KH*KW, Cin, Cout), padded to (25, C1P, C2P).
    w2 = params["conv2_w"].transpose(2, 3, 1, 0).reshape(25, 20, 50)
    # fc1: (500, 800) with in-features ordered (c,h,w) -> (h*w, c_pad, out_pad).
    wf1 = params["fc1_w"].reshape(500, 50, 4, 4).transpose(2, 3, 1, 0)
    # fc2: (ncls, 500) -> (500, ncls), padded to (F1P, CLSP).
    wf2 = params["fc2_w"].T

    bfc2 = jnp.full((1, CLSP), _NEG_INF, jnp.float32)
    bfc2 = bfc2.at[0, :ncls].set(params["fc2_b"].astype(jnp.float32))

    return {
        "w1": _pad_to(w1.astype(jnp.float32), (k1, C1P)),
        "b1": _pad_to(params["conv1_b"].reshape(1, 20).astype(jnp.float32),
                      (1, C1P)),
        "w2": _pad_to(w2.astype(jnp.float32), (25, C1P, C2P)),
        "b2": _pad_to(params["conv2_b"].reshape(1, 50).astype(jnp.float32),
                      (1, C2P)),
        "wfc1": _pad_to(wf1.astype(jnp.float32),
                        (4, 4, C2P, F1P)).reshape(16, C2P, F1P),
        "bfc1": _pad_to(params["fc1_b"].reshape(1, 500).astype(jnp.float32),
                        (1, F1P)),
        "wfc2": _pad_to(wf2.astype(jnp.float32), (F1P, CLSP)),
        "bfc2": bfc2,
    }


def _im2col_conv1(x_nhwc):
    # Tiny (576 x 25*Cin) patch matrix per image; kept as wrapper glue since
    # with Cin=1 the in-kernel alternative degenerates to K=1 matmuls.
    n, h, w, c = x_nhwc.shape
    oh, ow = h - 4, w - 4
    cols = [x_nhwc[:, i:i + oh, j:j + ow, :] for i in range(5) for j in range(5)]
    patches = jnp.stack(cols, axis=3)                  # (N, OH, OW, 25, Cin)
    return patches.reshape(n, oh * ow, 25 * c)         # (N, 576, 25*Cin)


def lenet_forward(packed, x_nchw, num_classes):
    n, cin = x_nchw.shape[0], x_nchw.shape[1]
    k1 = 25 * cin
    x = jnp.transpose(x_nchw, (0, 2, 3, 1)).astype(jnp.float32)   # NCHW -> NHWC
    cols1 = _im2col_conv1(x)                                      # (N, 576, k1)

    grid_spec = pltpu.PrefetchScalarGridSpec(
        num_scalar_prefetch=0,
        grid=(n,),
        in_specs=[
            pl.BlockSpec((1, 576, k1), lambda b: (b, 0, 0)),      # conv1 cols
            pl.BlockSpec((k1, C1P), lambda b: (0, 0)),            # w1
            pl.BlockSpec((1, C1P), lambda b: (0, 0)),             # b1
            pl.BlockSpec((25, C1P, C2P), lambda b: (0, 0, 0)),    # w2
            pl.BlockSpec((1, C2P), lambda b: (0, 0)),             # b2
            pl.BlockSpec((16, C2P, F1P), lambda b: (0, 0, 0)),    # fc1 w
            pl.BlockSpec((1, F1P), lambda b: (0, 0)),             # fc1 b
            pl.BlockSpec((F1P, CLSP), lambda b: (0, 0)),          # fc2 w
            pl.BlockSpec((1, CLSP), lambda b: (0, 0)),            # fc2 b (+mask)
        ],
        out_specs=pl.BlockSpec((1, 1, CLSP), lambda b: (b, 0, 0)),
        scratch_shapes=[pltpu.VMEM((12, 12, C1P), jnp.float32)],  # pooled conv1
    )

    out = pl.pallas_call(
        _lenet_fused_kernel,
        out_shape=jax.ShapeDtypeStruct((n, 1, CLSP), jnp.float32),
        grid_spec=grid_spec,
        compiler_params=pltpu.CompilerParams(
            dimension_semantics=("parallel",)),
    )(cols1, packed["w1"], packed["b1"], packed["w2"], packed["b2"],
      packed["wfc1"], packed["bfc1"], packed["wfc2"], packed["bfc2"])

    return out.reshape(n, CLSP)[:, :num_classes]


# ---------------------------------------------------------------------------
# Parameters (PyTorch-native layouts) and a pure-JAX reference for checking
# ---------------------------------------------------------------------------

def init_lenet_params(key, num_channels, num_classes):
    ks = jax.random.split(key, 8)

    def u(k, shape, fan_in):
        bound = 1.0 / jnp.sqrt(jnp.float32(fan_in))
        return jax.random.uniform(k, shape, jnp.float32, -bound, bound)

    return {
        "conv1_w": u(ks[0], (20, num_channels, 5, 5), num_channels * 25),
        "conv1_b": u(ks[1], (20,), num_channels * 25),
        "conv2_w": u(ks[2], (50, 20, 5, 5), 20 * 25),
        "conv2_b": u(ks[3], (50,), 20 * 25),
        "fc1_w":   u(ks[4], (500, 800), 800),
        "fc1_b":   u(ks[5], (500,), 800),
        "fc2_w":   u(ks[6], (num_classes, 500), 500),
        "fc2_b":   u(ks[7], (num_classes,), 500),
    }


def lenet_reference(params, x_nchw):
    x = x_nchw.astype(jnp.float32)

    def conv(h, w, b):
        out = jax.lax.conv_general_dilated(
            h, w, (1, 1), "VALID", dimension_numbers=("NCHW", "OIHW", "NCHW"))
        return jax.nn.relu(out + b[None, :, None, None])

    def pool(h):
        return jax.lax.reduce_window(h, -jnp.inf, jax.lax.max,
                                     (1, 1, 2, 2), (1, 1, 2, 2), "VALID")

    h = pool(conv(x, params["conv1_w"], params["conv1_b"]))
    h = pool(conv(h, params["conv2_w"], params["conv2_b"]))
    flat = h.reshape(h.shape[0], -1)                       # torch.flatten(x, 1)
    h = jax.nn.relu(flat @ params["fc1_w"].T + params["fc1_b"])
    logits = h @ params["fc2_w"].T + params["fc2_b"]
    return jax.nn.log_softmax(logits, axis=1)


if __name__ == "__main__":
    # fc1.in_features == 800 == 50*4*4 forces 28x28 spatial input (MNIST-like).
    batch, num_channels, num_classes = 2, 1, 10
    key = jax.random.PRNGKey(0)
    k_x, k_p = jax.random.split(key)
    x = jax.random.normal(k_x, (batch, num_channels, 28, 28), jnp.float32)
    params = init_lenet_params(k_p, num_channels, num_classes)
    packed = pack_params(params, num_channels)       # one-time weight packing

    fwd = jax.jit(functools.partial(lenet_forward, num_classes=num_classes))
    out = jax.block_until_ready(fwd(packed, x))
    ref = jax.block_until_ready(lenet_reference(params, x))

    assert out.shape == (batch, num_classes), out.shape
    assert bool(jnp.allclose(out, ref, atol=1e-2, rtol=1e-2)), (out, ref)
    print("KERNEL_OK")
</pallas_src>

<mosaic_0001>
module attributes {stable_mosaic.version = 11 : i64} {
  func.func @_lenet_fused_kernel(%arg0: i32, %arg1: memref<1x576x25xf32, #tpu.memory_space<vmem>>, %arg2: memref<25x32xf32, #tpu.memory_space<vmem>>, %arg3: memref<1x32xf32, #tpu.memory_space<vmem>>, %arg4: memref<25x32x64xf32, #tpu.memory_space<vmem>>, %arg5: memref<1x64xf32, #tpu.memory_space<vmem>>, %arg6: memref<16x64x512xf32, #tpu.memory_space<vmem>>, %arg7: memref<1x512xf32, #tpu.memory_space<vmem>>, %arg8: memref<512x128xf32, #tpu.memory_space<vmem>>, %arg9: memref<1x128xf32, #tpu.memory_space<vmem>>, %arg10: memref<1x1x128xf32, #tpu.memory_space<vmem>>, %arg11: memref<12x12x32xf32, #tpu.memory_space<vmem>>) attributes {dimension_semantics = [#tpu.dimension_semantics<parallel>], iteration_bounds = array<i64: 2>, scalar_prefetch = 0 : i64, scratch_operands = 1 : i64, tpu.core_type = #tpu.core_type<tc>, window_params = [{transform_indices = @transform_0, window_bounds = array<i64: 1, 576, 25>}, {pipeline_mode = #tpu.pipeline_mode<synchronous>, transform_indices = @transform_1, window_bounds = array<i64: 25, 32>}, {pipeline_mode = #tpu.pipeline_mode<synchronous>, transform_indices = @transform_2, window_bounds = array<i64: 1, 32>}, {pipeline_mode = #tpu.pipeline_mode<synchronous>, transform_indices = @transform_3, window_bounds = array<i64: 25, 32, 64>}, {pipeline_mode = #tpu.pipeline_mode<synchronous>, transform_indices = @transform_4, window_bounds = array<i64: 1, 64>}, {pipeline_mode = #tpu.pipeline_mode<synchronous>, transform_indices = @transform_5, window_bounds = array<i64: 16, 64, 512>}, {pipeline_mode = #tpu.pipeline_mode<synchronous>, transform_indices = @transform_6, window_bounds = array<i64: 1, 512>}, {pipeline_mode = #tpu.pipeline_mode<synchronous>, transform_indices = @transform_7, window_bounds = array<i64: 512, 128>}, {pipeline_mode = #tpu.pipeline_mode<synchronous>, transform_indices = @transform_8, window_bounds = array<i64: 1, 128>}, {transform_indices = @transform_9, window_bounds = array<i64: 1, 1, 128>}]} {
    %0 = tpu.iota {dimensions = array<i32: 0>} : vector<12x24xi32>
    %1 = tpu.iota {dimensions = array<i32: 1>} : vector<12x24xi32>
    %c2_i32 = arith.constant 2 : i32
    %2 = vector.broadcast %c2_i32 : i32 to vector<12x24xi32>
    %3 = arith.muli %2, %0 : vector<12x24xi32>
    %4 = arith.cmpi eq, %1, %3 : vector<12x24xi32>
    %5 = arith.extui %4 : vector<12x24xi1> to vector<12x24xi32>
    %6 = arith.sitofp %5 : vector<12x24xi32> to vector<12x24xf32>
    %c2_i32_0 = arith.constant 2 : i32
    %7 = vector.broadcast %c2_i32_0 : i32 to vector<12x24xi32>
    %8 = arith.muli %7, %0 : vector<12x24xi32>
    %c1_i32 = arith.constant 1 : i32
    %9 = vector.broadcast %c1_i32 : i32 to vector<12x24xi32>
    %10 = arith.addi %8, %9 : vector<12x24xi32>
    %11 = arith.cmpi eq, %1, %10 : vector<12x24xi32>
    %12 = arith.extui %11 : vector<12x24xi1> to vector<12x24xi32>
    %13 = arith.sitofp %12 : vector<12x24xi32> to vector<12x24xf32>
    %14 = tpu.iota {dimensions = array<i32: 0>} : vector<4x8xi32>
    %15 = tpu.iota {dimensions = array<i32: 1>} : vector<4x8xi32>
    %c2_i32_1 = arith.constant 2 : i32
    %16 = vector.broadcast %c2_i32_1 : i32 to vector<4x8xi32>
    %17 = arith.muli %16, %14 : vector<4x8xi32>
    %18 = arith.cmpi eq, %15, %17 : vector<4x8xi32>
    %19 = arith.extui %18 : vector<4x8xi1> to vector<4x8xi32>
    %20 = arith.sitofp %19 : vector<4x8xi32> to vector<4x8xf32>
    %c2_i32_2 = arith.constant 2 : i32
    %21 = vector.broadcast %c2_i32_2 : i32 to vector<4x8xi32>
    %22 = arith.muli %21, %14 : vector<4x8xi32>
    %c1_i32_3 = arith.constant 1 : i32
    %23 = vector.broadcast %c1_i32_3 : i32 to vector<4x8xi32>
    %24 = arith.addi %22, %23 : vector<4x8xi32>
    %25 = arith.cmpi eq, %15, %24 : vector<4x8xi32>
    %26 = arith.extui %25 : vector<4x8xi1> to vector<4x8xi32>
    %27 = arith.sitofp %26 : vector<4x8xi32> to vector<4x8xf32>
    %c0 = arith.constant 0 : index
    %c0_4 = arith.constant 0 : index
    %28 = vector.load %arg2[%c0, %c0_4] : memref<25x32xf32, #tpu.memory_space<vmem>>, vector<25x32xf32>
    %c0_5 = arith.constant 0 : index
    %c0_6 = arith.constant 0 : index
    %29 = vector.load %arg3[%c0_5, %c0_6] : memref<1x32xf32, #tpu.memory_space<vmem>>, vector<1x32xf32>
    %c0_7 = arith.constant 0 : index
    %c0_8 = arith.constant 0 : index
    %c0_9 = arith.constant 0 : index
    %30 = vector.load %arg1[%c0_7, %c0_8, %c0_9] : memref<1x576x25xf32, #tpu.memory_space<vmem>>, vector<1x48x25xf32>
    %31 = vector.shape_cast %30 : vector<1x48x25xf32> to vector<48x25xf32>
    %cst = arith.constant dense<0.000000e+00> : vector<48x32xf32>
    %32 = tpu.matmul %31, %28, %cst {dimension_numbers = #tpu.dot_dimension_numbers<[1], [0], [0], [1], [0, 0, 1, 1], [], []>} : vector<48x25xf32>, vector<25x32xf32>, vector<48x32xf32> -> vector<48x32xf32>
    %33 = vector.broadcast %29 : vector<1x32xf32> to vector<48x32xf32>
    %34 = arith.addf %32, %33 : vector<48x32xf32>
    %cst_10 = arith.constant 0.000000e+00 : f32
    %35 = vector.broadcast %cst_10 : f32 to vector<48x32xf32>
    %36 = arith.maximumf %34, %35 : vector<48x32xf32>
    %37 = vector.extract_strided_slice %36 {offsets = [0, 0], sizes = [24, 32], strides = [1, 1]} : vector<48x32xf32> to vector<24x32xf32>
    %38 = vector.extract_strided_slice %36 {offsets = [24, 0], sizes = [24, 32], strides = [1, 1]} : vector<48x32xf32> to vector<24x32xf32>
    %39 = arith.maximumf %37, %38 : vector<24x32xf32>
    %cst_11 = arith.constant dense<0.000000e+00> : vector<12x32xf32>
    %40 = tpu.matmul %6, %39, %cst_11 {dimension_numbers = #tpu.dot_dimension_numbers<[1], [0], [0], [1], [0, 0, 1, 1], [], []>} : vector<12x24xf32>, vector<24x32xf32>, vector<12x32xf32> -> vector<12x32xf32>
    %cst_12 = arith.constant dense<0.000000e+00> : vector<12x32xf32>
    %41 = tpu.matmul %13, %39, %cst_12 {dimension_numbers = #tpu.dot_dimension_numbers<[1], [0], [0], [1], [0, 0, 1, 1], [], []>} : vector<12x24xf32>, vector<24x32xf32>, vector<12x32xf32> -> vector<12x32xf32>
    %42 = arith.maximumf %40, %41 : vector<12x32xf32>
    %c0_13 = arith.constant 0 : index
    %c0_14 = arith.constant 0 : index
    %c0_15 = arith.constant 0 : index
    %43 = vector.load %arg11[%c0_13, %c0_14, %c0_15] : memref<12x12x32xf32, #tpu.memory_space<vmem>>, vector<1x12x32xf32>
    %44 = vector.shape_cast %43 : vector<1x12x32xf32> to vector<12x32xf32>
    %45 = vector.shape_cast %42 : vector<12x32xf32> to vector<1x12x32xf32>
    tpu.vector_store %arg11[%c0_13, %c0_14, %c0_15], %45 {strides = array<i32>} : memref<12x12x32xf32, #tpu.memory_space<vmem>>, vector<1x12x32xf32>,
    %c0_16 = arith.constant 0 : index
    %c48 = arith.constant 48 : index
    %c0_17 = arith.constant 0 : index
    %46 = vector.load %arg1[%c0_16, %c48, %c0_17] : memref<1x576x25xf32, #tpu.memory_space<vmem>>, vector<1x48x25xf32>
    %47 = vector.shape_cast %46 : vector<1x48x25xf32> to vector<48x25xf32>
    %cst_18 = arith.constant dense<0.000000e+00> : vector<48x32xf32>
    %48 = tpu.matmul %47, %28, %cst_18 {dimension_numbers = #tpu.dot_dimension_numbers<[1], [0], [0], [1], [0, 0, 1, 1], [], []>} : vector<48x25xf32>, vector<25x32xf32>, vector<48x32xf32> -> vector<48x32xf32>
    %49 = vector.broadcast %29 : vector<1x32xf32> to vector<48x32xf32>
    %50 = arith.addf %48, %49 : vector<48x32xf32>
    %cst_19 = arith.constant 0.000000e+00 : f32
    %51 = vector.broadcast %cst_19 : f32 to vector<48x32xf32>
    %52 = arith.maximumf %50, %51 : vector<48x32xf32>
    %53 = vector.extract_strided_slice %52 {offsets = [0, 0], sizes = [24, 32], strides = [1, 1]} : vector<48x32xf32> to vector<24x32xf32>
    %54 = vector.extract_strided_slice %52 {offsets = [24, 0], sizes = [24, 32], strides = [1, 1]} : vector<48x32xf32> to vector<24x32xf32>
    %55 = arith.maximumf %53, %54 : vector<24x32xf32>
    %cst_20 = arith.constant dense<0.000000e+00> : vector<12x32xf32>
    %56 = tpu.matmul %6, %55, %cst_20 {dimension_numbers = #tpu.dot_dimension_numbers<[1], [0], [0], [1], [0, 0, 1, 1], [], []>} : vector<12x24xf32>, vector<24x32xf32>, vector<12x32xf32> -> vector<12x32xf32>
    %cst_21 = arith.constant dense<0.000000e+00> : vector<12x32xf32>
    %57 = tpu.matmul %13, %55, %cst_21 {dimension_numbers = #tpu.dot_dimension_numbers<[1], [0], [0], [1], [0, 0, 1, 1], [], []>} : vector<12x24xf32>, vector<24x32xf32>, vector<12x32xf32> -> vector<12x32xf32>
    %58 = arith.maximumf %56, %57 : vector<12x32xf32>
    %c1 = arith.constant 1 : index
    %c0_22 = arith.constant 0 : index
    %c0_23 = arith.constant 0 : index
    %59 = vector.load %arg11[%c1, %c0_22, %c0_23] : memref<12x12x32xf32, #tpu.memory_space<vmem>>, vector<1x12x32xf32>
    %60 = vector.shape_cast %59 : vector<1x12x32xf32> to vector<12x32xf32>
    %61 = vector.shape_cast %58 : vector<12x32xf32> to vector<1x12x32xf32>
    tpu.vector_store %arg11[%c1, %c0_22, %c0_23], %61 {strides = array<i32>} : memref<12x12x32xf32, #tpu.memory_space<vmem>>, vector<1x12x32xf32>,
    %c0_24 = arith.constant 0 : index
    %c96 = arith.constant 96 : index
    %c0_25 = arith.constant 0 : index
    %62 = vector.load %arg1[%c0_24, %c96, %c0_25] : memref<1x576x25xf32, #tpu.memory_space<vmem>>, vector<1x48x25xf32>
    %63 = vector.shape_cast %62 : vector<1x48x25xf32> to vector<48x25xf32>
    %cst_26 = arith.constant dense<0.000000e+00> : vector<48x32xf32>
    %64 = tpu.matmul %63, %28, %cst_26 {dimension_numbers = #tpu.dot_dimension_numbers<[1], [0], [0], [1], [0, 0, 1, 1], [], []>} : vector<48x25xf32>, vector<25x32xf32>, vector<48x32xf32> -> vector<48x32xf32>
    %65 = vector.broadcast %29 : vector<1x32xf32> to vector<48x32xf32>
    %66 = arith.addf %64, %65 : vector<48x32xf32>
    %cst_27 = arith.constant 0.000000e+00 : f32
    %67 = vector.broadcast %cst_27 : f32 to vector<48x32xf32>
    %68 = arith.maximumf %66, %67 : vector<48x32xf32>
    %69 = vector.extract_strided_slice %68 {offsets = [0, 0], sizes = [24, 32], strides = [1, 1]} : vector<48x32xf32> to vector<24x32xf32>
    %70 = vector.extract_strided_slice %68 {offsets = [24, 0], sizes = [24, 32], strides = [1, 1]} : vector<48x32xf32> to vector<24x32xf32>
    %71 = arith.maximumf %69, %70 : vector<24x32xf32>
    %cst_28 = arith.constant dense<0.000000e+00> : vector<12x32xf32>
    %72 = tpu.matmul %6, %71, %cst_28 {dimension_numbers = #tpu.dot_dimension_numbers<[1], [0], [0], [1], [0, 0, 1, 1], [], []>} : vector<12x24xf32>, vector<24x32xf32>, vector<12x32xf32> -> vector<12x32xf32>
    %cst_29 = arith.constant dense<0.000000e+00> : vector<12x32xf32>
    %73 = tpu.matmul %13, %71, %cst_29 {dimension_numbers = #tpu.dot_dimension_numbers<[1], [0], [0], [1], [0, 0, 1, 1], [], []>} : vector<12x24xf32>, vector<24x32xf32>, vector<12x32xf32> -> vector<12x32xf32>
    %74 = arith.maximumf %72, %73 : vector<12x32xf32>
    %c2 = arith.constant 2 : index
    %c0_30 = arith.constant 0 : index
    %c0_31 = arith.constant 0 : index
    %75 = vector.load %arg11[%c2, %c0_30, %c0_31] : memref<12x12x32xf32, #tpu.memory_space<vmem>>, vector<1x12x32xf32>
    %76 = vector.shape_cast %75 : vector<1x12x32xf32> to vector<12x32xf32>
    %77 = vector.shape_cast %74 : vector<12x32xf32> to vector<1x12x32xf32>
    tpu.vector_store %arg11[%c2, %c0_30, %c0_31], %77 {strides = array<i32>} : memref<12x12x32xf32, #tpu.memory_space<vmem>>, vector<1x12x32xf32>,
    %c0_32 = arith.constant 0 : index
    %c144 = arith.constant 144 : index
    %c0_33 = arith.constant 0 : index
    %78 = vector.load %arg1[%c0_32, %c144, %c0_33] : memref<1x576x25xf32, #tpu.memory_space<vmem>>, vector<1x48x25xf32>
    %79 = vector.shape_cast %78 : vector<1x48x25xf32> to vector<48x25xf32>
    %cst_34 = arith.constant dense<0.000000e+00> : vector<48x32xf32>
    %80 = tpu.matmul %79, %28, %cst_34 {dimension_numbers = #tpu.dot_dimension_numbers<[1], [0], [0], [1], [0, 0, 1, 1], [], []>} : vector<48x25xf32>, vector<25x32xf32>, vector<48x32xf32> -> vector<48x32xf32>
    %81 = vector.broadcast %29 : vector<1x32xf32> to vector<48x32xf32>
    %82 = arith.addf %80, %81 : vector<48x32xf32>
    %cst_35 = arith.constant 0.000000e+00 : f32
    %83 = vector.broadcast %cst_35 : f32 to vector<48x32xf32>
    %84 = arith.maximumf %82, %83 : vector<48x32xf32>
    %85 = vector.extract_strided_slice %84 {offsets = [0, 0], sizes = [24, 32], strides = [1, 1]} : vector<48x32xf32> to vector<24x32xf32>
    %86 = vector.extract_strided_slice %84 {offsets = [24, 0], sizes = [24, 32], strides = [1, 1]} : vector<48x32xf32> to vector<24x32xf32>
    %87 = arith.maximumf %85, %86 : vector<24x32xf32>
    %cst_36 = arith.constant dense<0.000000e+00> : vector<12x32xf32>
    %88 = tpu.matmul %6, %87, %cst_36 {dimension_numbers = #tpu.dot_dimension_numbers<[1], [0], [0], [1], [0, 0, 1, 1], [], []>} : vector<12x24xf32>, vector<24x32xf32>, vector<12x32xf32> -> vector<12x32xf32>
    %cst_37 = arith.constant dense<0.000000e+00> : vector<12x32xf32>
    %89 = tpu.matmul %13, %87, %cst_37 {dimension_numbers = #tpu.dot_dimension_numbers<[1], [0], [0], [1], [0, 0, 1, 1], [], []>} : vector<12x24xf32>, vector<24x32xf32>, vector<12x32xf32> -> vector<12x32xf32>
    %90 = arith.maximumf %88, %89 : vector<12x32xf32>
    %c3 = arith.constant 3 : index
    %c0_38 = arith.constant 0 : index
    %c0_39 = arith.constant 0 : index
    %91 = vector.load %arg11[%c3, %c0_38, %c0_39] : memref<12x12x32xf32, #tpu.memory_space<vmem>>, vector<1x12x32xf32>
    %92 = vector.shape_cast %91 : vector<1x12x32xf32> to vector<12x32xf32>
    %93 = vector.shape_cast %90 : vector<12x32xf32> to vector<1x12x32xf32>
    tpu.vector_store %arg11[%c3, %c0_38, %c0_39], %93 {strides = array<i32>} : memref<12x12x32xf32, #tpu.memory_space<vmem>>, vector<1x12x32xf32>,
    %c0_40 = arith.constant 0 : index
    %c192 = arith.constant 192 : index
    %c0_41 = arith.constant 0 : index
    %94 = vector.load %arg1[%c0_40, %c192, %c0_41] : memref<1x576x25xf32, #tpu.memory_space<vmem>>, vector<1x48x25xf32>
    %95 = vector.shape_cast %94 : vector<1x48x25xf32> to vector<48x25xf32>
    %cst_42 = arith.constant dense<0.000000e+00> : vector<48x32xf32>
    %96 = tpu.matmul %95, %28, %cst_42 {dimension_numbers = #tpu.dot_dimension_numbers<[1], [0], [0], [1], [0, 0, 1, 1], [], []>} : vector<48x25xf32>, vector<25x32xf32>, vector<48x32xf32> -> vector<48x32xf32>
    %97 = vector.broadcast %29 : vector<1x32xf32> to vector<48x32xf32>
    %98 = arith.addf %96, %97 : vector<48x32xf32>
    %cst_43 = arith.constant 0.000000e+00 : f32
    %99 = vector.broadcast %cst_43 : f32 to vector<48x32xf32>
    %100 = arith.maximumf %98, %99 : vector<48x32xf32>
    %101 = vector.extract_strided_slice %100 {offsets = [0, 0], sizes = [24, 32], strides = [1, 1]} : vector<48x32xf32> to vector<24x32xf32>
    %102 = vector.extract_strided_slice %100 {offsets = [24, 0], sizes = [24, 32], strides = [1, 1]} : vector<48x32xf32> to vector<24x32xf32>
    %103 = arith.maximumf %101, %102 : vector<24x32xf32>
    %cst_44 = arith.constant dense<0.000000e+00> : vector<12x32xf32>
    %104 = tpu.matmul %6, %103, %cst_44 {dimension_numbers = #tpu.dot_dimension_numbers<[1], [0], [0], [1], [0, 0, 1, 1], [], []>} : vector<12x24xf32>, vector<24x32xf32>, vector<12x32xf32> -> vector<12x32xf32>
    %cst_45 = arith.constant dense<0.000000e+00> : vector<12x32xf32>
    %105 = tpu.matmul %13, %103, %cst_45 {dimension_numbers = #tpu.dot_dimension_numbers<[1], [0], [0], [1], [0, 0, 1, 1], [], []>} : vector<12x24xf32>, vector<24x32xf32>, vector<12x32xf32> -> vector<12x32xf32>
    %106 = arith.maximumf %104, %105 : vector<12x32xf32>
    %c4 = arith.constant 4 : index
    %c0_46 = arith.constant 0 : index
    %c0_47 = arith.constant 0 : index
    %107 = vector.load %arg11[%c4, %c0_46, %c0_47] : memref<12x12x32xf32, #tpu.memory_space<vmem>>, vector<1x12x32xf32>
    %108 = vector.shape_cast %107 : vector<1x12x32xf32> to vector<12x32xf32>
    %109 = vector.shape_cast %106 : vector<12x32xf32> to vector<1x12x32xf32>
    tpu.vector_store %arg11[%c4, %c0_46, %c0_47], %109 {strides = array<i32>} : memref<12x12x32xf32, #tpu.memory_space<vmem>>, vector<1x12x32xf32>,
    %c0_48 = arith.constant 0 : index
    %c240 = arith.constant 240 : index
    %c0_49 = arith.constant 0 : index
    %110 = vector.load %arg1[%c0_48, %c240, %c0_49] : memref<1x576x25xf32, #tpu.memory_space<vmem>>, vector<1x48x25xf32>
    %111 = vector.shape_cast %110 : vector<1x48x25xf32> to vector<48x25xf32>
    %cst_50 = arith.constant dense<0.000000e+00> : vector<48x32xf32>
    %112 = tpu.matmul %111, %28, %cst_50 {dimension_numbers = #tpu.dot_dimension_numbers<[1], [0], [0], [1], [0, 0, 1, 1], [], []>} : vector<48x25xf32>, vector<25x32xf32>, vector<48x32xf32> -> vector<48x32xf32>
    %113 = vector.broadcast %29 : vector<1x32xf32> to vector<48x32xf32>
    %114 = arith.addf %112, %113 : vector<48x32xf32>
    %cst_51 = arith.constant 0.000000e+00 : f32
    %115 = vector.broadcast %cst_51 : f32 to vector<48x32xf32>
    %116 = arith.maximumf %114, %115 : vector<48x32xf32>
    %117 = vector.extract_strided_slice %116 {offsets = [0, 0], sizes = [24, 32], strides = [1, 1]} : vector<48x32xf32> to vector<24x32xf32>
    %118 = vector.extract_strided_slice %116 {offsets = [24, 0], sizes = [24, 32], strides = [1, 1]} : vector<48x32xf32> to vector<24x32xf32>
    %119 = arith.maximumf %117, %118 : vector<24x32xf32>
    %cst_52 = arith.constant dense<0.000000e+00> : vector<12x32xf32>
    %120 = tpu.matmul %6, %119, %cst_52 {dimension_numbers = #tpu.dot_dimension_numbers<[1], [0], [0], [1], [0, 0, 1, 1], [], []>} : vector<12x24xf32>, vector<24x32xf32>, vector<12x32xf32> -> vector<12x32xf32>
    %cst_53 = arith.constant dense<0.000000e+00> : vector<12x32xf32>
    %121 = tpu.matmul %13, %119, %cst_53 {dimension_numbers = #tpu.dot_dimension_numbers<[1], [0], [0], [1], [0, 0, 1, 1], [], []>} : vector<12x24xf32>, vector<24x32xf32>, vector<12x32xf32> -> vector<12x32xf32>
    %122 = arith.maximumf %120, %121 : vector<12x32xf32>
    %c5 = arith.constant 5 : index
    %c0_54 = arith.constant 0 : index
    %c0_55 = arith.constant 0 : index
    %123 = vector.load %arg11[%c5, %c0_54, %c0_55] : memref<12x12x32xf32, #tpu.memory_space<vmem>>, vector<1x12x32xf32>
    %124 = vector.shape_cast %123 : vector<1x12x32xf32> to vector<12x32xf32>
    %125 = vector.shape_cast %122 : vector<12x32xf32> to vector<1x12x32xf32>
    tpu.vector_store %arg11[%c5, %c0_54, %c0_55], %125 {strides = array<i32>} : memref<12x12x32xf32, #tpu.memory_space<vmem>>, vector<1x12x32xf32>,
    %c0_56 = arith.constant 0 : index
    %c288 = arith.constant 288 : index
    %c0_57 = arith.constant 0 : index
    %126 = vector.load %arg1[%c0_56, %c288, %c0_57] : memref<1x576x25xf32, #tpu.memory_space<vmem>>, vector<1x48x25xf32>
    %127 = vector.shape_cast %126 : vector<1x48x25xf32> to vector<48x25xf32>
    %cst_58 = arith.constant dense<0.000000e+00> : vector<48x32xf32>
    %128 = tpu.matmul %127, %28, %cst_58 {dimension_numbers = #tpu.dot_dimension_numbers<[1], [0], [0], [1], [0, 0, 1, 1], [], []>} : vector<48x25xf32>, vector<25x32xf32>, vector<48x32xf32> -> vector<48x32xf32>
    %129 = vector.broadcast %29 : vector<1x32xf32> to vector<48x32xf32>
    %130 = arith.addf %128, %129 : vector<48x32xf32>
    %cst_59 = arith.constant 0.000000e+00 : f32
    %131 = vector.broadcast %cst_59 : f32 to vector<48x32xf32>
    %132 = arith.maximumf %130, %131 : vector<48x32xf32>
    %133 = vector.extract_strided_slice %132 {offsets = [0, 0], sizes = [24, 32], strides = [1, 1]} : vector<48x32xf32> to vector<24x32xf32>
    %134 = vector.extract_strided_slice %132 {offsets = [24, 0], sizes = [24, 32], strides = [1, 1]} : vector<48x32xf32> to vector<24x32xf32>
    %135 = arith.maximumf %133, %134 : vector<24x32xf32>
    %cst_60 = arith.constant dense<0.000000e+00> : vector<12x32xf32>
    %136 = tpu.matmul %6, %135, %cst_60 {dimension_numbers = #tpu.dot_dimension_numbers<[1], [0], [0], [1], [0, 0, 1, 1], [], []>} : vector<12x24xf32>, vector<24x32xf32>, vector<12x32xf32> -> vector<12x32xf32>
    %cst_61 = arith.constant dense<0.000000e+00> : vector<12x32xf32>
    %137 = tpu.matmul %13, %135, %cst_61 {dimension_numbers = #tpu.dot_dimension_numbers<[1], [0], [0], [1], [0, 0, 1, 1], [], []>} : vector<12x24xf32>, vector<24x32xf32>, vector<12x32xf32> -> vector<12x32xf32>
    %138 = arith.maximumf %136, %137 : vector<12x32xf32>
    %c6 = arith.constant 6 : index
    %c0_62 = arith.constant 0 : index
    %c0_63 = arith.constant 0 : index
    %139 = vector.load %arg11[%c6, %c0_62, %c0_63] : memref<12x12x32xf32, #tpu.memory_space<vmem>>, vector<1x12x32xf32>
    %140 = vector.shape_cast %139 : vector<1x12x32xf32> to vector<12x32xf32>
    %141 = vector.shape_cast %138 : vector<12x32xf32> to vector<1x12x32xf32>
    tpu.vector_store %arg11[%c6, %c0_62, %c0_63], %141 {strides = array<i32>} : memref<12x12x32xf32, #tpu.memory_space<vmem>>, vector<1x12x32xf32>,
    %c0_64 = arith.constant 0 : index
    %c336 = arith.constant 336 : index
    %c0_65 = arith.constant 0 : index
    %142 = vector.load %arg1[%c0_64, %c336, %c0_65] : memref<1x576x25xf32, #tpu.memory_space<vmem>>, vector<1x48x25xf32>
    %143 = vector.shape_cast %142 : vector<1x48x25xf32> to vector<48x25xf32>
    %cst_66 = arith.constant dense<0.000000e+00> : vector<48x32xf32>
    %144 = tpu.matmul %143, %28, %cst_66 {dimension_numbers = #tpu.dot_dimension_numbers<[1], [0], [0], [1], [0, 0, 1, 1], [], []>} : vector<48x25xf32>, vector<25x32xf32>, vector<48x32xf32> -> vector<48x32xf32>
    %145 = vector.broadcast %29 : vector<1x32xf32> to vector<48x32xf32>
    %146 = arith.addf %144, %145 : vector<48x32xf32>
    %cst_67 = arith.constant 0.000000e+00 : f32
    %147 = vector.broadcast %cst_67 : f32 to vector<48x32xf32>
    %148 = arith.maximumf %146, %147 : vector<48x32xf32>
    %149 = vector.extract_strided_slice %148 {offsets = [0, 0], sizes = [24, 32], strides = [1, 1]} : vector<48x32xf32> to vector<24x32xf32>
    %150 = vector.extract_strided_slice %148 {offsets = [24, 0], sizes = [24, 32], strides = [1, 1]} : vector<48x32xf32> to vector<24x32xf32>
    %151 = arith.maximumf %149, %150 : vector<24x32xf32>
    %cst_68 = arith.constant dense<0.000000e+00> : vector<12x32xf32>
    %152 = tpu.matmul %6, %151, %cst_68 {dimension_numbers = #tpu.dot_dimension_numbers<[1], [0], [0], [1], [0, 0, 1, 1], [], []>} : vector<12x24xf32>, vector<24x32xf32>, vector<12x32xf32> -> vector<12x32xf32>
    %cst_69 = arith.constant dense<0.000000e+00> : vector<12x32xf32>
    %153 = tpu.matmul %13, %151, %cst_69 {dimension_numbers = #tpu.dot_dimension_numbers<[1], [0], [0], [1], [0, 0, 1, 1], [], []>} : vector<12x24xf32>, vector<24x32xf32>, vector<12x32xf32> -> vector<12x32xf32>
    %154 = arith.maximumf %152, %153 : vector<12x32xf32>
    %c7 = arith.constant 7 : index
    %c0_70 = arith.constant 0 : index
    %c0_71 = arith.constant 0 : index
    %155 = vector.load %arg11[%c7, %c0_70, %c0_71] : memref<12x12x32xf32, #tpu.memory_space<vmem>>, vector<1x12x32xf32>
    %156 = vector.shape_cast %155 : vector<1x12x32xf32> to vector<12x32xf32>
    %157 = vector.shape_cast %154 : vector<12x32xf32> to vector<1x12x32xf32>
    tpu.vector_store %arg11[%c7, %c0_70, %c0_71], %157 {strides = array<i32>} : memref<12x12x32xf32, #tpu.memory_space<vmem>>, vector<1x12x32xf32>,
    %c0_72 = arith.constant 0 : index
    %c384 = arith.constant 384 : index
    %c0_73 = arith.constant 0 : index
    %158 = vector.load %arg1[%c0_72, %c384, %c0_73] : memref<1x576x25xf32, #tpu.memory_space<vmem>>, vector<1x48x25xf32>
    %159 = vector.shape_cast %158 : vector<1x48x25xf32> to vector<48x25xf32>
    %cst_74 = arith.constant dense<0.000000e+00> : vector<48x32xf32>
    %160 = tpu.matmul %159, %28, %cst_74 {dimension_numbers = #tpu.dot_dimension_numbers<[1], [0], [0], [1], [0, 0, 1, 1], [], []>} : vector<48x25xf32>, vector<25x32xf32>, vector<48x32xf32> -> vector<48x32xf32>
    %161 = vector.broadcast %29 : vector<1x32xf32> to vector<48x32xf32>
    %162 = arith.addf %160, %161 : vector<48x32xf32>
    %cst_75 = arith.constant 0.000000e+00 : f32
    %163 = vector.broadcast %cst_75 : f32 to vector<48x32xf32>
    %164 = arith.maximumf %162, %163 : vector<48x32xf32>
    %165 = vector.extract_strided_slice %164 {offsets = [0, 0], sizes = [24, 32], strides = [1, 1]} : vector<48x32xf32> to vector<24x32xf32>
    %166 = vector.extract_strided_slice %164 {offsets = [24, 0], sizes = [24, 32], strides = [1, 1]} : vector<48x32xf32> to vector<24x32xf32>
    %167 = arith.maximumf %165, %166 : vector<24x32xf32>
    %cst_76 = arith.constant dense<0.000000e+00> : vector<12x32xf32>
    %168 = tpu.matmul %6, %167, %cst_76 {dimension_numbers = #tpu.dot_dimension_numbers<[1], [0], [0], [1], [0, 0, 1, 1], [], []>} : vector<12x24xf32>, vector<24x32xf32>, vector<12x32xf32> -> vector<12x32xf32>
    %cst_77 = arith.constant dense<0.000000e+00> : vector<12x32xf32>
    %169 = tpu.matmul %13, %167, %cst_77 {dimension_numbers = #tpu.dot_dimension_numbers<[1], [0], [0], [1], [0, 0, 1, 1], [], []>} : vector<12x24xf32>, vector<24x32xf32>, vector<12x32xf32> -> vector<12x32xf32>
    %170 = arith.maximumf %168, %169 : vector<12x32xf32>
    %c8 = arith.constant 8 : index
    %c0_78 = arith.constant 0 : index
    %c0_79 = arith.constant 0 : index
    %171 = vector.load %arg11[%c8, %c0_78, %c0_79] : memref<12x12x32xf32, #tpu.memory_space<vmem>>, vector<1x12x32xf32>
    %172 = vector.shape_cast %171 : vector<1x12x32xf32> to vector<12x32xf32>
    %173 = vector.shape_cast %170 : vector<12x32xf32> to vector<1x12x32xf32>
    tpu.vector_store %arg11[%c8, %c0_78, %c0_79], %173 {strides = array<i32>} : memref<12x12x32xf32, #tpu.memory_space<vmem>>, vector<1x12x32xf32>,
    %c0_80 = arith.constant 0 : index
    %c432 = arith.constant 432 : index
    %c0_81 = arith.constant 0 : index
    %174 = vector.load %arg1[%c0_80, %c432, %c0_81] : memref<1x576x25xf32, #tpu.memory_space<vmem>>, vector<1x48x25xf32>
    %175 = vector.shape_cast %174 : vector<1x48x25xf32> to vector<48x25xf32>
    %cst_82 = arith.constant dense<0.000000e+00> : vector<48x32xf32>
    %176 = tpu.matmul %175, %28, %cst_82 {dimension_numbers = #tpu.dot_dimension_numbers<[1], [0], [0], [1], [0, 0, 1, 1], [], []>} : vector<48x25xf32>, vector<25x32xf32>, vector<48x32xf32> -> vector<48x32xf32>
    %177 = vector.broadcast %29 : vector<1x32xf32> to vector<48x32xf32>
    %178 = arith.addf %176, %177 : vector<48x32xf32>
    %cst_83 = arith.constant 0.000000e+00 : f32
    %179 = vector.broadcast %cst_83 : f32 to vector<48x32xf32>
    %180 = arith.maximumf %178, %179 : vector<48x32xf32>
    %181 = vector.extract_strided_slice %180 {offsets = [0, 0], sizes = [24, 32], strides = [1, 1]} : vector<48x32xf32> to vector<24x32xf32>
    %182 = vector.extract_strided_slice %180 {offsets = [24, 0], sizes = [24, 32], strides = [1, 1]} : vector<48x32xf32> to vector<24x32xf32>
    %183 = arith.maximumf %181, %182 : vector<24x32xf32>
    %cst_84 = arith.constant dense<0.000000e+00> : vector<12x32xf32>
    %184 = tpu.matmul %6, %183, %cst_84 {dimension_numbers = #tpu.dot_dimension_numbers<[1], [0], [0], [1], [0, 0, 1, 1], [], []>} : vector<12x24xf32>, vector<24x32xf32>, vector<12x32xf32> -> vector<12x32xf32>
    %cst_85 = arith.constant dense<0.000000e+00> : vector<12x32xf32>
    %185 = tpu.matmul %13, %183, %cst_85 {dimension_numbers = #tpu.dot_dimension_numbers<[1], [0], [0], [1], [0, 0, 1, 1], [], []>} : vector<12x24xf32>, vector<24x32xf32>, vector<12x32xf32> -> vector<12x32xf32>
    %186 = arith.maximumf %184, %185 : vector<12x32xf32>
    %c9 = arith.constant 9 : index
    %c0_86 = arith.constant 0 : index
    %c0_87 = arith.constant 0 : index
    %187 = vector.load %arg11[%c9, %c0_86, %c0_87] : memref<12x12x32xf32, #tpu.memory_space<vmem>>, vector<1x12x32xf32>
    %188 = vector.shape_cast %187 : vector<1x12x32xf32> to vector<12x32xf32>
    %189 = vector.shape_cast %186 : vector<12x32xf32> to vector<1x12x32xf32>
    tpu.vector_store %arg11[%c9, %c0_86, %c0_87], %189 {strides = array<i32>} : memref<12x12x32xf32, #tpu.memory_space<vmem>>, vector<1x12x32xf32>,
    %c0_88 = arith.constant 0 : index
    %c480 = arith.constant 480 : index
    %c0_89 = arith.constant 0 : index
    %190 = vector.load %arg1[%c0_88, %c480, %c0_89] : memref<1x576x25xf32, #tpu.memory_space<vmem>>, vector<1x48x25xf32>
    %191 = vector.shape_cast %190 : vector<1x48x25xf32> to vector<48x25xf32>
    %cst_90 = arith.constant dense<0.000000e+00> : vector<48x32xf32>
    %192 = tpu.matmul %191, %28, %cst_90 {dimension_numbers = #tpu.dot_dimension_numbers<[1], [0], [0], [1], [0, 0, 1, 1], [], []>} : vector<48x25xf32>, vector<25x32xf32>, vector<48x32xf32> -> vector<48x32xf32>
    %193 = vector.broadcast %29 : vector<1x32xf32> to vector<48x32xf32>
    %194 = arith.addf %192, %193 : vector<48x32xf32>
    %cst_91 = arith.constant 0.000000e+00 : f32
    %195 = vector.broadcast %cst_91 : f32 to vector<48x32xf32>
    %196 = arith.maximumf %194, %195 : vector<48x32xf32>
    %197 = vector.extract_strided_slice %196 {offsets = [0, 0], sizes = [24, 32], strides = [1, 1]} : vector<48x32xf32> to vector<24x32xf32>
    %198 = vector.extract_strided_slice %196 {offsets = [24, 0], sizes = [24, 32], strides = [1, 1]} : vector<48x32xf32> to vector<24x32xf32>
    %199 = arith.maximumf %197, %198 : vector<24x32xf32>
    %cst_92 = arith.constant dense<0.000000e+00> : vector<12x32xf32>
    %200 = tpu.matmul %6, %199, %cst_92 {dimension_numbers = #tpu.dot_dimension_numbers<[1], [0], [0], [1], [0, 0, 1, 1], [], []>} : vector<12x24xf32>, vector<24x32xf32>, vector<12x32xf32> -> vector<12x32xf32>
    %cst_93 = arith.constant dense<0.000000e+00> : vector<12x32xf32>
    %201 = tpu.matmul %13, %199, %cst_93 {dimension_numbers = #tpu.dot_dimension_numbers<[1], [0], [0], [1], [0, 0, 1, 1], [], []>} : vector<12x24xf32>, vector<24x32xf32>, vector<12x32xf32> -> vector<12x32xf32>
    %202 = arith.maximumf %200, %201 : vector<12x32xf32>
    %c10 = arith.constant 10 : index
    %c0_94 = arith.constant 0 : index
    %c0_95 = arith.constant 0 : index
    %203 = vector.load %arg11[%c10, %c0_94, %c0_95] : memref<12x12x32xf32, #tpu.memory_space<vmem>>, vector<1x12x32xf32>
    %204 = vector.shape_cast %203 : vector<1x12x32xf32> to vector<12x32xf32>
    %205 = vector.shape_cast %202 : vector<12x32xf32> to vector<1x12x32xf32>
    tpu.vector_store %arg11[%c10, %c0_94, %c0_95], %205 {strides = array<i32>} : memref<12x12x32xf32, #tpu.memory_space<vmem>>, vector<1x12x32xf32>,
    %c0_96 = arith.constant 0 : index
    %c528 = arith.constant 528 : index
    %c0_97 = arith.constant 0 : index
    %206 = vector.load %arg1[%c0_96, %c528, %c0_97] : memref<1x576x25xf32, #tpu.memory_space<vmem>>, vector<1x48x25xf32>
    %207 = vector.shape_cast %206 : vector<1x48x25xf32> to vector<48x25xf32>
    %cst_98 = arith.constant dense<0.000000e+00> : vector<48x32xf32>
    %208 = tpu.matmul %207, %28, %cst_98 {dimension_numbers = #tpu.dot_dimension_numbers<[1], [0], [0], [1], [0, 0, 1, 1], [], []>} : vector<48x25xf32>, vector<25x32xf32>, vector<48x32xf32> -> vector<48x32xf32>
    %209 = vector.broadcast %29 : vector<1x32xf32> to vector<48x32xf32>
    %210 = arith.addf %208, %209 : vector<48x32xf32>
    %cst_99 = arith.constant 0.000000e+00 : f32
    %211 = vector.broadcast %cst_99 : f32 to vector<48x32xf32>
    %212 = arith.maximumf %210, %211 : vector<48x32xf32>
    %213 = vector.extract_strided_slice %212 {offsets = [0, 0], sizes = [24, 32], strides = [1, 1]} : vector<48x32xf32> to vector<24x32xf32>
    %214 = vector.extract_strided_slice %212 {offsets = [24, 0], sizes = [24, 32], strides = [1, 1]} : vector<48x32xf32> to vector<24x32xf32>
    %215 = arith.maximumf %213, %214 : vector<24x32xf32>
    %cst_100 = arith.constant dense<0.000000e+00> : vector<12x32xf32>
    %216 = tpu.matmul %6, %215, %cst_100 {dimension_numbers = #tpu.dot_dimension_numbers<[1], [0], [0], [1], [0, 0, 1, 1], [], []>} : vector<12x24xf32>, vector<24x32xf32>, vector<12x32xf32> -> vector<12x32xf32>
    %cst_101 = arith.constant dense<0.000000e+00> : vector<12x32xf32>
    %217 = tpu.matmul %13, %215, %cst_101 {dimension_numbers = #tpu.dot_dimension_numbers<[1], [0], [0], [1], [0, 0, 1, 1], [], []>} : vector<12x24xf32>, vector<24x32xf32>, vector<12x32xf32> -> vector<12x32xf32>
    %218 = arith.maximumf %216, %217 : vector<12x32xf32>
    %c11 = arith.constant 11 : index
    %c0_102 = arith.constant 0 : index
    %c0_103 = arith.constant 0 : index
    %219 = vector.load %arg11[%c11, %c0_102, %c0_103] : memref<12x12x32xf32, #tpu.memory_space<vmem>>, vector<1x12x32xf32>
    %220 = vector.shape_cast %219 : vector<1x12x32xf32> to vector<12x32xf32>
    %221 = vector.shape_cast %218 : vector<12x32xf32> to vector<1x12x32xf32>
    tpu.vector_store %arg11[%c11, %c0_102, %c0_103], %221 {strides = array<i32>} : memref<12x12x32xf32, #tpu.memory_space<vmem>>, vector<1x12x32xf32>,
    %cst_104 = arith.constant 0.000000e+00 : f32
    %222 = vector.broadcast %cst_104 : f32 to vector<64x64xf32>
    %c0_105 = arith.constant 0 : index
    %c0_106 = arith.constant 0 : index
    %c0_107 = arith.constant 0 : index
    %223 = vector.load %arg11[%c0_105, %c0_106, %c0_107] : memref<12x12x32xf32, #tpu.memory_space<vmem>>, vector<8x8x32xf32>
    %224 = vector.shape_cast %223 : vector<8x8x32xf32> to vector<64x32xf32>
    %c0_108 = arith.constant 0 : index
    %c0_109 = arith.constant 0 : index
    %c0_110 = arith.constant 0 : index
    %225 = vector.load %arg4[%c0_108, %c0_109, %c0_110] : memref<25x32x64xf32, #tpu.memory_space<vmem>>, vector<1x32x64xf32>
    %226 = vector.shape_cast %225 : vector<1x32x64xf32> to vector<32x64xf32>
    %cst_111 = arith.constant dense<0.000000e+00> : vector<64x64xf32>
    %227 = tpu.matmul %224, %226, %cst_111 {dimension_numbers = #tpu.dot_dimension_numbers<[1], [0], [0], [1], [0, 0, 1, 1], [], []>} : vector<64x32xf32>, vector<32x64xf32>, vector<64x64xf32> -> vector<64x64xf32>
    %228 = arith.addf %222, %227 : vector<64x64xf32>
    %c0_112 = arith.constant 0 : index
    %c1_113 = arith.constant 1 : index
    %c0_114 = arith.constant 0 : index
    %229 = vector.load %arg11[%c0_112, %c1_113, %c0_114] : memref<12x12x32xf32, #tpu.memory_space<vmem>>, vector<8x8x32xf32>
    %230 = vector.shape_cast %229 : vector<8x8x32xf32> to vector<64x32xf32>
    %c1_115 = arith.constant 1 : index
    %c0_116 = arith.constant 0 : index
    %c0_117 = arith.constant 0 : index
    %231 = vector.load %arg4[%c1_115, %c0_116, %c0_117] : memref<25x32x64xf32, #tpu.memory_space<vmem>>, vector<1x32x64xf32>
    %232 = vector.shape_cast %231 : vector<1x32x64xf32> to vector<32x64xf32>
    %cst_118 = arith.constant dense<0.000000e+00> : vector<64x64xf32>
    %233 = tpu.matmul %230, %232, %cst_118 {dimension_numbers = #tpu.dot_dimension_numbers<[1], [0], [0], [1], [0, 0, 1, 1], [], []>} : vector<64x32xf32>, vector<32x64xf32>, vector<64x64xf32> -> vector<64x64xf32>
    %234 = arith.addf %228, %233 : vector<64x64xf32>
    %c0_119 = arith.constant 0 : index
    %c2_120 = arith.constant 2 : index
    %c0_121 = arith.constant 0 : index
    %235 = vector.load %arg11[%c0_119, %c2_120, %c0_121] : memref<12x12x32xf32, #tpu.memory_space<vmem>>, vector<8x8x32xf32>
    %236 = vector.shape_cast %235 : vector<8x8x32xf32> to vector<64x32xf32>
    %c2_122 = arith.constant 2 : index
    %c0_123 = arith.constant 0 : index
    %c0_124 = arith.constant 0 : index
    %237 = vector.load %arg4[%c2_122, %c0_123, %c0_124] : memref<25x32x64xf32, #tpu.memory_space<vmem>>, vector<1x32x64xf32>
    %238 = vector.shape_cast %237 : vector<1x32x64xf32> to vector<32x64xf32>
    %cst_125 = arith.constant dense<0.000000e+00> : vector<64x64xf32>
    %239 = tpu.matmul %236, %238, %cst_125 {dimension_numbers = #tpu.dot_dimension_numbers<[1], [0], [0], [1], [0, 0, 1, 1], [], []>} : vector<64x32xf32>, vector<32x64xf32>, vector<64x64xf32> -> vector<64x64xf32>
    %240 = arith.addf %234, %239 : vector<64x64xf32>
    %c0_126 = arith.constant 0 : index
    %c3_127 = arith.constant 3 : index
    %c0_128 = arith.constant 0 : index
    %241 = vector.load %arg11[%c0_126, %c3_127, %c0_128] : memref<12x12x32xf32, #tpu.memory_space<vmem>>, vector<8x8x32xf32>
    %242 = vector.shape_cast %241 : vector<8x8x32xf32> to vector<64x32xf32>
    %c3_129 = arith.constant 3 : index
    %c0_130 = arith.constant 0 : index
    %c0_131 = arith.constant 0 : index
    %243 = vector.load %arg4[%c3_129, %c0_130, %c0_131] : memref<25x32x64xf32, #tpu.memory_space<vmem>>, vector<1x32x64xf32>
    %244 = vector.shape_cast %243 : vector<1x32x64xf32> to vector<32x64xf32>
    %cst_132 = arith.constant dense<0.000000e+00> : vector<64x64xf32>
    %245 = tpu.matmul %242, %244, %cst_132 {dimension_numbers = #tpu.dot_dimension_numbers<[1], [0], [0], [1], [0, 0, 1, 1], [], []>} : vector<64x32xf32>, vector<32x64xf32>, vector<64x64xf32> -> vector<64x64xf32>
    %246 = arith.addf %240, %245 : vector<64x64xf32>
    %c0_133 = arith.constant 0 : index
    %c4_134 = arith.constant 4 : index
    %c0_135 = arith.constant 0 : index
    %247 = vector.load %arg11[%c0_133, %c4_134, %c0_135] : memref<12x12x32xf32, #tpu.memory_space<vmem>>, vector<8x8x32xf32>
    %248 = vector.shape_cast %247 : vector<8x8x32xf32> to vector<64x32xf32>
    %c4_136 = arith.constant 4 : index
    %c0_137 = arith.constant 0 : index
    %c0_138 = arith.constant 0 : index
    %249 = vector.load %arg4[%c4_136, %c0_137, %c0_138] : memref<25x32x64xf32, #tpu.memory_space<vmem>>, vector<1x32x64xf32>
    %250 = vector.shape_cast %249 : vector<1x32x64xf32> to vector<32x64xf32>
    %cst_139 = arith.constant dense<0.000000e+00> : vector<64x64xf32>
    %251 = tpu.matmul %248, %250, %cst_139 {dimension_numbers = #tpu.dot_dimension_numbers<[1], [0], [0], [1], [0, 0, 1, 1], [], []>} : vector<64x32xf32>, vector<32x64xf32>, vector<64x64xf32> -> vector<64x64xf32>
    %252 = arith.addf %246, %251 : vector<64x64xf32>
    %c1_140 = arith.constant 1 : index
    %c0_141 = arith.constant 0 : index
    %c0_142 = arith.constant 0 : index
    %253 = vector.load %arg11[%c1_140, %c0_141, %c0_142] : memref<12x12x32xf32, #tpu.memory_space<vmem>>, vector<8x8x32xf32>
    %254 = vector.shape_cast %253 : vector<8x8x32xf32> to vector<64x32xf32>
    %c5_143 = arith.constant 5 : index
    %c0_144 = arith.constant 0 : index
    %c0_145 = arith.constant 0 : index
    %255 = vector.load %arg4[%c5_143, %c0_144, %c0_145] : memref<25x32x64xf32, #tpu.memory_space<vmem>>, vector<1x32x64xf32>
    %256 = vector.shape_cast %255 : vector<1x32x64xf32> to vector<32x64xf32>
    %cst_146 = arith.constant dense<0.000000e+00> : vector<64x64xf32>
    %257 = tpu.matmul %254, %256, %cst_146 {dimension_numbers = #tpu.dot_dimension_numbers<[1], [0], [0], [1], [0, 0, 1, 1], [], []>} : vector<64x32xf32>, vector<32x64xf32>, vector<64x64xf32> -> vector<64x64xf32>
    %258 = arith.addf %252, %257 : vector<64x64xf32>
    %c1_147 = arith.constant 1 : index
    %c1_148 = arith.constant 1 : index
    %c0_149 = arith.constant 0 : index
    %259 = vector.load %arg11[%c1_147, %c1_148, %c0_149] : memref<12x12x32xf32, #tpu.memory_space<vmem>>, vector<8x8x32xf32>
    %260 = vector.shape_cast %259 : vector<8x8x32xf32> to vector<64x32xf32>
    %c6_150 = arith.constant 6 : index
    %c0_151 = arith.constant 0 : index
    %c0_152 = arith.constant 0 : index
    %261 = vector.load %arg4[%c6_150, %c0_151, %c0_152] : memref<25x32x64xf32, #tpu.memory_space<vmem>>, vector<1x32x64xf32>
    %262 = vector.shape_cast %261 : vector<1x32x64xf32> to vector<32x64xf32>
    %cst_153 = arith.constant dense<0.000000e+00> : vector<64x64xf32>
    %263 = tpu.matmul %260, %262, %cst_153 {dimension_numbers = #tpu.dot_dimension_numbers<[1], [0], [0], [1], [0, 0, 1, 1], [], []>} : vector<64x32xf32>, vector<32x64xf32>, vector<64x64xf32> -> vector<64x64xf32>
    %264 = arith.addf %258, %263 : vector<64x64xf32>
    %c1_154 = arith.constant 1 : index
    %c2_155 = arith.constant 2 : index
    %c0_156 = arith.constant 0 : index
    %265 = vector.load %arg11[%c1_154, %c2_155, %c0_156] : memref<12x12x32xf32, #tpu.memory_space<vmem>>, vector<8x8x32xf32>
    %266 = vector.shape_cast %265 : vector<8x8x32xf32> to vector<64x32xf32>
    %c7_157 = arith.constant 7 : index
    %c0_158 = arith.constant 0 : index
    %c0_159 = arith.constant 0 : index
    %267 = vector.load %arg4[%c7_157, %c0_158, %c0_159] : memref<25x32x64xf32, #tpu.memory_space<vmem>>, vector<1x32x64xf32>
    %268 = vector.shape_cast %267 : vector<1x32x64xf32> to vector<32x64xf32>
    %cst_160 = arith.constant dense<0.000000e+00> : vector<64x64xf32>
    %269 = tpu.matmul %266, %268, %cst_160 {dimension_numbers = #tpu.dot_dimension_numbers<[1], [0], [0], [1], [0, 0, 1, 1], [], []>} : vector<64x32xf32>, vector<32x64xf32>, vector<64x64xf32> -> vector<64x64xf32>
    %270 = arith.addf %264, %269 : vector<64x64xf32>
    %c1_161 = arith.constant 1 : index
    %c3_162 = arith.constant 3 : index
    %c0_163 = arith.constant 0 : index
    %271 = vector.load %arg11[%c1_161, %c3_162, %c0_163] : memref<12x12x32xf32, #tpu.memory_space<vmem>>, vector<8x8x32xf32>
    %272 = vector.shape_cast %271 : vector<8x8x32xf32> to vector<64x32xf32>
    %c8_164 = arith.constant 8 : index
    %c0_165 = arith.constant 0 : index
    %c0_166 = arith.constant 0 : index
    %273 = vector.load %arg4[%c8_164, %c0_165, %c0_166] : memref<25x32x64xf32, #tpu.memory_space<vmem>>, vector<1x32x64xf32>
    %274 = vector.shape_cast %273 : vector<1x32x64xf32> to vector<32x64xf32>
    %cst_167 = arith.constant dense<0.000000e+00> : vector<64x64xf32>
    %275 = tpu.matmul %272, %274, %cst_167 {dimension_numbers = #tpu.dot_dimension_numbers<[1], [0], [0], [1], [0, 0, 1, 1], [], []>} : vector<64x32xf32>, vector<32x64xf32>, vector<64x64xf32> -> vector<64x64xf32>
    %276 = arith.addf %270, %275 : vector<64x64xf32>
    %c1_168 = arith.constant 1 : index
    %c4_169 = arith.constant 4 : index
    %c0_170 = arith.constant 0 : index
    %277 = vector.load %arg11[%c1_168, %c4_169, %c0_170] : memref<12x12x32xf32, #tpu.memory_space<vmem>>, vector<8x8x32xf32>
    %278 = vector.shape_cast %277 : vector<8x8x32xf32> to vector<64x32xf32>
    %c9_171 = arith.constant 9 : index
    %c0_172 = arith.constant 0 : index
    %c0_173 = arith.constant 0 : index
    %279 = vector.load %arg4[%c9_171, %c0_172, %c0_173] : memref<25x32x64xf32, #tpu.memory_space<vmem>>, vector<1x32x64xf32>
    %280 = vector.shape_cast %279 : vector<1x32x64xf32> to vector<32x64xf32>
    %cst_174 = arith.constant dense<0.000000e+00> : vector<64x64xf32>
    %281 = tpu.matmul %278, %280, %cst_174 {dimension_numbers = #tpu.dot_dimension_numbers<[1], [0], [0], [1], [0, 0, 1, 1], [], []>} : vector<64x32xf32>, vector<32x64xf32>, vector<64x64xf32> -> vector<64x64xf32>
    %282 = arith.addf %276, %281 : vector<64x64xf32>
    %c2_175 = arith.constant 2 : index
    %c0_176 = arith.constant 0 : index
    %c0_177 = arith.constant 0 : index
    %283 = vector.load %arg11[%c2_175, %c0_176, %c0_177] : memref<12x12x32xf32, #tpu.memory_space<vmem>>, vector<8x8x32xf32>
    %284 = vector.shape_cast %283 : vector<8x8x32xf32> to vector<64x32xf32>
    %c10_178 = arith.constant 10 : index
    %c0_179 = arith.constant 0 : index
    %c0_180 = arith.constant 0 : index
    %285 = vector.load %arg4[%c10_178, %c0_179, %c0_180] : memref<25x32x64xf32, #tpu.memory_space<vmem>>, vector<1x32x64xf32>
    %286 = vector.shape_cast %285 : vector<1x32x64xf32> to vector<32x64xf32>
    %cst_181 = arith.constant dense<0.000000e+00> : vector<64x64xf32>
    %287 = tpu.matmul %284, %286, %cst_181 {dimension_numbers = #tpu.dot_dimension_numbers<[1], [0], [0], [1], [0, 0, 1, 1], [], []>} : vector<64x32xf32>, vector<32x64xf32>, vector<64x64xf32> -> vector<64x64xf32>
    %288 = arith.addf %282, %287 : vector<64x64xf32>
    %c2_182 = arith.constant 2 : index
    %c1_183 = arith.constant 1 : index
    %c0_184 = arith.constant 0 : index
    %289 = vector.load %arg11[%c2_182, %c1_183, %c0_184] : memref<12x12x32xf32, #tpu.memory_space<vmem>>, vector<8x8x32xf32>
    %290 = vector.shape_cast %289 : vector<8x8x32xf32> to vector<64x32xf32>
    %c11_185 = arith.constant 11 : index
    %c0_186 = arith.constant 0 : index
    %c0_187 = arith.constant 0 : index
    %291 = vector.load %arg4[%c11_185, %c0_186, %c0_187] : memref<25x32x64xf32, #tpu.memory_space<vmem>>, vector<1x32x64xf32>
    %292 = vector.shape_cast %291 : vector<1x32x64xf32> to vector<32x64xf32>
    %cst_188 = arith.constant dense<0.000000e+00> : vector<64x64xf32>
    %293 = tpu.matmul %290, %292, %cst_188 {dimension_numbers = #tpu.dot_dimension_numbers<[1], [0], [0], [1], [0, 0, 1, 1], [], []>} : vector<64x32xf32>, vector<32x64xf32>, vector<64x64xf32> -> vector<64x64xf32>
    %294 = arith.addf %288, %293 : vector<64x64xf32>
    %c2_189 = arith.constant 2 : index
    %c2_190 = arith.constant 2 : index
    %c0_191 = arith.constant 0 : index
    %295 = vector.load %arg11[%c2_189, %c2_190, %c0_191] : memref<12x12x32xf32, #tpu.memory_space<vmem>>, vector<8x8x32xf32>
    %296 = vector.shape_cast %295 : vector<8x8x32xf32> to vector<64x32xf32>
    %c12 = arith.constant 12 : index
    %c0_192 = arith.constant 0 : index
    %c0_193 = arith.constant 0 : index
    %297 = vector.load %arg4[%c12, %c0_192, %c0_193] : memref<25x32x64xf32, #tpu.memory_space<vmem>>, vector<1x32x64xf32>
    %298 = vector.shape_cast %297 : vector<1x32x64xf32> to vector<32x64xf32>
    %cst_194 = arith.constant dense<0.000000e+00> : vector<64x64xf32>
    %299 = tpu.matmul %296, %298, %cst_194 {dimension_numbers = #tpu.dot_dimension_numbers<[1], [0], [0], [1], [0, 0, 1, 1], [], []>} : vector<64x32xf32>, vector<32x64xf32>, vector<64x64xf32> -> vector<64x64xf32>
    %300 = arith.addf %294, %299 : vector<64x64xf32>
    %c2_195 = arith.constant 2 : index
    %c3_196 = arith.constant 3 : index
    %c0_197 = arith.constant 0 : index
    %301 = vector.load %arg11[%c2_195, %c3_196, %c0_197] : memref<12x12x32xf32, #tpu.memory_space<vmem>>, vector<8x8x32xf32>
    %302 = vector.shape_cast %301 : vector<8x8x32xf32> to vector<64x32xf32>
    %c13 = arith.constant 13 : index
    %c0_198 = arith.constant 0 : index
    %c0_199 = arith.constant 0 : index
    %303 = vector.load %arg4[%c13, %c0_198, %c0_199] : memref<25x32x64xf32, #tpu.memory_space<vmem>>, vector<1x32x64xf32>
    %304 = vector.shape_cast %303 : vector<1x32x64xf32> to vector<32x64xf32>
    %cst_200 = arith.constant dense<0.000000e+00> : vector<64x64xf32>
    %305 = tpu.matmul %302, %304, %cst_200 {dimension_numbers = #tpu.dot_dimension_numbers<[1], [0], [0], [1], [0, 0, 1, 1], [], []>} : vector<64x32xf32>, vector<32x64xf32>, vector<64x64xf32> -> vector<64x64xf32>
    %306 = arith.addf %300, %305 : vector<64x64xf32>
    %c2_201 = arith.constant 2 : index
    %c4_202 = arith.constant 4 : index
    %c0_203 = arith.constant 0 : index
    %307 = vector.load %arg11[%c2_201, %c4_202, %c0_203] : memref<12x12x32xf32, #tpu.memory_space<vmem>>, vector<8x8x32xf32>
    %308 = vector.shape_cast %307 : vector<8x8x32xf32> to vector<64x32xf32>
    %c14 = arith.constant 14 : index
    %c0_204 = arith.constant 0 : index
    %c0_205 = arith.constant 0 : index
    %309 = vector.load %arg4[%c14, %c0_204, %c0_205] : memref<25x32x64xf32, #tpu.memory_space<vmem>>, vector<1x32x64xf32>
    %310 = vector.shape_cast %309 : vector<1x32x64xf32> to vector<32x64xf32>
    %cst_206 = arith.constant dense<0.000000e+00> : vector<64x64xf32>
    %311 = tpu.matmul %308, %310, %cst_206 {dimension_numbers = #tpu.dot_dimension_numbers<[1], [0], [0], [1], [0, 0, 1, 1], [], []>} : vector<64x32xf32>, vector<32x64xf32>, vector<64x64xf32> -> vector<64x64xf32>
    %312 = arith.addf %306, %311 : vector<64x64xf32>
    %c3_207 = arith.constant 3 : index
    %c0_208 = arith.constant 0 : index
    %c0_209 = arith.constant 0 : index
    %313 = vector.load %arg11[%c3_207, %c0_208, %c0_209] : memref<12x12x32xf32, #tpu.memory_space<vmem>>, vector<8x8x32xf32>
    %314 = vector.shape_cast %313 : vector<8x8x32xf32> to vector<64x32xf32>
    %c15 = arith.constant 15 : index
    %c0_210 = arith.constant 0 : index
    %c0_211 = arith.constant 0 : index
    %315 = vector.load %arg4[%c15, %c0_210, %c0_211] : memref<25x32x64xf32, #tpu.memory_space<vmem>>, vector<1x32x64xf32>
    %316 = vector.shape_cast %315 : vector<1x32x64xf32> to vector<32x64xf32>
    %cst_212 = arith.constant dense<0.000000e+00> : vector<64x64xf32>
    %317 = tpu.matmul %314, %316, %cst_212 {dimension_numbers = #tpu.dot_dimension_numbers<[1], [0], [0], [1], [0, 0, 1, 1], [], []>} : vector<64x32xf32>, vector<32x64xf32>, vector<64x64xf32> -> vector<64x64xf32>
    %318 = arith.addf %312, %317 : vector<64x64xf32>
    %c3_213 = arith.constant 3 : index
    %c1_214 = arith.constant 1 : index
    %c0_215 = arith.constant 0 : index
    %319 = vector.load %arg11[%c3_213, %c1_214, %c0_215] : memref<12x12x32xf32, #tpu.memory_space<vmem>>, vector<8x8x32xf32>
    %320 = vector.shape_cast %319 : vector<8x8x32xf32> to vector<64x32xf32>
    %c16 = arith.constant 16 : index
    %c0_216 = arith.constant 0 : index
    %c0_217 = arith.constant 0 : index
    %321 = vector.load %arg4[%c16, %c0_216, %c0_217] : memref<25x32x64xf32, #tpu.memory_space<vmem>>, vector<1x32x64xf32>
    %322 = vector.shape_cast %321 : vector<1x32x64xf32> to vector<32x64xf32>
    %cst_218 = arith.constant dense<0.000000e+00> : vector<64x64xf32>
    %323 = tpu.matmul %320, %322, %cst_218 {dimension_numbers = #tpu.dot_dimension_numbers<[1], [0], [0], [1], [0, 0, 1, 1], [], []>} : vector<64x32xf32>, vector<32x64xf32>, vector<64x64xf32> -> vector<64x64xf32>
    %324 = arith.addf %318, %323 : vector<64x64xf32>
    %c3_219 = arith.constant 3 : index
    %c2_220 = arith.constant 2 : index
    %c0_221 = arith.constant 0 : index
    %325 = vector.load %arg11[%c3_219, %c2_220, %c0_221] : memref<12x12x32xf32, #tpu.memory_space<vmem>>, vector<8x8x32xf32>
    %326 = vector.shape_cast %325 : vector<8x8x32xf32> to vector<64x32xf32>
    %c17 = arith.constant 17 : index
    %c0_222 = arith.constant 0 : index
    %c0_223 = arith.constant 0 : index
    %327 = vector.load %arg4[%c17, %c0_222, %c0_223] : memref<25x32x64xf32, #tpu.memory_space<vmem>>, vector<1x32x64xf32>
    %328 = vector.shape_cast %327 : vector<1x32x64xf32> to vector<32x64xf32>
    %cst_224 = arith.constant dense<0.000000e+00> : vector<64x64xf32>
    %329 = tpu.matmul %326, %328, %cst_224 {dimension_numbers = #tpu.dot_dimension_numbers<[1], [0], [0], [1], [0, 0, 1, 1], [], []>} : vector<64x32xf32>, vector<32x64xf32>, vector<64x64xf32> -> vector<64x64xf32>
    %330 = arith.addf %324, %329 : vector<64x64xf32>
    %c3_225 = arith.constant 3 : index
    %c3_226 = arith.constant 3 : index
    %c0_227 = arith.constant 0 : index
    %331 = vector.load %arg11[%c3_225, %c3_226, %c0_227] : memref<12x12x32xf32, #tpu.memory_space<vmem>>, vector<8x8x32xf32>
    %332 = vector.shape_cast %331 : vector<8x8x32xf32> to vector<64x32xf32>
    %c18 = arith.constant 18 : index
    %c0_228 = arith.constant 0 : index
    %c0_229 = arith.constant 0 : index
    %333 = vector.load %arg4[%c18, %c0_228, %c0_229] : memref<25x32x64xf32, #tpu.memory_space<vmem>>, vector<1x32x64xf32>
    %334 = vector.shape_cast %333 : vector<1x32x64xf32> to vector<32x64xf32>
    %cst_230 = arith.constant dense<0.000000e+00> : vector<64x64xf32>
    %335 = tpu.matmul %332, %334, %cst_230 {dimension_numbers = #tpu.dot_dimension_numbers<[1], [0], [0], [1], [0, 0, 1, 1], [], []>} : vector<64x32xf32>, vector<32x64xf32>, vector<64x64xf32> -> vector<64x64xf32>
    %336 = arith.addf %330, %335 : vector<64x64xf32>
    %c3_231 = arith.constant 3 : index
    %c4_232 = arith.constant 4 : index
    %c0_233 = arith.constant 0 : index
    %337 = vector.load %arg11[%c3_231, %c4_232, %c0_233] : memref<12x12x32xf32, #tpu.memory_space<vmem>>, vector<8x8x32xf32>
    %338 = vector.shape_cast %337 : vector<8x8x32xf32> to vector<64x32xf32>
    %c19 = arith.constant 19 : index
    %c0_234 = arith.constant 0 : index
    %c0_235 = arith.constant 0 : index
    %339 = vector.load %arg4[%c19, %c0_234, %c0_235] : memref<25x32x64xf32, #tpu.memory_space<vmem>>, vector<1x32x64xf32>
    %340 = vector.shape_cast %339 : vector<1x32x64xf32> to vector<32x64xf32>
    %cst_236 = arith.constant dense<0.000000e+00> : vector<64x64xf32>
    %341 = tpu.matmul %338, %340, %cst_236 {dimension_numbers = #tpu.dot_dimension_numbers<[1], [0], [0], [1], [0, 0, 1, 1], [], []>} : vector<64x32xf32>, vector<32x64xf32>, vector<64x64xf32> -> vector<64x64xf32>
    %342 = arith.addf %336, %341 : vector<64x64xf32>
    %c4_237 = arith.constant 4 : index
    %c0_238 = arith.constant 0 : index
    %c0_239 = arith.constant 0 : index
    %343 = vector.load %arg11[%c4_237, %c0_238, %c0_239] : memref<12x12x32xf32, #tpu.memory_space<vmem>>, vector<8x8x32xf32>
    %344 = vector.shape_cast %343 : vector<8x8x32xf32> to vector<64x32xf32>
    %c20 = arith.constant 20 : index
    %c0_240 = arith.constant 0 : index
    %c0_241 = arith.constant 0 : index
    %345 = vector.load %arg4[%c20, %c0_240, %c0_241] : memref<25x32x64xf32, #tpu.memory_space<vmem>>, vector<1x32x64xf32>
    %346 = vector.shape_cast %345 : vector<1x32x64xf32> to vector<32x64xf32>
    %cst_242 = arith.constant dense<0.000000e+00> : vector<64x64xf32>
    %347 = tpu.matmul %344, %346, %cst_242 {dimension_numbers = #tpu.dot_dimension_numbers<[1], [0], [0], [1], [0, 0, 1, 1], [], []>} : vector<64x32xf32>, vector<32x64xf32>, vector<64x64xf32> -> vector<64x64xf32>
    %348 = arith.addf %342, %347 : vector<64x64xf32>
    %c4_243 = arith.constant 4 : index
    %c1_244 = arith.constant 1 : index
    %c0_245 = arith.constant 0 : index
    %349 = vector.load %arg11[%c4_243, %c1_244, %c0_245] : memref<12x12x32xf32, #tpu.memory_space<vmem>>, vector<8x8x32xf32>
    %350 = vector.shape_cast %349 : vector<8x8x32xf32> to vector<64x32xf32>
    %c21 = arith.constant 21 : index
    %c0_246 = arith.constant 0 : index
    %c0_247 = arith.constant 0 : index
    %351 = vector.load %arg4[%c21, %c0_246, %c0_247] : memref<25x32x64xf32, #tpu.memory_space<vmem>>, vector<1x32x64xf32>
    %352 = vector.shape_cast %351 : vector<1x32x64xf32> to vector<32x64xf32>
    %cst_248 = arith.constant dense<0.000000e+00> : vector<64x64xf32>
    %353 = tpu.matmul %350, %352, %cst_248 {dimension_numbers = #tpu.dot_dimension_numbers<[1], [0], [0], [1], [0, 0, 1, 1], [], []>} : vector<64x32xf32>, vector<32x64xf32>, vector<64x64xf32> -> vector<64x64xf32>
    %354 = arith.addf %348, %353 : vector<64x64xf32>
    %c4_249 = arith.constant 4 : index
    %c2_250 = arith.constant 2 : index
    %c0_251 = arith.constant 0 : index
    %355 = vector.load %arg11[%c4_249, %c2_250, %c0_251] : memref<12x12x32xf32, #tpu.memory_space<vmem>>, vector<8x8x32xf32>
    %356 = vector.shape_cast %355 : vector<8x8x32xf32> to vector<64x32xf32>
    %c22 = arith.constant 22 : index
    %c0_252 = arith.constant 0 : index
    %c0_253 = arith.constant 0 : index
    %357 = vector.load %arg4[%c22, %c0_252, %c0_253] : memref<25x32x64xf32, #tpu.memory_space<vmem>>, vector<1x32x64xf32>
    %358 = vector.shape_cast %357 : vector<1x32x64xf32> to vector<32x64xf32>
    %cst_254 = arith.constant dense<0.000000e+00> : vector<64x64xf32>
    %359 = tpu.matmul %356, %358, %cst_254 {dimension_numbers = #tpu.dot_dimension_numbers<[1], [0], [0], [1], [0, 0, 1, 1], [], []>} : vector<64x32xf32>, vector<32x64xf32>, vector<64x64xf32> -> vector<64x64xf32>
    %360 = arith.addf %354, %359 : vector<64x64xf32>
    %c4_255 = arith.constant 4 : index
    %c3_256 = arith.constant 3 : index
    %c0_257 = arith.constant 0 : index
    %361 = vector.load %arg11[%c4_255, %c3_256, %c0_257] : memref<12x12x32xf32, #tpu.memory_space<vmem>>, vector<8x8x32xf32>
    %362 = vector.shape_cast %361 : vector<8x8x32xf32> to vector<64x32xf32>
    %c23 = arith.constant 23 : index
    %c0_258 = arith.constant 0 : index
    %c0_259 = arith.constant 0 : index
    %363 = vector.load %arg4[%c23, %c0_258, %c0_259] : memref<25x32x64xf32, #tpu.memory_space<vmem>>, vector<1x32x64xf32>
    %364 = vector.shape_cast %363 : vector<1x32x64xf32> to vector<32x64xf32>
    %cst_260 = arith.constant dense<0.000000e+00> : vector<64x64xf32>
    %365 = tpu.matmul %362, %364, %cst_260 {dimension_numbers = #tpu.dot_dimension_numbers<[1], [0], [0], [1], [0, 0, 1, 1], [], []>} : vector<64x32xf32>, vector<32x64xf32>, vector<64x64xf32> -> vector<64x64xf32>
    %366 = arith.addf %360, %365 : vector<64x64xf32>
    %c4_261 = arith.constant 4 : index
    %c4_262 = arith.constant 4 : index
    %c0_263 = arith.constant 0 : index
    %367 = vector.load %arg11[%c4_261, %c4_262, %c0_263] : memref<12x12x32xf32, #tpu.memory_space<vmem>>, vector<8x8x32xf32>
    %368 = vector.shape_cast %367 : vector<8x8x32xf32> to vector<64x32xf32>
    %c24 = arith.constant 24 : index
    %c0_264 = arith.constant 0 : index
    %c0_265 = arith.constant 0 : index
    %369 = vector.load %arg4[%c24, %c0_264, %c0_265] : memref<25x32x64xf32, #tpu.memory_space<vmem>>, vector<1x32x64xf32>
    %370 = vector.shape_cast %369 : vector<1x32x64xf32> to vector<32x64xf32>
    %cst_266 = arith.constant dense<0.000000e+00> : vector<64x64xf32>
    %371 = tpu.matmul %368, %370, %cst_266 {dimension_numbers = #tpu.dot_dimension_numbers<[1], [0], [0], [1], [0, 0, 1, 1], [], []>} : vector<64x32xf32>, vector<32x64xf32>, vector<64x64xf32> -> vector<64x64xf32>
    %372 = arith.addf %366, %371 : vector<64x64xf32>
    %c0_267 = arith.constant 0 : index
    %c0_268 = arith.constant 0 : index
    %373 = vector.load %arg5[%c0_267, %c0_268] : memref<1x64xf32, #tpu.memory_space<vmem>>, vector<1x64xf32>
    %374 = vector.broadcast %373 : vector<1x64xf32> to vector<64x64xf32>
    %375 = arith.addf %372, %374 : vector<64x64xf32>
    %cst_269 = arith.constant 0.000000e+00 : f32
    %376 = vector.broadcast %cst_269 : f32 to vector<64x64xf32>
    %377 = arith.maximumf %375, %376 : vector<64x64xf32>
    %cst_270 = arith.constant 0.000000e+00 : f32
    %378 = vector.broadcast %cst_270 : f32 to vector<1x512xf32>
    %379 = vector.extract_strided_slice %377 {offsets = [0, 0], sizes = [8, 64], strides = [1, 1]} : vector<64x64xf32> to vector<8x64xf32>
    %380 = vector.extract_strided_slice %377 {offsets = [8, 0], sizes = [8, 64], strides = [1, 1]} : vector<64x64xf32> to vector<8x64xf32>
    %381 = arith.maximumf %379, %380 : vector<8x64xf32>
    %cst_271 = arith.constant dense<0.000000e+00> : vector<4x64xf32>
    %382 = tpu.matmul %20, %381, %cst_271 {dimension_numbers = #tpu.dot_dimension_numbers<[1], [0], [0], [1], [0, 0, 1, 1], [], []>} : vector<4x8xf32>, vector<8x64xf32>, vector<4x64xf32> -> vector<4x64xf32>
    %cst_272 = arith.constant dense<0.000000e+00> : vector<4x64xf32>
    %383 = tpu.matmul %27, %381, %cst_272 {dimension_numbers = #tpu.dot_dimension_numbers<[1], [0], [0], [1], [0, 0, 1, 1], [], []>} : vector<4x8xf32>, vector<8x64xf32>, vector<4x64xf32> -> vector<4x64xf32>
    %384 = arith.maximumf %382, %383 : vector<4x64xf32>
    %385 = vector.extract_strided_slice %384 {offsets = [0, 0], sizes = [1, 64], strides = [1, 1]} : vector<4x64xf32> to vector<1x64xf32>
    %c0_273 = arith.constant 0 : index
    %c0_274 = arith.constant 0 : index
    %c0_275 = arith.constant 0 : index
    %386 = vector.load %arg6[%c0_273, %c0_274, %c0_275] : memref<16x64x512xf32, #tpu.memory_space<vmem>>, vector<1x64x512xf32>
    %387 = vector.shape_cast %386 : vector<1x64x512xf32> to vector<64x512xf32>
    %cst_276 = arith.constant dense<0.000000e+00> : vector<1x512xf32>
    %388 = tpu.matmul %385, %387, %cst_276 {dimension_numbers = #tpu.dot_dimension_numbers<[1], [0], [0], [1], [0, 0, 1, 1], [], []>} : vector<1x64xf32>, vector<64x512xf32>, vector<1x512xf32> -> vector<1x512xf32>
    %389 = arith.addf %378, %388 : vector<1x512xf32>
    %390 = vector.extract_strided_slice %384 {offsets = [1, 0], sizes = [1, 64], strides = [1, 1]} : vector<4x64xf32> to vector<1x64xf32>
    %c1_277 = arith.constant 1 : index
    %c0_278 = arith.constant 0 : index
    %c0_279 = arith.constant 0 : index
    %391 = vector.load %arg6[%c1_277, %c0_278, %c0_279] : memref<16x64x512xf32, #tpu.memory_space<vmem>>, vector<1x64x512xf32>
    %392 = vector.shape_cast %391 : vector<1x64x512xf32> to vector<64x512xf32>
    %cst_280 = arith.constant dense<0.000000e+00> : vector<1x512xf32>
    %393 = tpu.matmul %390, %392, %cst_280 {dimension_numbers = #tpu.dot_dimension_numbers<[1], [0], [0], [1], [0, 0, 1, 1], [], []>} : vector<1x64xf32>, vector<64x512xf32>, vector<1x512xf32> -> vector<1x512xf32>
    %394 = arith.addf %389, %393 : vector<1x512xf32>
    %395 = vector.extract_strided_slice %384 {offsets = [2, 0], sizes = [1, 64], strides = [1, 1]} : vector<4x64xf32> to vector<1x64xf32>
    %c2_281 = arith.constant 2 : index
    %c0_282 = arith.constant 0 : index
    %c0_283 = arith.constant 0 : index
    %396 = vector.load %arg6[%c2_281, %c0_282, %c0_283] : memref<16x64x512xf32, #tpu.memory_space<vmem>>, vector<1x64x512xf32>
    %397 = vector.shape_cast %396 : vector<1x64x512xf32> to vector<64x512xf32>
    %cst_284 = arith.constant dense<0.000000e+00> : vector<1x512xf32>
    %398 = tpu.matmul %395, %397, %cst_284 {dimension_numbers = #tpu.dot_dimension_numbers<[1], [0], [0], [1], [0, 0, 1, 1], [], []>} : vector<1x64xf32>, vector<64x512xf32>, vector<1x512xf32> -> vector<1x512xf32>
    %399 = arith.addf %394, %398 : vector<1x512xf32>
    %400 = vector.extract_strided_slice %384 {offsets = [3, 0], sizes = [1, 64], strides = [1, 1]} : vector<4x64xf32> to vector<1x64xf32>
    %c3_285 = arith.constant 3 : index
    %c0_286 = arith.constant 0 : index
    %c0_287 = arith.constant 0 : index
    %401 = vector.load %arg6[%c3_285, %c0_286, %c0_287] : memref<16x64x512xf32, #tpu.memory_space<vmem>>, vector<1x64x512xf32>
    %402 = vector.shape_cast %401 : vector<1x64x512xf32> to vector<64x512xf32>
    %cst_288 = arith.constant dense<0.000000e+00> : vector<1x512xf32>
    %403 = tpu.matmul %400, %402, %cst_288 {dimension_numbers = #tpu.dot_dimension_numbers<[1], [0], [0], [1], [0, 0, 1, 1], [], []>} : vector<1x64xf32>, vector<64x512xf32>, vector<1x512xf32> -> vector<1x512xf32>
    %404 = arith.addf %399, %403 : vector<1x512xf32>
    %405 = vector.extract_strided_slice %377 {offsets = [16, 0], sizes = [8, 64], strides = [1, 1]} : vector<64x64xf32> to vector<8x64xf32>
    %406 = vector.extract_strided_slice %377 {offsets = [24, 0], sizes = [8, 64], strides = [1, 1]} : vector<64x64xf32> to vector<8x64xf32>
    %407 = arith.maximumf %405, %406 : vector<8x64xf32>
    %cst_289 = arith.constant dense<0.000000e+00> : vector<4x64xf32>
    %408 = tpu.matmul %20, %407, %cst_289 {dimension_numbers = #tpu.dot_dimension_numbers<[1], [0], [0], [1], [0, 0, 1, 1], [], []>} : vector<4x8xf32>, vector<8x64xf32>, vector<4x64xf32> -> vector<4x64xf32>
    %cst_290 = arith.constant dense<0.000000e+00> : vector<4x64xf32>
    %409 = tpu.matmul %27, %407, %cst_290 {dimension_numbers = #tpu.dot_dimension_numbers<[1], [0], [0], [1], [0, 0, 1, 1], [], []>} : vector<4x8xf32>, vector<8x64xf32>, vector<4x64xf32> -> vector<4x64xf32>
    %410 = arith.maximumf %408, %409 : vector<4x64xf32>
    %411 = vector.extract_strided_slice %410 {offsets = [0, 0], sizes = [1, 64], strides = [1, 1]} : vector<4x64xf32> to vector<1x64xf32>
    %c4_291 = arith.constant 4 : index
    %c0_292 = arith.constant 0 : index
    %c0_293 = arith.constant 0 : index
    %412 = vector.load %arg6[%c4_291, %c0_292, %c0_293] : memref<16x64x512xf32, #tpu.memory_space<vmem>>, vector<1x64x512xf32>
    %413 = vector.shape_cast %412 : vector<1x64x512xf32> to vector<64x512xf32>
    %cst_294 = arith.constant dense<0.000000e+00> : vector<1x512xf32>
    %414 = tpu.matmul %411, %413, %cst_294 {dimension_numbers = #tpu.dot_dimension_numbers<[1], [0], [0], [1], [0, 0, 1, 1], [], []>} : vector<1x64xf32>, vector<64x512xf32>, vector<1x512xf32> -> vector<1x512xf32>
    %415 = arith.addf %404, %414 : vector<1x512xf32>
    %416 = vector.extract_strided_slice %410 {offsets = [1, 0], sizes = [1, 64], strides = [1, 1]} : vector<4x64xf32> to vector<1x64xf32>
    %c5_295 = arith.constant 5 : index
    %c0_296 = arith.constant 0 : index
    %c0_297 = arith.constant 0 : index
    %417 = vector.load %arg6[%c5_295, %c0_296, %c0_297] : memref<16x64x512xf32, #tpu.memory_space<vmem>>, vector<1x64x512xf32>
    %418 = vector.shape_cast %417 : vector<1x64x512xf32> to vector<64x512xf32>
    %cst_298 = arith.constant dense<0.000000e+00> : vector<1x512xf32>
    %419 = tpu.matmul %416, %418, %cst_298 {dimension_numbers = #tpu.dot_dimension_numbers<[1], [0], [0], [1], [0, 0, 1, 1], [], []>} : vector<1x64xf32>, vector<64x512xf32>, vector<1x512xf32> -> vector<1x512xf32>
    %420 = arith.addf %415, %419 : vector<1x512xf32>
    %421 = vector.extract_strided_slice %410 {offsets = [2, 0], sizes = [1, 64], strides = [1, 1]} : vector<4x64xf32> to vector<1x64xf32>
    %c6_299 = arith.constant 6 : index
    %c0_300 = arith.constant 0 : index
    %c0_301 = arith.constant 0 : index
    %422 = vector.load %arg6[%c6_299, %c0_300, %c0_301] : memref<16x64x512xf32, #tpu.memory_space<vmem>>, vector<1x64x512xf32>
    %423 = vector.shape_cast %422 : vector<1x64x512xf32> to vector<64x512xf32>
    %cst_302 = arith.constant dense<0.000000e+00> : vector<1x512xf32>
    %424 = tpu.matmul %421, %423, %cst_302 {dimension_numbers = #tpu.dot_dimension_numbers<[1], [0], [0], [1], [0, 0, 1, 1], [], []>} : vector<1x64xf32>, vector<64x512xf32>, vector<1x512xf32> -> vector<1x512xf32>
    %425 = arith.addf %420, %424 : vector<1x512xf32>
    %426 = vector.extract_strided_slice %410 {offsets = [3, 0], sizes = [1, 64], strides = [1, 1]} : vector<4x64xf32> to vector<1x64xf32>
    %c7_303 = arith.constant 7 : index
    %c0_304 = arith.constant 0 : index
    %c0_305 = arith.constant 0 : index
    %427 = vector.load %arg6[%c7_303, %c0_304, %c0_305] : memref<16x64x512xf32, #tpu.memory_space<vmem>>, vector<1x64x512xf32>
    %428 = vector.shape_cast %427 : vector<1x64x512xf32> to vector<64x512xf32>
    %cst_306 = arith.constant dense<0.000000e+00> : vector<1x512xf32>
    %429 = tpu.matmul %426, %428, %cst_306 {dimension_numbers = #tpu.dot_dimension_numbers<[1], [0], [0], [1], [0, 0, 1, 1], [], []>} : vector<1x64xf32>, vector<64x512xf32>, vector<1x512xf32> -> vector<1x512xf32>
    %430 = arith.addf %425, %429 : vector<1x512xf32>
    %431 = vector.extract_strided_slice %377 {offsets = [32, 0], sizes = [8, 64], strides = [1, 1]} : vector<64x64xf32> to vector<8x64xf32>
    %432 = vector.extract_strided_slice %377 {offsets = [40, 0], sizes = [8, 64], strides = [1, 1]} : vector<64x64xf32> to vector<8x64xf32>
    %433 = arith.maximumf %431, %432 : vector<8x64xf32>
    %cst_307 = arith.constant dense<0.000000e+00> : vector<4x64xf32>
    %434 = tpu.matmul %20, %433, %cst_307 {dimension_numbers = #tpu.dot_dimension_numbers<[1], [0], [0], [1], [0, 0, 1, 1], [], []>} : vector<4x8xf32>, vector<8x64xf32>, vector<4x64xf32> -> vector<4x64xf32>
    %cst_308 = arith.constant dense<0.000000e+00> : vector<4x64xf32>
    %435 = tpu.matmul %27, %433, %cst_308 {dimension_numbers = #tpu.dot_dimension_numbers<[1], [0], [0], [1], [0, 0, 1, 1], [], []>} : vector<4x8xf32>, vector<8x64xf32>, vector<4x64xf32> -> vector<4x64xf32>
    %436 = arith.maximumf %434, %435 : vector<4x64xf32>
    %437 = vector.extract_strided_slice %436 {offsets = [0, 0], sizes = [1, 64], strides = [1, 1]} : vector<4x64xf32> to vector<1x64xf32>
    %c8_309 = arith.constant 8 : index
    %c0_310 = arith.constant 0 : index
    %c0_311 = arith.constant 0 : index
    %438 = vector.load %arg6[%c8_309, %c0_310, %c0_311] : memref<16x64x512xf32, #tpu.memory_space<vmem>>, vector<1x64x512xf32>
    %439 = vector.shape_cast %438 : vector<1x64x512xf32> to vector<64x512xf32>
    %cst_312 = arith.constant dense<0.000000e+00> : vector<1x512xf32>
    %440 = tpu.matmul %437, %439, %cst_312 {dimension_numbers = #tpu.dot_dimension_numbers<[1], [0], [0], [1], [0, 0, 1, 1], [], []>} : vector<1x64xf32>, vector<64x512xf32>, vector<1x512xf32> -> vector<1x512xf32>
    %441 = arith.addf %430, %440 : vector<1x512xf32>
    %442 = vector.extract_strided_slice %436 {offsets = [1, 0], sizes = [1, 64], strides = [1, 1]} : vector<4x64xf32> to vector<1x64xf32>
    %c9_313 = arith.constant 9 : index
    %c0_314 = arith.constant 0 : index
    %c0_315 = arith.constant 0 : index
    %443 = vector.load %arg6[%c9_313, %c0_314, %c0_315] : memref<16x64x512xf32, #tpu.memory_space<vmem>>, vector<1x64x512xf32>
    %444 = vector.shape_cast %443 : vector<1x64x512xf32> to vector<64x512xf32>
    %cst_316 = arith.constant dense<0.000000e+00> : vector<1x512xf32>
    %445 = tpu.matmul %442, %444, %cst_316 {dimension_numbers = #tpu.dot_dimension_numbers<[1], [0], [0], [1], [0, 0, 1, 1], [], []>} : vector<1x64xf32>, vector<64x512xf32>, vector<1x512xf32> -> vector<1x512xf32>
    %446 = arith.addf %441, %445 : vector<1x512xf32>
    %447 = vector.extract_strided_slice %436 {offsets = [2, 0], sizes = [1, 64], strides = [1, 1]} : vector<4x64xf32> to vector<1x64xf32>
    %c10_317 = arith.constant 10 : index
    %c0_318 = arith.constant 0 : index
    %c0_319 = arith.constant 0 : index
    %448 = vector.load %arg6[%c10_317, %c0_318, %c0_319] : memref<16x64x512xf32, #tpu.memory_space<vmem>>, vector<1x64x512xf32>
    %449 = vector.shape_cast %448 : vector<1x64x512xf32> to vector<64x512xf32>
    %cst_320 = arith.constant dense<0.000000e+00> : vector<1x512xf32>
    %450 = tpu.matmul %447, %449, %cst_320 {dimension_numbers = #tpu.dot_dimension_numbers<[1], [0], [0], [1], [0, 0, 1, 1], [], []>} : vector<1x64xf32>, vector<64x512xf32>, vector<1x512xf32> -> vector<1x512xf32>
    %451 = arith.addf %446, %450 : vector<1x512xf32>
    %452 = vector.extract_strided_slice %436 {offsets = [3, 0], sizes = [1, 64], strides = [1, 1]} : vector<4x64xf32> to vector<1x64xf32>
    %c11_321 = arith.constant 11 : index
    %c0_322 = arith.constant 0 : index
    %c0_323 = arith.constant 0 : index
    %453 = vector.load %arg6[%c11_321, %c0_322, %c0_323] : memref<16x64x512xf32, #tpu.memory_space<vmem>>, vector<1x64x512xf32>
    %454 = vector.shape_cast %453 : vector<1x64x512xf32> to vector<64x512xf32>
    %cst_324 = arith.constant dense<0.000000e+00> : vector<1x512xf32>
    %455 = tpu.matmul %452, %454, %cst_324 {dimension_numbers = #tpu.dot_dimension_numbers<[1], [0], [0], [1], [0, 0, 1, 1], [], []>} : vector<1x64xf32>, vector<64x512xf32>, vector<1x512xf32> -> vector<1x512xf32>
    %456 = arith.addf %451, %455 : vector<1x512xf32>
    %457 = vector.extract_strided_slice %377 {offsets = [48, 0], sizes = [8, 64], strides = [1, 1]} : vector<64x64xf32> to vector<8x64xf32>
    %458 = vector.extract_strided_slice %377 {offsets = [56, 0], sizes = [8, 64], strides = [1, 1]} : vector<64x64xf32> to vector<8x64xf32>
    %459 = arith.maximumf %457, %458 : vector<8x64xf32>
    %cst_325 = arith.constant dense<0.000000e+00> : vector<4x64xf32>
    %460 = tpu.matmul %20, %459, %cst_325 {dimension_numbers = #tpu.dot_dimension_numbers<[1], [0], [0], [1], [0, 0, 1, 1], [], []>} : vector<4x8xf32>, vector<8x64xf32>, vector<4x64xf32> -> vector<4x64xf32>
    %cst_326 = arith.constant dense<0.000000e+00> : vector<4x64xf32>
    %461 = tpu.matmul %27, %459, %cst_326 {dimension_numbers = #tpu.dot_dimension_numbers<[1], [0], [0], [1], [0, 0, 1, 1], [], []>} : vector<4x8xf32>, vector<8x64xf32>, vector<4x64xf32> -> vector<4x64xf32>
    %462 = arith.maximumf %460, %461 : vector<4x64xf32>
    %463 = vector.extract_strided_slice %462 {offsets = [0, 0], sizes = [1, 64], strides = [1, 1]} : vector<4x64xf32> to vector<1x64xf32>
    %c12_327 = arith.constant 12 : index
    %c0_328 = arith.constant 0 : index
    %c0_329 = arith.constant 0 : index
    %464 = vector.load %arg6[%c12_327, %c0_328, %c0_329] : memref<16x64x512xf32, #tpu.memory_space<vmem>>, vector<1x64x512xf32>
    %465 = vector.shape_cast %464 : vector<1x64x512xf32> to vector<64x512xf32>
    %cst_330 = arith.constant dense<0.000000e+00> : vector<1x512xf32>
    %466 = tpu.matmul %463, %465, %cst_330 {dimension_numbers = #tpu.dot_dimension_numbers<[1], [0], [0], [1], [0, 0, 1, 1], [], []>} : vector<1x64xf32>, vector<64x512xf32>, vector<1x512xf32> -> vector<1x512xf32>
    %467 = arith.addf %456, %466 : vector<1x512xf32>
    %468 = vector.extract_strided_slice %462 {offsets = [1, 0], sizes = [1, 64], strides = [1, 1]} : vector<4x64xf32> to vector<1x64xf32>
    %c13_331 = arith.constant 13 : index
    %c0_332 = arith.constant 0 : index
    %c0_333 = arith.constant 0 : index
    %469 = vector.load %arg6[%c13_331, %c0_332, %c0_333] : memref<16x64x512xf32, #tpu.memory_space<vmem>>, vector<1x64x512xf32>
    %470 = vector.shape_cast %469 : vector<1x64x512xf32> to vector<64x512xf32>
    %cst_334 = arith.constant dense<0.000000e+00> : vector<1x512xf32>
    %471 = tpu.matmul %468, %470, %cst_334 {dimension_numbers = #tpu.dot_dimension_numbers<[1], [0], [0], [1], [0, 0, 1, 1], [], []>} : vector<1x64xf32>, vector<64x512xf32>, vector<1x512xf32> -> vector<1x512xf32>
    %472 = arith.addf %467, %471 : vector<1x512xf32>
    %473 = vector.extract_strided_slice %462 {offsets = [2, 0], sizes = [1, 64], strides = [1, 1]} : vector<4x64xf32> to vector<1x64xf32>
    %c14_335 = arith.constant 14 : index
    %c0_336 = arith.constant 0 : index
    %c0_337 = arith.constant 0 : index
    %474 = vector.load %arg6[%c14_335, %c0_336, %c0_337] : memref<16x64x512xf32, #tpu.memory_space<vmem>>, vector<1x64x512xf32>
    %475 = vector.shape_cast %474 : vector<1x64x512xf32> to vector<64x512xf32>
    %cst_338 = arith.constant dense<0.000000e+00> : vector<1x512xf32>
    %476 = tpu.matmul %473, %475, %cst_338 {dimension_numbers = #tpu.dot_dimension_numbers<[1], [0], [0], [1], [0, 0, 1, 1], [], []>} : vector<1x64xf32>, vector<64x512xf32>, vector<1x512xf32> -> vector<1x512xf32>
    %477 = arith.addf %472, %476 : vector<1x512xf32>
    %478 = vector.extract_strided_slice %462 {offsets = [3, 0], sizes = [1, 64], strides = [1, 1]} : vector<4x64xf32> to vector<1x64xf32>
    %c15_339 = arith.constant 15 : index
    %c0_340 = arith.constant 0 : index
    %c0_341 = arith.constant 0 : index
    %479 = vector.load %arg6[%c15_339, %c0_340, %c0_341] : memref<16x64x512xf32, #tpu.memory_space<vmem>>, vector<1x64x512xf32>
    %480 = vector.shape_cast %479 : vector<1x64x512xf32> to vector<64x512xf32>
    %cst_342 = arith.constant dense<0.000000e+00> : vector<1x512xf32>
    %481 = tpu.matmul %478, %480, %cst_342 {dimension_numbers = #tpu.dot_dimension_numbers<[1], [0], [0], [1], [0, 0, 1, 1], [], []>} : vector<1x64xf32>, vector<64x512xf32>, vector<1x512xf32> -> vector<1x512xf32>
    %482 = arith.addf %477, %481 : vector<1x512xf32>
    %c0_343 = arith.constant 0 : index
    %c0_344 = arith.constant 0 : index
    %483 = vector.load %arg7[%c0_343, %c0_344] : memref<1x512xf32, #tpu.memory_space<vmem>>, vector<1x512xf32>
    %484 = arith.addf %482, %483 : vector<1x512xf32>
    %cst_345 = arith.constant 0.000000e+00 : f32
    %485 = vector.broadcast %cst_345 : f32 to vector<1x512xf32>
    %486 = arith.maximumf %484, %485 : vector<1x512xf32>
    %c0_346 = arith.constant 0 : index
    %c0_347 = arith.constant 0 : index
    %487 = vector.load %arg8[%c0_346, %c0_347] : memref<512x128xf32, #tpu.memory_space<vmem>>, vector<512x128xf32>
    %cst_348 = arith.constant dense<0.000000e+00> : vector<1x128xf32>
    %488 = tpu.matmul %486, %487, %cst_348 {dimension_numbers = #tpu.dot_dimension_numbers<[1], [0], [0], [1], [0, 0, 1, 1], [], []>} : vector<1x512xf32>, vector<512x128xf32>, vector<1x128xf32> -> vector<1x128xf32>
    %c0_349 = arith.constant 0 : index
    %c0_350 = arith.constant 0 : index
    %489 = vector.load %arg9[%c0_349, %c0_350] : memref<1x128xf32, #tpu.memory_space<vmem>>, vector<1x128xf32>
    %490 = arith.addf %488, %489 : vector<1x128xf32>
    %cst_351 = arith.constant dense<0xFF800000> : vector<1xf32>
    %491 = vector.multi_reduction <maximumf>, %490, %cst_351 [1] : vector<1x128xf32> to vector<1xf32>
    %492 = vector.shape_cast %491 : vector<1xf32> to vector<1x1xf32>
    %493 = vector.broadcast %492 : vector<1x1xf32> to vector<1x128xf32>
    %494 = arith.subf %490, %493 : vector<1x128xf32>
    %495 = math.exp %494 : vector<1x128xf32>
    %cst_352 = arith.constant dense<0.000000e+00> : vector<1xf32>
    %496 = vector.multi_reduction <add>, %495, %cst_352 [1] : vector<1x128xf32> to vector<1xf32>
    %497 = vector.shape_cast %496 : vector<1xf32> to vector<1x1xf32>
    %498 = math.log %497 : vector<1x1xf32>
    %499 = arith.addf %492, %498 : vector<1x1xf32>
    %500 = vector.broadcast %499 : vector<1x1xf32> to vector<1x128xf32>
    %501 = arith.subf %490, %500 : vector<1x128xf32>
    %c0_353 = arith.constant 0 : index
    %c0_354 = arith.constant 0 : index
    %c0_355 = arith.constant 0 : index
    %502 = vector.load %arg10[%c0_353, %c0_354, %c0_355] : memref<1x1x128xf32, #tpu.memory_space<vmem>>, vector<1x1x128xf32>
    %503 = vector.shape_cast %502 : vector<1x1x128xf32> to vector<1x128xf32>
    %504 = vector.shape_cast %501 : vector<1x128xf32> to vector<1x1x128xf32>
    tpu.vector_store %arg10[%c0_353, %c0_354, %c0_355], %504 {strides = array<i32>} : memref<1x1x128xf32, #tpu.memory_space<vmem>>, vector<1x1x128xf32>,
    return
  }
  func.func @transform_0(%arg0: i32) -> (i32, i32, i32) {
    %c0_i32 = arith.constant 0 : i32
    %c0_i32_0 = arith.constant 0 : i32
    %c0_i32_1 = arith.constant 0 : i32
    return %arg0, %c0_i32, %c0_i32_0 : i32, i32, i32
  }
  func.func @transform_1(%arg0: i32) -> (i32, i32) {
    %c0_i32 = arith.constant 0 : i32
    %c0_i32_0 = arith.constant 0 : i32
    %c0_i32_1 = arith.constant 0 : i32
    return %c0_i32, %c0_i32_0 : i32, i32
  }
  func.func @transform_2(%arg0: i32) -> (i32, i32) {
    %c0_i32 = arith.constant 0 : i32
    %c0_i32_0 = arith.constant 0 : i32
    %c0_i32_1 = arith.constant 0 : i32
    return %c0_i32, %c0_i32_0 : i32, i32
  }
  func.func @transform_3(%arg0: i32) -> (i32, i32, i32) {
    %c0_i32 = arith.constant 0 : i32
    %c0_i32_0 = arith.constant 0 : i32
    %c0_i32_1 = arith.constant 0 : i32
    %c0_i32_2 = arith.constant 0 : i32
    return %c0_i32, %c0_i32_0, %c0_i32_1 : i32, i32, i32
  }
  func.func @transform_4(%arg0: i32) -> (i32, i32) {
    %c0_i32 = arith.constant 0 : i32
    %c0_i32_0 = arith.constant 0 : i32
    %c0_i32_1 = arith.constant 0 : i32
    return %c0_i32, %c0_i32_0 : i32, i32
  }
  func.func @transform_5(%arg0: i32) -> (i32, i32, i32) {
    %c0_i32 = arith.constant 0 : i32
    %c0_i32_0 = arith.constant 0 : i32
    %c0_i32_1 = arith.constant 0 : i32
    %c0_i32_2 = arith.constant 0 : i32
    return %c0_i32, %c0_i32_0, %c0_i32_1 : i32, i32, i32
  }
  func.func @transform_6(%arg0: i32) -> (i32, i32) {
    %c0_i32 = arith.constant 0 : i32
    %c0_i32_0 = arith.constant 0 : i32
    %c0_i32_1 = arith.constant 0 : i32
    return %c0_i32, %c0_i32_0 : i32, i32
  }
  func.func @transform_7(%arg0: i32) -> (i32, i32) {
    %c0_i32 = arith.constant 0 : i32
    %c0_i32_0 = arith.constant 0 : i32
    %c0_i32_1 = arith.constant 0 : i32
    return %c0_i32, %c0_i32_0 : i32, i32
  }
  func.func @transform_8(%arg0: i32) -> (i32, i32) {
    %c0_i32 = arith.constant 0 : i32
    %c0_i32_0 = arith.constant 0 : i32
    %c0_i32_1 = arith.constant 0 : i32
    return %c0_i32, %c0_i32_0 : i32, i32
  }
  func.func @transform_9(%arg0: i32) -> (i32, i32, i32) {
    %c0_i32 = arith.constant 0 : i32
    %c0_i32_0 = arith.constant 0 : i32
    %c0_i32_1 = arith.constant 0 : i32
    return %arg0, %c0_i32, %c0_i32_0 : i32, i32, i32
  }
}

</mosaic_0001>

<llo_original>
// kernel: lenet_forward.1
$region0: #{lenet_forward.1}
  #allocation0 [shape = 'u32[]', space=smem, size = 0x4, offset = 0x4, fixed_abs, tag = 'smem constant byte address 0x4 - core index']
  #allocation1 [shape = 'u32[72,128]{1,0:T(1,128)}', space=vmem, size = 0x9000, scoped, tag = 'internal scratch']
  #allocation2 [shape = 'f32[12,12,32]{2,1,0:T(8,128)}', space=vmem, size = 0x18000, scoped, tag = 'scratch operand']
  %s0 = inlined_call_operand.vmem [shape: f32[2,576,25], index: 0, kind: input, shape index: {}]
  %s1 = inlined_call_operand.vmem [shape: f32[25,32], index: 1, kind: input, shape index: {}]
  %s2 = inlined_call_operand.vmem [shape: f32[1,32], index: 2, kind: input, shape index: {}]
  %s3 = inlined_call_operand.vmem [shape: f32[25,32,64], index: 3, kind: input, shape index: {}]
  %s4 = inlined_call_operand.vmem [shape: f32[1,64], index: 4, kind: input, shape index: {}]
  %s5 = inlined_call_operand.vmem [shape: f32[16,64,512], index: 5, kind: input, shape index: {}]
  %s6 = inlined_call_operand.vmem [shape: f32[1,512], index: 6, kind: input, shape index: {}]
  %s7 = inlined_call_operand.vmem [shape: f32[512,128], index: 7, kind: input, shape index: {}]
  %s8 = inlined_call_operand.vmem [shape: f32[1,128], index: 8, kind: input, shape index: {}]
  %s9 = inlined_call_operand.hbm [shape: f32[2,1,128], index: 9, kind: output, shape index: {}]
  %s10 = sld [smem:[#allocation0]]
  $region69: #{lenet_forward.1} parent=0
    _
  %s12 = ssub.s32 1, %s10
  %s13 = scalar_select 0, %s12, %s10
  $region1: #{lenet_forward.1} parent=0
    #allocation3 [shape = 'u8[1024]{0}', space=vmem, size = 0x400, scoped, tag = 'output window, operand 0']
    #allocation4 [shape = 's32[2]{0}', space=sflag, size = 0x8, scoped, tag = 'scoped memory for lenet_forward.1']
    %14 = vsyncpa [#allocation4], 0
    %s15 = scalar_lea.sflag [#allocation4], 1
    %16 = vsyncpa %s15, 0
    loop: start=0, step=1, limit=4
    $region2: #{lenet_forward.1} parent=1 // loop_pre_header
      _
    $region3: #{lenet_forward.1} parent=1 // loop_header
      %s18 = sphi 0, %s22
      %p19 = scmp.ge.s32.totalorder %s18, 4
      %s28 = sphi 0, %s30
      %s31 = sphi 0, %s28
      %s32 = sphi 0, %s31
      %s48 = sphi 0, %s32
      %s52 = sphi 0, %s52
      %s54 = sphi 0, %s52
      %s55 = sphi 0, %s54
      %s69 = sphi 0, %s55
      %s73 = sphi 0, %s73
      %s75 = sphi 0, %s73
      %s76 = sphi 0, %s75
      %s90 = sphi 0, %s76
      %s94 = sphi 0, %s94
      %s96 = sphi 0, %s94
      %s97 = sphi 0, %s96
      %s111 = sphi 0, %s97
      %s115 = sphi 0, %s115
      %s117 = sphi 0, %s115
      %s118 = sphi 0, %s117
      %s132 = sphi 0, %s118
      %s136 = sphi 0, %s136
      %s138 = sphi 0, %s136
      %s139 = sphi 0, %s138
      %s153 = sphi 0, %s139
      %s157 = sphi 0, %s157
      %s159 = sphi 0, %s157
      %s160 = sphi 0, %s159
      %s174 = sphi 0, %s160
      %s178 = sphi 0, %s178
      %s180 = sphi 0, %s178
      %s181 = sphi 0, %s180
      %s195 = sphi 0, %s181
      %s199 = sphi 0, %s199
      %s201 = sphi 0, %s199
      %s202 = sphi 0, %s201
      %s216 = sphi 0, %s202
      %s222 = sphi 0, %s224
      %s225 = sphi 0, %s222
      %s226 = sphi 0, %s225
      %s242 = sphi 0, %s226
    $region4: #{lenet_forward.1} parent=1 // loop_header_branch
      %21 = sbr.rel (%p19) target = $region8
    $region5: #{lenet_forward.1} parent=1 // loop_body
      %s23 = ssub.s32 %s18, 1
      %s24 = ssub.s32 %s18, 2
      %s25 = sadd.s32 %s18, 1
      %s26 = ssub.s32 %s18, %s25
      %p27 = scmp.eq.s32.totalorder %s26, 0
      %s29 = sadd.s32 %s28, 1
      %s30 = scalar_select %p27, %s28, %s29
      %p33 = pneg %p27
      %p34 = scmp.eq.s32.totalorder %s18, 1
      %p35 = por %p33, %p34
      %p36 = scmp.ne.s32.totalorder %s28, %s31
      %p37 = scmp.eq.s32.totalorder %s18, 0
      %p38 = por %p36, %p37
      %p39 = scmp.ne.s32.totalorder %s28, %s31
      %p40 = scmp.eq.s32.totalorder %s23, 1
      %p41 = por %p39, %p40
      %p42 = scmp.ne.s32.totalorder %s31, %s32
      %p43 = scmp.eq.s32.totalorder %s23, 0
      %p44 = por %p42, %p43
      %p45 = scmp.ne.s32.totalorder %s31, %s32
      %p46 = scmp.eq.s32.totalorder %s24, 1
      %p47 = por %p45, %p46
      %p49 = scmp.ne.s32.totalorder %s32, %s48
      %p50 = scmp.eq.s32.totalorder %s24, 0
      %p51 = por %p49, %p50
      %s53 = sadd.s32 %s52, 1
      %p56 = scmp.eq.s32.totalorder %s18, 1
      %p57 = scmp.ne.s32.totalorder %s52, %s54
      %p58 = scmp.eq.s32.totalorder %s18, 0
      %p59 = por %p57, %p58
      %p60 = scmp.ne.s32.totalorder %s52, %s54
      %p61 = scmp.eq.s32.totalorder %s23, 1
      %p62 = por %p60, %p61
      %p63 = scmp.ne.s32.totalorder %s54, %s55
      %p64 = scmp.eq.s32.totalorder %s23, 0
      %p65 = por %p63, %p64
      %p66 = scmp.ne.s32.totalorder %s54, %s55
      %p67 = scmp.eq.s32.totalorder %s24, 1
      %p68 = por %p66, %p67
      %p70 = scmp.ne.s32.totalorder %s55, %s69
      %p71 = scmp.eq.s32.totalorder %s24, 0
      %p72 = por %p70, %p71
      %s74 = sadd.s32 %s73, 1
      %p77 = scmp.eq.s32.totalorder %s18, 1
      %p78 = scmp.ne.s32.totalorder %s73, %s75
      %p79 = scmp.eq.s32.totalorder %s18, 0
      %p80 = por %p78, %p79
      %p81 = scmp.ne.s32.totalorder %s73, %s75
      %p82 = scmp.eq.s32.totalorder %s23, 1
      %p83 = por %p81, %p82
      %p84 = scmp.ne.s32.totalorder %s75, %s76
      %p85 = scmp.eq.s32.totalorder %s23, 0
      %p86 = por %p84, %p85
      %p87 = scmp.ne.s32.totalorder %s75, %s76
      %p88 = scmp.eq.s32.totalorder %s24, 1
      %p89 = por %p87, %p88
      %p91 = scmp.ne.s32.totalorder %s76, %s90
      %p92 = scmp.eq.s32.totalorder %s24, 0
      %p93 = por %p91, %p92
      %s95 = sadd.s32 %s94, 1
      %p98 = scmp.eq.s32.totalorder %s18, 1
      %p99 = scmp.ne.s32.totalorder %s94, %s96
      %p100 = scmp.eq.s32.totalorder %s18, 0
      %p101 = por %p99, %p100
      %p102 = scmp.ne.s32.totalorder %s94, %s96
      %p103 = scmp.eq.s32.totalorder %s23, 1
      %p104 = por %p102, %p103
      %p105 = scmp.ne.s32.totalorder %s96, %s97
      %p106 = scmp.eq.s32.totalorder %s23, 0
      %p107 = por %p105, %p106
      %p108 = scmp.ne.s32.totalorder %s96, %s97
      %p109 = scmp.eq.s32.totalorder %s24, 1
      %p110 = por %p108, %p109
      %p112 = scmp.ne.s32.totalorder %s97, %s111
      %p113 = scmp.eq.s32.totalorder %s24, 0
      %p114 = por %p112, %p113
      %s116 = sadd.s32 %s115, 1
      %p119 = scmp.eq.s32.totalorder %s18, 1
      %p120 = scmp.ne.s32.totalorder %s115, %s117
      %p121 = scmp.eq.s32.totalorder %s18, 0
      %p122 = por %p120, %p121
      %p123 = scmp.ne.s32.totalorder %s115, %s117
      %p124 = scmp.eq.s32.totalorder %s23, 1
      %p125 = por %p123, %p124
      %p126 = scmp.ne.s32.totalorder %s117, %s118
      %p127 = scmp.eq.s32.totalorder %s23, 0
      %p128 = por %p126, %p127
      %p129 = scmp.ne.s32.totalorder %s117, %s118
      %p130 = scmp.eq.s32.totalorder %s24, 1
      %p131 = por %p129, %p130
      %p133 = scmp.ne.s32.totalorder %s118, %s132
      %p134 = scmp.eq.s32.totalorder %s24, 0
      %p135 = por %p133, %p134
      %s137 = sadd.s32 %s136, 1
      %p140 = scmp.eq.s32.totalorder %s18, 1
      %p141 = scmp.ne.s32.totalorder %s136, %s138
      %p142 = scmp.eq.s32.totalorder %s18, 0
      %p143 = por %p141, %p142
      %p144 = scmp.ne.s32.totalorder %s136, %s138
      %p145 = scmp.eq.s32.totalorder %s23, 1
      %p146 = por %p144, %p145
      %p147 = scmp.ne.s32.totalorder %s138, %s139
      %p148 = scmp.eq.s32.totalorder %s23, 0
      %p149 = por %p147, %p148
      %p150 = scmp.ne.s32.totalorder %s138, %s139
      %p151 = scmp.eq.s32.totalorder %s24, 1
      %p152 = por %p150, %p151
      %p154 = scmp.ne.s32.totalorder %s139, %s153
      %p155 = scmp.eq.s32.totalorder %s24, 0
      %p156 = por %p154, %p155
      %s158 = sadd.s32 %s157, 1
      %p161 = scmp.eq.s32.totalorder %s18, 1
      %p162 = scmp.ne.s32.totalorder %s157, %s159
      %p163 = scmp.eq.s32.totalorder %s18, 0
      %p164 = por %p162, %p163
      %p165 = scmp.ne.s32.totalorder %s157, %s159
      %p166 = scmp.eq.s32.totalorder %s23, 1
      %p167 = por %p165, %p166
      %p168 = scmp.ne.s32.totalorder %s159, %s160
      %p169 = scmp.eq.s32.totalorder %s23, 0
      %p170 = por %p168, %p169
      %p171 = scmp.ne.s32.totalorder %s159, %s160
      %p172 = scmp.eq.s32.totalorder %s24, 1
      %p173 = por %p171, %p172
      %p175 = scmp.ne.s32.totalorder %s160, %s174
      %p176 = scmp.eq.s32.totalorder %s24, 0
      %p177 = por %p175, %p176
      %s179 = sadd.s32 %s178, 1
      %p182 = scmp.eq.s32.totalorder %s18, 1
      %p183 = scmp.ne.s32.totalorder %s178, %s180
      %p184 = scmp.eq.s32.totalorder %s18, 0
      %p185 = por %p183, %p184
      %p186 = scmp.ne.s32.totalorder %s178, %s180
      %p187 = scmp.eq.s32.totalorder %s23, 1
      %p188 = por %p186, %p187
      %p189 = scmp.ne.s32.totalorder %s180, %s181
      %p190 = scmp.eq.s32.totalorder %s23, 0
      %p191 = por %p189, %p190
      %p192 = scmp.ne.s32.totalorder %s180, %s181
      %p193 = scmp.eq.s32.totalorder %s24, 1
      %p194 = por %p192, %p193
      %p196 = scmp.ne.s32.totalorder %s181, %s195
      %p197 = scmp.eq.s32.totalorder %s24, 0
      %p198 = por %p196, %p197
      %s200 = sadd.s32 %s199, 1
      %p203 = scmp.eq.s32.totalorder %s18, 1
      %p204 = scmp.ne.s32.totalorder %s199, %s201
      %p205 = scmp.eq.s32.totalorder %s18, 0
      %p206 = por %p204, %p205
      %p207 = scmp.ne.s32.totalorder %s199, %s201
      %p208 = scmp.eq.s32.totalorder %s23, 1
      %p209 = por %p207, %p208
      %p210 = scmp.ne.s32.totalorder %s201, %s202
      %p211 = scmp.eq.s32.totalorder %s23, 0
      %p212 = por %p210, %p211
      %p213 = scmp.ne.s32.totalorder %s201, %s202
      %p214 = scmp.eq.s32.totalorder %s24, 1
      %p215 = por %p213, %p214
      %p217 = scmp.ne.s32.totalorder %s202, %s216
      %p218 = scmp.eq.s32.totalorder %s24, 0
      %p219 = por %p217, %p218
      %s220 = ssub.s32 %s18, %s25
      %p221 = scmp.eq.s32.totalorder %s220, 0
      %s223 = sadd.s32 %s222, 1
      %s224 = scalar_select %p221, %s222, %s223
      %p227 = pneg %p221
      %p228 = scmp.eq.s32.totalorder %s18, 1
      %p229 = por %p227, %p228
      %p230 = scmp.ne.s32.totalorder %s222, %s225
      %p231 = scmp.eq.s32.totalorder %s18, 0
      %p232 = por %p230, %p231
      %p233 = scmp.ne.s32.totalorder %s222, %s225
      %p234 = scmp.eq.s32.totalorder %s23, 1
      %p235 = por %p233, %p234
      %p236 = scmp.ne.s32.totalorder %s225, %s226
      %p237 = scmp.eq.s32.totalorder %s23, 0
      %p238 = por %p236, %p237
      %p239 = scmp.ne.s32.totalorder %s225, %s226
      %p240 = scmp.eq.s32.totalorder %s24, 1
      %p241 = por %p239, %p240
      %p243 = scmp.ne.s32.totalorder %s226, %s242
      %p244 = scmp.eq.s32.totalorder %s24, 0
      %p245 = por %p243, %p244
      %p246 = scmp.le.s32.totalorder 1, %s18
      %p247 = scmp.lt.s32.totalorder %s18, 3
      %p248 = pnand %p246, %p247
      %p249 = pneg %p248
      // Predicated region
      $region9: #{lenet_forward.1} parent=5 // pred_check
        _
      $region10: #{lenet_forward.1} parent=5 // pred_check_branch
        %251 = sbr.rel (%p248) target = $region12
      $region11: #{lenet_forward.1} parent=5 // pred_region
        %s252 = ssub.s32 %s18, 1
        // Predicated region
        $region13: #{lenet_forward.1} parent=11 // pred_check
          %p253 = pneg %p65
        $region14: #{lenet_forward.1} parent=11 // pred_check_branch
          %255 = sbr.rel (%p253) target = $region16
        $region15: #{lenet_forward.1} parent=11 // pred_region
          _
        $region16: #{lenet_forward.1} parent=11 // pred_fallthru
          _
        // Predicated region
        $region17: #{lenet_forward.1} parent=11 // pred_check
          %p256 = pneg %p86
        $region18: #{lenet_forward.1} parent=11 // pred_check_branch
          %258 = sbr.rel (%p256) target = $region20
        $region19: #{lenet_forward.1} parent=11 // pred_region
          _
        $region20: #{lenet_forward.1} parent=11 // pred_fallthru
          _
        // Predicated region
        $region21: #{lenet_forward.1} parent=11 // pred_check
          %p259 = pneg %p107
        $region22: #{lenet_forward.1} parent=11 // pred_check_branch
          %261 = sbr.rel (%p259) target = $region24
        $region23: #{lenet_forward.1} parent=11 // pred_region
          _
        $region24: #{lenet_forward.1} parent=11 // pred_fallthru
          _
        // Predicated region
        $region25: #{lenet_forward.1} parent=11 // pred_check
          %p262 = pneg %p128
        $region26: #{lenet_forward.1} parent=11 // pred_check_branch
          %264 = sbr.rel (%p262) target = $region28
        $region27: #{lenet_forward.1} parent=11 // pred_region
          _
        $region28: #{lenet_forward.1} parent=11 // pred_fallthru
          _
        // Predicated region
        $region29: #{lenet_forward.1} parent=11 // pred_check
          %p265 = pneg %p149
        $region30: #{lenet_forward.1} parent=11 // pred_check_branch
          %267 = sbr.rel (%p265) target = $region32
        $region31: #{lenet_forward.1} parent=11 // pred_region
          _
        $region32: #{lenet_forward.1} parent=11 // pred_fallthru
          _
        // Predicated region
        $region33: #{lenet_forward.1} parent=11 // pred_check
          %p268 = pneg %p170
        $region34: #{lenet_forward.1} parent=11 // pred_check_branch
          %270 = sbr.rel (%p268) target = $region36
        $region35: #{lenet_forward.1} parent=11 // pred_region
          _
        $region36: #{lenet_forward.1} parent=11 // pred_fallthru
          _
        // Predicated region
        $region37: #{lenet_forward.1} parent=11 // pred_check
          %p271 = pneg %p191
        $region38: #{lenet_forward.1} parent=11 // pred_check_branch
          %273 = sbr.rel (%p271) target = $region40
        $region39: #{lenet_forward.1} parent=11 // pred_region
          _
        $region40: #{lenet_forward.1} parent=11 // pred_fallthru
          _
        // Predicated region
        $region41: #{lenet_forward.1} parent=11 // pred_check
          %p274 = pneg %p212
        $region42: #{lenet_forward.1} parent=11 // pred_check_branch
          %276 = sbr.rel (%p274) target = $region44
        $region43: #{lenet_forward.1} parent=11 // pred_region
          _
        $region44: #{lenet_forward.1} parent=11 // pred_fallthru
          _
      $region12: #{lenet_forward.1} parent=5 // pred_fallthru
        _
      %p277 = scmp.lt.s32.totalorder %s18, 2
      // Predicated region
      $region45: #{lenet_forward.1} parent=5 // pred_check
        %p278 = pneg %p277
      $region46: #{lenet_forward.1} parent=5 // pred_check_branch
        %280 = sbr.rel (%p278) target = $region48
      $region47: #{lenet_forward.1} parent=5 // pred_region
        // Predicated region
        $region49: #{lenet_forward.1} parent=47 // pred_check
          %p281 = pneg %p38
        $region50: #{lenet_forward.1} parent=47 // pred_check_branch
          %283 = sbr.rel (%p281) target = $region52
        $region51: #{lenet_forward.1} parent=47 // pred_region
          %p284 = scmp.lt.s32.totalorder %s18, 1
          %s285 = scalar_select %p284, %s18, 1
          %s286 = smul.addr %s285, 72
          %s287 = smul.addr %s286, 8
          %s288 = scalar_lea.vmem %s0, %s287
        $region52: #{lenet_forward.1} parent=47 // pred_fallthru
          _
      $region48: #{lenet_forward.1} parent=5 // pred_fallthru
        _
      %p289 = scmp.le.s32.totalorder 1, %s18
      %p290 = scmp.lt.s32.totalorder %s18, 3
      %p291 = pnand %p289, %p290
      %p292 = pneg %p291
      // Predicated region
      $region53: #{lenet_forward.1} parent=5 // pred_check
        _
      $region54: #{lenet_forward.1} parent=5 // pred_check_branch
        %294 = sbr.rel (%p291) target = $region56
      $region55: #{lenet_forward.1} parent=5 // pred_region
        %s295 = ssub.s32 %s18, 1
        %p296 = scmp.lt.s32.totalorder %s23, 1
        %s297 = scalar_select %p296, %s23, 1
        %s298 = smul.addr %s297, 72
        %s299 = smul.addr %s298, 8
        %s300 = scalar_lea.vmem %s0, %s299
        %p301 = pneg %p44
        %p302 = pneg %p41
        %p303 = pneg %p65
        %p304 = pneg %p62
        %p305 = pneg %p86
        %p306 = pneg %p83
        %p307 = pneg %p107
        %p308 = pneg %p104
        %p309 = pneg %p128
        %p310 = pneg %p125
        %p311 = pneg %p149
        %p312 = pneg %p146
        %p313 = pneg %p170
        %p314 = pneg %p167
        %p315 = pneg %p191
        %p316 = pneg %p188
        %p317 = pneg %p212
        %p318 = pneg %p209
        %p319 = pneg %p238
        %p320 = pneg %p235
        %s321 = sand.u32 %s225, 1
        %s322 = scalar_lea.sflag [#allocation4], %s321
        %s323 = sand.u32 %s225, 1
        %s324 = scalar_lea.vmem [#allocation3], %s323
        %p325 = scmp.lt.s32.totalorder %s23, 1
        %s326 = scalar_select %p325, %s23, 1
        %s327 = smul.addr %s326, 72
        %s328 = smul.addr %s327, 8
        %s329 = scalar_lea.vmem %s0, %s328
        %v330 = vlaneseq
        %v331 = vshrl.u32 %v330, 7
        %v332 = vadd.s32 %v331, 8
        %v333 = vlaneseq
        %v334 = vand.u32 %v333, 127
        %v335 = vmul.u32 %v331, 2
        %v336 = vmul.u32 %v332, 2
        %vm337 = vcmp.eq.s32.totalorder %v334, %v335
        %vm338 = vcmp.eq.s32.totalorder %v334, %v336
        %v339 = vsel %vm337, 1, 0
        %v340 = vsel %vm338, 1, 0
        %v341 = vcvt.s32.f32 %v339
        %v342 = vcvt.s32.f32 %v340
        %v343 = vadd.s32 %v335, 1
        %v344 = vadd.s32 %v336, 1
        %vm345 = vcmp.eq.s32.totalorder %v334, %v343
        %vm346 = vcmp.eq.s32.totalorder %v334, %v344
        %v347 = vsel %vm345, 1, 0
        %v348 = vsel %vm346, 1, 0
        %v349 = vcvt.s32.f32 %v347
        %v350 = vcvt.s32.f32 %v348
        %v351 = vld [vmem:[%s1] sm:$0xff]
        %v352 = vld [vmem:[%s1 + $0x8] sm:$0xff]
        %v353 = vld [vmem:[%s1 + $0x10] sm:$0xff]
        %v354 = vld [vmem:[%s1 + $0x18] sm:$0x1]
        %v355 = vld [vmem:[%s2] sm:$0x1]
        %v356 = vld [vmem:[%s329] sm:$0xff]
        %v357 = vld [vmem:[%s329 + $0x8] sm:$0xff]
        %v358 = vld [vmem:[%s329 + $0x10] sm:$0xff]
        %v359 = vld [vmem:[%s329 + $0x18] sm:$0xff]
        %v360 = vld [vmem:[%s329 + $0x20] sm:$0xff]
        %v361 = vld [vmem:[%s329 + $0x28] sm:$0xff]
        %v363 = vperm.slane %v355, 0
        %vm365 = vcmask 203776
        %v367 = vsel %vm365, %v356, 0
        %v370 = vsel %vm365, %v357, 0
        %v373 = vsel %vm365, %v358, 0
        %v376 = vsel %vm365, %v359, 0
        %v379 = vsel %vm365, %v360, 0
        %v382 = vsel %vm365, %v361, 0
        %vm384 = vcmask 1040384
        %v386 = vsel %vm384, %v354, 0
        %388 = vmatpush.msra.mxu0 0.0
        %389 = vmatpush.msra.mxu0 0.0
        %390 = vmatpush.msra.mxu0 0.0
        %391 = vmatpush.msra.mxu0 0.0
        %392 = vmatpush.msra.mxu0 0.0
        %393 = vmatpush.msra.mxu0 0.0
        %394 = vmatpush.msra.mxu0 0.0
        %395 = vmatpush.msra.mxu0 0.0
        %396 = vmatpush.msra.mxu0 0.0
        %397 = vmatpush.msra.mxu0 0.0
        %398 = vmatpush.msra.mxu0 0.0
        %399 = vmatpush.msra.mxu0 0.0
        %400 = vmatpush.msra.mxu0 %v386
        %401 = vmatpush.msra.mxu0 %v353
        %402 = vmatpush.msra.mxu0 %v352
        %403 = vmatpush.msra.mxu0 %v351
        %404 = vmatmul.f32.gmra.mxu0 %v367
        %v405 = vpop.f32.mrf.mxu0
        %v406 = vadd.f32 %v363, %v405
        %407 = vmatmul.f32.gmra.mxu0 %v370
        %v408 = vpop.f32.mrf.mxu0
        %v409 = vadd.f32 %v363, %v408
        %410 = vmatmul.f32.gmra.mxu0 %v373
        %v411 = vpop.f32.mrf.mxu0
        %v412 = vadd.f32 %v363, %v411
        %413 = vmatmul.f32.gmra.mxu0 %v376
        %v414 = vpop.f32.mrf.mxu0
        %v415 = vadd.f32 %v363, %v414
        %416 = vmatmul.f32.gmra.mxu0 %v379
        %v417 = vpop.f32.mrf.mxu0
        %v418 = vadd.f32 %v363, %v417
        %419 = vmatmul.f32.gmra.mxu0 %v382
        %v420 = vpop.f32.mrf.mxu0
        %v421 = vadd.f32 %v363, %v420
        %422 = vdwg.mxu0
        %v423 = vmax.f32 %v406, 0.0
        %v424 = vmax.f32 %v409, 0.0
        %v425 = vmax.f32 %v412, 0.0
        %v426 = vmax.f32 %v415, 0.0
        %v427 = vmax.f32 %v418, 0.0
        %v428 = vmax.f32 %v421, 0.0
        %v429 = vmax.f32 %v423, %v426
        %v430 = vmax.f32 %v424, %v427
        %v431 = vmax.f32 %v425, %v428
        %vm432 = vcmask 195584
        %v434 = vsel %vm432, %v341, 0
        %v437 = vsel %vm432, %v342, 0
        %439 = vmatpush.msra.mxu0 0.0
        %440 = vmatpush.msra.mxu0 0.0
        %441 = vmatpush.msra.mxu0 0.0
        %442 = vmatpush.msra.mxu0 0.0
        %443 = vmatpush.msra.mxu0 0.0
        %444 = vmatpush.msra.mxu0 0.0
        %445 = vmatpush.msra.mxu0 0.0
        %446 = vmatpush.msra.mxu0 0.0
        %447 = vmatpush.msra.mxu0 0.0
        %448 = vmatpush.msra.mxu0 0.0
        %449 = vmatpush.msra.mxu0 0.0
        %450 = vmatpush.msra.mxu0 0.0
        %451 = vmatpush.msra.mxu0 0.0
        %452 = vmatpush.msra.mxu0 %v431
        %453 = vmatpush.msra.mxu0 %v430
        %454 = vmatpush.msra.mxu0 %v429
        %455 = vmatmul.f32.gmra.mxu0 %v434
        %v456 = vpop.f32.mrf.mxu0
        %v457 = vadd.f32 0.0, %v456
        %458 = vmatmul.f32.gmra.mxu0 %v437
        %v459 = vpop.f32.mrf.mxu0
        %v460 = vadd.f32 0.0, %v459
        %461 = vdwg.mxu0
        %v463 = vsel %vm432, %v349, 0
        %v466 = vsel %vm432, %v350, 0
        %468 = vmatpush.msra.mxu0 0.0
        %469 = vmatpush.msra.mxu0 0.0
        %470 = vmatpush.msra.mxu0 0.0
        %471 = vmatpush.msra.mxu0 0.0
        %472 = vmatpush.msra.mxu0 0.0
        %473 = vmatpush.msra.mxu0 0.0
        %474 = vmatpush.msra.mxu0 0.0
        %475 = vmatpush.msra.mxu0 0.0
        %476 = vmatpush.msra.mxu0 0.0
        %477 = vmatpush.msra.mxu0 0.0
        %478 = vmatpush.msra.mxu0 0.0
        %479 = vmatpush.msra.mxu0 0.0
        %480 = vmatpush.msra.mxu0 0.0
        %481 = vmatpush.msra.mxu0 %v431
        %482 = vmatpush.msra.mxu0 %v430
        %483 = vmatpush.msra.mxu0 %v429
        %484 = vmatmul.f32.gmra.mxu0 %v463
        %v485 = vpop.f32.mrf.mxu0
        %v486 = vadd.f32 0.0, %v485
        %487 = vmatmul.f32.gmra.mxu0 %v466
        %v488 = vpop.f32.mrf.mxu0
        %v489 = vadd.f32 0.0, %v488
        %490 = vdwg.mxu0
        %v491 = vmax.f32 %v457, %v486
        %v492 = vmax.f32 %v460, %v489
        %vm493 = vcmask 261120
        %494 = vst.msk [vmem:[#allocation2] sm:$0xff] %vm493, %v491
        %vm495 = vcmask 257024
        %496 = vst.msk [vmem:[#allocation2 + $0x8] sm:$0xf] %vm495, %v492
        %v497 = vld [vmem:[%s329 + $0x30] sm:$0xff]
        %v498 = vld [vmem:[%s329 + $0x38] sm:$0xff]
        %v499 = vld [vmem:[%s329 + $0x40] sm:$0xff]
        %v500 = vld [vmem:[%s329 + $0x48] sm:$0xff]
        %v501 = vld [vmem:[%s329 + $0x50] sm:$0xff]
        %v502 = vld [vmem:[%s329 + $0x58] sm:$0xff]
        %v504 = vsel %vm365, %v497, 0
        %v507 = vsel %vm365, %v498, 0
        %v510 = vsel %vm365, %v499, 0
        %v513 = vsel %vm365, %v500, 0
        %v516 = vsel %vm365, %v501, 0
        %v519 = vsel %vm365, %v502, 0
        %521 = vmatpush.msra.mxu0 0.0
        %522 = vmatpush.msra.mxu0 0.0
        %523 = vmatpush.msra.mxu0 0.0
        %524 = vmatpush.msra.mxu0 0.0
        %525 = vmatpush.msra.mxu0 0.0
        %526 = vmatpush.msra.mxu0 0.0
        %527 = vmatpush.msra.mxu0 0.0
        %528 = vmatpush.msra.mxu0 0.0
        %529 = vmatpush.msra.mxu0 0.0
        %530 = vmatpush.msra.mxu0 0.0
        %531 = vmatpush.msra.mxu0 0.0
        %532 = vmatpush.msra.mxu0 0.0
        %533 = vmatpush.msra.mxu0 %v386
        %534 = vmatpush.msra.mxu0 %v353
        %535 = vmatpush.msra.mxu0 %v352
        %536 = vmatpush.msra.mxu0 %v351
        %537 = vmatmul.f32.gmra.mxu0 %v504
        %v538 = vpop.f32.mrf.mxu0
        %v539 = vadd.f32 %v363, %v538
        %540 = vmatmul.f32.gmra.mxu0 %v507
        %v541 = vpop.f32.mrf.mxu0
        %v542 = vadd.f32 %v363, %v541
        %543 = vmatmul.f32.gmra.mxu0 %v510
        %v544 = vpop.f32.mrf.mxu0
        %v545 = vadd.f32 %v363, %v544
        %546 = vmatmul.f32.gmra.mxu0 %v513
        %v547 = vpop.f32.mrf.mxu0
        %v548 = vadd.f32 %v363, %v547
        %549 = vmatmul.f32.gmra.mxu0 %v516
        %v550 = vpop.f32.mrf.mxu0
        %v551 = vadd.f32 %v363, %v550
        %552 = vmatmul.f32.gmra.mxu0 %v519
        %v553 = vpop.f32.mrf.mxu0
        %v554 = vadd.f32 %v363, %v553
        %555 = vdwg.mxu0
        %v556 = vmax.f32 %v539, 0.0
        %v557 = vmax.f32 %v542, 0.0
        %v558 = vmax.f32 %v545, 0.0
        %v559 = vmax.f32 %v548, 0.0
        %v560 = vmax.f32 %v551, 0.0
        %v561 = vmax.f32 %v554, 0.0
        %v562 = vmax.f32 %v556, %v559
        %v563 = vmax.f32 %v557, %v560
        %v564 = vmax.f32 %v558, %v561
        %565 = vmatpush.msra.mxu0 0.0
        %566 = vmatpush.msra.mxu0 0.0
        %567 = vmatpush.msra.mxu0 0.0
        %568 = vmatpush.msra.mxu0 0.0
        %569 = vmatpush.msra.mxu0 0.0
        %570 = vmatpush.msra.mxu0 0.0
        %571 = vmatpush.msra.mxu0 0.0
        %572 = vmatpush.msra.mxu0 0.0
        %573 = vmatpush.msra.mxu0 0.0
        %574 = vmatpush.msra.mxu0 0.0
        %575 = vmatpush.msra.mxu0 0.0
        %576 = vmatpush.msra.mxu0 0.0
        %577 = vmatpush.msra.mxu0 0.0
        %578 = vmatpush.msra.mxu0 %v564
        %579 = vmatpush.msra.mxu0 %v563
        %580 = vmatpush.msra.mxu0 %v562
        %581 = vmatmul.f32.gmra.mxu0 %v434
        %v582 = vpop.f32.mrf.mxu0
        %v583 = vadd.f32 0.0, %v582
        %584 = vmatmul.f32.gmra.mxu0 %v437
        %v585 = vpop.f32.mrf.mxu0
        %v586 = vadd.f32 0.0, %v585
        %587 = vdwg.mxu0
        %588 = vmatpush.msra.mxu0 0.0
        %589 = vmatpush.msra.mxu0 0.0
        %590 = vmatpush.msra.mxu0 0.0
        %591 = vmatpush.msra.mxu0 0.0
        %592 = vmatpush.msra.mxu0 0.0
        %593 = vmatpush.msra.mxu0 0.0
        %594 = vmatpush.msra.mxu0 0.0
        %595 = vmatpush.msra.mxu0 0.0
        %596 = vmatpush.msra.mxu0 0.0
        %597 = vmatpush.msra.mxu0 0.0
        %598 = vmatpush.msra.mxu0 0.0
        %599 = vmatpush.msra.mxu0 0.0
        %600 = vmatpush.msra.mxu0 0.0
        %601 = vmatpush.msra.mxu0 %v564
        %602 = vmatpush.msra.mxu0 %v563
        %603 = vmatpush.msra.mxu0 %v562
        %604 = vmatmul.f32.gmra.mxu0 %v463
        %v605 = vpop.f32.mrf.mxu0
        %v606 = vadd.f32 0.0, %v605
        %607 = vmatmul.f32.gmra.mxu0 %v466
        %v608 = vpop.f32.mrf.mxu0
        %v609 = vadd.f32 0.0, %v608
        %610 = vdwg.mxu0
        %v611 = vmax.f32 %v583, %v606
        %v612 = vmax.f32 %v586, %v609
        %s613 = scalar_lea.vmem [#allocation2], 16
        %614 = vst.msk [vmem:[%s613] sm:$0xff] %vm493, %v611
        %615 = vst.msk [vmem:[%s613 + $0x8] sm:$0xf] %vm495, %v612
        %v616 = vld [vmem:[%s329 + $0x60] sm:$0xff]
        %v617 = vld [vmem:[%s329 + $0x68] sm:$0xff]
        %v618 = vld [vmem:[%s329 + $0x70] sm:$0xff]
        %v619 = vld [vmem:[%s329 + $0x78] sm:$0xff]
        %v620 = vld [vmem:[%s329 + $0x80] sm:$0xff]
        %v621 = vld [vmem:[%s329 + $0x88] sm:$0xff]
        %v623 = vsel %vm365, %v616, 0
        %v626 = vsel %vm365, %v617, 0
        %v629 = vsel %vm365, %v618, 0
        %v632 = vsel %vm365, %v619, 0
        %v635 = vsel %vm365, %v620, 0
        %v638 = vsel %vm365, %v621, 0
        %640 = vmatpush.msra.mxu0 0.0
        %641 = vmatpush.msra.mxu0 0.0
        %642 = vmatpush.msra.mxu0 0.0
        %643 = vmatpush.msra.mxu0 0.0
        %644 = vmatpush.msra.mxu0 0.0
        %645 = vmatpush.msra.mxu0 0.0
        %646 = vmatpush.msra.mxu0 0.0
        %647 = vmatpush.msra.mxu0 0.0
        %648 = vmatpush.msra.mxu0 0.0
        %649 = vmatpush.msra.mxu0 0.0
        %650 = vmatpush.msra.mxu0 0.0
        %651 = vmatpush.msra.mxu0 0.0
        %652 = vmatpush.msra.mxu0 %v386
        %653 = vmatpush.msra.mxu0 %v353
        %654 = vmatpush.msra.mxu0 %v352
        %655 = vmatpush.msra.mxu0 %v351
        %656 = vmatmul.f32.gmra.mxu0 %v623
        %v657 = vpop.f32.mrf.mxu0
        %v658 = vadd.f32 %v363, %v657
        %659 = vmatmul.f32.gmra.mxu0 %v626
        %v660 = vpop.f32.mrf.mxu0
        %v661 = vadd.f32 %v363, %v660
        %662 = vmatmul.f32.gmra.mxu0 %v629
        %v663 = vpop.f32.mrf.mxu0
        %v664 = vadd.f32 %v363, %v663
        %665 = vmatmul.f32.gmra.mxu0 %v632
        %v666 = vpop.f32.mrf.mxu0
        %v667 = vadd.f32 %v363, %v666
        %668 = vmatmul.f32.gmra.mxu0 %v635
        %v669 = vpop.f32.mrf.mxu0
        %v670 = vadd.f32 %v363, %v669
        %671 = vmatmul.f32.gmra.mxu0 %v638
        %v672 = vpop.f32.mrf.mxu0
        %v673 = vadd.f32 %v363, %v672
        %674 = vdwg.mxu0
        %v675 = vmax.f32 %v658, 0.0
        %v676 = vmax.f32 %v661, 0.0
        %v677 = vmax.f32 %v664, 0.0
        %v678 = vmax.f32 %v667, 0.0
        %v679 = vmax.f32 %v670, 0.0
        %v680 = vmax.f32 %v673, 0.0
        %v681 = vmax.f32 %v675, %v678
        %v682 = vmax.f32 %v676, %v679
        %v683 = vmax.f32 %v677, %v680
        %684 = vmatpush.msra.mxu0 0.0
        %685 = vmatpush.msra.mxu0 0.0
        %686 = vmatpush.msra.mxu0 0.0
        %687 = vmatpush.msra.mxu0 0.0
        %688 = vmatpush.msra.mxu0 0.0
        %689 = vmatpush.msra.mxu0 0.0
        %690 = vmatpush.msra.mxu0 0.0
        %691 = vmatpush.msra.mxu0 0.0
        %692 = vmatpush.msra.mxu0 0.0
        %693 = vmatpush.msra.mxu0 0.0
        %694 = vmatpush.msra.mxu0 0.0
        %695 = vmatpush.msra.mxu0 0.0
        %696 = vmatpush.msra.mxu0 0.0
        %697 = vmatpush.msra.mxu0 %v683
        %698 = vmatpush.msra.mxu0 %v682
        %699 = vmatpush.msra.mxu0 %v681
        %700 = vmatmul.f32.gmra.mxu0 %v434
        %v701 = vpop.f32.mrf.mxu0
        %v702 = vadd.f32 0.0, %v701
        %703 = vmatmul.f32.gmra.mxu0 %v437
        %v704 = vpop.f32.mrf.mxu0
        %v705 = vadd.f32 0.0, %v704
        %706 = vdwg.mxu0
        %707 = vmatpush.msra.mxu0 0.0
        %708 = vmatpush.msra.mxu0 0.0
        %709 = vmatpush.msra.mxu0 0.0
        %710 = vmatpush.msra.mxu0 0.0
        %711 = vmatpush.msra.mxu0 0.0
        %712 = vmatpush.msra.mxu0 0.0
        %713 = vmatpush.msra.mxu0 0.0
        %714 = vmatpush.msra.mxu0 0.0
        %715 = vmatpush.msra.mxu0 0.0
        %716 = vmatpush.msra.mxu0 0.0
        %717 = vmatpush.msra.mxu0 0.0
        %718 = vmatpush.msra.mxu0 0.0
        %719 = vmatpush.msra.mxu0 0.0
        %720 = vmatpush.msra.mxu0 %v683
        %721 = vmatpush.msra.mxu0 %v682
        %722 = vmatpush.msra.mxu0 %v681
        %723 = vmatmul.f32.gmra.mxu0 %v463
        %v724 = vpop.f32.mrf.mxu0
        %v725 = vadd.f32 0.0, %v724
        %726 = vmatmul.f32.gmra.mxu0 %v466
        %v727 = vpop.f32.mrf.mxu0
        %v728 = vadd.f32 0.0, %v727
        %729 = vdwg.mxu0
        %v730 = vmax.f32 %v702, %v725
        %v731 = vmax.f32 %v705, %v728
        %s732 = scalar_lea.vmem [#allocation2], 32
        %733 = vst.msk [vmem:[%s732] sm:$0xff] %vm493, %v730
        %734 = vst.msk [vmem:[%s732 + $0x8] sm:$0xf] %vm495, %v731
        %v735 = vld [vmem:[%s329 + $0x90] sm:$0xff]
        %v736 = vld [vmem:[%s329 + $0x98] sm:$0xff]
        %v737 = vld [vmem:[%s329 + $0xa0] sm:$0xff]
        %v738 = vld [vmem:[%s329 + $0xa8] sm:$0xff]
        %v739 = vld [vmem:[%s329 + $0xb0] sm:$0xff]
        %v740 = vld [vmem:[%s329 + $0xb8] sm:$0xff]
        %v742 = vsel %vm365, %v735, 0
        %v745 = vsel %vm365, %v736, 0
        %v748 = vsel %vm365, %v737, 0
        %v751 = vsel %vm365, %v738, 0
        %v754 = vsel %vm365, %v739, 0
        %v757 = vsel %vm365, %v740, 0
        %759 = vmatpush.msra.mxu0 0.0
        %760 = vmatpush.msra.mxu0 0.0
        %761 = vmatpush.msra.mxu0 0.0
        %762 = vmatpush.msra.mxu0 0.0
        %763 = vmatpush.msra.mxu0 0.0
        %764 = vmatpush.msra.mxu0 0.0
        %765 = vmatpush.msra.mxu0 0.0
        %766 = vmatpush.msra.mxu0 0.0
        %767 = vmatpush.msra.mxu0 0.0
        %768 = vmatpush.msra.mxu0 0.0
        %769 = vmatpush.msra.mxu0 0.0
        %770 = vmatpush.msra.mxu0 0.0
        %771 = vmatpush.msra.mxu0 %v386
        %772 = vmatpush.msra.mxu0 %v353
        %773 = vmatpush.msra.mxu0 %v352
        %774 = vmatpush.msra.mxu0 %v351
        %775 = vmatmul.f32.gmra.mxu0 %v742
        %v776 = vpop.f32.mrf.mxu0
        %v777 = vadd.f32 %v363, %v776
        %778 = vmatmul.f32.gmra.mxu0 %v745
        %v779 = vpop.f32.mrf.mxu0
        %v780 = vadd.f32 %v363, %v779
        %781 = vmatmul.f32.gmra.mxu0 %v748
        %v782 = vpop.f32.mrf.mxu0
        %v783 = vadd.f32 %v363, %v782
        %784 = vmatmul.f32.gmra.mxu0 %v751
        %v785 = vpop.f32.mrf.mxu0
        %v786 = vadd.f32 %v363, %v785
        %787 = vmatmul.f32.gmra.mxu0 %v754
        %v788 = vpop.f32.mrf.mxu0
        %v789 = vadd.f32 %v363, %v788
        %790 = vmatmul.f32.gmra.mxu0 %v757
        %v791 = vpop.f32.mrf.mxu0
        %v792 = vadd.f32 %v363, %v791
        %793 = vdwg.mxu0
        %v794 = vmax.f32 %v777, 0.0
        %v795 = vmax.f32 %v780, 0.0
        %v796 = vmax.f32 %v783, 0.0
        %v797 = vmax.f32 %v786, 0.0
        %v798 = vmax.f32 %v789, 0.0
        %v799 = vmax.f32 %v792, 0.0
        %v800 = vmax.f32 %v794, %v797
        %v801 = vmax.f32 %v795, %v798
        %v802 = vmax.f32 %v796, %v799
        %803 = vmatpush.msra.mxu0 0.0
        %804 = vmatpush.msra.mxu0 0.0
        %805 = vmatpush.msra.mxu0 0.0
        %806 = vmatpush.msra.mxu0 0.0
        %807 = vmatpush.msra.mxu0 0.0
        %808 = vmatpush.msra.mxu0 0.0
        %809 = vmatpush.msra.mxu0 0.0
        %810 = vmatpush.msra.mxu0 0.0
        %811 = vmatpush.msra.mxu0 0.0
        %812 = vmatpush.msra.mxu0 0.0
        %813 = vmatpush.msra.mxu0 0.0
        %814 = vmatpush.msra.mxu0 0.0
        %815 = vmatpush.msra.mxu0 0.0
        %816 = vmatpush.msra.mxu0 %v802
        %817 = vmatpush.msra.mxu0 %v801
        %818 = vmatpush.msra.mxu0 %v800
        %819 = vmatmul.f32.gmra.mxu0 %v434
        %v820 = vpop.f32.mrf.mxu0
        %v821 = vadd.f32 0.0, %v820
        %822 = vmatmul.f32.gmra.mxu0 %v437
        %v823 = vpop.f32.mrf.mxu0
        %v824 = vadd.f32 0.0, %v823
        %825 = vdwg.mxu0
        %826 = vmatpush.msra.mxu0 0.0
        %827 = vmatpush.msra.mxu0 0.0
        %828 = vmatpush.msra.mxu0 0.0
        %829 = vmatpush.msra.mxu0 0.0
        %830 = vmatpush.msra.mxu0 0.0
        %831 = vmatpush.msra.mxu0 0.0
        %832 = vmatpush.msra.mxu0 0.0
        %833 = vmatpush.msra.mxu0 0.0
        %834 = vmatpush.msra.mxu0 0.0
        %835 = vmatpush.msra.mxu0 0.0
        %836 = vmatpush.msra.mxu0 0.0
        %837 = vmatpush.msra.mxu0 0.0
        %838 = vmatpush.msra.mxu0 0.0
        %839 = vmatpush.msra.mxu0 %v802
        %840 = vmatpush.msra.mxu0 %v801
        %841 = vmatpush.msra.mxu0 %v800
        %842 = vmatmul.f32.gmra.mxu0 %v463
        %v843 = vpop.f32.mrf.mxu0
        %v844 = vadd.f32 0.0, %v843
        %845 = vmatmul.f32.gmra.mxu0 %v466
        %v846 = vpop.f32.mrf.mxu0
        %v847 = vadd.f32 0.0, %v846
        %848 = vdwg.mxu0
        %v849 = vmax.f32 %v821, %v844
        %v850 = vmax.f32 %v824, %v847
        %s851 = scalar_lea.vmem [#allocation2], 48
        %852 = vst.msk [vmem:[%s851] sm:$0xff] %vm493, %v849
        %853 = vst.msk [vmem:[%s851 + $0x8] sm:$0xf] %vm495, %v850
        %v854 = vld [vmem:[%s329 + $0xc0] sm:$0xff]
        %v855 = vld [vmem:[%s329 + $0xc8] sm:$0xff]
        %v856 = vld [vmem:[%s329 + $0xd0] sm:$0xff]
        %v857 = vld [vmem:[%s329 + $0xd8] sm:$0xff]
        %v858 = vld [vmem:[%s329 + $0xe0] sm:$0xff]
        %v859 = vld [vmem:[%s329 + $0xe8] sm:$0xff]
        %v861 = vsel %vm365, %v854, 0
        %v864 = vsel %vm365, %v855, 0
        %v867 = vsel %vm365, %v856, 0
        %v870 = vsel %vm365, %v857, 0
        %v873 = vsel %vm365, %v858, 0
        %v876 = vsel %vm365, %v859, 0
        %878 = vmatpush.msra.mxu0 0.0
        %879 = vmatpush.msra.mxu0 0.0
        %880 = vmatpush.msra.mxu0 0.0
        %881 = vmatpush.msra.mxu0 0.0
        %882 = vmatpush.msra.mxu0 0.0
        %883 = vmatpush.msra.mxu0 0.0
        %884 = vmatpush.msra.mxu0 0.0
        %885 = vmatpush.msra.mxu0 0.0
        %886 = vmatpush.msra.mxu0 0.0
        %887 = vmatpush.msra.mxu0 0.0
        %888 = vmatpush.msra.mxu0 0.0
        %889 = vmatpush.msra.mxu0 0.0
        %890 = vmatpush.msra.mxu0 %v386
        %891 = vmatpush.msra.mxu0 %v353
        %892 = vmatpush.msra.mxu0 %v352
        %893 = vmatpush.msra.mxu0 %v351
        %894 = vmatmul.f32.gmra.mxu0 %v861
        %v895 = vpop.f32.mrf.mxu0
        %v896 = vadd.f32 %v363, %v895
        %897 = vmatmul.f32.gmra.mxu0 %v864
        %v898 = vpop.f32.mrf.mxu0
        %v899 = vadd.f32 %v363, %v898
        %900 = vmatmul.f32.gmra.mxu0 %v867
        %v901 = vpop.f32.mrf.mxu0
        %v902 = vadd.f32 %v363, %v901
        %903 = vmatmul.f32.gmra.mxu0 %v870
        %v904 = vpop.f32.mrf.mxu0
        %v905 = vadd.f32 %v363, %v904
        %906 = vmatmul.f32.gmra.mxu0 %v873
        %v907 = vpop.f32.mrf.mxu0
        %v908 = vadd.f32 %v363, %v907
        %909 = vmatmul.f32.gmra.mxu0 %v876
        %v910 = vpop.f32.mrf.mxu0
        %v911 = vadd.f32 %v363, %v910
        %912 = vdwg.mxu0
        %v913 = vmax.f32 %v896, 0.0
        %v914 = vmax.f32 %v899, 0.0
        %v915 = vmax.f32 %v902, 0.0
        %v916 = vmax.f32 %v905, 0.0
        %v917 = vmax.f32 %v908, 0.0
        %v918 = vmax.f32 %v911, 0.0
        %v919 = vmax.f32 %v913, %v916
        %v920 = vmax.f32 %v914, %v917
        %v921 = vmax.f32 %v915, %v918
        %922 = vmatpush.msra.mxu0 0.0
        %923 = vmatpush.msra.mxu0 0.0
        %924 = vmatpush.msra.mxu0 0.0
        %925 = vmatpush.msra.mxu0 0.0
        %926 = vmatpush.msra.mxu0 0.0
        %927 = vmatpush.msra.mxu0 0.0
        %928 = vmatpush.msra.mxu0 0.0
        %929 = vmatpush.msra.mxu0 0.0
        %930 = vmatpush.msra.mxu0 0.0
        %931 = vmatpush.msra.mxu0 0.0
        %932 = vmatpush.msra.mxu0 0.0
        %933 = vmatpush.msra.mxu0 0.0
        %934 = vmatpush.msra.mxu0 0.0
        %935 = vmatpush.msra.mxu0 %v921
        %936 = vmatpush.msra.mxu0 %v920
        %937 = vmatpush.msra.mxu0 %v919
        %938 = vmatmul.f32.gmra.mxu0 %v434
        %v939 = vpop.f32.mrf.mxu0
        %v940 = vadd.f32 0.0, %v939
        %941 = vmatmul.f32.gmra.mxu0 %v437
        %v942 = vpop.f32.mrf.mxu0
        %v943 = vadd.f32 0.0, %v942
        %944 = vdwg.mxu0
        %945 = vmatpush.msra.mxu0 0.0
        %946 = vmatpush.msra.mxu0 0.0
        %947 = vmatpush.msra.mxu0 0.0
        %948 = vmatpush.msra.mxu0 0.0
        %949 = vmatpush.msra.mxu0 0.0
        %950 = vmatpush.msra.mxu0 0.0
        %951 = vmatpush.msra.mxu0 0.0
        %952 = vmatpush.msra.mxu0 0.0
        %953 = vmatpush.msra.mxu0 0.0
        %954 = vmatpush.msra.mxu0 0.0
        %955 = vmatpush.msra.mxu0 0.0
        %956 = vmatpush.msra.mxu0 0.0
        %957 = vmatpush.msra.mxu0 0.0
        %958 = vmatpush.msra.mxu0 %v921
        %959 = vmatpush.msra.mxu0 %v920
        %960 = vmatpush.msra.mxu0 %v919
        %961 = vmatmul.f32.gmra.mxu0 %v463
        %v962 = vpop.f32.mrf.mxu0
        %v963 = vadd.f32 0.0, %v962
        %964 = vmatmul.f32.gmra.mxu0 %v466
        %v965 = vpop.f32.mrf.mxu0
        %v966 = vadd.f32 0.0, %v965
        %967 = vdwg.mxu0
        %v968 = vmax.f32 %v940, %v963
        %v969 = vmax.f32 %v943, %v966
        %s970 = scalar_lea.vmem [#allocation2], 64
        %971 = vst.msk [vmem:[%s970] sm:$0xff] %vm493, %v968
        %972 = vst.msk [vmem:[%s970 + $0x8] sm:$0xf] %vm495, %v969
        %v973 = vld [vmem:[%s329 + $0xf0] sm:$0xff]
        %v974 = vld [vmem:[%s329 + $0xf8] sm:$0xff]
        %v975 = vld [vmem:[%s329 + $0x100] sm:$0xff]
        %v976 = vld [vmem:[%s329 + $0x108] sm:$0xff]
        %v977 = vld [vmem:[%s329 + $0x110] sm:$0xff]
        %v978 = vld [vmem:[%s329 + $0x118] sm:$0xff]
        %v980 = vsel %vm365, %v973, 0
        %v983 = vsel %vm365, %v974, 0
        %v986 = vsel %vm365, %v975, 0
        %v989 = vsel %vm365, %v976, 0
        %v992 = vsel %vm365, %v977, 0
        %v995 = vsel %vm365, %v978, 0
        %997 = vmatpush.msra.mxu0 0.0
        %998 = vmatpush.msra.mxu0 0.0
        %999 = vmatpush.msra.mxu0 0.0
        %1000 = vmatpush.msra.mxu0 0.0
        %1001 = vmatpush.msra.mxu0 0.0
        %1002 = vmatpush.msra.mxu0 0.0
        %1003 = vmatpush.msra.mxu0 0.0
        %1004 = vmatpush.msra.mxu0 0.0
        %1005 = vmatpush.msra.mxu0 0.0
        %1006 = vmatpush.msra.mxu0 0.0
        %1007 = vmatpush.msra.mxu0 0.0
        %1008 = vmatpush.msra.mxu0 0.0
        %1009 = vmatpush.msra.mxu0 %v386
        %1010 = vmatpush.msra.mxu0 %v353
        %1011 = vmatpush.msra.mxu0 %v352
        %1012 = vmatpush.msra.mxu0 %v351
        %1013 = vmatmul.f32.gmra.mxu0 %v980
        %v1014 = vpop.f32.mrf.mxu0
        %v1015 = vadd.f32 %v363, %v1014
        %1016 = vmatmul.f32.gmra.mxu0 %v983
        %v1017 = vpop.f32.mrf.mxu0
        %v1018 = vadd.f32 %v363, %v1017
        %1019 = vmatmul.f32.gmra.mxu0 %v986
        %v1020 = vpop.f32.mrf.mxu0
        %v1021 = vadd.f32 %v363, %v1020
        %1022 = vmatmul.f32.gmra.mxu0 %v989
        %v1023 = vpop.f32.mrf.mxu0
        %v1024 = vadd.f32 %v363, %v1023
        %1025 = vmatmul.f32.gmra.mxu0 %v992
        %v1026 = vpop.f32.mrf.mxu0
        %v1027 = vadd.f32 %v363, %v1026
        %1028 = vmatmul.f32.gmra.mxu0 %v995
        %v1029 = vpop.f32.mrf.mxu0
        %v1030 = vadd.f32 %v363, %v1029
        %1031 = vdwg.mxu0
        %v1032 = vmax.f32 %v1015, 0.0
        %v1033 = vmax.f32 %v1018, 0.0
        %v1034 = vmax.f32 %v1021, 0.0
        %v1035 = vmax.f32 %v1024, 0.0
        %v1036 = vmax.f32 %v1027, 0.0
        %v1037 = vmax.f32 %v1030, 0.0
        %v1038 = vmax.f32 %v1032, %v1035
        %v1039 = vmax.f32 %v1033, %v1036
        %v1040 = vmax.f32 %v1034, %v1037
        %1041 = vmatpush.msra.mxu0 0.0
        %1042 = vmatpush.msra.mxu0 0.0
        %1043 = vmatpush.msra.mxu0 0.0
        %1044 = vmatpush.msra.mxu0 0.0
        %1045 = vmatpush.msra.mxu0 0.0
        %1046 = vmatpush.msra.mxu0 0.0
        %1047 = vmatpush.msra.mxu0 0.0
        %1048 = vmatpush.msra.mxu0 0.0
        %1049 = vmatpush.msra.mxu0 0.0
        %1050 = vmatpush.msra.mxu0 0.0
        %1051 = vmatpush.msra.mxu0 0.0
        %1052 = vmatpush.msra.mxu0 0.0
        %1053 = vmatpush.msra.mxu0 0.0
        %1054 = vmatpush.msra.mxu0 %v1040
        %1055 = vmatpush.msra.mxu0 %v1039
        %1056 = vmatpush.msra.mxu0 %v1038
        %1057 = vmatmul.f32.gmra.mxu0 %v434
        %v1058 = vpop.f32.mrf.mxu0
        %v1059 = vadd.f32 0.0, %v1058
        %1060 = vmatmul.f32.gmra.mxu0 %v437
        %v1061 = vpop.f32.mrf.mxu0
        %v1062 = vadd.f32 0.0, %v1061
        %1063 = vdwg.mxu0
        %1064 = vmatpush.msra.mxu0 0.0
        %1065 = vmatpush.msra.mxu0 0.0
        %1066 = vmatpush.msra.mxu0 0.0
        %1067 = vmatpush.msra.mxu0 0.0
        %1068 = vmatpush.msra.mxu0 0.0
        %1069 = vmatpush.msra.mxu0 0.0
        %1070 = vmatpush.msra.mxu0 0.0
        %1071 = vmatpush.msra.mxu0 0.0
        %1072 = vmatpush.msra.mxu0 0.0
        %1073 = vmatpush.msra.mxu0 0.0
        %1074 = vmatpush.msra.mxu0 0.0
        %1075 = vmatpush.msra.mxu0 0.0
        %1076 = vmatpush.msra.mxu0 0.0
        %1077 = vmatpush.msra.mxu0 %v1040
        %1078 = vmatpush.msra.mxu0 %v1039
        %1079 = vmatpush.msra.mxu0 %v1038
        %1080 = vmatmul.f32.gmra.mxu0 %v463
        %v1081 = vpop.f32.mrf.mxu0
        %v1082 = vadd.f32 0.0, %v1081
        %1083 = vmatmul.f32.gmra.mxu0 %v466
        %v1084 = vpop.f32.mrf.mxu0
        %v1085 = vadd.f32 0.0, %v1084
        %1086 = vdwg.mxu0
        %v1087 = vmax.f32 %v1059, %v1082
        %v1088 = vmax.f32 %v1062, %v1085
        %s1089 = scalar_lea.vmem [#allocation2], 80
        %1090 = vst.msk [vmem:[%s1089] sm:$0xff] %vm493, %v1087
        %1091 = vst.msk [vmem:[%s1089 + $0x8] sm:$0xf] %vm495, %v1088
        %v1092 = vld [vmem:[%s329 + $0x120] sm:$0xff]
        %v1093 = vld [vmem:[%s329 + $0x128] sm:$0xff]
        %v1094 = vld [vmem:[%s329 + $0x130] sm:$0xff]
        %v1095 = vld [vmem:[%s329 + $0x138] sm:$0xff]
        %v1096 = vld [vmem:[%s329 + $0x140] sm:$0xff]
        %v1097 = vld [vmem:[%s329 + $0x148] sm:$0xff]
        %v1099 = vsel %vm365, %v1092, 0
        %v1102 = vsel %vm365, %v1093, 0
        %v1105 = vsel %vm365, %v1094, 0
        %v1108 = vsel %vm365, %v1095, 0
        %v1111 = vsel %vm365, %v1096, 0
        %v1114 = vsel %vm365, %v1097, 0
        %1116 = vmatpush.msra.mxu0 0.0
        %1117 = vmatpush.msra.mxu0 0.0
        %1118 = vmatpush.msra.mxu0 0.0
        %1119 = vmatpush.msra.mxu0 0.0
        %1120 = vmatpush.msra.mxu0 0.0
        %1121 = vmatpush.msra.mxu0 0.0
        %1122 = vmatpush.msra.mxu0 0.0
        %1123 = vmatpush.msra.mxu0 0.0
        %1124 = vmatpush.msra.mxu0 0.0
        %1125 = vmatpush.msra.mxu0 0.0
        %1126 = vmatpush.msra.mxu0 0.0
        %1127 = vmatpush.msra.mxu0 0.0
        %1128 = vmatpush.msra.mxu0 %v386
        %1129 = vmatpush.msra.mxu0 %v353
        %1130 = vmatpush.msra.mxu0 %v352
        %1131 = vmatpush.msra.mxu0 %v351
        %1132 = vmatmul.f32.gmra.mxu0 %v1099
        %v1133 = vpop.f32.mrf.mxu0
        %v1134 = vadd.f32 %v363, %v1133
        %1135 = vmatmul.f32.gmra.mxu0 %v1102
        %v1136 = vpop.f32.mrf.mxu0
        %v1137 = vadd.f32 %v363, %v1136
        %1138 = vmatmul.f32.gmra.mxu0 %v1105
        %v1139 = vpop.f32.mrf.mxu0
        %v1140 = vadd.f32 %v363, %v1139
        %1141 = vmatmul.f32.gmra.mxu0 %v1108
        %v1142 = vpop.f32.mrf.mxu0
        %v1143 = vadd.f32 %v363, %v1142
        %1144 = vmatmul.f32.gmra.mxu0 %v1111
        %v1145 = vpop.f32.mrf.mxu0
        %v1146 = vadd.f32 %v363, %v1145
        %1147 = vmatmul.f32.gmra.mxu0 %v1114
        %v1148 = vpop.f32.mrf.mxu0
        %v1149 = vadd.f32 %v363, %v1148
        %1150 = vdwg.mxu0
        %v1151 = vmax.f32 %v1134, 0.0
        %v1152 = vmax.f32 %v1137, 0.0
        %v1153 = vmax.f32 %v1140, 0.0
        %v1154 = vmax.f32 %v1143, 0.0
        %v1155 = vmax.f32 %v1146, 0.0
        %v1156 = vmax.f32 %v1149, 0.0
        %v1157 = vmax.f32 %v1151, %v1154
        %v1158 = vmax.f32 %v1152, %v1155
        %v1159 = vmax.f32 %v1153, %v1156
        %1160 = vmatpush.msra.mxu0 0.0
        %1161 = vmatpush.msra.mxu0 0.0
        %1162 = vmatpush.msra.mxu0 0.0
        %1163 = vmatpush.msra.mxu0 0.0
        %1164 = vmatpush.msra.mxu0 0.0
        %1165 = vmatpush.msra.mxu0 0.0
        %1166 = vmatpush.msra.mxu0 0.0
        %1167 = vmatpush.msra.mxu0 0.0
        %1168 = vmatpush.msra.mxu0 0.0
        %1169 = vmatpush.msra.mxu0 0.0
        %1170 = vmatpush.msra.mxu0 0.0
        %1171 = vmatpush.msra.mxu0 0.0
        %1172 = vmatpush.msra.mxu0 0.0
        %1173 = vmatpush.msra.mxu0 %v1159
        %1174 = vmatpush.msra.mxu0 %v1158
        %1175 = vmatpush.msra.mxu0 %v1157
        %1176 = vmatmul.f32.gmra.mxu0 %v434
        %v1177 = vpop.f32.mrf.mxu0
        %v1178 = vadd.f32 0.0, %v1177
        %1179 = vmatmul.f32.gmra.mxu0 %v437
        %v1180 = vpop.f32.mrf.mxu0
        %v1181 = vadd.f32 0.0, %v1180
        %1182 = vdwg.mxu0
        %1183 = vmatpush.msra.mxu0 0.0
        %1184 = vmatpush.msra.mxu0 0.0
        %1185 = vmatpush.msra.mxu0 0.0
        %1186 = vmatpush.msra.mxu0 0.0
        %1187 = vmatpush.msra.mxu0 0.0
        %1188 = vmatpush.msra.mxu0 0.0
        %1189 = vmatpush.msra.mxu0 0.0
        %1190 = vmatpush.msra.mxu0 0.0
        %1191 = vmatpush.msra.mxu0 0.0
        %1192 = vmatpush.msra.mxu0 0.0
        %1193 = vmatpush.msra.mxu0 0.0
        %1194 = vmatpush.msra.mxu0 0.0
        %1195 = vmatpush.msra.mxu0 0.0
        %1196 = vmatpush.msra.mxu0 %v1159
        %1197 = vmatpush.msra.mxu0 %v1158
        %1198 = vmatpush.msra.mxu0 %v1157
        %1199 = vmatmul.f32.gmra.mxu0 %v463
        %v1200 = vpop.f32.mrf.mxu0
        %v1201 = vadd.f32 0.0, %v1200
        %1202 = vmatmul.f32.gmra.mxu0 %v466
        %v1203 = vpop.f32.mrf.mxu0
        %v1204 = vadd.f32 0.0, %v1203
        %1205 = vdwg.mxu0
        %v1206 = vmax.f32 %v1178, %v1201
        %v1207 = vmax.f32 %v1181, %v1204
        %s1208 = scalar_lea.vmem [#allocation2], 96
        %1209 = vst.msk [vmem:[%s1208] sm:$0xff] %vm493, %v1206
        %1210 = vst.msk [vmem:[%s1208 + $0x8] sm:$0xf] %vm495, %v1207
        %v1211 = vld [vmem:[%s329 + $0x150] sm:$0xff]
        %v1212 = vld [vmem:[%s329 + $0x158] sm:$0xff]
        %v1213 = vld [vmem:[%s329 + $0x160] sm:$0xff]
        %v1214 = vld [vmem:[%s329 + $0x168] sm:$0xff]
        %v1215 = vld [vmem:[%s329 + $0x170] sm:$0xff]
        %v1216 = vld [vmem:[%s329 + $0x178] sm:$0xff]
        %v1218 = vsel %vm365, %v1211, 0
        %v1221 = vsel %vm365, %v1212, 0
        %v1224 = vsel %vm365, %v1213, 0
        %v1227 = vsel %vm365, %v1214, 0
        %v1230 = vsel %vm365, %v1215, 0
        %v1233 = vsel %vm365, %v1216, 0
        %1235 = vmatpush.msra.mxu0 0.0
        %1236 = vmatpush.msra.mxu0 0.0
        %1237 = vmatpush.msra.mxu0 0.0
        %1238 = vmatpush.msra.mxu0 0.0
        %1239 = vmatpush.msra.mxu0 0.0
        %1240 = vmatpush.msra.mxu0 0.0
        %1241 = vmatpush.msra.mxu0 0.0
        %1242 = vmatpush.msra.mxu0 0.0
        %1243 = vmatpush.msra.mxu0 0.0
        %1244 = vmatpush.msra.mxu0 0.0
        %1245 = vmatpush.msra.mxu0 0.0
        %1246 = vmatpush.msra.mxu0 0.0
        %1247 = vmatpush.msra.mxu0 %v386
        %1248 = vmatpush.msra.mxu0 %v353
        %1249 = vmatpush.msra.mxu0 %v352
        %1250 = vmatpush.msra.mxu0 %v351
        %1251 = vmatmul.f32.gmra.mxu0 %v1218
        %v1252 = vpop.f32.mrf.mxu0
        %v1253 = vadd.f32 %v363, %v1252
        %1254 = vmatmul.f32.gmra.mxu0 %v1221
        %v1255 = vpop.f32.mrf.mxu0
        %v1256 = vadd.f32 %v363, %v1255
        %1257 = vmatmul.f32.gmra.mxu0 %v1224
        %v1258 = vpop.f32.mrf.mxu0
        %v1259 = vadd.f32 %v363, %v1258
        %1260 = vmatmul.f32.gmra.mxu0 %v1227
        %v1261 = vpop.f32.mrf.mxu0
        %v1262 = vadd.f32 %v363, %v1261
        %1263 = vmatmul.f32.gmra.mxu0 %v1230
        %v1264 = vpop.f32.mrf.mxu0
        %v1265 = vadd.f32 %v363, %v1264
        %1266 = vmatmul.f32.gmra.mxu0 %v1233
        %v1267 = vpop.f32.mrf.mxu0
        %v1268 = vadd.f32 %v363, %v1267
        %1269 = vdwg.mxu0
        %v1270 = vmax.f32 %v1253, 0.0
        %v1271 = vmax.f32 %v1256, 0.0
        %v1272 = vmax.f32 %v1259, 0.0
        %v1273 = vmax.f32 %v1262, 0.0
        %v1274 = vmax.f32 %v1265, 0.0
        %v1275 = vmax.f32 %v1268, 0.0
        %v1276 = vmax.f32 %v1270, %v1273
        %v1277 = vmax.f32 %v1271, %v1274
        %v1278 = vmax.f32 %v1272, %v1275
        %1279 = vmatpush.msra.mxu0 0.0
        %1280 = vmatpush.msra.mxu0 0.0
        %1281 = vmatpush.msra.mxu0 0.0
        %1282 = vmatpush.msra.mxu0 0.0
        %1283 = vmatpush.msra.mxu0 0.0
        %1284 = vmatpush.msra.mxu0 0.0
        %1285 = vmatpush.msra.mxu0 0.0
        %1286 = vmatpush.msra.mxu0 0.0
        %1287 = vmatpush.msra.mxu0 0.0
        %1288 = vmatpush.msra.mxu0 0.0
        %1289 = vmatpush.msra.mxu0 0.0
        %1290 = vmatpush.msra.mxu0 0.0
        %1291 = vmatpush.msra.mxu0 0.0
        %1292 = vmatpush.msra.mxu0 %v1278
        %1293 = vmatpush.msra.mxu0 %v1277
        %1294 = vmatpush.msra.mxu0 %v1276
        %1295 = vmatmul.f32.gmra.mxu0 %v434
        %v1296 = vpop.f32.mrf.mxu0
        %v1297 = vadd.f32 0.0, %v1296
        %1298 = vmatmul.f32.gmra.mxu0 %v437
        %v1299 = vpop.f32.mrf.mxu0
        %v1300 = vadd.f32 0.0, %v1299
        %1301 = vdwg.mxu0
        %1302 = vmatpush.msra.mxu0 0.0
        %1303 = vmatpush.msra.mxu0 0.0
        %1304 = vmatpush.msra.mxu0 0.0
        %1305 = vmatpush.msra.mxu0 0.0
        %1306 = vmatpush.msra.mxu0 0.0
        %1307 = vmatpush.msra.mxu0 0.0
        %1308 = vmatpush.msra.mxu0 0.0
        %1309 = vmatpush.msra.mxu0 0.0
        %1310 = vmatpush.msra.mxu0 0.0
        %1311 = vmatpush.msra.mxu0 0.0
        %1312 = vmatpush.msra.mxu0 0.0
        %1313 = vmatpush.msra.mxu0 0.0
        %1314 = vmatpush.msra.mxu0 0.0
        %1315 = vmatpush.msra.mxu0 %v1278
        %1316 = vmatpush.msra.mxu0 %v1277
        %1317 = vmatpush.msra.mxu0 %v1276
        %1318 = vmatmul.f32.gmra.mxu0 %v463
        %v1319 = vpop.f32.mrf.mxu0
        %v1320 = vadd.f32 0.0, %v1319
        %1321 = vmatmul.f32.gmra.mxu0 %v466
        %v1322 = vpop.f32.mrf.mxu0
        %v1323 = vadd.f32 0.0, %v1322
        %1324 = vdwg.mxu0
        %v1325 = vmax.f32 %v1297, %v1320
        %v1326 = vmax.f32 %v1300, %v1323
        %s1327 = scalar_lea.vmem [#allocation2], 112
        %1328 = vst.msk [vmem:[%s1327] sm:$0xff] %vm493, %v1325
        %1329 = vst.msk [vmem:[%s1327 + $0x8] sm:$0xf] %vm495, %v1326
        %v1330 = vld [vmem:[%s329 + $0x180] sm:$0xff]
        %v1331 = vld [vmem:[%s329 + $0x188] sm:$0xff]
        %v1332 = vld [vmem:[%s329 + $0x190] sm:$0xff]
        %v1333 = vld [vmem:[%s329 + $0x198] sm:$0xff]
        %v1334 = vld [vmem:[%s329 + $0x1a0] sm:$0xff]
        %v1335 = vld [vmem:[%s329 + $0x1a8] sm:$0xff]
        %v1337 = vsel %vm365, %v1330, 0
        %v1340 = vsel %vm365, %v1331, 0
        %v1343 = vsel %vm365, %v1332, 0
        %v1346 = vsel %vm365, %v1333, 0
        %v1349 = vsel %vm365, %v1334, 0
        %v1352 = vsel %vm365, %v1335, 0
        %1354 = vmatpush.msra.mxu0 0.0
        %1355 = vmatpush.msra.mxu0 0.0
        %1356 = vmatpush.msra.mxu0 0.0
        %1357 = vmatpush.msra.mxu0 0.0
        %1358 = vmatpush.msra.mxu0 0.0
        %1359 = vmatpush.msra.mxu0 0.0
        %1360 = vmatpush.msra.mxu0 0.0
        %1361 = vmatpush.msra.mxu0 0.0
        %1362 = vmatpush.msra.mxu0 0.0
        %1363 = vmatpush.msra.mxu0 0.0
        %1364 = vmatpush.msra.mxu0 0.0
        %1365 = vmatpush.msra.mxu0 0.0
        %1366 = vmatpush.msra.mxu0 %v386
        %1367 = vmatpush.msra.mxu0 %v353
        %1368 = vmatpush.msra.mxu0 %v352
        %1369 = vmatpush.msra.mxu0 %v351
        %1370 = vmatmul.f32.gmra.mxu0 %v1337
        %v1371 = vpop.f32.mrf.mxu0
        %v1372 = vadd.f32 %v363, %v1371
        %1373 = vmatmul.f32.gmra.mxu0 %v1340
        %v1374 = vpop.f32.mrf.mxu0
        %v1375 = vadd.f32 %v363, %v1374
        %1376 = vmatmul.f32.gmra.mxu0 %v1343
        %v1377 = vpop.f32.mrf.mxu0
        %v1378 = vadd.f32 %v363, %v1377
        %1379 = vmatmul.f32.gmra.mxu0 %v1346
        %v1380 = vpop.f32.mrf.mxu0
        %v1381 = vadd.f32 %v363, %v1380
        %1382 = vmatmul.f32.gmra.mxu0 %v1349
        %v1383 = vpop.f32.mrf.mxu0
        %v1384 = vadd.f32 %v363, %v1383
        %1385 = vmatmul.f32.gmra.mxu0 %v1352
        %v1386 = vpop.f32.mrf.mxu0
        %v1387 = vadd.f32 %v363, %v1386
        %1388 = vdwg.mxu0
        %v1389 = vmax.f32 %v1372, 0.0
        %v1390 = vmax.f32 %v1375, 0.0
        %v1391 = vmax.f32 %v1378, 0.0
        %v1392 = vmax.f32 %v1381, 0.0
        %v1393 = vmax.f32 %v1384, 0.0
        %v1394 = vmax.f32 %v1387, 0.0
        %v1395 = vmax.f32 %v1389, %v1392
        %v1396 = vmax.f32 %v1390, %v1393
        %v1397 = vmax.f32 %v1391, %v1394
        %1398 = vmatpush.msra.mxu0 0.0
        %1399 = vmatpush.msra.mxu0 0.0
        %1400 = vmatpush.msra.mxu0 0.0
        %1401 = vmatpush.msra.mxu0 0.0
        %1402 = vmatpush.msra.mxu0 0.0
        %1403 = vmatpush.msra.mxu0 0.0
        %1404 = vmatpush.msra.mxu0 0.0
        %1405 = vmatpush.msra.mxu0 0.0
        %1406 = vmatpush.msra.mxu0 0.0
        %1407 = vmatpush.msra.mxu0 0.0
        %1408 = vmatpush.msra.mxu0 0.0
        %1409 = vmatpush.msra.mxu0 0.0
        %1410 = vmatpush.msra.mxu0 0.0
        %1411 = vmatpush.msra.mxu0 %v1397
        %1412 = vmatpush.msra.mxu0 %v1396
        %1413 = vmatpush.msra.mxu0 %v1395
        %1414 = vmatmul.f32.gmra.mxu0 %v434
        %v1415 = vpop.f32.mrf.mxu0
        %v1416 = vadd.f32 0.0, %v1415
        %1417 = vmatmul.f32.gmra.mxu0 %v437
        %v1418 = vpop.f32.mrf.mxu0
        %v1419 = vadd.f32 0.0, %v1418
        %1420 = vdwg.mxu0
        %1421 = vmatpush.msra.mxu0 0.0
        %1422 = vmatpush.msra.mxu0 0.0
        %1423 = vmatpush.msra.mxu0 0.0
        %1424 = vmatpush.msra.mxu0 0.0
        %1425 = vmatpush.msra.mxu0 0.0
        %1426 = vmatpush.msra.mxu0 0.0
        %1427 = vmatpush.msra.mxu0 0.0
        %1428 = vmatpush.msra.mxu0 0.0
        %1429 = vmatpush.msra.mxu0 0.0
        %1430 = vmatpush.msra.mxu0 0.0
        %1431 = vmatpush.msra.mxu0 0.0
        %1432 = vmatpush.msra.mxu0 0.0
        %1433 = vmatpush.msra.mxu0 0.0
        %1434 = vmatpush.msra.mxu0 %v1397
        %1435 = vmatpush.msra.mxu0 %v1396
        %1436 = vmatpush.msra.mxu0 %v1395
        %1437 = vmatmul.f32.gmra.mxu0 %v463
        %v1438 = vpop.f32.mrf.mxu0
        %v1439 = vadd.f32 0.0, %v1438
        %1440 = vmatmul.f32.gmra.mxu0 %v466
        %v1441 = vpop.f32.mrf.mxu0
        %v1442 = vadd.f32 0.0, %v1441
        %1443 = vdwg.mxu0
        %v1444 = vmax.f32 %v1416, %v1439
        %v1445 = vmax.f32 %v1419, %v1442
        %s1446 = scalar_lea.vmem [#allocation2], 128
        %1447 = vst.msk [vmem:[%s1446] sm:$0xff] %vm493, %v1444
        %1448 = vst.msk [vmem:[%s1446 + $0x8] sm:$0xf] %vm495, %v1445
        %v1449 = vld [vmem:[%s329 + $0x1b0] sm:$0xff]
        %v1450 = vld [vmem:[%s329 + $0x1b8] sm:$0xff]
        %v1451 = vld [vmem:[%s329 + $0x1c0] sm:$0xff]
        %v1452 = vld [vmem:[%s329 + $0x1c8] sm:$0xff]
        %v1453 = vld [vmem:[%s329 + $0x1d0] sm:$0xff]
        %v1454 = vld [vmem:[%s329 + $0x1d8] sm:$0xff]
        %v1456 = vsel %vm365, %v1449, 0
        %v1459 = vsel %vm365, %v1450, 0
        %v1462 = vsel %vm365, %v1451, 0
        %v1465 = vsel %vm365, %v1452, 0
        %v1468 = vsel %vm365, %v1453, 0
        %v1471 = vsel %vm365, %v1454, 0
        %1473 = vmatpush.msra.mxu0 0.0
        %1474 = vmatpush.msra.mxu0 0.0
        %1475 = vmatpush.msra.mxu0 0.0
        %1476 = vmatpush.msra.mxu0 0.0
        %1477 = vmatpush.msra.mxu0 0.0
        %1478 = vmatpush.msra.mxu0 0.0
        %1479 = vmatpush.msra.mxu0 0.0
        %1480 = vmatpush.msra.mxu0 0.0
        %1481 = vmatpush.msra.mxu0 0.0
        %1482 = vmatpush.msra.mxu0 0.0
        %1483 = vmatpush.msra.mxu0 0.0
        %1484 = vmatpush.msra.mxu0 0.0
        %1485 = vmatpush.msra.mxu0 %v386
        %1486 = vmatpush.msra.mxu0 %v353
        %1487 = vmatpush.msra.mxu0 %v352
        %1488 = vmatpush.msra.mxu0 %v351
        %1489 = vmatmul.f32.gmra.mxu0 %v1456
        %v1490 = vpop.f32.mrf.mxu0
        %v1491 = vadd.f32 %v363, %v1490
        %1492 = vmatmul.f32.gmra.mxu0 %v1459
        %v1493 = vpop.f32.mrf.mxu0
        %v1494 = vadd.f32 %v363, %v1493
        %1495 = vmatmul.f32.gmra.mxu0 %v1462
        %v1496 = vpop.f32.mrf.mxu0
        %v1497 = vadd.f32 %v363, %v1496
        %1498 = vmatmul.f32.gmra.mxu0 %v1465
        %v1499 = vpop.f32.mrf.mxu0
        %v1500 = vadd.f32 %v363, %v1499
        %1501 = vmatmul.f32.gmra.mxu0 %v1468
        %v1502 = vpop.f32.mrf.mxu0
        %v1503 = vadd.f32 %v363, %v1502
        %1504 = vmatmul.f32.gmra.mxu0 %v1471
        %v1505 = vpop.f32.mrf.mxu0
        %v1506 = vadd.f32 %v363, %v1505
        %1507 = vdwg.mxu0
        %v1508 = vmax.f32 %v1491, 0.0
        %v1509 = vmax.f32 %v1494, 0.0
        %v1510 = vmax.f32 %v1497, 0.0
        %v1511 = vmax.f32 %v1500, 0.0
        %v1512 = vmax.f32 %v1503, 0.0
        %v1513 = vmax.f32 %v1506, 0.0
        %v1514 = vmax.f32 %v1508, %v1511
        %v1515 = vmax.f32 %v1509, %v1512
        %v1516 = vmax.f32 %v1510, %v1513
        %1517 = vmatpush.msra.mxu0 0.0
        %1518 = vmatpush.msra.mxu0 0.0
        %1519 = vmatpush.msra.mxu0 0.0
        %1520 = vmatpush.msra.mxu0 0.0
        %1521 = vmatpush.msra.mxu0 0.0
        %1522 = vmatpush.msra.mxu0 0.0
        %1523 = vmatpush.msra.mxu0 0.0
        %1524 = vmatpush.msra.mxu0 0.0
        %1525 = vmatpush.msra.mxu0 0.0
        %1526 = vmatpush.msra.mxu0 0.0
        %1527 = vmatpush.msra.mxu0 0.0
        %1528 = vmatpush.msra.mxu0 0.0
        %1529 = vmatpush.msra.mxu0 0.0
        %1530 = vmatpush.msra.mxu0 %v1516
        %1531 = vmatpush.msra.mxu0 %v1515
        %1532 = vmatpush.msra.mxu0 %v1514
        %1533 = vmatmul.f32.gmra.mxu0 %v434
        %v1534 = vpop.f32.mrf.mxu0
        %v1535 = vadd.f32 0.0, %v1534
        %1536 = vmatmul.f32.gmra.mxu0 %v437
        %v1537 = vpop.f32.mrf.mxu0
        %v1538 = vadd.f32 0.0, %v1537
        %1539 = vdwg.mxu0
        %1540 = vmatpush.msra.mxu0 0.0
        %1541 = vmatpush.msra.mxu0 0.0
        %1542 = vmatpush.msra.mxu0 0.0
        %1543 = vmatpush.msra.mxu0 0.0
        %1544 = vmatpush.msra.mxu0 0.0
        %1545 = vmatpush.msra.mxu0 0.0
        %1546 = vmatpush.msra.mxu0 0.0
        %1547 = vmatpush.msra.mxu0 0.0
        %1548 = vmatpush.msra.mxu0 0.0
        %1549 = vmatpush.msra.mxu0 0.0
        %1550 = vmatpush.msra.mxu0 0.0
        %1551 = vmatpush.msra.mxu0 0.0
        %1552 = vmatpush.msra.mxu0 0.0
        %1553 = vmatpush.msra.mxu0 %v1516
        %1554 = vmatpush.msra.mxu0 %v1515
        %1555 = vmatpush.msra.mxu0 %v1514
        %1556 = vmatmul.f32.gmra.mxu0 %v463
        %v1557 = vpop.f32.mrf.mxu0
        %v1558 = vadd.f32 0.0, %v1557
        %1559 = vmatmul.f32.gmra.mxu0 %v466
        %v1560 = vpop.f32.mrf.mxu0
        %v1561 = vadd.f32 0.0, %v1560
        %1562 = vdwg.mxu0
        %v1563 = vmax.f32 %v1535, %v1558
        %v1564 = vmax.f32 %v1538, %v1561
        %s1565 = scalar_lea.vmem [#allocation2], 144
        %1566 = vst.msk [vmem:[%s1565] sm:$0xff] %vm493, %v1563
        %1567 = vst.msk [vmem:[%s1565 + $0x8] sm:$0xf] %vm495, %v1564
        %v1568 = vld [vmem:[%s329 + $0x1e0] sm:$0xff]
        %v1569 = vld [vmem:[%s329 + $0x1e8] sm:$0xff]
        %v1570 = vld [vmem:[%s329 + $0x1f0] sm:$0xff]
        %v1571 = vld [vmem:[%s329 + $0x1f8] sm:$0xff]
        %v1572 = vld [vmem:[%s329 + $0x200] sm:$0xff]
        %v1573 = vld [vmem:[%s329 + $0x208] sm:$0xff]
        %v1575 = vsel %vm365, %v1568, 0
        %v1578 = vsel %vm365, %v1569, 0
        %v1581 = vsel %vm365, %v1570, 0
        %v1584 = vsel %vm365, %v1571, 0
        %v1587 = vsel %vm365, %v1572, 0
        %v1590 = vsel %vm365, %v1573, 0
        %1592 = vmatpush.msra.mxu0 0.0
        %1593 = vmatpush.msra.mxu0 0.0
        %1594 = vmatpush.msra.mxu0 0.0
        %1595 = vmatpush.msra.mxu0 0.0
        %1596 = vmatpush.msra.mxu0 0.0
        %1597 = vmatpush.msra.mxu0 0.0
        %1598 = vmatpush.msra.mxu0 0.0
        %1599 = vmatpush.msra.mxu0 0.0
        %1600 = vmatpush.msra.mxu0 0.0
        %1601 = vmatpush.msra.mxu0 0.0
        %1602 = vmatpush.msra.mxu0 0.0
        %1603 = vmatpush.msra.mxu0 0.0
        %1604 = vmatpush.msra.mxu0 %v386
        %1605 = vmatpush.msra.mxu0 %v353
        %1606 = vmatpush.msra.mxu0 %v352
        %1607 = vmatpush.msra.mxu0 %v351
        %1608 = vmatmul.f32.gmra.mxu0 %v1575
        %v1609 = vpop.f32.mrf.mxu0
        %v1610 = vadd.f32 %v363, %v1609
        %1611 = vmatmul.f32.gmra.mxu0 %v1578
        %v1612 = vpop.f32.mrf.mxu0
        %v1613 = vadd.f32 %v363, %v1612
        %1614 = vmatmul.f32.gmra.mxu0 %v1581
        %v1615 = vpop.f32.mrf.mxu0
        %v1616 = vadd.f32 %v363, %v1615
        %1617 = vmatmul.f32.gmra.mxu0 %v1584
        %v1618 = vpop.f32.mrf.mxu0
        %v1619 = vadd.f32 %v363, %v1618
        %1620 = vmatmul.f32.gmra.mxu0 %v1587
        %v1621 = vpop.f32.mrf.mxu0
        %v1622 = vadd.f32 %v363, %v1621
        %1623 = vmatmul.f32.gmra.mxu0 %v1590
        %v1624 = vpop.f32.mrf.mxu0
        %v1625 = vadd.f32 %v363, %v1624
        %1626 = vdwg.mxu0
        %v1627 = vmax.f32 %v1610, 0.0
        %v1628 = vmax.f32 %v1613, 0.0
        %v1629 = vmax.f32 %v1616, 0.0
        %v1630 = vmax.f32 %v1619, 0.0
        %v1631 = vmax.f32 %v1622, 0.0
        %v1632 = vmax.f32 %v1625, 0.0
        %v1633 = vmax.f32 %v1627, %v1630
        %v1634 = vmax.f32 %v1628, %v1631
        %v1635 = vmax.f32 %v1629, %v1632
        %1636 = vmatpush.msra.mxu0 0.0
        %1637 = vmatpush.msra.mxu0 0.0
        %1638 = vmatpush.msra.mxu0 0.0
        %1639 = vmatpush.msra.mxu0 0.0
        %1640 = vmatpush.msra.mxu0 0.0
        %1641 = vmatpush.msra.mxu0 0.0
        %1642 = vmatpush.msra.mxu0 0.0
        %1643 = vmatpush.msra.mxu0 0.0
        %1644 = vmatpush.msra.mxu0 0.0
        %1645 = vmatpush.msra.mxu0 0.0
        %1646 = vmatpush.msra.mxu0 0.0
        %1647 = vmatpush.msra.mxu0 0.0
        %1648 = vmatpush.msra.mxu0 0.0
        %1649 = vmatpush.msra.mxu0 %v1635
        %1650 = vmatpush.msra.mxu0 %v1634
        %1651 = vmatpush.msra.mxu0 %v1633
        %1652 = vmatmul.f32.gmra.mxu0 %v434
        %v1653 = vpop.f32.mrf.mxu0
        %v1654 = vadd.f32 0.0, %v1653
        %1655 = vmatmul.f32.gmra.mxu0 %v437
        %v1656 = vpop.f32.mrf.mxu0
        %v1657 = vadd.f32 0.0, %v1656
        %1658 = vdwg.mxu0
        %1659 = vmatpush.msra.mxu0 0.0
        %1660 = vmatpush.msra.mxu0 0.0
        %1661 = vmatpush.msra.mxu0 0.0
        %1662 = vmatpush.msra.mxu0 0.0
        %1663 = vmatpush.msra.mxu0 0.0
        %1664 = vmatpush.msra.mxu0 0.0
        %1665 = vmatpush.msra.mxu0 0.0
        %1666 = vmatpush.msra.mxu0 0.0
        %1667 = vmatpush.msra.mxu0 0.0
        %1668 = vmatpush.msra.mxu0 0.0
        %1669 = vmatpush.msra.mxu0 0.0
        %1670 = vmatpush.msra.mxu0 0.0
        %1671 = vmatpush.msra.mxu0 0.0
        %1672 = vmatpush.msra.mxu0 %v1635
        %1673 = vmatpush.msra.mxu0 %v1634
        %1674 = vmatpush.msra.mxu0 %v1633
        %1675 = vmatmul.f32.gmra.mxu0 %v463
        %v1676 = vpop.f32.mrf.mxu0
        %v1677 = vadd.f32 0.0, %v1676
        %1678 = vmatmul.f32.gmra.mxu0 %v466
        %v1679 = vpop.f32.mrf.mxu0
        %v1680 = vadd.f32 0.0, %v1679
        %1681 = vdwg.mxu0
        %v1682 = vmax.f32 %v1654, %v1677
        %v1683 = vmax.f32 %v1657, %v1680
        %s1684 = scalar_lea.vmem [#allocation2], 160
        %1685 = vst.msk [vmem:[%s1684] sm:$0xff] %vm493, %v1682
        %1686 = vst.msk [vmem:[%s1684 + $0x8] sm:$0xf] %vm495, %v1683
        %v1687 = vld [vmem:[%s329 + $0x210] sm:$0xff]
        %v1688 = vld [vmem:[%s329 + $0x218] sm:$0xff]
        %v1689 = vld [vmem:[%s329 + $0x220] sm:$0xff]
        %v1690 = vld [vmem:[%s329 + $0x228] sm:$0xff]
        %v1691 = vld [vmem:[%s329 + $0x230] sm:$0xff]
        %v1692 = vld [vmem:[%s329 + $0x238] sm:$0xff]
        %v1694 = vsel %vm365, %v1687, 0
        %v1697 = vsel %vm365, %v1688, 0
        %v1700 = vsel %vm365, %v1689, 0
        %v1703 = vsel %vm365, %v1690, 0
        %v1706 = vsel %vm365, %v1691, 0
        %v1709 = vsel %vm365, %v1692, 0
        %1711 = vmatpush.msra.mxu0 0.0
        %1712 = vmatpush.msra.mxu0 0.0
        %1713 = vmatpush.msra.mxu0 0.0
        %1714 = vmatpush.msra.mxu0 0.0
        %1715 = vmatpush.msra.mxu0 0.0
        %1716 = vmatpush.msra.mxu0 0.0
        %1717 = vmatpush.msra.mxu0 0.0
        %1718 = vmatpush.msra.mxu0 0.0
        %1719 = vmatpush.msra.mxu0 0.0
        %1720 = vmatpush.msra.mxu0 0.0
        %1721 = vmatpush.msra.mxu0 0.0
        %1722 = vmatpush.msra.mxu0 0.0
        %1723 = vmatpush.msra.mxu0 %v386
        %1724 = vmatpush.msra.mxu0 %v353
        %1725 = vmatpush.msra.mxu0 %v352
        %1726 = vmatpush.msra.mxu0 %v351
        %1727 = vmatmul.f32.gmra.mxu0 %v1694
        %v1728 = vpop.f32.mrf.mxu0
        %v1729 = vadd.f32 %v363, %v1728
        %1730 = vmatmul.f32.gmra.mxu0 %v1697
        %v1731 = vpop.f32.mrf.mxu0
        %v1732 = vadd.f32 %v363, %v1731
        %1733 = vmatmul.f32.gmra.mxu0 %v1700
        %v1734 = vpop.f32.mrf.mxu0
        %v1735 = vadd.f32 %v363, %v1734
        %1736 = vmatmul.f32.gmra.mxu0 %v1703
        %v1737 = vpop.f32.mrf.mxu0
        %v1738 = vadd.f32 %v363, %v1737
        %1739 = vmatmul.f32.gmra.mxu0 %v1706
        %v1740 = vpop.f32.mrf.mxu0
        %v1741 = vadd.f32 %v363, %v1740
        %1742 = vmatmul.f32.gmra.mxu0 %v1709
        %v1743 = vpop.f32.mrf.mxu0
        %v1744 = vadd.f32 %v363, %v1743
        %1745 = vdwg.mxu0
        %v1746 = vmax.f32 %v1729, 0.0
        %v1747 = vmax.f32 %v1732, 0.0
        %v1748 = vmax.f32 %v1735, 0.0
        %v1749 = vmax.f32 %v1738, 0.0
        %v1750 = vmax.f32 %v1741, 0.0
        %v1751 = vmax.f32 %v1744, 0.0
        %v1752 = vmax.f32 %v1746, %v1749
        %v1753 = vmax.f32 %v1747, %v1750
        %v1754 = vmax.f32 %v1748, %v1751
        %1755 = vmatpush.msra.mxu0 0.0
        %1756 = vmatpush.msra.mxu0 0.0
        %1757 = vmatpush.msra.mxu0 0.0
        %1758 = vmatpush.msra.mxu0 0.0
        %1759 = vmatpush.msra.mxu0 0.0
        %1760 = vmatpush.msra.mxu0 0.0
        %1761 = vmatpush.msra.mxu0 0.0
        %1762 = vmatpush.msra.mxu0 0.0
        %1763 = vmatpush.msra.mxu0 0.0
        %1764 = vmatpush.msra.mxu0 0.0
        %1765 = vmatpush.msra.mxu0 0.0
        %1766 = vmatpush.msra.mxu0 0.0
        %1767 = vmatpush.msra.mxu0 0.0
        %1768 = vmatpush.msra.mxu0 %v1754
        %1769 = vmatpush.msra.mxu0 %v1753
        %1770 = vmatpush.msra.mxu0 %v1752
        %1771 = vmatmul.f32.gmra.mxu0 %v434
        %v1772 = vpop.f32.mrf.mxu0
        %v1773 = vadd.f32 0.0, %v1772
        %1774 = vmatmul.f32.gmra.mxu0 %v437
        %v1775 = vpop.f32.mrf.mxu0
        %v1776 = vadd.f32 0.0, %v1775
        %1777 = vdwg.mxu0
        %1778 = vmatpush.msra.mxu0 0.0
        %1779 = vmatpush.msra.mxu0 0.0
        %1780 = vmatpush.msra.mxu0 0.0
        %1781 = vmatpush.msra.mxu0 0.0
        %1782 = vmatpush.msra.mxu0 0.0
        %1783 = vmatpush.msra.mxu0 0.0
        %1784 = vmatpush.msra.mxu0 0.0
        %1785 = vmatpush.msra.mxu0 0.0
        %1786 = vmatpush.msra.mxu0 0.0
        %1787 = vmatpush.msra.mxu0 0.0
        %1788 = vmatpush.msra.mxu0 0.0
        %1789 = vmatpush.msra.mxu0 0.0
        %1790 = vmatpush.msra.mxu0 0.0
        %1791 = vmatpush.msra.mxu0 %v1754
        %1792 = vmatpush.msra.mxu0 %v1753
        %1793 = vmatpush.msra.mxu0 %v1752
        %1794 = vmatmul.f32.gmra.mxu0 %v463
        %v1795 = vpop.f32.mrf.mxu0
        %v1796 = vadd.f32 0.0, %v1795
        %1797 = vmatmul.f32.gmra.mxu0 %v466
        %v1798 = vpop.f32.mrf.mxu0
        %v1799 = vadd.f32 0.0, %v1798
        %1800 = vdwg.mxu0
        %v1801 = vmax.f32 %v1773, %v1796
        %v1802 = vmax.f32 %v1776, %v1799
        %s1803 = scalar_lea.vmem [#allocation2], 176
        %1804 = vst.msk [vmem:[%s1803] sm:$0xff] %vm493, %v1801
        %1805 = vst.msk [vmem:[%s1803 + $0x8] sm:$0xf] %vm495, %v1802
        %v1806 = vld [vmem:[#allocation2] sm:$0xff]
        %v1807 = vld [vmem:[#allocation2 + $0x10] sm:$0xff]
        %v1808 = vld [vmem:[#allocation2 + $0x20] sm:$0xff]
        %v1809 = vld [vmem:[#allocation2 + $0x30] sm:$0xff]
        %v1810 = vld [vmem:[#allocation2 + $0x40] sm:$0xff]
        %v1811 = vld [vmem:[#allocation2 + $0x50] sm:$0xff]
        %v1812 = vld [vmem:[#allocation2 + $0x60] sm:$0xff]
        %v1813 = vld [vmem:[#allocation2 + $0x70] sm:$0xff]
        %v1814 = vld [vmem:[%s3] sm:$0xff]
        %v1815 = vld [vmem:[%s3 + $0x8] sm:$0xff]
        %v1816 = vld [vmem:[%s3 + $0x10] sm:$0xff]
        %v1817 = vld [vmem:[%s3 + $0x18] sm:$0xff]
        %v1818 = vld [vmem:[#allocation2 + $0x1] sm:$0xff]
        %v1819 = vld [vmem:[#allocation2 + $0x11] sm:$0xff]
        %v1820 = vld [vmem:[#allocation2 + $0x21] sm:$0xff]
        %v1821 = vld [vmem:[#allocation2 + $0x31] sm:$0xff]
        %v1822 = vld [vmem:[#allocation2 + $0x41] sm:$0xff]
        %v1823 = vld [vmem:[#allocation2 + $0x51] sm:$0xff]
        %v1824 = vld [vmem:[#allocation2 + $0x61] sm:$0xff]
        %v1825 = vld [vmem:[#allocation2 + $0x71] sm:$0xff]
        %s1826 = scalar_lea.vmem %s3, 32
        %v1827 = vld [vmem:[%s1826] sm:$0xff]
        %v1828 = vld [vmem:[%s1826 + $0x8] sm:$0xff]
        %v1829 = vld [vmem:[%s1826 + $0x10] sm:$0xff]
        %v1830 = vld [vmem:[%s1826 + $0x18] sm:$0xff]
        %v1832 = vsel %vm493, %v1818, 0
        %v1835 = vsel %vm493, %v1819, 0
        %v1838 = vsel %vm493, %v1820, 0
        %v1841 = vsel %vm493, %v1821, 0
        %v1844 = vsel %vm493, %v1822, 0
        %v1847 = vsel %vm493, %v1823, 0
        %v1850 = vsel %vm493, %v1824, 0
        %v1853 = vsel %vm493, %v1825, 0
        %1855 = vmatpush.msra.mxu0 0.0
        %1856 = vmatpush.msra.mxu0 0.0
        %1857 = vmatpush.msra.mxu0 0.0
        %1858 = vmatpush.msra.mxu0 0.0
        %1859 = vmatpush.msra.mxu0 0.0
        %1860 = vmatpush.msra.mxu0 0.0
        %1861 = vmatpush.msra.mxu0 0.0
        %1862 = vmatpush.msra.mxu0 0.0
        %1863 = vmatpush.msra.mxu0 0.0
        %1864 = vmatpush.msra.mxu0 0.0
        %1865 = vmatpush.msra.mxu0 0.0
        %1866 = vmatpush.msra.mxu0 0.0
        %1867 = vmatpush.msra.mxu0 %v1830
        %1868 = vmatpush.msra.mxu0 %v1829
        %1869 = vmatpush.msra.mxu0 %v1828
        %1870 = vmatpush.msra.mxu0 %v1827
        %1871 = vmatmul.f32.gmra.mxu0 %v1832
        %v1872 = vpop.f32.mrf.mxu0
        %v1873 = vadd.f32 0.0, %v1872
        %1874 = vmatmul.f32.gmra.mxu0 %v1835
        %v1875 = vpop.f32.mrf.mxu0
        %v1876 = vadd.f32 0.0, %v1875
        %1877 = vmatmul.f32.gmra.mxu0 %v1838
        %v1878 = vpop.f32.mrf.mxu0
        %v1879 = vadd.f32 0.0, %v1878
        %1880 = vmatmul.f32.gmra.mxu0 %v1841
        %v1881 = vpop.f32.mrf.mxu0
        %v1882 = vadd.f32 0.0, %v1881
        %1883 = vmatmul.f32.gmra.mxu0 %v1844
        %v1884 = vpop.f32.mrf.mxu0
        %v1885 = vadd.f32 0.0, %v1884
        %1886 = vmatmul.f32.gmra.mxu0 %v1847
        %v1887 = vpop.f32.mrf.mxu0
        %v1888 = vadd.f32 0.0, %v1887
        %1889 = vmatmul.f32.gmra.mxu0 %v1850
        %v1890 = vpop.f32.mrf.mxu0
        %v1891 = vadd.f32 0.0, %v1890
        %1892 = vmatmul.f32.gmra.mxu0 %v1853
        %v1893 = vpop.f32.mrf.mxu0
        %v1894 = vadd.f32 0.0, %v1893
        %1895 = vdwg.mxu0
        %v1897 = vsel %vm493, %v1806, 0
        %v1900 = vsel %vm493, %v1807, 0
        %v1903 = vsel %vm493, %v1808, 0
        %v1906 = vsel %vm493, %v1809, 0
        %v1909 = vsel %vm493, %v1810, 0
        %v1912 = vsel %vm493, %v1811, 0
        %v1915 = vsel %vm493, %v1812, 0
        %v1918 = vsel %vm493, %v1813, 0
        %1920 = vmatpush.msra.mxu0 0.0
        %1921 = vmatpush.msra.mxu0 0.0
        %1922 = vmatpush.msra.mxu0 0.0
        %1923 = vmatpush.msra.mxu0 0.0
        %1924 = vmatpush.msra.mxu0 0.0
        %1925 = vmatpush.msra.mxu0 0.0
        %1926 = vmatpush.msra.mxu0 0.0
        %1927 = vmatpush.msra.mxu0 0.0
        %1928 = vmatpush.msra.mxu0 0.0
        %1929 = vmatpush.msra.mxu0 0.0
        %1930 = vmatpush.msra.mxu0 0.0
        %1931 = vmatpush.msra.mxu0 0.0
        %1932 = vmatpush.msra.mxu0 %v1817
        %1933 = vmatpush.msra.mxu0 %v1816
        %1934 = vmatpush.msra.mxu0 %v1815
        %1935 = vmatpush.msra.mxu0 %v1814
        %1936 = vmatmul.f32.gmra.mxu0 %v1897
        %v1937 = vpop.f32.mrf.mxu0
        %v1938 = vadd.f32 %v1873, %v1937
        %1939 = vmatmul.f32.gmra.mxu0 %v1900
        %v1940 = vpop.f32.mrf.mxu0
        %v1941 = vadd.f32 %v1876, %v1940
        %1942 = vmatmul.f32.gmra.mxu0 %v1903
        %v1943 = vpop.f32.mrf.mxu0
        %v1944 = vadd.f32 %v1879, %v1943
        %1945 = vmatmul.f32.gmra.mxu0 %v1906
        %v1946 = vpop.f32.mrf.mxu0
        %v1947 = vadd.f32 %v1882, %v1946
        %1948 = vmatmul.f32.gmra.mxu0 %v1909
        %v1949 = vpop.f32.mrf.mxu0
        %v1950 = vadd.f32 %v1885, %v1949
        %1951 = vmatmul.f32.gmra.mxu0 %v1912
        %v1952 = vpop.f32.mrf.mxu0
        %v1953 = vadd.f32 %v1888, %v1952
        %1954 = vmatmul.f32.gmra.mxu0 %v1915
        %v1955 = vpop.f32.mrf.mxu0
        %v1956 = vadd.f32 %v1891, %v1955
        %1957 = vmatmul.f32.gmra.mxu0 %v1918
        %v1958 = vpop.f32.mrf.mxu0
        %v1959 = vadd.f32 %v1894, %v1958
        %1960 = vdwg.mxu0
        %v1961 = vld [vmem:[#allocation2 + $0x2] sm:$0xff]
        %v1962 = vld [vmem:[#allocation2 + $0x12] sm:$0xff]
        %v1963 = vld [vmem:[#allocation2 + $0x22] sm:$0xff]
        %v1964 = vld [vmem:[#allocation2 + $0x32] sm:$0xff]
        %v1965 = vld [vmem:[#allocation2 + $0x42] sm:$0xff]
        %v1966 = vld [vmem:[#allocation2 + $0x52] sm:$0xff]
        %v1967 = vld [vmem:[#allocation2 + $0x62] sm:$0xff]
        %v1968 = vld [vmem:[#allocation2 + $0x72] sm:$0xff]
        %s1969 = scalar_lea.vmem %s3, 64
        %v1970 = vld [vmem:[%s1969] sm:$0xff]
        %v1971 = vld [vmem:[%s1969 + $0x8] sm:$0xff]
        %v1972 = vld [vmem:[%s1969 + $0x10] sm:$0xff]
        %v1973 = vld [vmem:[%s1969 + $0x18] sm:$0xff]
        %v1975 = vsel %vm493, %v1961, 0
        %v1978 = vsel %vm493, %v1962, 0
        %v1981 = vsel %vm493, %v1963, 0
        %v1984 = vsel %vm493, %v1964, 0
        %v1987 = vsel %vm493, %v1965, 0
        %v1990 = vsel %vm493, %v1966, 0
        %v1993 = vsel %vm493, %v1967, 0
        %v1996 = vsel %vm493, %v1968, 0
        %1998 = vmatpush.msra.mxu0 0.0
        %1999 = vmatpush.msra.mxu0 0.0
        %2000 = vmatpush.msra.mxu0 0.0
        %2001 = vmatpush.msra.mxu0 0.0
        %2002 = vmatpush.msra.mxu0 0.0
        %2003 = vmatpush.msra.mxu0 0.0
        %2004 = vmatpush.msra.mxu0 0.0
        %2005 = vmatpush.msra.mxu0 0.0
        %2006 = vmatpush.msra.mxu0 0.0
        %2007 = vmatpush.msra.mxu0 0.0
        %2008 = vmatpush.msra.mxu0 0.0
        %2009 = vmatpush.msra.mxu0 0.0
        %2010 = vmatpush.msra.mxu0 %v1973
        %2011 = vmatpush.msra.mxu0 %v1972
        %2012 = vmatpush.msra.mxu0 %v1971
        %2013 = vmatpush.msra.mxu0 %v1970
        %2014 = vmatmul.f32.gmra.mxu0 %v1975
        %v2015 = vpop.f32.mrf.mxu0
        %v2016 = vadd.f32 0.0, %v2015
        %2017 = vmatmul.f32.gmra.mxu0 %v1978
        %v2018 = vpop.f32.mrf.mxu0
        %v2019 = vadd.f32 0.0, %v2018
        %2020 = vmatmul.f32.gmra.mxu0 %v1981
        %v2021 = vpop.f32.mrf.mxu0
        %v2022 = vadd.f32 0.0, %v2021
        %2023 = vmatmul.f32.gmra.mxu0 %v1984
        %v2024 = vpop.f32.mrf.mxu0
        %v2025 = vadd.f32 0.0, %v2024
        %2026 = vmatmul.f32.gmra.mxu0 %v1987
        %v2027 = vpop.f32.mrf.mxu0
        %v2028 = vadd.f32 0.0, %v2027
        %2029 = vmatmul.f32.gmra.mxu0 %v1990
        %v2030 = vpop.f32.mrf.mxu0
        %v2031 = vadd.f32 0.0, %v2030
        %2032 = vmatmul.f32.gmra.mxu0 %v1993
        %v2033 = vpop.f32.mrf.mxu0
        %v2034 = vadd.f32 0.0, %v2033
        %2035 = vmatmul.f32.gmra.mxu0 %v1996
        %v2036 = vpop.f32.mrf.mxu0
        %v2037 = vadd.f32 0.0, %v2036
        %2038 = vdwg.mxu0
        %v2039 = vadd.f32 %v1938, %v2016
        %v2040 = vadd.f32 %v1941, %v2019
        %v2041 = vadd.f32 %v1944, %v2022
        %v2042 = vadd.f32 %v1947, %v2025
        %v2043 = vadd.f32 %v1950, %v2028
        %v2044 = vadd.f32 %v1953, %v2031
        %v2045 = vadd.f32 %v1956, %v2034
        %v2046 = vadd.f32 %v1959, %v2037
        %v2047 = vld [vmem:[#allocation2 + $0x3] sm:$0xff]
        %v2048 = vld [vmem:[#allocation2 + $0x13] sm:$0xff]
        %v2049 = vld [vmem:[#allocation2 + $0x23] sm:$0xff]
        %v2050 = vld [vmem:[#allocation2 + $0x33] sm:$0xff]
        %v2051 = vld [vmem:[#allocation2 + $0x43] sm:$0xff]
        %v2052 = vld [vmem:[#allocation2 + $0x53] sm:$0xff]
        %v2053 = vld [vmem:[#allocation2 + $0x63] sm:$0xff]
        %v2054 = vld [vmem:[#allocation2 + $0x73] sm:$0xff]
        %s2055 = scalar_lea.vmem %s3, 96
        %v2056 = vld [vmem:[%s2055] sm:$0xff]
        %v2057 = vld [vmem:[%s2055 + $0x8] sm:$0xff]
        %v2058 = vld [vmem:[%s2055 + $0x10] sm:$0xff]
        %v2059 = vld [vmem:[%s2055 + $0x18] sm:$0xff]
        %v2061 = vsel %vm493, %v2047, 0
        %v2064 = vsel %vm493, %v2048, 0
        %v2067 = vsel %vm493, %v2049, 0
        %v2070 = vsel %vm493, %v2050, 0
        %v2073 = vsel %vm493, %v2051, 0
        %v2076 = vsel %vm493, %v2052, 0
        %v2079 = vsel %vm493, %v2053, 0
        %v2082 = vsel %vm493, %v2054, 0
        %2084 = vmatpush.msra.mxu0 0.0
        %2085 = vmatpush.msra.mxu0 0.0
        %2086 = vmatpush.msra.mxu0 0.0
        %2087 = vmatpush.msra.mxu0 0.0
        %2088 = vmatpush.msra.mxu0 0.0
        %2089 = vmatpush.msra.mxu0 0.0
        %2090 = vmatpush.msra.mxu0 0.0
        %2091 = vmatpush.msra.mxu0 0.0
        %2092 = vmatpush.msra.mxu0 0.0
        %2093 = vmatpush.msra.mxu0 0.0
        %2094 = vmatpush.msra.mxu0 0.0
        %2095 = vmatpush.msra.mxu0 0.0
        %2096 = vmatpush.msra.mxu0 %v2059
        %2097 = vmatpush.msra.mxu0 %v2058
        %2098 = vmatpush.msra.mxu0 %v2057
        %2099 = vmatpush.msra.mxu0 %v2056
        %2100 = vmatmul.f32.gmra.mxu0 %v2061
        %v2101 = vpop.f32.mrf.mxu0
        %v2102 = vadd.f32 0.0, %v2101
        %2103 = vmatmul.f32.gmra.mxu0 %v2064
        %v2104 = vpop.f32.mrf.mxu0
        %v2105 = vadd.f32 0.0, %v2104
        %2106 = vmatmul.f32.gmra.mxu0 %v2067
        %v2107 = vpop.f32.mrf.mxu0
        %v2108 = vadd.f32 0.0, %v2107
        %2109 = vmatmul.f32.gmra.mxu0 %v2070
        %v2110 = vpop.f32.mrf.mxu0
        %v2111 = vadd.f32 0.0, %v2110
        %2112 = vmatmul.f32.gmra.mxu0 %v2073
        %v2113 = vpop.f32.mrf.mxu0
        %v2114 = vadd.f32 0.0, %v2113
        %2115 = vmatmul.f32.gmra.mxu0 %v2076
        %v2116 = vpop.f32.mrf.mxu0
        %v2117 = vadd.f32 0.0, %v2116
        %2118 = vmatmul.f32.gmra.mxu0 %v2079
        %v2119 = vpop.f32.mrf.mxu0
        %v2120 = vadd.f32 0.0, %v2119
        %2121 = vmatmul.f32.gmra.mxu0 %v2082
        %v2122 = vpop.f32.mrf.mxu0
        %v2123 = vadd.f32 0.0, %v2122
        %2124 = vdwg.mxu0
        %v2125 = vadd.f32 %v2039, %v2102
        %v2126 = vadd.f32 %v2040, %v2105
        %v2127 = vadd.f32 %v2041, %v2108
        %v2128 = vadd.f32 %v2042, %v2111
        %v2129 = vadd.f32 %v2043, %v2114
        %v2130 = vadd.f32 %v2044, %v2117
        %v2131 = vadd.f32 %v2045, %v2120
        %v2132 = vadd.f32 %v2046, %v2123
        %v2133 = vld [vmem:[#allocation2 + $0x4] sm:$0xff]
        %v2134 = vld [vmem:[#allocation2 + $0x14] sm:$0xff]
        %v2135 = vld [vmem:[#allocation2 + $0x24] sm:$0xff]
        %v2136 = vld [vmem:[#allocation2 + $0x34] sm:$0xff]
        %v2137 = vld [vmem:[#allocation2 + $0x44] sm:$0xff]
        %v2138 = vld [vmem:[#allocation2 + $0x54] sm:$0xff]
        %v2139 = vld [vmem:[#allocation2 + $0x64] sm:$0xff]
        %v2140 = vld [vmem:[#allocation2 + $0x74] sm:$0xff]
        %s2141 = scalar_lea.vmem %s3, 128
        %v2142 = vld [vmem:[%s2141] sm:$0xff]
        %v2143 = vld [vmem:[%s2141 + $0x8] sm:$0xff]
        %v2144 = vld [vmem:[%s2141 + $0x10] sm:$0xff]
        %v2145 = vld [vmem:[%s2141 + $0x18] sm:$0xff]
        %v2147 = vsel %vm493, %v2133, 0
        %v2150 = vsel %vm493, %v2134, 0
        %v2153 = vsel %vm493, %v2135, 0
        %v2156 = vsel %vm493, %v2136, 0
        %v2159 = vsel %vm493, %v2137, 0
        %v2162 = vsel %vm493, %v2138, 0
        %v2165 = vsel %vm493, %v2139, 0
        %v2168 = vsel %vm493, %v2140, 0
        %2170 = vmatpush.msra.mxu0 0.0
        %2171 = vmatpush.msra.mxu0 0.0
        %2172 = vmatpush.msra.mxu0 0.0
        %2173 = vmatpush.msra.mxu0 0.0
        %2174 = vmatpush.msra.mxu0 0.0
        %2175 = vmatpush.msra.mxu0 0.0
        %2176 = vmatpush.msra.mxu0 0.0
        %2177 = vmatpush.msra.mxu0 0.0
        %2178 = vmatpush.msra.mxu0 0.0
        %2179 = vmatpush.msra.mxu0 0.0
        %2180 = vmatpush.msra.mxu0 0.0
        %2181 = vmatpush.msra.mxu0 0.0
        %2182 = vmatpush.msra.mxu0 %v2145
        %2183 = vmatpush.msra.mxu0 %v2144
        %2184 = vmatpush.msra.mxu0 %v2143
        %2185 = vmatpush.msra.mxu0 %v2142
        %2186 = vmatmul.f32.gmra.mxu0 %v2147
        %v2187 = vpop.f32.mrf.mxu0
        %v2188 = vadd.f32 0.0, %v2187
        %2189 = vmatmul.f32.gmra.mxu0 %v2150
        %v2190 = vpop.f32.mrf.mxu0
        %v2191 = vadd.f32 0.0, %v2190
        %2192 = vmatmul.f32.gmra.mxu0 %v2153
        %v2193 = vpop.f32.mrf.mxu0
        %v2194 = vadd.f32 0.0, %v2193
        %2195 = vmatmul.f32.gmra.mxu0 %v2156
        %v2196 = vpop.f32.mrf.mxu0
        %v2197 = vadd.f32 0.0, %v2196
        %2198 = vmatmul.f32.gmra.mxu0 %v2159
        %v2199 = vpop.f32.mrf.mxu0
        %v2200 = vadd.f32 0.0, %v2199
        %2201 = vmatmul.f32.gmra.mxu0 %v2162
        %v2202 = vpop.f32.mrf.mxu0
        %v2203 = vadd.f32 0.0, %v2202
        %2204 = vmatmul.f32.gmra.mxu0 %v2165
        %v2205 = vpop.f32.mrf.mxu0
        %v2206 = vadd.f32 0.0, %v2205
        %2207 = vmatmul.f32.gmra.mxu0 %v2168
        %v2208 = vpop.f32.mrf.mxu0
        %v2209 = vadd.f32 0.0, %v2208
        %2210 = vdwg.mxu0
        %v2211 = vadd.f32 %v2125, %v2188
        %v2212 = vadd.f32 %v2126, %v2191
        %v2213 = vadd.f32 %v2127, %v2194
        %v2214 = vadd.f32 %v2128, %v2197
        %v2215 = vadd.f32 %v2129, %v2200
        %v2216 = vadd.f32 %v2130, %v2203
        %v2217 = vadd.f32 %v2131, %v2206
        %v2218 = vadd.f32 %v2132, %v2209
        %v2219 = vld [vmem:[%s613] sm:$0xff]
        %v2220 = vld [vmem:[%s613 + $0x10] sm:$0xff]
        %v2221 = vld [vmem:[%s613 + $0x20] sm:$0xff]
        %v2222 = vld [vmem:[%s613 + $0x30] sm:$0xff]
        %v2223 = vld [vmem:[%s613 + $0x40] sm:$0xff]
        %v2224 = vld [vmem:[%s613 + $0x50] sm:$0xff]
        %v2225 = vld [vmem:[%s613 + $0x60] sm:$0xff]
        %v2226 = vld [vmem:[%s613 + $0x70] sm:$0xff]
        %s2227 = scalar_lea.vmem %s3, 160
        %v2228 = vld [vmem:[%s2227] sm:$0xff]
        %v2229 = vld [vmem:[%s2227 + $0x8] sm:$0xff]
        %v2230 = vld [vmem:[%s2227 + $0x10] sm:$0xff]
        %v2231 = vld [vmem:[%s2227 + $0x18] sm:$0xff]
        %v2233 = vsel %vm493, %v2219, 0
        %v2236 = vsel %vm493, %v2220, 0
        %v2239 = vsel %vm493, %v2221, 0
        %v2242 = vsel %vm493, %v2222, 0
        %v2245 = vsel %vm493, %v2223, 0
        %v2248 = vsel %vm493, %v2224, 0
        %v2251 = vsel %vm493, %v2225, 0
        %v2254 = vsel %vm493, %v2226, 0
        %2256 = vmatpush.msra.mxu0 0.0
        %2257 = vmatpush.msra.mxu0 0.0
        %2258 = vmatpush.msra.mxu0 0.0
        %2259 = vmatpush.msra.mxu0 0.0
        %2260 = vmatpush.msra.mxu0 0.0
        %2261 = vmatpush.msra.mxu0 0.0
        %2262 = vmatpush.msra.mxu0 0.0
        %2263 = vmatpush.msra.mxu0 0.0
        %2264 = vmatpush.msra.mxu0 0.0
        %2265 = vmatpush.msra.mxu0 0.0
        %2266 = vmatpush.msra.mxu0 0.0
        %2267 = vmatpush.msra.mxu0 0.0
        %2268 = vmatpush.msra.mxu0 %v2231
        %2269 = vmatpush.msra.mxu0 %v2230
        %2270 = vmatpush.msra.mxu0 %v2229
        %2271 = vmatpush.msra.mxu0 %v2228
        %2272 = vmatmul.f32.gmra.mxu0 %v2233
        %v2273 = vpop.f32.mrf.mxu0
        %v2274 = vadd.f32 0.0, %v2273
        %2275 = vmatmul.f32.gmra.mxu0 %v2236
        %v2276 = vpop.f32.mrf.mxu0
        %v2277 = vadd.f32 0.0, %v2276
        %2278 = vmatmul.f32.gmra.mxu0 %v2239
        %v2279 = vpop.f32.mrf.mxu0
        %v2280 = vadd.f32 0.0, %v2279
        %2281 = vmatmul.f32.gmra.mxu0 %v2242
        %v2282 = vpop.f32.mrf.mxu0
        %v2283 = vadd.f32 0.0, %v2282
        %2284 = vmatmul.f32.gmra.mxu0 %v2245
        %v2285 = vpop.f32.mrf.mxu0
        %v2286 = vadd.f32 0.0, %v2285
        %2287 = vmatmul.f32.gmra.mxu0 %v2248
        %v2288 = vpop.f32.mrf.mxu0
        %v2289 = vadd.f32 0.0, %v2288
        %2290 = vmatmul.f32.gmra.mxu0 %v2251
        %v2291 = vpop.f32.mrf.mxu0
        %v2292 = vadd.f32 0.0, %v2291
        %2293 = vmatmul.f32.gmra.mxu0 %v2254
        %v2294 = vpop.f32.mrf.mxu0
        %v2295 = vadd.f32 0.0, %v2294
        %2296 = vdwg.mxu0
        %v2297 = vadd.f32 %v2211, %v2274
        %v2298 = vadd.f32 %v2212, %v2277
        %v2299 = vadd.f32 %v2213, %v2280
        %v2300 = vadd.f32 %v2214, %v2283
        %v2301 = vadd.f32 %v2215, %v2286
        %v2302 = vadd.f32 %v2216, %v2289
        %v2303 = vadd.f32 %v2217, %v2292
        %v2304 = vadd.f32 %v2218, %v2295
        %v2305 = vld [vmem:[%s613 + $0x1] sm:$0xff]
        %v2306 = vld [vmem:[%s613 + $0x11] sm:$0xff]
        %v2307 = vld [vmem:[%s613 + $0x21] sm:$0xff]
        %v2308 = vld [vmem:[%s613 + $0x31] sm:$0xff]
        %v2309 = vld [vmem:[%s613 + $0x41] sm:$0xff]
        %v2310 = vld [vmem:[%s613 + $0x51] sm:$0xff]
        %v2311 = vld [vmem:[%s613 + $0x61] sm:$0xff]
        %v2312 = vld [vmem:[%s613 + $0x71] sm:$0xff]
        %s2313 = scalar_lea.vmem %s3, 192
        %v2314 = vld [vmem:[%s2313] sm:$0xff]
        %v2315 = vld [vmem:[%s2313 + $0x8] sm:$0xff]
        %v2316 = vld [vmem:[%s2313 + $0x10] sm:$0xff]
        %v2317 = vld [vmem:[%s2313 + $0x18] sm:$0xff]
        %v2319 = vsel %vm493, %v2305, 0
        %v2322 = vsel %vm493, %v2306, 0
        %v2325 = vsel %vm493, %v2307, 0
        %v2328 = vsel %vm493, %v2308, 0
        %v2331 = vsel %vm493, %v2309, 0
        %v2334 = vsel %vm493, %v2310, 0
        %v2337 = vsel %vm493, %v2311, 0
        %v2340 = vsel %vm493, %v2312, 0
        %2342 = vmatpush.msra.mxu0 0.0
        %2343 = vmatpush.msra.mxu0 0.0
        %2344 = vmatpush.msra.mxu0 0.0
        %2345 = vmatpush.msra.mxu0 0.0
        %2346 = vmatpush.msra.mxu0 0.0
        %2347 = vmatpush.msra.mxu0 0.0
        %2348 = vmatpush.msra.mxu0 0.0
        %2349 = vmatpush.msra.mxu0 0.0
        %2350 = vmatpush.msra.mxu0 0.0
        %2351 = vmatpush.msra.mxu0 0.0
        %2352 = vmatpush.msra.mxu0 0.0
        %2353 = vmatpush.msra.mxu0 0.0
        %2354 = vmatpush.msra.mxu0 %v2317
        %2355 = vmatpush.msra.mxu0 %v2316
        %2356 = vmatpush.msra.mxu0 %v2315
        %2357 = vmatpush.msra.mxu0 %v2314
        %2358 = vmatmul.f32.gmra.mxu0 %v2319
        %v2359 = vpop.f32.mrf.mxu0
        %v2360 = vadd.f32 0.0, %v2359
        %2361 = vmatmul.f32.gmra.mxu0 %v2322
        %v2362 = vpop.f32.mrf.mxu0
        %v2363 = vadd.f32 0.0, %v2362
        %2364 = vmatmul.f32.gmra.mxu0 %v2325
        %v2365 = vpop.f32.mrf.mxu0
        %v2366 = vadd.f32 0.0, %v2365
        %2367 = vmatmul.f32.gmra.mxu0 %v2328
        %v2368 = vpop.f32.mrf.mxu0
        %v2369 = vadd.f32 0.0, %v2368
        %2370 = vmatmul.f32.gmra.mxu0 %v2331
        %v2371 = vpop.f32.mrf.mxu0
        %v2372 = vadd.f32 0.0, %v2371
        %2373 = vmatmul.f32.gmra.mxu0 %v2334
        %v2374 = vpop.f32.mrf.mxu0
        %v2375 = vadd.f32 0.0, %v2374
        %2376 = vmatmul.f32.gmra.mxu0 %v2337
        %v2377 = vpop.f32.mrf.mxu0
        %v2378 = vadd.f32 0.0, %v2377
        %2379 = vmatmul.f32.gmra.mxu0 %v2340
        %v2380 = vpop.f32.mrf.mxu0
        %v2381 = vadd.f32 0.0, %v2380
        %2382 = vdwg.mxu0
        %v2383 = vadd.f32 %v2297, %v2360
        %v2384 = vadd.f32 %v2298, %v2363
        %v2385 = vadd.f32 %v2299, %v2366
        %v2386 = vadd.f32 %v2300, %v2369
        %v2387 = vadd.f32 %v2301, %v2372
        %v2388 = vadd.f32 %v2302, %v2375
        %v2389 = vadd.f32 %v2303, %v2378
        %v2390 = vadd.f32 %v2304, %v2381
        %v2391 = vld [vmem:[%s613 + $0x2] sm:$0xff]
        %v2392 = vld [vmem:[%s613 + $0x12] sm:$0xff]
        %v2393 = vld [vmem:[%s613 + $0x22] sm:$0xff]
        %v2394 = vld [vmem:[%s613 + $0x32] sm:$0xff]
        %v2395 = vld [vmem:[%s613 + $0x42] sm:$0xff]
        %v2396 = vld [vmem:[%s613 + $0x52] sm:$0xff]
        %v2397 = vld [vmem:[%s613 + $0x62] sm:$0xff]
        %v2398 = vld [vmem:[%s613 + $0x72] sm:$0xff]
        %s2399 = scalar_lea.vmem %s3, 224
        %v2400 = vld [vmem:[%s2399] sm:$0xff]
        %v2401 = vld [vmem:[%s2399 + $0x8] sm:$0xff]
        %v2402 = vld [vmem:[%s2399 + $0x10] sm:$0xff]
        %v2403 = vld [vmem:[%s2399 + $0x18] sm:$0xff]
        %v2405 = vsel %vm493, %v2391, 0
        %v2408 = vsel %vm493, %v2392, 0
        %v2411 = vsel %vm493, %v2393, 0
        %v2414 = vsel %vm493, %v2394, 0
        %v2417 = vsel %vm493, %v2395, 0
        %v2420 = vsel %vm493, %v2396, 0
        %v2423 = vsel %vm493, %v2397, 0
        %v2426 = vsel %vm493, %v2398, 0
        %2428 = vmatpush.msra.mxu0 0.0
        %2429 = vmatpush.msra.mxu0 0.0
        %2430 = vmatpush.msra.mxu0 0.0
        %2431 = vmatpush.msra.mxu0 0.0
        %2432 = vmatpush.msra.mxu0 0.0
        %2433 = vmatpush.msra.mxu0 0.0
        %2434 = vmatpush.msra.mxu0 0.0
        %2435 = vmatpush.msra.mxu0 0.0
        %2436 = vmatpush.msra.mxu0 0.0
        %2437 = vmatpush.msra.mxu0 0.0
        %2438 = vmatpush.msra.mxu0 0.0
        %2439 = vmatpush.msra.mxu0 0.0
        %2440 = vmatpush.msra.mxu0 %v2403
        %2441 = vmatpush.msra.mxu0 %v2402
        %2442 = vmatpush.msra.mxu0 %v2401
        %2443 = vmatpush.msra.mxu0 %v2400
        %2444 = vmatmul.f32.gmra.mxu0 %v2405
        %v2445 = vpop.f32.mrf.mxu0
        %v2446 = vadd.f32 0.0, %v2445
        %2447 = vmatmul.f32.gmra.mxu0 %v2408
        %v2448 = vpop.f32.mrf.mxu0
        %v2449 = vadd.f32 0.0, %v2448
        %2450 = vmatmul.f32.gmra.mxu0 %v2411
        %v2451 = vpop.f32.mrf.mxu0
        %v2452 = vadd.f32 0.0, %v2451
        %2453 = vmatmul.f32.gmra.mxu0 %v2414
        %v2454 = vpop.f32.mrf.mxu0
        %v2455 = vadd.f32 0.0, %v2454
        %2456 = vmatmul.f32.gmra.mxu0 %v2417
        %v2457 = vpop.f32.mrf.mxu0
        %v2458 = vadd.f32 0.0, %v2457
        %2459 = vmatmul.f32.gmra.mxu0 %v2420
        %v2460 = vpop.f32.mrf.mxu0
        %v2461 = vadd.f32 0.0, %v2460
        %2462 = vmatmul.f32.gmra.mxu0 %v2423
        %v2463 = vpop.f32.mrf.mxu0
        %v2464 = vadd.f32 0.0, %v2463
        %2465 = vmatmul.f32.gmra.mxu0 %v2426
        %v2466 = vpop.f32.mrf.mxu0
        %v2467 = vadd.f32 0.0, %v2466
        %2468 = vdwg.mxu0
        %v2469 = vadd.f32 %v2383, %v2446
        %v2470 = vadd.f32 %v2384, %v2449
        %v2471 = vadd.f32 %v2385, %v2452
        %v2472 = vadd.f32 %v2386, %v2455
        %v2473 = vadd.f32 %v2387, %v2458
        %v2474 = vadd.f32 %v2388, %v2461
        %v2475 = vadd.f32 %v2389, %v2464
        %v2476 = vadd.f32 %v2390, %v2467
        %v2477 = vld [vmem:[%s613 + $0x3] sm:$0xff]
        %v2478 = vld [vmem:[%s613 + $0x13] sm:$0xff]
        %v2479 = vld [vmem:[%s613 + $0x23] sm:$0xff]
        %v2480 = vld [vmem:[%s613 + $0x33] sm:$0xff]
        %v2481 = vld [vmem:[%s613 + $0x43] sm:$0xff]
        %v2482 = vld [vmem:[%s613 + $0x53] sm:$0xff]
        %v2483 = vld [vmem:[%s613 + $0x63] sm:$0xff]
        %v2484 = vld [vmem:[%s613 + $0x73] sm:$0xff]
        %s2485 = scalar_lea.vmem %s3, 256
        %v2486 = vld [vmem:[%s2485] sm:$0xff]
        %v2487 = vld [vmem:[%s2485 + $0x8] sm:$0xff]
        %v2488 = vld [vmem:[%s2485 + $0x10] sm:$0xff]
        %v2489 = vld [vmem:[%s2485 + $0x18] sm:$0xff]
        %v2491 = vsel %vm493, %v2477, 0
        %v2494 = vsel %vm493, %v2478, 0
        %v2497 = vsel %vm493, %v2479, 0
        %v2500 = vsel %vm493, %v2480, 0
        %v2503 = vsel %vm493, %v2481, 0
        %v2506 = vsel %vm493, %v2482, 0
        %v2509 = vsel %vm493, %v2483, 0
        %v2512 = vsel %vm493, %v2484, 0
        %2514 = vmatpush.msra.mxu0 0.0
        %2515 = vmatpush.msra.mxu0 0.0
        %2516 = vmatpush.msra.mxu0 0.0
        %2517 = vmatpush.msra.mxu0 0.0
        %2518 = vmatpush.msra.mxu0 0.0
        %2519 = vmatpush.msra.mxu0 0.0
        %2520 = vmatpush.msra.mxu0 0.0
        %2521 = vmatpush.msra.mxu0 0.0
        %2522 = vmatpush.msra.mxu0 0.0
        %2523 = vmatpush.msra.mxu0 0.0
        %2524 = vmatpush.msra.mxu0 0.0
        %2525 = vmatpush.msra.mxu0 0.0
        %2526 = vmatpush.msra.mxu0 %v2489
        %2527 = vmatpush.msra.mxu0 %v2488
        %2528 = vmatpush.msra.mxu0 %v2487
        %2529 = vmatpush.msra.mxu0 %v2486
        %2530 = vmatmul.f32.gmra.mxu0 %v2491
        %v2531 = vpop.f32.mrf.mxu0
        %v2532 = vadd.f32 0.0, %v2531
        %2533 = vmatmul.f32.gmra.mxu0 %v2494
        %v2534 = vpop.f32.mrf.mxu0
        %v2535 = vadd.f32 0.0, %v2534
        %2536 = vmatmul.f32.gmra.mxu0 %v2497
        %v2537 = vpop.f32.mrf.mxu0
        %v2538 = vadd.f32 0.0, %v2537
        %2539 = vmatmul.f32.gmra.mxu0 %v2500
        %v2540 = vpop.f32.mrf.mxu0
        %v2541 = vadd.f32 0.0, %v2540
        %2542 = vmatmul.f32.gmra.mxu0 %v2503
        %v2543 = vpop.f32.mrf.mxu0
        %v2544 = vadd.f32 0.0, %v2543
        %2545 = vmatmul.f32.gmra.mxu0 %v2506
        %v2546 = vpop.f32.mrf.mxu0
        %v2547 = vadd.f32 0.0, %v2546
        %2548 = vmatmul.f32.gmra.mxu0 %v2509
        %v2549 = vpop.f32.mrf.mxu0
        %v2550 = vadd.f32 0.0, %v2549
        %2551 = vmatmul.f32.gmra.mxu0 %v2512
        %v2552 = vpop.f32.mrf.mxu0
        %v2553 = vadd.f32 0.0, %v2552
        %2554 = vdwg.mxu0
        %v2555 = vadd.f32 %v2469, %v2532
        %v2556 = vadd.f32 %v2470, %v2535
        %v2557 = vadd.f32 %v2471, %v2538
        %v2558 = vadd.f32 %v2472, %v2541
        %v2559 = vadd.f32 %v2473, %v2544
        %v2560 = vadd.f32 %v2474, %v2547
        %v2561 = vadd.f32 %v2475, %v2550
        %v2562 = vadd.f32 %v2476, %v2553
        %v2563 = vld [vmem:[%s613 + $0x4] sm:$0xff]
        %v2564 = vld [vmem:[%s613 + $0x14] sm:$0xff]
        %v2565 = vld [vmem:[%s613 + $0x24] sm:$0xff]
        %v2566 = vld [vmem:[%s613 + $0x34] sm:$0xff]
        %v2567 = vld [vmem:[%s613 + $0x44] sm:$0xff]
        %v2568 = vld [vmem:[%s613 + $0x54] sm:$0xff]
        %v2569 = vld [vmem:[%s613 + $0x64] sm:$0xff]
        %v2570 = vld [vmem:[%s613 + $0x74] sm:$0xff]
        %s2571 = scalar_lea.vmem %s3, 288
        %v2572 = vld [vmem:[%s2571] sm:$0xff]
        %v2573 = vld [vmem:[%s2571 + $0x8] sm:$0xff]
        %v2574 = vld [vmem:[%s2571 + $0x10] sm:$0xff]
        %v2575 = vld [vmem:[%s2571 + $0x18] sm:$0xff]
        %v2577 = vsel %vm493, %v2563, 0
        %v2580 = vsel %vm493, %v2564, 0
        %v2583 = vsel %vm493, %v2565, 0
        %v2586 = vsel %vm493, %v2566, 0
        %v2589 = vsel %vm493, %v2567, 0
        %v2592 = vsel %vm493, %v2568, 0
        %v2595 = vsel %vm493, %v2569, 0
        %v2598 = vsel %vm493, %v2570, 0
        %2600 = vmatpush.msra.mxu0 0.0
        %2601 = vmatpush.msra.mxu0 0.0
        %2602 = vmatpush.msra.mxu0 0.0
        %2603 = vmatpush.msra.mxu0 0.0
        %2604 = vmatpush.msra.mxu0 0.0
        %2605 = vmatpush.msra.mxu0 0.0
        %2606 = vmatpush.msra.mxu0 0.0
        %2607 = vmatpush.msra.mxu0 0.0
        %2608 = vmatpush.msra.mxu0 0.0
        %2609 = vmatpush.msra.mxu0 0.0
        %2610 = vmatpush.msra.mxu0 0.0
        %2611 = vmatpush.msra.mxu0 0.0
        %2612 = vmatpush.msra.mxu0 %v2575
        %2613 = vmatpush.msra.mxu0 %v2574
        %2614 = vmatpush.msra.mxu0 %v2573
        %2615 = vmatpush.msra.mxu0 %v2572
        %2616 = vmatmul.f32.gmra.mxu0 %v2577
        %v2617 = vpop.f32.mrf.mxu0
        %v2618 = vadd.f32 0.0, %v2617
        %2619 = vmatmul.f32.gmra.mxu0 %v2580
        %v2620 = vpop.f32.mrf.mxu0
        %v2621 = vadd.f32 0.0, %v2620
        %2622 = vmatmul.f32.gmra.mxu0 %v2583
        %v2623 = vpop.f32.mrf.mxu0
        %v2624 = vadd.f32 0.0, %v2623
        %2625 = vmatmul.f32.gmra.mxu0 %v2586
        %v2626 = vpop.f32.mrf.mxu0
        %v2627 = vadd.f32 0.0, %v2626
        %2628 = vmatmul.f32.gmra.mxu0 %v2589
        %v2629 = vpop.f32.mrf.mxu0
        %v2630 = vadd.f32 0.0, %v2629
        %2631 = vmatmul.f32.gmra.mxu0 %v2592
        %v2632 = vpop.f32.mrf.mxu0
        %v2633 = vadd.f32 0.0, %v2632
        %2634 = vmatmul.f32.gmra.mxu0 %v2595
        %v2635 = vpop.f32.mrf.mxu0
        %v2636 = vadd.f32 0.0, %v2635
        %2637 = vmatmul.f32.gmra.mxu0 %v2598
        %v2638 = vpop.f32.mrf.mxu0
        %v2639 = vadd.f32 0.0, %v2638
        %2640 = vdwg.mxu0
        %v2641 = vadd.f32 %v2555, %v2618
        %v2642 = vadd.f32 %v2556, %v2621
        %v2643 = vadd.f32 %v2557, %v2624
        %v2644 = vadd.f32 %v2558, %v2627
        %v2645 = vadd.f32 %v2559, %v2630
        %v2646 = vadd.f32 %v2560, %v2633
        %v2647 = vadd.f32 %v2561, %v2636
        %v2648 = vadd.f32 %v2562, %v2639
        %v2649 = vld [vmem:[%s732] sm:$0xff]
        %v2650 = vld [vmem:[%s732 + $0x10] sm:$0xff]
        %v2651 = vld [vmem:[%s732 + $0x20] sm:$0xff]
        %v2652 = vld [vmem:[%s732 + $0x30] sm:$0xff]
        %v2653 = vld [vmem:[%s732 + $0x40] sm:$0xff]
        %v2654 = vld [vmem:[%s732 + $0x50] sm:$0xff]
        %v2655 = vld [vmem:[%s732 + $0x60] sm:$0xff]
        %v2656 = vld [vmem:[%s732 + $0x70] sm:$0xff]
        %s2657 = scalar_lea.vmem %s3, 320
        %v2658 = vld [vmem:[%s2657] sm:$0xff]
        %v2659 = vld [vmem:[%s2657 + $0x8] sm:$0xff]
        %v2660 = vld [vmem:[%s2657 + $0x10] sm:$0xff]
        %v2661 = vld [vmem:[%s2657 + $0x18] sm:$0xff]
        %v2663 = vsel %vm493, %v2649, 0
        %v2666 = vsel %vm493, %v2650, 0
        %v2669 = vsel %vm493, %v2651, 0
        %v2672 = vsel %vm493, %v2652, 0
        %v2675 = vsel %vm493, %v2653, 0
        %v2678 = vsel %vm493, %v2654, 0
        %v2681 = vsel %vm493, %v2655, 0
        %v2684 = vsel %vm493, %v2656, 0
        %2686 = vmatpush.msra.mxu0 0.0
        %2687 = vmatpush.msra.mxu0 0.0
        %2688 = vmatpush.msra.mxu0 0.0
        %2689 = vmatpush.msra.mxu0 0.0
        %2690 = vmatpush.msra.mxu0 0.0
        %2691 = vmatpush.msra.mxu0 0.0
        %2692 = vmatpush.msra.mxu0 0.0
        %2693 = vmatpush.msra.mxu0 0.0
        %2694 = vmatpush.msra.mxu0 0.0
        %2695 = vmatpush.msra.mxu0 0.0
        %2696 = vmatpush.msra.mxu0 0.0
        %2697 = vmatpush.msra.mxu0 0.0
        %2698 = vmatpush.msra.mxu0 %v2661
        %2699 = vmatpush.msra.mxu0 %v2660
        %2700 = vmatpush.msra.mxu0 %v2659
        %2701 = vmatpush.msra.mxu0 %v2658
        %2702 = vmatmul.f32.gmra.mxu0 %v2663
        %v2703 = vpop.f32.mrf.mxu0
        %v2704 = vadd.f32 0.0, %v2703
        %2705 = vmatmul.f32.gmra.mxu0 %v2666
        %v2706 = vpop.f32.mrf.mxu0
        %v2707 = vadd.f32 0.0, %v2706
        %2708 = vmatmul.f32.gmra.mxu0 %v2669
        %v2709 = vpop.f32.mrf.mxu0
        %v2710 = vadd.f32 0.0, %v2709
        %2711 = vmatmul.f32.gmra.mxu0 %v2672
        %v2712 = vpop.f32.mrf.mxu0
        %v2713 = vadd.f32 0.0, %v2712
        %2714 = vmatmul.f32.gmra.mxu0 %v2675
        %v2715 = vpop.f32.mrf.mxu0
        %v2716 = vadd.f32 0.0, %v2715
        %2717 = vmatmul.f32.gmra.mxu0 %v2678
        %v2718 = vpop.f32.mrf.mxu0
        %v2719 = vadd.f32 0.0, %v2718
        %2720 = vmatmul.f32.gmra.mxu0 %v2681
        %v2721 = vpop.f32.mrf.mxu0
        %v2722 = vadd.f32 0.0, %v2721
        %2723 = vmatmul.f32.gmra.mxu0 %v2684
        %v2724 = vpop.f32.mrf.mxu0
        %v2725 = vadd.f32 0.0, %v2724
        %2726 = vdwg.mxu0
        %v2727 = vadd.f32 %v2641, %v2704
        %v2728 = vadd.f32 %v2642, %v2707
        %v2729 = vadd.f32 %v2643, %v2710
        %v2730 = vadd.f32 %v2644, %v2713
        %v2731 = vadd.f32 %v2645, %v2716
        %v2732 = vadd.f32 %v2646, %v2719
        %v2733 = vadd.f32 %v2647, %v2722
        %v2734 = vadd.f32 %v2648, %v2725
        %v2735 = vld [vmem:[%s732 + $0x1] sm:$0xff]
        %v2736 = vld [vmem:[%s732 + $0x11] sm:$0xff]
        %v2737 = vld [vmem:[%s732 + $0x21] sm:$0xff]
        %v2738 = vld [vmem:[%s732 + $0x31] sm:$0xff]
        %v2739 = vld [vmem:[%s732 + $0x41] sm:$0xff]
        %v2740 = vld [vmem:[%s732 + $0x51] sm:$0xff]
        %v2741 = vld [vmem:[%s732 + $0x61] sm:$0xff]
        %v2742 = vld [vmem:[%s732 + $0x71] sm:$0xff]
        %s2743 = scalar_lea.vmem %s3, 352
        %v2744 = vld [vmem:[%s2743] sm:$0xff]
        %v2745 = vld [vmem:[%s2743 + $0x8] sm:$0xff]
        %v2746 = vld [vmem:[%s2743 + $0x10] sm:$0xff]
        %v2747 = vld [vmem:[%s2743 + $0x18] sm:$0xff]
        %v2749 = vsel %vm493, %v2735, 0
        %v2752 = vsel %vm493, %v2736, 0
        %v2755 = vsel %vm493, %v2737, 0
        %v2758 = vsel %vm493, %v2738, 0
        %v2761 = vsel %vm493, %v2739, 0
        %v2764 = vsel %vm493, %v2740, 0
        %v2767 = vsel %vm493, %v2741, 0
        %v2770 = vsel %vm493, %v2742, 0
        %2772 = vmatpush.msra.mxu0 0.0
        %2773 = vmatpush.msra.mxu0 0.0
        %2774 = vmatpush.msra.mxu0 0.0
        %2775 = vmatpush.msra.mxu0 0.0
        %2776 = vmatpush.msra.mxu0 0.0
        %2777 = vmatpush.msra.mxu0 0.0
        %2778 = vmatpush.msra.mxu0 0.0
        %2779 = vmatpush.msra.mxu0 0.0
        %2780 = vmatpush.msra.mxu0 0.0
        %2781 = vmatpush.msra.mxu0 0.0
        %2782 = vmatpush.msra.mxu0 0.0
        %2783 = vmatpush.msra.mxu0 0.0
        %2784 = vmatpush.msra.mxu0 %v2747
        %2785 = vmatpush.msra.mxu0 %v2746
        %2786 = vmatpush.msra.mxu0 %v2745
        %2787 = vmatpush.msra.mxu0 %v2744
        %2788 = vmatmul.f32.gmra.mxu0 %v2749
        %v2789 = vpop.f32.mrf.mxu0
        %v2790 = vadd.f32 0.0, %v2789
        %2791 = vmatmul.f32.gmra.mxu0 %v2752
        %v2792 = vpop.f32.mrf.mxu0
        %v2793 = vadd.f32 0.0, %v2792
        %2794 = vmatmul.f32.gmra.mxu0 %v2755
        %v2795 = vpop.f32.mrf.mxu0
        %v2796 = vadd.f32 0.0, %v2795
        %2797 = vmatmul.f32.gmra.mxu0 %v2758
        %v2798 = vpop.f32.mrf.mxu0
        %v2799 = vadd.f32 0.0, %v2798
        %2800 = vmatmul.f32.gmra.mxu0 %v2761
        %v2801 = vpop.f32.mrf.mxu0
        %v2802 = vadd.f32 0.0, %v2801
        %2803 = vmatmul.f32.gmra.mxu0 %v2764
        %v2804 = vpop.f32.mrf.mxu0
        %v2805 = vadd.f32 0.0, %v2804
        %2806 = vmatmul.f32.gmra.mxu0 %v2767
        %v2807 = vpop.f32.mrf.mxu0
        %v2808 = vadd.f32 0.0, %v2807
        %2809 = vmatmul.f32.gmra.mxu0 %v2770
        %v2810 = vpop.f32.mrf.mxu0
        %v2811 = vadd.f32 0.0, %v2810
        %2812 = vdwg.mxu0
        %v2813 = vadd.f32 %v2727, %v2790
        %v2814 = vadd.f32 %v2728, %v2793
        %v2815 = vadd.f32 %v2729, %v2796
        %v2816 = vadd.f32 %v2730, %v2799
        %v2817 = vadd.f32 %v2731, %v2802
        %v2818 = vadd.f32 %v2732, %v2805
        %v2819 = vadd.f32 %v2733, %v2808
        %v2820 = vadd.f32 %v2734, %v2811
        %v2821 = vld [vmem:[%s732 + $0x2] sm:$0xff]
        %v2822 = vld [vmem:[%s732 + $0x12] sm:$0xff]
        %v2823 = vld [vmem:[%s732 + $0x22] sm:$0xff]
        %v2824 = vld [vmem:[%s732 + $0x32] sm:$0xff]
        %v2825 = vld [vmem:[%s732 + $0x42] sm:$0xff]
        %v2826 = vld [vmem:[%s732 + $0x52] sm:$0xff]
        %v2827 = vld [vmem:[%s732 + $0x62] sm:$0xff]
        %v2828 = vld [vmem:[%s732 + $0x72] sm:$0xff]
        %s2829 = scalar_lea.vmem %s3, 384
        %v2830 = vld [vmem:[%s2829] sm:$0xff]
        %v2831 = vld [vmem:[%s2829 + $0x8] sm:$0xff]
        %v2832 = vld [vmem:[%s2829 + $0x10] sm:$0xff]
        %v2833 = vld [vmem:[%s2829 + $0x18] sm:$0xff]
        %v2835 = vsel %vm493, %v2821, 0
        %v2838 = vsel %vm493, %v2822, 0
        %v2841 = vsel %vm493, %v2823, 0
        %v2844 = vsel %vm493, %v2824, 0
        %v2847 = vsel %vm493, %v2825, 0
        %v2850 = vsel %vm493, %v2826, 0
        %v2853 = vsel %vm493, %v2827, 0
        %v2856 = vsel %vm493, %v2828, 0
        %2858 = vmatpush.msra.mxu0 0.0
        %2859 = vmatpush.msra.mxu0 0.0
        %2860 = vmatpush.msra.mxu0 0.0
        %2861 = vmatpush.msra.mxu0 0.0
        %2862 = vmatpush.msra.mxu0 0.0
        %2863 = vmatpush.msra.mxu0 0.0
        %2864 = vmatpush.msra.mxu0 0.0
        %2865 = vmatpush.msra.mxu0 0.0
        %2866 = vmatpush.msra.mxu0 0.0
        %2867 = vmatpush.msra.mxu0 0.0
        %2868 = vmatpush.msra.mxu0 0.0
        %2869 = vmatpush.msra.mxu0 0.0
        %2870 = vmatpush.msra.mxu0 %v2833
        %2871 = vmatpush.msra.mxu0 %v2832
        %2872 = vmatpush.msra.mxu0 %v2831
        %2873 = vmatpush.msra.mxu0 %v2830
        %2874 = vmatmul.f32.gmra.mxu0 %v2835
        %v2875 = vpop.f32.mrf.mxu0
        %v2876 = vadd.f32 0.0, %v2875
        %2877 = vmatmul.f32.gmra.mxu0 %v2838
        %v2878 = vpop.f32.mrf.mxu0
        %v2879 = vadd.f32 0.0, %v2878
        %2880 = vmatmul.f32.gmra.mxu0 %v2841
        %v2881 = vpop.f32.mrf.mxu0
        %v2882 = vadd.f32 0.0, %v2881
        %2883 = vmatmul.f32.gmra.mxu0 %v2844
        %v2884 = vpop.f32.mrf.mxu0
        %v2885 = vadd.f32 0.0, %v2884
        %2886 = vmatmul.f32.gmra.mxu0 %v2847
        %v2887 = vpop.f32.mrf.mxu0
        %v2888 = vadd.f32 0.0, %v2887
        %2889 = vmatmul.f32.gmra.mxu0 %v2850
        %v2890 = vpop.f32.mrf.mxu0
        %v2891 = vadd.f32 0.0, %v2890
        %2892 = vmatmul.f32.gmra.mxu0 %v2853
        %v2893 = vpop.f32.mrf.mxu0
        %v2894 = vadd.f32 0.0, %v2893
        %2895 = vmatmul.f32.gmra.mxu0 %v2856
        %v2896 = vpop.f32.mrf.mxu0
        %v2897 = vadd.f32 0.0, %v2896
        %2898 = vdwg.mxu0
        %v2899 = vadd.f32 %v2813, %v2876
        %v2900 = vadd.f32 %v2814, %v2879
        %v2901 = vadd.f32 %v2815, %v2882
        %v2902 = vadd.f32 %v2816, %v2885
        %v2903 = vadd.f32 %v2817, %v2888
        %v2904 = vadd.f32 %v2818, %v2891
        %v2905 = vadd.f32 %v2819, %v2894
        %v2906 = vadd.f32 %v2820, %v2897
        %v2907 = vld [vmem:[%s732 + $0x3] sm:$0xff]
        %v2908 = vld [vmem:[%s732 + $0x13] sm:$0xff]
        %v2909 = vld [vmem:[%s732 + $0x23] sm:$0xff]
        %v2910 = vld [vmem:[%s732 + $0x33] sm:$0xff]
        %v2911 = vld [vmem:[%s732 + $0x43] sm:$0xff]
        %v2912 = vld [vmem:[%s732 + $0x53] sm:$0xff]
        %v2913 = vld [vmem:[%s732 + $0x63] sm:$0xff]
        %v2914 = vld [vmem:[%s732 + $0x73] sm:$0xff]
        %s2915 = scalar_lea.vmem %s3, 416
        %v2916 = vld [vmem:[%s2915] sm:$0xff]
        %v2917 = vld [vmem:[%s2915 + $0x8] sm:$0xff]
        %v2918 = vld [vmem:[%s2915 + $0x10] sm:$0xff]
        %v2919 = vld [vmem:[%s2915 + $0x18] sm:$0xff]
        %v2921 = vsel %vm493, %v2907, 0
        %v2924 = vsel %vm493, %v2908, 0
        %v2927 = vsel %vm493, %v2909, 0
        %v2930 = vsel %vm493, %v2910, 0
        %v2933 = vsel %vm493, %v2911, 0
        %v2936 = vsel %vm493, %v2912, 0
        %v2939 = vsel %vm493, %v2913, 0
        %v2942 = vsel %vm493, %v2914, 0
        %2944 = vmatpush.msra.mxu0 0.0
        %2945 = vmatpush.msra.mxu0 0.0
        %2946 = vmatpush.msra.mxu0 0.0
        %2947 = vmatpush.msra.mxu0 0.0
        %2948 = vmatpush.msra.mxu0 0.0
        %2949 = vmatpush.msra.mxu0 0.0
        %2950 = vmatpush.msra.mxu0 0.0
        %2951 = vmatpush.msra.mxu0 0.0
        %2952 = vmatpush.msra.mxu0 0.0
        %2953 = vmatpush.msra.mxu0 0.0
        %2954 = vmatpush.msra.mxu0 0.0
        %2955 = vmatpush.msra.mxu0 0.0
        %2956 = vmatpush.msra.mxu0 %v2919
        %2957 = vmatpush.msra.mxu0 %v2918
        %2958 = vmatpush.msra.mxu0 %v2917
        %2959 = vmatpush.msra.mxu0 %v2916
        %2960 = vmatmul.f32.gmra.mxu0 %v2921
        %v2961 = vpop.f32.mrf.mxu0
        %v2962 = vadd.f32 0.0, %v2961
        %2963 = vmatmul.f32.gmra.mxu0 %v2924
        %v2964 = vpop.f32.mrf.mxu0
        %v2965 = vadd.f32 0.0, %v2964
        %2966 = vmatmul.f32.gmra.mxu0 %v2927
        %v2967 = vpop.f32.mrf.mxu0
        %v2968 = vadd.f32 0.0, %v2967
        %2969 = vmatmul.f32.gmra.mxu0 %v2930
        %v2970 = vpop.f32.mrf.mxu0
        %v2971 = vadd.f32 0.0, %v2970
        %2972 = vmatmul.f32.gmra.mxu0 %v2933
        %v2973 = vpop.f32.mrf.mxu0
        %v2974 = vadd.f32 0.0, %v2973
        %2975 = vmatmul.f32.gmra.mxu0 %v2936
        %v2976 = vpop.f32.mrf.mxu0
        %v2977 = vadd.f32 0.0, %v2976
        %2978 = vmatmul.f32.gmra.mxu0 %v2939
        %v2979 = vpop.f32.mrf.mxu0
        %v2980 = vadd.f32 0.0, %v2979
        %2981 = vmatmul.f32.gmra.mxu0 %v2942
        %v2982 = vpop.f32.mrf.mxu0
        %v2983 = vadd.f32 0.0, %v2982
        %2984 = vdwg.mxu0
        %v2985 = vadd.f32 %v2899, %v2962
        %v2986 = vadd.f32 %v2900, %v2965
        %v2987 = vadd.f32 %v2901, %v2968
        %v2988 = vadd.f32 %v2902, %v2971
        %v2989 = vadd.f32 %v2903, %v2974
        %v2990 = vadd.f32 %v2904, %v2977
        %v2991 = vadd.f32 %v2905, %v2980
        %v2992 = vadd.f32 %v2906, %v2983
        %v2993 = vld [vmem:[%s732 + $0x4] sm:$0xff]
        %v2994 = vld [vmem:[%s732 + $0x14] sm:$0xff]
        %v2995 = vld [vmem:[%s732 + $0x24] sm:$0xff]
        %v2996 = vld [vmem:[%s732 + $0x34] sm:$0xff]
        %v2997 = vld [vmem:[%s732 + $0x44] sm:$0xff]
        %v2998 = vld [vmem:[%s732 + $0x54] sm:$0xff]
        %v2999 = vld [vmem:[%s732 + $0x64] sm:$0xff]
        %v3000 = vld [vmem:[%s732 + $0x74] sm:$0xff]
        %s3001 = scalar_lea.vmem %s3, 448
        %v3002 = vld [vmem:[%s3001] sm:$0xff]
        %v3003 = vld [vmem:[%s3001 + $0x8] sm:$0xff]
        %v3004 = vld [vmem:[%s3001 + $0x10] sm:$0xff]
        %v3005 = vld [vmem:[%s3001 + $0x18] sm:$0xff]
        %v3007 = vsel %vm493, %v2993, 0
        %v3010 = vsel %vm493, %v2994, 0
        %v3013 = vsel %vm493, %v2995, 0
        %v3016 = vsel %vm493, %v2996, 0
        %v3019 = vsel %vm493, %v2997, 0
        %v3022 = vsel %vm493, %v2998, 0
        %v3025 = vsel %vm493, %v2999, 0
        %v3028 = vsel %vm493, %v3000, 0
        %3030 = vmatpush.msra.mxu0 0.0
        %3031 = vmatpush.msra.mxu0 0.0
        %3032 = vmatpush.msra.mxu0 0.0
        %3033 = vmatpush.msra.mxu0 0.0
        %3034 = vmatpush.msra.mxu0 0.0
        %3035 = vmatpush.msra.mxu0 0.0
        %3036 = vmatpush.msra.mxu0 0.0
        %3037 = vmatpush.msra.mxu0 0.0
        %3038 = vmatpush.msra.mxu0 0.0
        %3039 = vmatpush.msra.mxu0 0.0
        %3040 = vmatpush.msra.mxu0 0.0
        %3041 = vmatpush.msra.mxu0 0.0
        %3042 = vmatpush.msra.mxu0 %v3005
        %3043 = vmatpush.msra.mxu0 %v3004
        %3044 = vmatpush.msra.mxu0 %v3003
        %3045 = vmatpush.msra.mxu0 %v3002
        %3046 = vmatmul.f32.gmra.mxu0 %v3007
        %v3047 = vpop.f32.mrf.mxu0
        %v3048 = vadd.f32 0.0, %v3047
        %3049 = vmatmul.f32.gmra.mxu0 %v3010
        %v3050 = vpop.f32.mrf.mxu0
        %v3051 = vadd.f32 0.0, %v3050
        %3052 = vmatmul.f32.gmra.mxu0 %v3013
        %v3053 = vpop.f32.mrf.mxu0
        %v3054 = vadd.f32 0.0, %v3053
        %3055 = vmatmul.f32.gmra.mxu0 %v3016
        %v3056 = vpop.f32.mrf.mxu0
        %v3057 = vadd.f32 0.0, %v3056
        %3058 = vmatmul.f32.gmra.mxu0 %v3019
        %v3059 = vpop.f32.mrf.mxu0
        %v3060 = vadd.f32 0.0, %v3059
        %3061 = vmatmul.f32.gmra.mxu0 %v3022
        %v3062 = vpop.f32.mrf.mxu0
        %v3063 = vadd.f32 0.0, %v3062
        %3064 = vmatmul.f32.gmra.mxu0 %v3025
        %v3065 = vpop.f32.mrf.mxu0
        %v3066 = vadd.f32 0.0, %v3065
        %3067 = vmatmul.f32.gmra.mxu0 %v3028
        %v3068 = vpop.f32.mrf.mxu0
        %v3069 = vadd.f32 0.0, %v3068
        %3070 = vdwg.mxu0
        %v3071 = vadd.f32 %v2985, %v3048
        %v3072 = vadd.f32 %v2986, %v3051
        %v3073 = vadd.f32 %v2987, %v3054
        %v3074 = vadd.f32 %v2988, %v3057
        %v3075 = vadd.f32 %v2989, %v3060
        %v3076 = vadd.f32 %v2990, %v3063
        %v3077 = vadd.f32 %v2991, %v3066
        %v3078 = vadd.f32 %v2992, %v3069
        %v3079 = vld [vmem:[%s851] sm:$0xff]
        %v3080 = vld [vmem:[%s851 + $0x10] sm:$0xff]
        %v3081 = vld [vmem:[%s851 + $0x20] sm:$0xff]
        %v3082 = vld [vmem:[%s851 + $0x30] sm:$0xff]
        %v3083 = vld [vmem:[%s851 + $0x40] sm:$0xff]
        %v3084 = vld [vmem:[%s851 + $0x50] sm:$0xff]
        %v3085 = vld [vmem:[%s851 + $0x60] sm:$0xff]
        %v3086 = vld [vmem:[%s851 + $0x70] sm:$0xff]
        %s3087 = scalar_lea.vmem %s3, 480
        %v3088 = vld [vmem:[%s3087] sm:$0xff]
        %v3089 = vld [vmem:[%s3087 + $0x8] sm:$0xff]
        %v3090 = vld [vmem:[%s3087 + $0x10] sm:$0xff]
        %v3091 = vld [vmem:[%s3087 + $0x18] sm:$0xff]
        %v3093 = vsel %vm493, %v3079, 0
        %v3096 = vsel %vm493, %v3080, 0
        %v3099 = vsel %vm493, %v3081, 0
        %v3102 = vsel %vm493, %v3082, 0
        %v3105 = vsel %vm493, %v3083, 0
        %v3108 = vsel %vm493, %v3084, 0
        %v3111 = vsel %vm493, %v3085, 0
        %v3114 = vsel %vm493, %v3086, 0
        %3116 = vmatpush.msra.mxu0 0.0
        %3117 = vmatpush.msra.mxu0 0.0
        %3118 = vmatpush.msra.mxu0 0.0
        %3119 = vmatpush.msra.mxu0 0.0
        %3120 = vmatpush.msra.mxu0 0.0
        %3121 = vmatpush.msra.mxu0 0.0
        %3122 = vmatpush.msra.mxu0 0.0
        %3123 = vmatpush.msra.mxu0 0.0
        %3124 = vmatpush.msra.mxu0 0.0
        %3125 = vmatpush.msra.mxu0 0.0
        %3126 = vmatpush.msra.mxu0 0.0
        %3127 = vmatpush.msra.mxu0 0.0
        %3128 = vmatpush.msra.mxu0 %v3091
        %3129 = vmatpush.msra.mxu0 %v3090
        %3130 = vmatpush.msra.mxu0 %v3089
        %3131 = vmatpush.msra.mxu0 %v3088
        %3132 = vmatmul.f32.gmra.mxu0 %v3093
        %v3133 = vpop.f32.mrf.mxu0
        %v3134 = vadd.f32 0.0, %v3133
        %3135 = vmatmul.f32.gmra.mxu0 %v3096
        %v3136 = vpop.f32.mrf.mxu0
        %v3137 = vadd.f32 0.0, %v3136
        %3138 = vmatmul.f32.gmra.mxu0 %v3099
        %v3139 = vpop.f32.mrf.mxu0
        %v3140 = vadd.f32 0.0, %v3139
        %3141 = vmatmul.f32.gmra.mxu0 %v3102
        %v3142 = vpop.f32.mrf.mxu0
        %v3143 = vadd.f32 0.0, %v3142
        %3144 = vmatmul.f32.gmra.mxu0 %v3105
        %v3145 = vpop.f32.mrf.mxu0
        %v3146 = vadd.f32 0.0, %v3145
        %3147 = vmatmul.f32.gmra.mxu0 %v3108
        %v3148 = vpop.f32.mrf.mxu0
        %v3149 = vadd.f32 0.0, %v3148
        %3150 = vmatmul.f32.gmra.mxu0 %v3111
        %v3151 = vpop.f32.mrf.mxu0
        %v3152 = vadd.f32 0.0, %v3151
        %3153 = vmatmul.f32.gmra.mxu0 %v3114
        %v3154 = vpop.f32.mrf.mxu0
        %v3155 = vadd.f32 0.0, %v3154
        %3156 = vdwg.mxu0
        %v3157 = vadd.f32 %v3071, %v3134
        %v3158 = vadd.f32 %v3072, %v3137
        %v3159 = vadd.f32 %v3073, %v3140
        %v3160 = vadd.f32 %v3074, %v3143
        %v3161 = vadd.f32 %v3075, %v3146
        %v3162 = vadd.f32 %v3076, %v3149
        %v3163 = vadd.f32 %v3077, %v3152
        %v3164 = vadd.f32 %v3078, %v3155
        %v3165 = vld [vmem:[%s851 + $0x1] sm:$0xff]
        %v3166 = vld [vmem:[%s851 + $0x11] sm:$0xff]
        %v3167 = vld [vmem:[%s851 + $0x21] sm:$0xff]
        %v3168 = vld [vmem:[%s851 + $0x31] sm:$0xff]
        %v3169 = vld [vmem:[%s851 + $0x41] sm:$0xff]
        %v3170 = vld [vmem:[%s851 + $0x51] sm:$0xff]
        %v3171 = vld [vmem:[%s851 + $0x61] sm:$0xff]
        %v3172 = vld [vmem:[%s851 + $0x71] sm:$0xff]
        %s3173 = scalar_lea.vmem %s3, 512
        %v3174 = vld [vmem:[%s3173] sm:$0xff]
        %v3175 = vld [vmem:[%s3173 + $0x8] sm:$0xff]
        %v3176 = vld [vmem:[%s3173 + $0x10] sm:$0xff]
        %v3177 = vld [vmem:[%s3173 + $0x18] sm:$0xff]
        %v3179 = vsel %vm493, %v3165, 0
        %v3182 = vsel %vm493, %v3166, 0
        %v3185 = vsel %vm493, %v3167, 0
        %v3188 = vsel %vm493, %v3168, 0
        %v3191 = vsel %vm493, %v3169, 0
        %v3194 = vsel %vm493, %v3170, 0
        %v3197 = vsel %vm493, %v3171, 0
        %v3200 = vsel %vm493, %v3172, 0
        %3202 = vmatpush.msra.mxu0 0.0
        %3203 = vmatpush.msra.mxu0 0.0
        %3204 = vmatpush.msra.mxu0 0.0
        %3205 = vmatpush.msra.mxu0 0.0
        %3206 = vmatpush.msra.mxu0 0.0
        %3207 = vmatpush.msra.mxu0 0.0
        %3208 = vmatpush.msra.mxu0 0.0
        %3209 = vmatpush.msra.mxu0 0.0
        %3210 = vmatpush.msra.mxu0 0.0
        %3211 = vmatpush.msra.mxu0 0.0
        %3212 = vmatpush.msra.mxu0 0.0
        %3213 = vmatpush.msra.mxu0 0.0
        %3214 = vmatpush.msra.mxu0 %v3177
        %3215 = vmatpush.msra.mxu0 %v3176
        %3216 = vmatpush.msra.mxu0 %v3175
        %3217 = vmatpush.msra.mxu0 %v3174
        %3218 = vmatmul.f32.gmra.mxu0 %v3179
        %v3219 = vpop.f32.mrf.mxu0
        %v3220 = vadd.f32 0.0, %v3219
        %3221 = vmatmul.f32.gmra.mxu0 %v3182
        %v3222 = vpop.f32.mrf.mxu0
        %v3223 = vadd.f32 0.0, %v3222
        %3224 = vmatmul.f32.gmra.mxu0 %v3185
        %v3225 = vpop.f32.mrf.mxu0
        %v3226 = vadd.f32 0.0, %v3225
        %3227 = vmatmul.f32.gmra.mxu0 %v3188
        %v3228 = vpop.f32.mrf.mxu0
        %v3229 = vadd.f32 0.0, %v3228
        %3230 = vmatmul.f32.gmra.mxu0 %v3191
        %v3231 = vpop.f32.mrf.mxu0
        %v3232 = vadd.f32 0.0, %v3231
        %3233 = vmatmul.f32.gmra.mxu0 %v3194
        %v3234 = vpop.f32.mrf.mxu0
        %v3235 = vadd.f32 0.0, %v3234
        %3236 = vmatmul.f32.gmra.mxu0 %v3197
        %v3237 = vpop.f32.mrf.mxu0
        %v3238 = vadd.f32 0.0, %v3237
        %3239 = vmatmul.f32.gmra.mxu0 %v3200
        %v3240 = vpop.f32.mrf.mxu0
        %v3241 = vadd.f32 0.0, %v3240
        %3242 = vdwg.mxu0
        %v3243 = vadd.f32 %v3157, %v3220
        %v3244 = vadd.f32 %v3158, %v3223
        %v3245 = vadd.f32 %v3159, %v3226
        %v3246 = vadd.f32 %v3160, %v3229
        %v3247 = vadd.f32 %v3161, %v3232
        %v3248 = vadd.f32 %v3162, %v3235
        %v3249 = vadd.f32 %v3163, %v3238
        %v3250 = vadd.f32 %v3164, %v3241
        %v3251 = vld [vmem:[%s851 + $0x2] sm:$0xff]
        %v3252 = vld [vmem:[%s851 + $0x12] sm:$0xff]
        %v3253 = vld [vmem:[%s851 + $0x22] sm:$0xff]
        %v3254 = vld [vmem:[%s851 + $0x32] sm:$0xff]
        %v3255 = vld [vmem:[%s851 + $0x42] sm:$0xff]
        %v3256 = vld [vmem:[%s851 + $0x52] sm:$0xff]
        %v3257 = vld [vmem:[%s851 + $0x62] sm:$0xff]
        %v3258 = vld [vmem:[%s851 + $0x72] sm:$0xff]
        %s3259 = scalar_lea.vmem %s3, 544
        %v3260 = vld [vmem:[%s3259] sm:$0xff]
        %v3261 = vld [vmem:[%s3259 + $0x8] sm:$0xff]
        %v3262 = vld [vmem:[%s3259 + $0x10] sm:$0xff]
        %v3263 = vld [vmem:[%s3259 + $0x18] sm:$0xff]
        %v3265 = vsel %vm493, %v3251, 0
        %v3268 = vsel %vm493, %v3252, 0
        %v3271 = vsel %vm493, %v3253, 0
        %v3274 = vsel %vm493, %v3254, 0
        %v3277 = vsel %vm493, %v3255, 0
        %v3280 = vsel %vm493, %v3256, 0
        %v3283 = vsel %vm493, %v3257, 0
        %v3286 = vsel %vm493, %v3258, 0
        %3288 = vmatpush.msra.mxu0 0.0
        %3289 = vmatpush.msra.mxu0 0.0
        %3290 = vmatpush.msra.mxu0 0.0
        %3291 = vmatpush.msra.mxu0 0.0
        %3292 = vmatpush.msra.mxu0 0.0
        %3293 = vmatpush.msra.mxu0 0.0
        %3294 = vmatpush.msra.mxu0 0.0
        %3295 = vmatpush.msra.mxu0 0.0
        %3296 = vmatpush.msra.mxu0 0.0
        %3297 = vmatpush.msra.mxu0 0.0
        %3298 = vmatpush.msra.mxu0 0.0
        %3299 = vmatpush.msra.mxu0 0.0
        %3300 = vmatpush.msra.mxu0 %v3263
        %3301 = vmatpush.msra.mxu0 %v3262
        %3302 = vmatpush.msra.mxu0 %v3261
        %3303 = vmatpush.msra.mxu0 %v3260
        %3304 = vmatmul.f32.gmra.mxu0 %v3265
        %v3305 = vpop.f32.mrf.mxu0
        %v3306 = vadd.f32 0.0, %v3305
        %3307 = vmatmul.f32.gmra.mxu0 %v3268
        %v3308 = vpop.f32.mrf.mxu0
        %v3309 = vadd.f32 0.0, %v3308
        %3310 = vmatmul.f32.gmra.mxu0 %v3271
        %v3311 = vpop.f32.mrf.mxu0
        %v3312 = vadd.f32 0.0, %v3311
        %3313 = vmatmul.f32.gmra.mxu0 %v3274
        %v3314 = vpop.f32.mrf.mxu0
        %v3315 = vadd.f32 0.0, %v3314
        %3316 = vmatmul.f32.gmra.mxu0 %v3277
        %v3317 = vpop.f32.mrf.mxu0
        %v3318 = vadd.f32 0.0, %v3317
        %3319 = vmatmul.f32.gmra.mxu0 %v3280
        %v3320 = vpop.f32.mrf.mxu0
        %v3321 = vadd.f32 0.0, %v3320
        %3322 = vmatmul.f32.gmra.mxu0 %v3283
        %v3323 = vpop.f32.mrf.mxu0
        %v3324 = vadd.f32 0.0, %v3323
        %3325 = vmatmul.f32.gmra.mxu0 %v3286
        %v3326 = vpop.f32.mrf.mxu0
        %v3327 = vadd.f32 0.0, %v3326
        %3328 = vdwg.mxu0
        %v3329 = vadd.f32 %v3243, %v3306
        %v3330 = vadd.f32 %v3244, %v3309
        %v3331 = vadd.f32 %v3245, %v3312
        %v3332 = vadd.f32 %v3246, %v3315
        %v3333 = vadd.f32 %v3247, %v3318
        %v3334 = vadd.f32 %v3248, %v3321
        %v3335 = vadd.f32 %v3249, %v3324
        %v3336 = vadd.f32 %v3250, %v3327
        %v3337 = vld [vmem:[%s851 + $0x3] sm:$0xff]
        %v3338 = vld [vmem:[%s851 + $0x13] sm:$0xff]
        %v3339 = vld [vmem:[%s851 + $0x23] sm:$0xff]
        %v3340 = vld [vmem:[%s851 + $0x33] sm:$0xff]
        %v3341 = vld [vmem:[%s851 + $0x43] sm:$0xff]
        %v3342 = vld [vmem:[%s851 + $0x53] sm:$0xff]
        %v3343 = vld [vmem:[%s851 + $0x63] sm:$0xff]
        %v3344 = vld [vmem:[%s851 + $0x73] sm:$0xff]
        %s3345 = scalar_lea.vmem %s3, 576
        %v3346 = vld [vmem:[%s3345] sm:$0xff]
        %v3347 = vld [vmem:[%s3345 + $0x8] sm:$0xff]
        %v3348 = vld [vmem:[%s3345 + $0x10] sm:$0xff]
        %v3349 = vld [vmem:[%s3345 + $0x18] sm:$0xff]
        %v3351 = vsel %vm493, %v3337, 0
        %v3354 = vsel %vm493, %v3338, 0
        %v3357 = vsel %vm493, %v3339, 0
        %v3360 = vsel %vm493, %v3340, 0
        %v3363 = vsel %vm493, %v3341, 0
        %v3366 = vsel %vm493, %v3342, 0
        %v3369 = vsel %vm493, %v3343, 0
        %v3372 = vsel %vm493, %v3344, 0
        %3374 = vmatpush.msra.mxu0 0.0
        %3375 = vmatpush.msra.mxu0 0.0
        %3376 = vmatpush.msra.mxu0 0.0
        %3377 = vmatpush.msra.mxu0 0.0
        %3378 = vmatpush.msra.mxu0 0.0
        %3379 = vmatpush.msra.mxu0 0.0
        %3380 = vmatpush.msra.mxu0 0.0
        %3381 = vmatpush.msra.mxu0 0.0
        %3382 = vmatpush.msra.mxu0 0.0
        %3383 = vmatpush.msra.mxu0 0.0
        %3384 = vmatpush.msra.mxu0 0.0
        %3385 = vmatpush.msra.mxu0 0.0
        %3386 = vmatpush.msra.mxu0 %v3349
        %3387 = vmatpush.msra.mxu0 %v3348
        %3388 = vmatpush.msra.mxu0 %v3347
        %3389 = vmatpush.msra.mxu0 %v3346
        %3390 = vmatmul.f32.gmra.mxu0 %v3351
        %v3391 = vpop.f32.mrf.mxu0
        %v3392 = vadd.f32 0.0, %v3391
        %3393 = vmatmul.f32.gmra.mxu0 %v3354
        %v3394 = vpop.f32.mrf.mxu0
        %v3395 = vadd.f32 0.0, %v3394
        %3396 = vmatmul.f32.gmra.mxu0 %v3357
        %v3397 = vpop.f32.mrf.mxu0
        %v3398 = vadd.f32 0.0, %v3397
        %3399 = vmatmul.f32.gmra.mxu0 %v3360
        %v3400 = vpop.f32.mrf.mxu0
        %v3401 = vadd.f32 0.0, %v3400
        %3402 = vmatmul.f32.gmra.mxu0 %v3363
        %v3403 = vpop.f32.mrf.mxu0
        %v3404 = vadd.f32 0.0, %v3403
        %3405 = vmatmul.f32.gmra.mxu0 %v3366
        %v3406 = vpop.f32.mrf.mxu0
        %v3407 = vadd.f32 0.0, %v3406
        %3408 = vmatmul.f32.gmra.mxu0 %v3369
        %v3409 = vpop.f32.mrf.mxu0
        %v3410 = vadd.f32 0.0, %v3409
        %3411 = vmatmul.f32.gmra.mxu0 %v3372
        %v3412 = vpop.f32.mrf.mxu0
        %v3413 = vadd.f32 0.0, %v3412
        %3414 = vdwg.mxu0
        %v3415 = vadd.f32 %v3329, %v3392
        %v3416 = vadd.f32 %v3330, %v3395
        %v3417 = vadd.f32 %v3331, %v3398
        %v3418 = vadd.f32 %v3332, %v3401
        %v3419 = vadd.f32 %v3333, %v3404
        %v3420 = vadd.f32 %v3334, %v3407
        %v3421 = vadd.f32 %v3335, %v3410
        %v3422 = vadd.f32 %v3336, %v3413
        %v3423 = vld [vmem:[%s851 + $0x4] sm:$0xff]
        %v3424 = vld [vmem:[%s851 + $0x14] sm:$0xff]
        %v3425 = vld [vmem:[%s851 + $0x24] sm:$0xff]
        %v3426 = vld [vmem:[%s851 + $0x34] sm:$0xff]
        %v3427 = vld [vmem:[%s851 + $0x44] sm:$0xff]
        %v3428 = vld [vmem:[%s851 + $0x54] sm:$0xff]
        %v3429 = vld [vmem:[%s851 + $0x64] sm:$0xff]
        %v3430 = vld [vmem:[%s851 + $0x74] sm:$0xff]
        %s3431 = scalar_lea.vmem %s3, 608
        %v3432 = vld [vmem:[%s3431] sm:$0xff]
        %v3433 = vld [vmem:[%s3431 + $0x8] sm:$0xff]
        %v3434 = vld [vmem:[%s3431 + $0x10] sm:$0xff]
        %v3435 = vld [vmem:[%s3431 + $0x18] sm:$0xff]
        %v3437 = vsel %vm493, %v3423, 0
        %v3440 = vsel %vm493, %v3424, 0
        %v3443 = vsel %vm493, %v3425, 0
        %v3446 = vsel %vm493, %v3426, 0
        %v3449 = vsel %vm493, %v3427, 0
        %v3452 = vsel %vm493, %v3428, 0
        %v3455 = vsel %vm493, %v3429, 0
        %v3458 = vsel %vm493, %v3430, 0
        %3460 = vmatpush.msra.mxu0 0.0
        %3461 = vmatpush.msra.mxu0 0.0
        %3462 = vmatpush.msra.mxu0 0.0
        %3463 = vmatpush.msra.mxu0 0.0
        %3464 = vmatpush.msra.mxu0 0.0
        %3465 = vmatpush.msra.mxu0 0.0
        %3466 = vmatpush.msra.mxu0 0.0
        %3467 = vmatpush.msra.mxu0 0.0
        %3468 = vmatpush.msra.mxu0 0.0
        %3469 = vmatpush.msra.mxu0 0.0
        %3470 = vmatpush.msra.mxu0 0.0
        %3471 = vmatpush.msra.mxu0 0.0
        %3472 = vmatpush.msra.mxu0 %v3435
        %3473 = vmatpush.msra.mxu0 %v3434
        %3474 = vmatpush.msra.mxu0 %v3433
        %3475 = vmatpush.msra.mxu0 %v3432
        %3476 = vmatmul.f32.gmra.mxu0 %v3437
        %v3477 = vpop.f32.mrf.mxu0
        %v3478 = vadd.f32 0.0, %v3477
        %3479 = vmatmul.f32.gmra.mxu0 %v3440
        %v3480 = vpop.f32.mrf.mxu0
        %v3481 = vadd.f32 0.0, %v3480
        %3482 = vmatmul.f32.gmra.mxu0 %v3443
        %v3483 = vpop.f32.mrf.mxu0
        %v3484 = vadd.f32 0.0, %v3483
        %3485 = vmatmul.f32.gmra.mxu0 %v3446
        %v3486 = vpop.f32.mrf.mxu0
        %v3487 = vadd.f32 0.0, %v3486
        %3488 = vmatmul.f32.gmra.mxu0 %v3449
        %v3489 = vpop.f32.mrf.mxu0
        %v3490 = vadd.f32 0.0, %v3489
        %3491 = vmatmul.f32.gmra.mxu0 %v3452
        %v3492 = vpop.f32.mrf.mxu0
        %v3493 = vadd.f32 0.0, %v3492
        %3494 = vmatmul.f32.gmra.mxu0 %v3455
        %v3495 = vpop.f32.mrf.mxu0
        %v3496 = vadd.f32 0.0, %v3495
        %3497 = vmatmul.f32.gmra.mxu0 %v3458
        %v3498 = vpop.f32.mrf.mxu0
        %v3499 = vadd.f32 0.0, %v3498
        %3500 = vdwg.mxu0
        %v3501 = vadd.f32 %v3415, %v3478
        %v3502 = vadd.f32 %v3416, %v3481
        %v3503 = vadd.f32 %v3417, %v3484
        %v3504 = vadd.f32 %v3418, %v3487
        %v3505 = vadd.f32 %v3419, %v3490
        %v3506 = vadd.f32 %v3420, %v3493
        %v3507 = vadd.f32 %v3421, %v3496
        %v3508 = vadd.f32 %v3422, %v3499
        %v3509 = vld [vmem:[%s970] sm:$0xff]
        %v3510 = vld [vmem:[%s970 + $0x10] sm:$0xff]
        %v3511 = vld [vmem:[%s970 + $0x20] sm:$0xff]
        %v3512 = vld [vmem:[%s970 + $0x30] sm:$0xff]
        %v3513 = vld [vmem:[%s970 + $0x40] sm:$0xff]
        %v3514 = vld [vmem:[%s970 + $0x50] sm:$0xff]
        %v3515 = vld [vmem:[%s970 + $0x60] sm:$0xff]
        %v3516 = vld [vmem:[%s970 + $0x70] sm:$0xff]
        %s3517 = scalar_lea.vmem %s3, 640
        %v3518 = vld [vmem:[%s3517] sm:$0xff]
        %v3519 = vld [vmem:[%s3517 + $0x8] sm:$0xff]
        %v3520 = vld [vmem:[%s3517 + $0x10] sm:$0xff]
        %v3521 = vld [vmem:[%s3517 + $0x18] sm:$0xff]
        %v3523 = vsel %vm493, %v3509, 0
        %v3526 = vsel %vm493, %v3510, 0
        %v3529 = vsel %vm493, %v3511, 0
        %v3532 = vsel %vm493, %v3512, 0
        %v3535 = vsel %vm493, %v3513, 0
        %v3538 = vsel %vm493, %v3514, 0
        %v3541 = vsel %vm493, %v3515, 0
        %v3544 = vsel %vm493, %v3516, 0
        %3546 = vmatpush.msra.mxu0 0.0
        %3547 = vmatpush.msra.mxu0 0.0
        %3548 = vmatpush.msra.mxu0 0.0
        %3549 = vmatpush.msra.mxu0 0.0
        %3550 = vmatpush.msra.mxu0 0.0
        %3551 = vmatpush.msra.mxu0 0.0
        %3552 = vmatpush.msra.mxu0 0.0
        %3553 = vmatpush.msra.mxu0 0.0
        %3554 = vmatpush.msra.mxu0 0.0
        %3555 = vmatpush.msra.mxu0 0.0
        %3556 = vmatpush.msra.mxu0 0.0
        %3557 = vmatpush.msra.mxu0 0.0
        %3558 = vmatpush.msra.mxu0 %v3521
        %3559 = vmatpush.msra.mxu0 %v3520
        %3560 = vmatpush.msra.mxu0 %v3519
        %3561 = vmatpush.msra.mxu0 %v3518
        %3562 = vmatmul.f32.gmra.mxu0 %v3523
        %v3563 = vpop.f32.mrf.mxu0
        %v3564 = vadd.f32 0.0, %v3563
        %3565 = vmatmul.f32.gmra.mxu0 %v3526
        %v3566 = vpop.f32.mrf.mxu0
        %v3567 = vadd.f32 0.0, %v3566
        %3568 = vmatmul.f32.gmra.mxu0 %v3529
        %v3569 = vpop.f32.mrf.mxu0
        %v3570 = vadd.f32 0.0, %v3569
        %3571 = vmatmul.f32.gmra.mxu0 %v3532
        %v3572 = vpop.f32.mrf.mxu0
        %v3573 = vadd.f32 0.0, %v3572
        %3574 = vmatmul.f32.gmra.mxu0 %v3535
        %v3575 = vpop.f32.mrf.mxu0
        %v3576 = vadd.f32 0.0, %v3575
        %3577 = vmatmul.f32.gmra.mxu0 %v3538
        %v3578 = vpop.f32.mrf.mxu0
        %v3579 = vadd.f32 0.0, %v3578
        %3580 = vmatmul.f32.gmra.mxu0 %v3541
        %v3581 = vpop.f32.mrf.mxu0
        %v3582 = vadd.f32 0.0, %v3581
        %3583 = vmatmul.f32.gmra.mxu0 %v3544
        %v3584 = vpop.f32.mrf.mxu0
        %v3585 = vadd.f32 0.0, %v3584
        %3586 = vdwg.mxu0
        %v3587 = vadd.f32 %v3501, %v3564
        %v3588 = vadd.f32 %v3502, %v3567
        %v3589 = vadd.f32 %v3503, %v3570
        %v3590 = vadd.f32 %v3504, %v3573
        %v3591 = vadd.f32 %v3505, %v3576
        %v3592 = vadd.f32 %v3506, %v3579
        %v3593 = vadd.f32 %v3507, %v3582
        %v3594 = vadd.f32 %v3508, %v3585
        %v3595 = vld [vmem:[%s970 + $0x1] sm:$0xff]
        %v3596 = vld [vmem:[%s970 + $0x11] sm:$0xff]
        %v3597 = vld [vmem:[%s970 + $0x21] sm:$0xff]
        %v3598 = vld [vmem:[%s970 + $0x31] sm:$0xff]
        %v3599 = vld [vmem:[%s970 + $0x41] sm:$0xff]
        %v3600 = vld [vmem:[%s970 + $0x51] sm:$0xff]
        %v3601 = vld [vmem:[%s970 + $0x61] sm:$0xff]
        %v3602 = vld [vmem:[%s970 + $0x71] sm:$0xff]
        %s3603 = scalar_lea.vmem %s3, 672
        %v3604 = vld [vmem:[%s3603] sm:$0xff]
        %v3605 = vld [vmem:[%s3603 + $0x8] sm:$0xff]
        %v3606 = vld [vmem:[%s3603 + $0x10] sm:$0xff]
        %v3607 = vld [vmem:[%s3603 + $0x18] sm:$0xff]
        %v3609 = vsel %vm493, %v3595, 0
        %v3612 = vsel %vm493, %v3596, 0
        %v3615 = vsel %vm493, %v3597, 0
        %v3618 = vsel %vm493, %v3598, 0
        %v3621 = vsel %vm493, %v3599, 0
        %v3624 = vsel %vm493, %v3600, 0
        %v3627 = vsel %vm493, %v3601, 0
        %v3630 = vsel %vm493, %v3602, 0
        %3632 = vmatpush.msra.mxu0 0.0
        %3633 = vmatpush.msra.mxu0 0.0
        %3634 = vmatpush.msra.mxu0 0.0
        %3635 = vmatpush.msra.mxu0 0.0
        %3636 = vmatpush.msra.mxu0 0.0
        %3637 = vmatpush.msra.mxu0 0.0
        %3638 = vmatpush.msra.mxu0 0.0
        %3639 = vmatpush.msra.mxu0 0.0
        %3640 = vmatpush.msra.mxu0 0.0
        %3641 = vmatpush.msra.mxu0 0.0
        %3642 = vmatpush.msra.mxu0 0.0
        %3643 = vmatpush.msra.mxu0 0.0
        %3644 = vmatpush.msra.mxu0 %v3607
        %3645 = vmatpush.msra.mxu0 %v3606
        %3646 = vmatpush.msra.mxu0 %v3605
        %3647 = vmatpush.msra.mxu0 %v3604
        %3648 = vmatmul.f32.gmra.mxu0 %v3609
        %v3649 = vpop.f32.mrf.mxu0
        %v3650 = vadd.f32 0.0, %v3649
        %3651 = vmatmul.f32.gmra.mxu0 %v3612
        %v3652 = vpop.f32.mrf.mxu0
        %v3653 = vadd.f32 0.0, %v3652
        %3654 = vmatmul.f32.gmra.mxu0 %v3615
        %v3655 = vpop.f32.mrf.mxu0
        %v3656 = vadd.f32 0.0, %v3655
        %3657 = vmatmul.f32.gmra.mxu0 %v3618
        %v3658 = vpop.f32.mrf.mxu0
        %v3659 = vadd.f32 0.0, %v3658
        %3660 = vmatmul.f32.gmra.mxu0 %v3621
        %v3661 = vpop.f32.mrf.mxu0
        %v3662 = vadd.f32 0.0, %v3661
        %3663 = vmatmul.f32.gmra.mxu0 %v3624
        %v3664 = vpop.f32.mrf.mxu0
        %v3665 = vadd.f32 0.0, %v3664
        %3666 = vmatmul.f32.gmra.mxu0 %v3627
        %v3667 = vpop.f32.mrf.mxu0
        %v3668 = vadd.f32 0.0, %v3667
        %3669 = vmatmul.f32.gmra.mxu0 %v3630
        %v3670 = vpop.f32.mrf.mxu0
        %v3671 = vadd.f32 0.0, %v3670
        %3672 = vdwg.mxu0
        %v3673 = vadd.f32 %v3587, %v3650
        %v3674 = vadd.f32 %v3588, %v3653
        %v3675 = vadd.f32 %v3589, %v3656
        %v3676 = vadd.f32 %v3590, %v3659
        %v3677 = vadd.f32 %v3591, %v3662
        %v3678 = vadd.f32 %v3592, %v3665
        %v3679 = vadd.f32 %v3593, %v3668
        %v3680 = vadd.f32 %v3594, %v3671
        %v3681 = vld [vmem:[%s970 + $0x2] sm:$0xff]
        %v3682 = vld [vmem:[%s970 + $0x12] sm:$0xff]
        %v3683 = vld [vmem:[%s970 + $0x22] sm:$0xff]
        %v3684 = vld [vmem:[%s970 + $0x32] sm:$0xff]
        %v3685 = vld [vmem:[%s970 + $0x42] sm:$0xff]
        %v3686 = vld [vmem:[%s970 + $0x52] sm:$0xff]
        %v3687 = vld [vmem:[%s970 + $0x62] sm:$0xff]
        %v3688 = vld [vmem:[%s970 + $0x72] sm:$0xff]
        %s3689 = scalar_lea.vmem %s3, 704
        %v3690 = vld [vmem:[%s3689] sm:$0xff]
        %v3691 = vld [vmem:[%s3689 + $0x8] sm:$0xff]
        %v3692 = vld [vmem:[%s3689 + $0x10] sm:$0xff]
        %v3693 = vld [vmem:[%s3689 + $0x18] sm:$0xff]
        %v3695 = vsel %vm493, %v3681, 0
        %v3698 = vsel %vm493, %v3682, 0
        %v3701 = vsel %vm493, %v3683, 0
        %v3704 = vsel %vm493, %v3684, 0
        %v3707 = vsel %vm493, %v3685, 0
        %v3710 = vsel %vm493, %v3686, 0
        %v3713 = vsel %vm493, %v3687, 0
        %v3716 = vsel %vm493, %v3688, 0
        %3718 = vmatpush.msra.mxu0 0.0
        %3719 = vmatpush.msra.mxu0 0.0
        %3720 = vmatpush.msra.mxu0 0.0
        %3721 = vmatpush.msra.mxu0 0.0
        %3722 = vmatpush.msra.mxu0 0.0
        %3723 = vmatpush.msra.mxu0 0.0
        %3724 = vmatpush.msra.mxu0 0.0
        %3725 = vmatpush.msra.mxu0 0.0
        %3726 = vmatpush.msra.mxu0 0.0
        %3727 = vmatpush.msra.mxu0 0.0
        %3728 = vmatpush.msra.mxu0 0.0
        %3729 = vmatpush.msra.mxu0 0.0
        %3730 = vmatpush.msra.mxu0 %v3693
        %3731 = vmatpush.msra.mxu0 %v3692
        %3732 = vmatpush.msra.mxu0 %v3691
        %3733 = vmatpush.msra.mxu0 %v3690
        %3734 = vmatmul.f32.gmra.mxu0 %v3695
        %v3735 = vpop.f32.mrf.mxu0
        %v3736 = vadd.f32 0.0, %v3735
        %3737 = vmatmul.f32.gmra.mxu0 %v3698
        %v3738 = vpop.f32.mrf.mxu0
        %v3739 = vadd.f32 0.0, %v3738
        %3740 = vmatmul.f32.gmra.mxu0 %v3701
        %v3741 = vpop.f32.mrf.mxu0
        %v3742 = vadd.f32 0.0, %v3741
        %3743 = vmatmul.f32.gmra.mxu0 %v3704
        %v3744 = vpop.f32.mrf.mxu0
        %v3745 = vadd.f32 0.0, %v3744
        %3746 = vmatmul.f32.gmra.mxu0 %v3707
        %v3747 = vpop.f32.mrf.mxu0
        %v3748 = vadd.f32 0.0, %v3747
        %3749 = vmatmul.f32.gmra.mxu0 %v3710
        %v3750 = vpop.f32.mrf.mxu0
        %v3751 = vadd.f32 0.0, %v3750
        %3752 = vmatmul.f32.gmra.mxu0 %v3713
        %v3753 = vpop.f32.mrf.mxu0
        %v3754 = vadd.f32 0.0, %v3753
        %3755 = vmatmul.f32.gmra.mxu0 %v3716
        %v3756 = vpop.f32.mrf.mxu0
        %v3757 = vadd.f32 0.0, %v3756
        %3758 = vdwg.mxu0
        %v3759 = vadd.f32 %v3673, %v3736
        %v3760 = vadd.f32 %v3674, %v3739
        %v3761 = vadd.f32 %v3675, %v3742
        %v3762 = vadd.f32 %v3676, %v3745
        %v3763 = vadd.f32 %v3677, %v3748
        %v3764 = vadd.f32 %v3678, %v3751
        %v3765 = vadd.f32 %v3679, %v3754
        %v3766 = vadd.f32 %v3680, %v3757
        %v3767 = vld [vmem:[%s970 + $0x3] sm:$0xff]
        %v3768 = vld [vmem:[%s970 + $0x13] sm:$0xff]
        %v3769 = vld [vmem:[%s970 + $0x23] sm:$0xff]
        %v3770 = vld [vmem:[%s970 + $0x33] sm:$0xff]
        %v3771 = vld [vmem:[%s970 + $0x43] sm:$0xff]
        %v3772 = vld [vmem:[%s970 + $0x53] sm:$0xff]
        %v3773 = vld [vmem:[%s970 + $0x63] sm:$0xff]
        %v3774 = vld [vmem:[%s970 + $0x73] sm:$0xff]
        %s3775 = scalar_lea.vmem %s3, 736
        %v3776 = vld [vmem:[%s3775] sm:$0xff]
        %v3777 = vld [vmem:[%s3775 + $0x8] sm:$0xff]
        %v3778 = vld [vmem:[%s3775 + $0x10] sm:$0xff]
        %v3779 = vld [vmem:[%s3775 + $0x18] sm:$0xff]
        %v3781 = vsel %vm493, %v3767, 0
        %v3784 = vsel %vm493, %v3768, 0
        %v3787 = vsel %vm493, %v3769, 0
        %v3790 = vsel %vm493, %v3770, 0
        %v3793 = vsel %vm493, %v3771, 0
        %v3796 = vsel %vm493, %v3772, 0
        %v3799 = vsel %vm493, %v3773, 0
        %v3802 = vsel %vm493, %v3774, 0
        %3804 = vmatpush.msra.mxu0 0.0
        %3805 = vmatpush.msra.mxu0 0.0
        %3806 = vmatpush.msra.mxu0 0.0
        %3807 = vmatpush.msra.mxu0 0.0
        %3808 = vmatpush.msra.mxu0 0.0
        %3809 = vmatpush.msra.mxu0 0.0
        %3810 = vmatpush.msra.mxu0 0.0
        %3811 = vmatpush.msra.mxu0 0.0
        %3812 = vmatpush.msra.mxu0 0.0
        %3813 = vmatpush.msra.mxu0 0.0
        %3814 = vmatpush.msra.mxu0 0.0
        %3815 = vmatpush.msra.mxu0 0.0
        %3816 = vmatpush.msra.mxu0 %v3779
        %3817 = vmatpush.msra.mxu0 %v3778
        %3818 = vmatpush.msra.mxu0 %v3777
        %3819 = vmatpush.msra.mxu0 %v3776
        %3820 = vmatmul.f32.gmra.mxu0 %v3781
        %v3821 = vpop.f32.mrf.mxu0
        %v3822 = vadd.f32 0.0, %v3821
        %3823 = vmatmul.f32.gmra.mxu0 %v3784
        %v3824 = vpop.f32.mrf.mxu0
        %v3825 = vadd.f32 0.0, %v3824
        %3826 = vmatmul.f32.gmra.mxu0 %v3787
        %v3827 = vpop.f32.mrf.mxu0
        %v3828 = vadd.f32 0.0, %v3827
        %3829 = vmatmul.f32.gmra.mxu0 %v3790
        %v3830 = vpop.f32.mrf.mxu0
        %v3831 = vadd.f32 0.0, %v3830
        %3832 = vmatmul.f32.gmra.mxu0 %v3793
        %v3833 = vpop.f32.mrf.mxu0
        %v3834 = vadd.f32 0.0, %v3833
        %3835 = vmatmul.f32.gmra.mxu0 %v3796
        %v3836 = vpop.f32.mrf.mxu0
        %v3837 = vadd.f32 0.0, %v3836
        %3838 = vmatmul.f32.gmra.mxu0 %v3799
        %v3839 = vpop.f32.mrf.mxu0
        %v3840 = vadd.f32 0.0, %v3839
        %3841 = vmatmul.f32.gmra.mxu0 %v3802
        %v3842 = vpop.f32.mrf.mxu0
        %v3843 = vadd.f32 0.0, %v3842
        %3844 = vdwg.mxu0
        %v3845 = vadd.f32 %v3759, %v3822
        %v3846 = vadd.f32 %v3760, %v3825
        %v3847 = vadd.f32 %v3761, %v3828
        %v3848 = vadd.f32 %v3762, %v3831
        %v3849 = vadd.f32 %v3763, %v3834
        %v3850 = vadd.f32 %v3764, %v3837
        %v3851 = vadd.f32 %v3765, %v3840
        %v3852 = vadd.f32 %v3766, %v3843
        %v3853 = vld [vmem:[%s970 + $0x4] sm:$0xff]
        %v3854 = vld [vmem:[%s970 + $0x14] sm:$0xff]
        %v3855 = vld [vmem:[%s970 + $0x24] sm:$0xff]
        %v3856 = vld [vmem:[%s970 + $0x34] sm:$0xff]
        %v3857 = vld [vmem:[%s970 + $0x44] sm:$0xff]
        %v3858 = vld [vmem:[%s970 + $0x54] sm:$0xff]
        %v3859 = vld [vmem:[%s970 + $0x64] sm:$0xff]
        %v3860 = vld [vmem:[%s970 + $0x74] sm:$0xff]
        %s3861 = scalar_lea.vmem %s3, 768
        %v3862 = vld [vmem:[%s3861] sm:$0xff]
        %v3863 = vld [vmem:[%s3861 + $0x8] sm:$0xff]
        %v3864 = vld [vmem:[%s3861 + $0x10] sm:$0xff]
        %v3865 = vld [vmem:[%s3861 + $0x18] sm:$0xff]
        %v3867 = vsel %vm493, %v3853, 0
        %v3870 = vsel %vm493, %v3854, 0
        %v3873 = vsel %vm493, %v3855, 0
        %v3876 = vsel %vm493, %v3856, 0
        %v3879 = vsel %vm493, %v3857, 0
        %v3882 = vsel %vm493, %v3858, 0
        %v3885 = vsel %vm493, %v3859, 0
        %v3888 = vsel %vm493, %v3860, 0
        %3890 = vmatpush.msra.mxu0 0.0
        %3891 = vmatpush.msra.mxu0 0.0
        %3892 = vmatpush.msra.mxu0 0.0
        %3893 = vmatpush.msra.mxu0 0.0
        %3894 = vmatpush.msra.mxu0 0.0
        %3895 = vmatpush.msra.mxu0 0.0
        %3896 = vmatpush.msra.mxu0 0.0
        %3897 = vmatpush.msra.mxu0 0.0
        %3898 = vmatpush.msra.mxu0 0.0
        %3899 = vmatpush.msra.mxu0 0.0
        %3900 = vmatpush.msra.mxu0 0.0
        %3901 = vmatpush.msra.mxu0 0.0
        %3902 = vmatpush.msra.mxu0 %v3865
        %3903 = vmatpush.msra.mxu0 %v3864
        %3904 = vmatpush.msra.mxu0 %v3863
        %3905 = vmatpush.msra.mxu0 %v3862
        %3906 = vmatmul.f32.gmra.mxu0 %v3867
        %v3907 = vpop.f32.mrf.mxu0
        %v3908 = vadd.f32 0.0, %v3907
        %3909 = vmatmul.f32.gmra.mxu0 %v3870
        %v3910 = vpop.f32.mrf.mxu0
        %v3911 = vadd.f32 0.0, %v3910
        %3912 = vmatmul.f32.gmra.mxu0 %v3873
        %v3913 = vpop.f32.mrf.mxu0
        %v3914 = vadd.f32 0.0, %v3913
        %3915 = vmatmul.f32.gmra.mxu0 %v3876
        %v3916 = vpop.f32.mrf.mxu0
        %v3917 = vadd.f32 0.0, %v3916
        %3918 = vmatmul.f32.gmra.mxu0 %v3879
        %v3919 = vpop.f32.mrf.mxu0
        %v3920 = vadd.f32 0.0, %v3919
        %3921 = vmatmul.f32.gmra.mxu0 %v3882
        %v3922 = vpop.f32.mrf.mxu0
        %v3923 = vadd.f32 0.0, %v3922
        %3924 = vmatmul.f32.gmra.mxu0 %v3885
        %v3925 = vpop.f32.mrf.mxu0
        %v3926 = vadd.f32 0.0, %v3925
        %3927 = vmatmul.f32.gmra.mxu0 %v3888
        %v3928 = vpop.f32.mrf.mxu0
        %v3929 = vadd.f32 0.0, %v3928
        %3930 = vdwg.mxu0
        %v3931 = vadd.f32 %v3845, %v3908
        %v3932 = vadd.f32 %v3846, %v3911
        %v3933 = vadd.f32 %v3847, %v3914
        %v3934 = vadd.f32 %v3848, %v3917
        %v3935 = vadd.f32 %v3849, %v3920
        %v3936 = vadd.f32 %v3850, %v3923
        %v3937 = vadd.f32 %v3851, %v3926
        %v3938 = vadd.f32 %v3852, %v3929
        %v3939 = vld [vmem:[%s4] sm:$0x1]
        %v3941 = vperm.slane %v3939, 0
        %v3943 = vadd.f32 %v3931, %v3941
        %v3944 = vadd.f32 %v3932, %v3941
        %v3945 = vadd.f32 %v3933, %v3941
        %v3946 = vadd.f32 %v3934, %v3941
        %v3947 = vadd.f32 %v3935, %v3941
        %v3948 = vadd.f32 %v3936, %v3941
        %v3949 = vadd.f32 %v3937, %v3941
        %v3950 = vadd.f32 %v3938, %v3941
        %v3951 = vmax.f32 %v3943, 0.0
        %v3952 = vmax.f32 %v3944, 0.0
        %v3953 = vmax.f32 %v3945, 0.0
        %v3954 = vmax.f32 %v3946, 0.0
        %v3955 = vmax.f32 %v3947, 0.0
        %v3956 = vmax.f32 %v3948, 0.0
        %v3957 = vmax.f32 %v3949, 0.0
        %v3958 = vmax.f32 %v3950, 0.0
        %v3959 = vmax.f32 %v3951, %v3952
        %vm3960 = vcmask 64512
        %v3961 = vsel %vm3960, %v341, 0
        %3963 = vmatpush.msra.mxu0 0.0
        %3964 = vmatpush.msra.mxu0 0.0
        %3965 = vmatpush.msra.mxu0 0.0
        %3966 = vmatpush.msra.mxu0 0.0
        %3967 = vmatpush.msra.mxu0 0.0
        %3968 = vmatpush.msra.mxu0 0.0
        %3969 = vmatpush.msra.mxu0 0.0
        %3970 = vmatpush.msra.mxu0 0.0
        %3971 = vmatpush.msra.mxu0 0.0
        %3972 = vmatpush.msra.mxu0 0.0
        %3973 = vmatpush.msra.mxu0 0.0
        %3974 = vmatpush.msra.mxu0 0.0
        %3975 = vmatpush.msra.mxu0 0.0
        %3976 = vmatpush.msra.mxu0 0.0
        %3977 = vmatpush.msra.mxu0 0.0
        %3978 = vmatpush.msra.mxu0 %v3959
        %3979 = vmatmul.f32.gmra.mxu0 %v3961
        %v3980 = vpop.f32.mrf.mxu0
        %v3981 = vadd.f32 0.0, %v3980
        %3982 = vdwg.mxu0
        %v3983 = vsel %vm3960, %v349, 0
        %3985 = vmatpush.msra.mxu0 0.0
        %3986 = vmatpush.msra.mxu0 0.0
        %3987 = vmatpush.msra.mxu0 0.0
        %3988 = vmatpush.msra.mxu0 0.0
        %3989 = vmatpush.msra.mxu0 0.0
        %3990 = vmatpush.msra.mxu0 0.0
        %3991 = vmatpush.msra.mxu0 0.0
        %3992 = vmatpush.msra.mxu0 0.0
        %3993 = vmatpush.msra.mxu0 0.0
        %3994 = vmatpush.msra.mxu0 0.0
        %3995 = vmatpush.msra.mxu0 0.0
        %3996 = vmatpush.msra.mxu0 0.0
        %3997 = vmatpush.msra.mxu0 0.0
        %3998 = vmatpush.msra.mxu0 0.0
        %3999 = vmatpush.msra.mxu0 0.0
        %4000 = vmatpush.msra.mxu0 %v3959
        %4001 = vmatmul.f32.gmra.mxu0 %v3983
        %v4002 = vpop.f32.mrf.mxu0
        %v4003 = vadd.f32 0.0, %v4002
        %4004 = vdwg.mxu0
        %v4005 = vmax.f32 %v3981, %v4003
        %v4006 = vld [vmem:[%s5] sm:$0xff]
        %v4007 = vld [vmem:[%s5 + $0x8] sm:$0xff]
        %v4008 = vld [vmem:[%s5 + $0x10] sm:$0xff]
        %v4009 = vld [vmem:[%s5 + $0x18] sm:$0xff]
        %v4010 = vld [vmem:[%s5 + $0x20] sm:$0xff]
        %v4011 = vld [vmem:[%s5 + $0x28] sm:$0xff]
        %v4012 = vld [vmem:[%s5 + $0x30] sm:$0xff]
        %v4013 = vld [vmem:[%s5 + $0x38] sm:$0xff]
        %v4014 = vld [vmem:[%s5 + $0x40] sm:$0xff]
        %v4015 = vld [vmem:[%s5 + $0x48] sm:$0xff]
        %v4016 = vld [vmem:[%s5 + $0x50] sm:$0xff]
        %v4017 = vld [vmem:[%s5 + $0x58] sm:$0xff]
        %v4018 = vld [vmem:[%s5 + $0x60] sm:$0xff]
        %v4019 = vld [vmem:[%s5 + $0x68] sm:$0xff]
        %v4020 = vld [vmem:[%s5 + $0x70] sm:$0xff]
        %v4021 = vld [vmem:[%s5 + $0x78] sm:$0xff]
        %v4022 = vld [vmem:[%s5 + $0x80] sm:$0xff]
        %v4023 = vld [vmem:[%s5 + $0x88] sm:$0xff]
        %v4024 = vld [vmem:[%s5 + $0x90] sm:$0xff]
        %v4025 = vld [vmem:[%s5 + $0x98] sm:$0xff]
        %v4026 = vld [vmem:[%s5 + $0xa0] sm:$0xff]
        %v4027 = vld [vmem:[%s5 + $0xa8] sm:$0xff]
        %v4028 = vld [vmem:[%s5 + $0xb0] sm:$0xff]
        %v4029 = vld [vmem:[%s5 + $0xb8] sm:$0xff]
        %v4030 = vld [vmem:[%s5 + $0xc0] sm:$0xff]
        %v4031 = vld [vmem:[%s5 + $0xc8] sm:$0xff]
        %v4032 = vld [vmem:[%s5 + $0xd0] sm:$0xff]
        %v4033 = vld [vmem:[%s5 + $0xd8] sm:$0xff]
        %v4034 = vld [vmem:[%s5 + $0xe0] sm:$0xff]
        %v4035 = vld [vmem:[%s5 + $0xe8] sm:$0xff]
        %v4036 = vld [vmem:[%s5 + $0xf0] sm:$0xff]
        %v4037 = vld [vmem:[%s5 + $0xf8] sm:$0xff]
        %s4038 = scalar_lea.vmem %s5, 256
        %v4039 = vld [vmem:[%s4038] sm:$0xff]
        %v4040 = vld [vmem:[%s4038 + $0x8] sm:$0xff]
        %v4041 = vld [vmem:[%s4038 + $0x10] sm:$0xff]
        %v4042 = vld [vmem:[%s4038 + $0x18] sm:$0xff]
        %v4043 = vld [vmem:[%s4038 + $0x20] sm:$0xff]
        %v4044 = vld [vmem:[%s4038 + $0x28] sm:$0xff]
        %v4045 = vld [vmem:[%s4038 + $0x30] sm:$0xff]
        %v4046 = vld [vmem:[%s4038 + $0x38] sm:$0xff]
        %v4047 = vld [vmem:[%s4038 + $0x40] sm:$0xff]
        %v4048 = vld [vmem:[%s4038 + $0x48] sm:$0xff]
        %v4049 = vld [vmem:[%s4038 + $0x50] sm:$0xff]
        %v4050 = vld [vmem:[%s4038 + $0x58] sm:$0xff]
        %v4051 = vld [vmem:[%s4038 + $0x60] sm:$0xff]
        %v4052 = vld [vmem:[%s4038 + $0x68] sm:$0xff]
        %v4053 = vld [vmem:[%s4038 + $0x70] sm:$0xff]
        %v4054 = vld [vmem:[%s4038 + $0x78] sm:$0xff]
        %v4055 = vld [vmem:[%s4038 + $0x80] sm:$0xff]
        %v4056 = vld [vmem:[%s4038 + $0x88] sm:$0xff]
        %v4057 = vld [vmem:[%s4038 + $0x90] sm:$0xff]
        %v4058 = vld [vmem:[%s4038 + $0x98] sm:$0xff]
        %v4059 = vld [vmem:[%s4038 + $0xa0] sm:$0xff]
        %v4060 = vld [vmem:[%s4038 + $0xa8] sm:$0xff]
        %v4061 = vld [vmem:[%s4038 + $0xb0] sm:$0xff]
        %v4062 = vld [vmem:[%s4038 + $0xb8] sm:$0xff]
        %v4063 = vld [vmem:[%s4038 + $0xc0] sm:$0xff]
        %v4064 = vld [vmem:[%s4038 + $0xc8] sm:$0xff]
        %v4065 = vld [vmem:[%s4038 + $0xd0] sm:$0xff]
        %v4066 = vld [vmem:[%s4038 + $0xd8] sm:$0xff]
        %v4067 = vld [vmem:[%s4038 + $0xe0] sm:$0xff]
        %v4068 = vld [vmem:[%s4038 + $0xe8] sm:$0xff]
        %v4069 = vld [vmem:[%s4038 + $0xf0] sm:$0xff]
        %v4070 = vld [vmem:[%s4038 + $0xf8] sm:$0xff]
        %v4072 = vrot.slane %v4005, 1
        %vm4073 = vcmask 523264
        %v4074 = vsel %vm4073, %v4072, 0
        %4076 = vmatpush.msra.mxu0 0.0
        %4077 = vmatpush.msra.mxu0 0.0
        %4078 = vmatpush.msra.mxu0 0.0
        %4079 = vmatpush.msra.mxu0 0.0
        %4080 = vmatpush.msra.mxu0 0.0
        %4081 = vmatpush.msra.mxu0 0.0
        %4082 = vmatpush.msra.mxu0 0.0
        %4083 = vmatpush.msra.mxu0 0.0
        %4084 = vmatpush.msra.mxu0 %v4067
        %4085 = vmatpush.msra.mxu0 %v4063
        %4086 = vmatpush.msra.mxu0 %v4059
        %4087 = vmatpush.msra.mxu0 %v4055
        %4088 = vmatpush.msra.mxu0 %v4051
        %4089 = vmatpush.msra.mxu0 %v4047
        %4090 = vmatpush.msra.mxu0 %v4043
        %4091 = vmatpush.msra.mxu0 %v4039
        %4092 = vmatmul.f32.gmra.mxu0 %v4074
        %v4093 = vpop.f32.mrf.mxu0
        %v4094 = vadd.f32 0.0, %v4093
        %4095 = vdwg.mxu0
        %4096 = vmatpush.msra.mxu0 0.0
        %4097 = vmatpush.msra.mxu0 0.0
        %4098 = vmatpush.msra.mxu0 0.0
        %4099 = vmatpush.msra.mxu0 0.0
        %4100 = vmatpush.msra.mxu0 0.0
        %4101 = vmatpush.msra.mxu0 0.0
        %4102 = vmatpush.msra.mxu0 0.0
        %4103 = vmatpush.msra.mxu0 0.0
        %4104 = vmatpush.msra.mxu0 %v4068
        %4105 = vmatpush.msra.mxu0 %v4064
        %4106 = vmatpush.msra.mxu0 %v4060
        %4107 = vmatpush.msra.mxu0 %v4056
        %4108 = vmatpush.msra.mxu0 %v4052
        %4109 = vmatpush.msra.mxu0 %v4048
        %4110 = vmatpush.msra.mxu0 %v4044
        %4111 = vmatpush.msra.mxu0 %v4040
        %4112 = vmatmul.f32.gmra.mxu0 %v4074
        %v4113 = vpop.f32.mrf.mxu0
        %v4114 = vadd.f32 0.0, %v4113
        %4115 = vdwg.mxu0
        %4116 = vmatpush.msra.mxu0 0.0
        %4117 = vmatpush.msra.mxu0 0.0
        %4118 = vmatpush.msra.mxu0 0.0
        %4119 = vmatpush.msra.mxu0 0.0
        %4120 = vmatpush.msra.mxu0 0.0
        %4121 = vmatpush.msra.mxu0 0.0
        %4122 = vmatpush.msra.mxu0 0.0
        %4123 = vmatpush.msra.mxu0 0.0
        %4124 = vmatpush.msra.mxu0 %v4069
        %4125 = vmatpush.msra.mxu0 %v4065
        %4126 = vmatpush.msra.mxu0 %v4061
        %4127 = vmatpush.msra.mxu0 %v4057
        %4128 = vmatpush.msra.mxu0 %v4053
        %4129 = vmatpush.msra.mxu0 %v4049
        %4130 = vmatpush.msra.mxu0 %v4045
        %4131 = vmatpush.msra.mxu0 %v4041
        %4132 = vmatmul.f32.gmra.mxu0 %v4074
        %v4133 = vpop.f32.mrf.mxu0
        %v4134 = vadd.f32 0.0, %v4133
        %4135 = vdwg.mxu0
        %4136 = vmatpush.msra.mxu0 0.0
        %4137 = vmatpush.msra.mxu0 0.0
        %4138 = vmatpush.msra.mxu0 0.0
        %4139 = vmatpush.msra.mxu0 0.0
        %4140 = vmatpush.msra.mxu0 0.0
        %4141 = vmatpush.msra.mxu0 0.0
        %4142 = vmatpush.msra.mxu0 0.0
        %4143 = vmatpush.msra.mxu0 0.0
        %4144 = vmatpush.msra.mxu0 %v4070
        %4145 = vmatpush.msra.mxu0 %v4066
        %4146 = vmatpush.msra.mxu0 %v4062
        %4147 = vmatpush.msra.mxu0 %v4058
        %4148 = vmatpush.msra.mxu0 %v4054
        %4149 = vmatpush.msra.mxu0 %v4050
        %4150 = vmatpush.msra.mxu0 %v4046
        %4151 = vmatpush.msra.mxu0 %v4042
        %4152 = vmatmul.f32.gmra.mxu0 %v4074
        %v4153 = vpop.f32.mrf.mxu0
        %v4154 = vadd.f32 0.0, %v4153
        %4155 = vdwg.mxu0
        %v4156 = vsel %vm4073, %v4005, 0
        %4158 = vmatpush.msra.mxu0 0.0
        %4159 = vmatpush.msra.mxu0 0.0
        %4160 = vmatpush.msra.mxu0 0.0
        %4161 = vmatpush.msra.mxu0 0.0
        %4162 = vmatpush.msra.mxu0 0.0
        %4163 = vmatpush.msra.mxu0 0.0
        %4164 = vmatpush.msra.mxu0 0.0
        %4165 = vmatpush.msra.mxu0 0.0
        %4166 = vmatpush.msra.mxu0 %v4034
        %4167 = vmatpush.msra.mxu0 %v4030
        %4168 = vmatpush.msra.mxu0 %v4026
        %4169 = vmatpush.msra.mxu0 %v4022
        %4170 = vmatpush.msra.mxu0 %v4018
        %4171 = vmatpush.msra.mxu0 %v4014
        %4172 = vmatpush.msra.mxu0 %v4010
        %4173 = vmatpush.msra.mxu0 %v4006
        %4174 = vmatmul.f32.gmra.mxu0 %v4156
        %v4175 = vpop.f32.mrf.mxu0
        %v4176 = vadd.f32 %v4094, %v4175
        %4177 = vdwg.mxu0
        %4178 = vmatpush.msra.mxu0 0.0
        %4179 = vmatpush.msra.mxu0 0.0
        %4180 = vmatpush.msra.mxu0 0.0
        %4181 = vmatpush.msra.mxu0 0.0
        %4182 = vmatpush.msra.mxu0 0.0
        %4183 = vmatpush.msra.mxu0 0.0
        %4184 = vmatpush.msra.mxu0 0.0
        %4185 = vmatpush.msra.mxu0 0.0
        %4186 = vmatpush.msra.mxu0 %v4035
        %4187 = vmatpush.msra.mxu0 %v4031
        %4188 = vmatpush.msra.mxu0 %v4027
        %4189 = vmatpush.msra.mxu0 %v4023
        %4190 = vmatpush.msra.mxu0 %v4019
        %4191 = vmatpush.msra.mxu0 %v4015
        %4192 = vmatpush.msra.mxu0 %v4011
        %4193 = vmatpush.msra.mxu0 %v4007
        %4194 = vmatmul.f32.gmra.mxu0 %v4156
        %v4195 = vpop.f32.mrf.mxu0
        %v4196 = vadd.f32 %v4114, %v4195
        %4197 = vdwg.mxu0
        %4198 = vmatpush.msra.mxu0 0.0
        %4199 = vmatpush.msra.mxu0 0.0
        %4200 = vmatpush.msra.mxu0 0.0
        %4201 = vmatpush.msra.mxu0 0.0
        %4202 = vmatpush.msra.mxu0 0.0
        %4203 = vmatpush.msra.mxu0 0.0
        %4204 = vmatpush.msra.mxu0 0.0
        %4205 = vmatpush.msra.mxu0 0.0
        %4206 = vmatpush.msra.mxu0 %v4036
        %4207 = vmatpush.msra.mxu0 %v4032
        %4208 = vmatpush.msra.mxu0 %v4028
        %4209 = vmatpush.msra.mxu0 %v4024
        %4210 = vmatpush.msra.mxu0 %v4020
        %4211 = vmatpush.msra.mxu0 %v4016
        %4212 = vmatpush.msra.mxu0 %v4012
        %4213 = vmatpush.msra.mxu0 %v4008
        %4214 = vmatmul.f32.gmra.mxu0 %v4156
        %v4215 = vpop.f32.mrf.mxu0
        %v4216 = vadd.f32 %v4134, %v4215
        %4217 = vdwg.mxu0
        %4218 = vmatpush.msra.mxu0 0.0
        %4219 = vmatpush.msra.mxu0 0.0
        %4220 = vmatpush.msra.mxu0 0.0
        %4221 = vmatpush.msra.mxu0 0.0
        %4222 = vmatpush.msra.mxu0 0.0
        %4223 = vmatpush.msra.mxu0 0.0
        %4224 = vmatpush.msra.mxu0 0.0
        %4225 = vmatpush.msra.mxu0 0.0
        %4226 = vmatpush.msra.mxu0 %v4037
        %4227 = vmatpush.msra.mxu0 %v4033
        %4228 = vmatpush.msra.mxu0 %v4029
        %4229 = vmatpush.msra.mxu0 %v4025
        %4230 = vmatpush.msra.mxu0 %v4021
        %4231 = vmatpush.msra.mxu0 %v4017
        %4232 = vmatpush.msra.mxu0 %v4013
        %4233 = vmatpush.msra.mxu0 %v4009
        %4234 = vmatmul.f32.gmra.mxu0 %v4156
        %v4235 = vpop.f32.mrf.mxu0
        %v4236 = vadd.f32 %v4154, %v4235
        %4237 = vdwg.mxu0
        %s4238 = scalar_lea.vmem %s5, 512
        %v4239 = vld [vmem:[%s4238] sm:$0xff]
        %v4240 = vld [vmem:[%s4238 + $0x8] sm:$0xff]
        %v4241 = vld [vmem:[%s4238 + $0x10] sm:$0xff]
        %v4242 = vld [vmem:[%s4238 + $0x18] sm:$0xff]
        %v4243 = vld [vmem:[%s4238 + $0x20] sm:$0xff]
        %v4244 = vld [vmem:[%s4238 + $0x28] sm:$0xff]
        %v4245 = vld [vmem:[%s4238 + $0x30] sm:$0xff]
        %v4246 = vld [vmem:[%s4238 + $0x38] sm:$0xff]
        %v4247 = vld [vmem:[%s4238 + $0x40] sm:$0xff]
        %v4248 = vld [vmem:[%s4238 + $0x48] sm:$0xff]
        %v4249 = vld [vmem:[%s4238 + $0x50] sm:$0xff]
        %v4250 = vld [vmem:[%s4238 + $0x58] sm:$0xff]
        %v4251 = vld [vmem:[%s4238 + $0x60] sm:$0xff]
        %v4252 = vld [vmem:[%s4238 + $0x68] sm:$0xff]
        %v4253 = vld [vmem:[%s4238 + $0x70] sm:$0xff]
        %v4254 = vld [vmem:[%s4238 + $0x78] sm:$0xff]
        %v4255 = vld [vmem:[%s4238 + $0x80] sm:$0xff]
        %v4256 = vld [vmem:[%s4238 + $0x88] sm:$0xff]
        %v4257 = vld [vmem:[%s4238 + $0x90] sm:$0xff]
        %v4258 = vld [vmem:[%s4238 + $0x98] sm:$0xff]
        %v4259 = vld [vmem:[%s4238 + $0xa0] sm:$0xff]
        %v4260 = vld [vmem:[%s4238 + $0xa8] sm:$0xff]
        %v4261 = vld [vmem:[%s4238 + $0xb0] sm:$0xff]
        %v4262 = vld [vmem:[%s4238 + $0xb8] sm:$0xff]
        %v4263 = vld [vmem:[%s4238 + $0xc0] sm:$0xff]
        %v4264 = vld [vmem:[%s4238 + $0xc8] sm:$0xff]
        %v4265 = vld [vmem:[%s4238 + $0xd0] sm:$0xff]
        %v4266 = vld [vmem:[%s4238 + $0xd8] sm:$0xff]
        %v4267 = vld [vmem:[%s4238 + $0xe0] sm:$0xff]
        %v4268 = vld [vmem:[%s4238 + $0xe8] sm:$0xff]
        %v4269 = vld [vmem:[%s4238 + $0xf0] sm:$0xff]
        %v4270 = vld [vmem:[%s4238 + $0xf8] sm:$0xff]
        %v4271 = vrot.slane %v4005, 2
        %v4272 = vsel %vm4073, %v4271, 0
        %4274 = vmatpush.msra.mxu0 0.0
        %4275 = vmatpush.msra.mxu0 0.0
        %4276 = vmatpush.msra.mxu0 0.0
        %4277 = vmatpush.msra.mxu0 0.0
        %4278 = vmatpush.msra.mxu0 0.0
        %4279 = vmatpush.msra.mxu0 0.0
        %4280 = vmatpush.msra.mxu0 0.0
        %4281 = vmatpush.msra.mxu0 0.0
        %4282 = vmatpush.msra.mxu0 %v4267
        %4283 = vmatpush.msra.mxu0 %v4263
        %4284 = vmatpush.msra.mxu0 %v4259
        %4285 = vmatpush.msra.mxu0 %v4255
        %4286 = vmatpush.msra.mxu0 %v4251
        %4287 = vmatpush.msra.mxu0 %v4247
        %4288 = vmatpush.msra.mxu0 %v4243
        %4289 = vmatpush.msra.mxu0 %v4239
        %4290 = vmatmul.f32.gmra.mxu0 %v4272
        %v4291 = vpop.f32.mrf.mxu0
        %v4292 = vadd.f32 0.0, %v4291
        %4293 = vdwg.mxu0
        %4294 = vmatpush.msra.mxu0 0.0
        %4295 = vmatpush.msra.mxu0 0.0
        %4296 = vmatpush.msra.mxu0 0.0
        %4297 = vmatpush.msra.mxu0 0.0
        %4298 = vmatpush.msra.mxu0 0.0
        %4299 = vmatpush.msra.mxu0 0.0
        %4300 = vmatpush.msra.mxu0 0.0
        %4301 = vmatpush.msra.mxu0 0.0
        %4302 = vmatpush.msra.mxu0 %v4268
        %4303 = vmatpush.msra.mxu0 %v4264
        %4304 = vmatpush.msra.mxu0 %v4260
        %4305 = vmatpush.msra.mxu0 %v4256
        %4306 = vmatpush.msra.mxu0 %v4252
        %4307 = vmatpush.msra.mxu0 %v4248
        %4308 = vmatpush.msra.mxu0 %v4244
        %4309 = vmatpush.msra.mxu0 %v4240
        %4310 = vmatmul.f32.gmra.mxu0 %v4272
        %v4311 = vpop.f32.mrf.mxu0
        %v4312 = vadd.f32 0.0, %v4311
        %4313 = vdwg.mxu0
        %4314 = vmatpush.msra.mxu0 0.0
        %4315 = vmatpush.msra.mxu0 0.0
        %4316 = vmatpush.msra.mxu0 0.0
        %4317 = vmatpush.msra.mxu0 0.0
        %4318 = vmatpush.msra.mxu0 0.0
        %4319 = vmatpush.msra.mxu0 0.0
        %4320 = vmatpush.msra.mxu0 0.0
        %4321 = vmatpush.msra.mxu0 0.0
        %4322 = vmatpush.msra.mxu0 %v4269
        %4323 = vmatpush.msra.mxu0 %v4265
        %4324 = vmatpush.msra.mxu0 %v4261
        %4325 = vmatpush.msra.mxu0 %v4257
        %4326 = vmatpush.msra.mxu0 %v4253
        %4327 = vmatpush.msra.mxu0 %v4249
        %4328 = vmatpush.msra.mxu0 %v4245
        %4329 = vmatpush.msra.mxu0 %v4241
        %4330 = vmatmul.f32.gmra.mxu0 %v4272
        %v4331 = vpop.f32.mrf.mxu0
        %v4332 = vadd.f32 0.0, %v4331
        %4333 = vdwg.mxu0
        %4334 = vmatpush.msra.mxu0 0.0
        %4335 = vmatpush.msra.mxu0 0.0
        %4336 = vmatpush.msra.mxu0 0.0
        %4337 = vmatpush.msra.mxu0 0.0
        %4338 = vmatpush.msra.mxu0 0.0
        %4339 = vmatpush.msra.mxu0 0.0
        %4340 = vmatpush.msra.mxu0 0.0
        %4341 = vmatpush.msra.mxu0 0.0
        %4342 = vmatpush.msra.mxu0 %v4270
        %4343 = vmatpush.msra.mxu0 %v4266
        %4344 = vmatpush.msra.mxu0 %v4262
        %4345 = vmatpush.msra.mxu0 %v4258
        %4346 = vmatpush.msra.mxu0 %v4254
        %4347 = vmatpush.msra.mxu0 %v4250
        %4348 = vmatpush.msra.mxu0 %v4246
        %4349 = vmatpush.msra.mxu0 %v4242
        %4350 = vmatmul.f32.gmra.mxu0 %v4272
        %v4351 = vpop.f32.mrf.mxu0
        %v4352 = vadd.f32 0.0, %v4351
        %4353 = vdwg.mxu0
        %v4354 = vadd.f32 %v4176, %v4292
        %v4355 = vadd.f32 %v4196, %v4312
        %v4356 = vadd.f32 %v4216, %v4332
        %v4357 = vadd.f32 %v4236, %v4352
        %s4358 = scalar_lea.vmem %s5, 768
        %v4359 = vld [vmem:[%s4358] sm:$0xff]
        %v4360 = vld [vmem:[%s4358 + $0x8] sm:$0xff]
        %v4361 = vld [vmem:[%s4358 + $0x10] sm:$0xff]
        %v4362 = vld [vmem:[%s4358 + $0x18] sm:$0xff]
        %v4363 = vld [vmem:[%s4358 + $0x20] sm:$0xff]
        %v4364 = vld [vmem:[%s4358 + $0x28] sm:$0xff]
        %v4365 = vld [vmem:[%s4358 + $0x30] sm:$0xff]
        %v4366 = vld [vmem:[%s4358 + $0x38] sm:$0xff]
        %v4367 = vld [vmem:[%s4358 + $0x40] sm:$0xff]
        %v4368 = vld [vmem:[%s4358 + $0x48] sm:$0xff]
        %v4369 = vld [vmem:[%s4358 + $0x50] sm:$0xff]
        %v4370 = vld [vmem:[%s4358 + $0x58] sm:$0xff]
        %v4371 = vld [vmem:[%s4358 + $0x60] sm:$0xff]
        %v4372 = vld [vmem:[%s4358 + $0x68] sm:$0xff]
        %v4373 = vld [vmem:[%s4358 + $0x70] sm:$0xff]
        %v4374 = vld [vmem:[%s4358 + $0x78] sm:$0xff]
        %v4375 = vld [vmem:[%s4358 + $0x80] sm:$0xff]
        %v4376 = vld [vmem:[%s4358 + $0x88] sm:$0xff]
        %v4377 = vld [vmem:[%s4358 + $0x90] sm:$0xff]
        %v4378 = vld [vmem:[%s4358 + $0x98] sm:$0xff]
        %v4379 = vld [vmem:[%s4358 + $0xa0] sm:$0xff]
        %v4380 = vld [vmem:[%s4358 + $0xa8] sm:$0xff]
        %v4381 = vld [vmem:[%s4358 + $0xb0] sm:$0xff]
        %v4382 = vld [vmem:[%s4358 + $0xb8] sm:$0xff]
        %v4383 = vld [vmem:[%s4358 + $0xc0] sm:$0xff]
        %v4384 = vld [vmem:[%s4358 + $0xc8] sm:$0xff]
        %v4385 = vld [vmem:[%s4358 + $0xd0] sm:$0xff]
        %v4386 = vld [vmem:[%s4358 + $0xd8] sm:$0xff]
        %v4387 = vld [vmem:[%s4358 + $0xe0] sm:$0xff]
        %v4388 = vld [vmem:[%s4358 + $0xe8] sm:$0xff]
        %v4389 = vld [vmem:[%s4358 + $0xf0] sm:$0xff]
        %v4390 = vld [vmem:[%s4358 + $0xf8] sm:$0xff]
        %v4391 = vrot.slane %v4005, 3
        %v4392 = vsel %vm4073, %v4391, 0
        %4394 = vmatpush.msra.mxu0 0.0
        %4395 = vmatpush.msra.mxu0 0.0
        %4396 = vmatpush.msra.mxu0 0.0
        %4397 = vmatpush.msra.mxu0 0.0
        %4398 = vmatpush.msra.mxu0 0.0
        %4399 = vmatpush.msra.mxu0 0.0
        %4400 = vmatpush.msra.mxu0 0.0
        %4401 = vmatpush.msra.mxu0 0.0
        %4402 = vmatpush.msra.mxu0 %v4387
        %4403 = vmatpush.msra.mxu0 %v4383
        %4404 = vmatpush.msra.mxu0 %v4379
        %4405 = vmatpush.msra.mxu0 %v4375
        %4406 = vmatpush.msra.mxu0 %v4371
        %4407 = vmatpush.msra.mxu0 %v4367
        %4408 = vmatpush.msra.mxu0 %v4363
        %4409 = vmatpush.msra.mxu0 %v4359
        %4410 = vmatmul.f32.gmra.mxu0 %v4392
        %v4411 = vpop.f32.mrf.mxu0
        %v4412 = vadd.f32 0.0, %v4411
        %4413 = vdwg.mxu0
        %4414 = vmatpush.msra.mxu0 0.0
        %4415 = vmatpush.msra.mxu0 0.0
        %4416 = vmatpush.msra.mxu0 0.0
        %4417 = vmatpush.msra.mxu0 0.0
        %4418 = vmatpush.msra.mxu0 0.0
        %4419 = vmatpush.msra.mxu0 0.0
        %4420 = vmatpush.msra.mxu0 0.0
        %4421 = vmatpush.msra.mxu0 0.0
        %4422 = vmatpush.msra.mxu0 %v4388
        %4423 = vmatpush.msra.mxu0 %v4384
        %4424 = vmatpush.msra.mxu0 %v4380
        %4425 = vmatpush.msra.mxu0 %v4376
        %4426 = vmatpush.msra.mxu0 %v4372
        %4427 = vmatpush.msra.mxu0 %v4368
        %4428 = vmatpush.msra.mxu0 %v4364
        %4429 = vmatpush.msra.mxu0 %v4360
        %4430 = vmatmul.f32.gmra.mxu0 %v4392
        %v4431 = vpop.f32.mrf.mxu0
        %v4432 = vadd.f32 0.0, %v4431
        %4433 = vdwg.mxu0
        %4434 = vmatpush.msra.mxu0 0.0
        %4435 = vmatpush.msra.mxu0 0.0
        %4436 = vmatpush.msra.mxu0 0.0
        %4437 = vmatpush.msra.mxu0 0.0
        %4438 = vmatpush.msra.mxu0 0.0
        %4439 = vmatpush.msra.mxu0 0.0
        %4440 = vmatpush.msra.mxu0 0.0
        %4441 = vmatpush.msra.mxu0 0.0
        %4442 = vmatpush.msra.mxu0 %v4389
        %4443 = vmatpush.msra.mxu0 %v4385
        %4444 = vmatpush.msra.mxu0 %v4381
        %4445 = vmatpush.msra.mxu0 %v4377
        %4446 = vmatpush.msra.mxu0 %v4373
        %4447 = vmatpush.msra.mxu0 %v4369
        %4448 = vmatpush.msra.mxu0 %v4365
        %4449 = vmatpush.msra.mxu0 %v4361
        %4450 = vmatmul.f32.gmra.mxu0 %v4392
        %v4451 = vpop.f32.mrf.mxu0
        %v4452 = vadd.f32 0.0, %v4451
        %4453 = vdwg.mxu0
        %4454 = vmatpush.msra.mxu0 0.0
        %4455 = vmatpush.msra.mxu0 0.0
        %4456 = vmatpush.msra.mxu0 0.0
        %4457 = vmatpush.msra.mxu0 0.0
        %4458 = vmatpush.msra.mxu0 0.0
        %4459 = vmatpush.msra.mxu0 0.0
        %4460 = vmatpush.msra.mxu0 0.0
        %4461 = vmatpush.msra.mxu0 0.0
        %4462 = vmatpush.msra.mxu0 %v4390
        %4463 = vmatpush.msra.mxu0 %v4386
        %4464 = vmatpush.msra.mxu0 %v4382
        %4465 = vmatpush.msra.mxu0 %v4378
        %4466 = vmatpush.msra.mxu0 %v4374
        %4467 = vmatpush.msra.mxu0 %v4370
        %4468 = vmatpush.msra.mxu0 %v4366
        %4469 = vmatpush.msra.mxu0 %v4362
        %4470 = vmatmul.f32.gmra.mxu0 %v4392
        %v4471 = vpop.f32.mrf.mxu0
        %v4472 = vadd.f32 0.0, %v4471
        %4473 = vdwg.mxu0
        %v4474 = vadd.f32 %v4354, %v4412
        %v4475 = vadd.f32 %v4355, %v4432
        %v4476 = vadd.f32 %v4356, %v4452
        %v4477 = vadd.f32 %v4357, %v4472
        %v4478 = vmax.f32 %v3953, %v3954
        %4479 = vmatpush.msra.mxu0 0.0
        %4480 = vmatpush.msra.mxu0 0.0
        %4481 = vmatpush.msra.mxu0 0.0
        %4482 = vmatpush.msra.mxu0 0.0
        %4483 = vmatpush.msra.mxu0 0.0
        %4484 = vmatpush.msra.mxu0 0.0
        %4485 = vmatpush.msra.mxu0 0.0
        %4486 = vmatpush.msra.mxu0 0.0
        %4487 = vmatpush.msra.mxu0 0.0
        %4488 = vmatpush.msra.mxu0 0.0
        %4489 = vmatpush.msra.mxu0 0.0
        %4490 = vmatpush.msra.mxu0 0.0
        %4491 = vmatpush.msra.mxu0 0.0
        %4492 = vmatpush.msra.mxu0 0.0
        %4493 = vmatpush.msra.mxu0 0.0
        %4494 = vmatpush.msra.mxu0 %v4478
        %4495 = vmatmul.f32.gmra.mxu0 %v3961
        %v4496 = vpop.f32.mrf.mxu0
        %v4497 = vadd.f32 0.0, %v4496
        %4498 = vdwg.mxu0
        %4499 = vmatpush.msra.mxu0 0.0
        %4500 = vmatpush.msra.mxu0 0.0
        %4501 = vmatpush.msra.mxu0 0.0
        %4502 = vmatpush.msra.mxu0 0.0
        %4503 = vmatpush.msra.mxu0 0.0
        %4504 = vmatpush.msra.mxu0 0.0
        %4505 = vmatpush.msra.mxu0 0.0
        %4506 = vmatpush.msra.mxu0 0.0
        %4507 = vmatpush.msra.mxu0 0.0
        %4508 = vmatpush.msra.mxu0 0.0
        %4509 = vmatpush.msra.mxu0 0.0
        %4510 = vmatpush.msra.mxu0 0.0
        %4511 = vmatpush.msra.mxu0 0.0
        %4512 = vmatpush.msra.mxu0 0.0
        %4513 = vmatpush.msra.mxu0 0.0
        %4514 = vmatpush.msra.mxu0 %v4478
        %4515 = vmatmul.f32.gmra.mxu0 %v3983
        %v4516 = vpop.f32.mrf.mxu0
        %v4517 = vadd.f32 0.0, %v4516
        %4518 = vdwg.mxu0
        %v4519 = vmax.f32 %v4497, %v4517
        %s4520 = scalar_lea.vmem %s5, 1024
        %v4521 = vld [vmem:[%s4520] sm:$0xff]
        %v4522 = vld [vmem:[%s4520 + $0x8] sm:$0xff]
        %v4523 = vld [vmem:[%s4520 + $0x10] sm:$0xff]
        %v4524 = vld [vmem:[%s4520 + $0x18] sm:$0xff]
        %v4525 = vld [vmem:[%s4520 + $0x20] sm:$0xff]
        %v4526 = vld [vmem:[%s4520 + $0x28] sm:$0xff]
        %v4527 = vld [vmem:[%s4520 + $0x30] sm:$0xff]
        %v4528 = vld [vmem:[%s4520 + $0x38] sm:$0xff]
        %v4529 = vld [vmem:[%s4520 + $0x40] sm:$0xff]
        %v4530 = vld [vmem:[%s4520 + $0x48] sm:$0xff]
        %v4531 = vld [vmem:[%s4520 + $0x50] sm:$0xff]
        %v4532 = vld [vmem:[%s4520 + $0x58] sm:$0xff]
        %v4533 = vld [vmem:[%s4520 + $0x60] sm:$0xff]
        %v4534 = vld [vmem:[%s4520 + $0x68] sm:$0xff]
        %v4535 = vld [vmem:[%s4520 + $0x70] sm:$0xff]
        %v4536 = vld [vmem:[%s4520 + $0x78] sm:$0xff]
        %v4537 = vld [vmem:[%s4520 + $0x80] sm:$0xff]
        %v4538 = vld [vmem:[%s4520 + $0x88] sm:$0xff]
        %v4539 = vld [vmem:[%s4520 + $0x90] sm:$0xff]
        %v4540 = vld [vmem:[%s4520 + $0x98] sm:$0xff]
        %v4541 = vld [vmem:[%s4520 + $0xa0] sm:$0xff]
        %v4542 = vld [vmem:[%s4520 + $0xa8] sm:$0xff]
        %v4543 = vld [vmem:[%s4520 + $0xb0] sm:$0xff]
        %v4544 = vld [vmem:[%s4520 + $0xb8] sm:$0xff]
        %v4545 = vld [vmem:[%s4520 + $0xc0] sm:$0xff]
        %v4546 = vld [vmem:[%s4520 + $0xc8] sm:$0xff]
        %v4547 = vld [vmem:[%s4520 + $0xd0] sm:$0xff]
        %v4548 = vld [vmem:[%s4520 + $0xd8] sm:$0xff]
        %v4549 = vld [vmem:[%s4520 + $0xe0] sm:$0xff]
        %v4550 = vld [vmem:[%s4520 + $0xe8] sm:$0xff]
        %v4551 = vld [vmem:[%s4520 + $0xf0] sm:$0xff]
        %v4552 = vld [vmem:[%s4520 + $0xf8] sm:$0xff]
        %v4554 = vsel %vm4073, %v4519, 0
        %4556 = vmatpush.msra.mxu0 0.0
        %4557 = vmatpush.msra.mxu0 0.0
        %4558 = vmatpush.msra.mxu0 0.0
        %4559 = vmatpush.msra.mxu0 0.0
        %4560 = vmatpush.msra.mxu0 0.0
        %4561 = vmatpush.msra.mxu0 0.0
        %4562 = vmatpush.msra.mxu0 0.0
        %4563 = vmatpush.msra.mxu0 0.0
        %4564 = vmatpush.msra.mxu0 %v4549
        %4565 = vmatpush.msra.mxu0 %v4545
        %4566 = vmatpush.msra.mxu0 %v4541
        %4567 = vmatpush.msra.mxu0 %v4537
        %4568 = vmatpush.msra.mxu0 %v4533
        %4569 = vmatpush.msra.mxu0 %v4529
        %4570 = vmatpush.msra.mxu0 %v4525
        %4571 = vmatpush.msra.mxu0 %v4521
        %4572 = vmatmul.f32.gmra.mxu0 %v4554
        %v4573 = vpop.f32.mrf.mxu0
        %v4574 = vadd.f32 0.0, %v4573
        %4575 = vdwg.mxu0
        %4576 = vmatpush.msra.mxu0 0.0
        %4577 = vmatpush.msra.mxu0 0.0
        %4578 = vmatpush.msra.mxu0 0.0
        %4579 = vmatpush.msra.mxu0 0.0
        %4580 = vmatpush.msra.mxu0 0.0
        %4581 = vmatpush.msra.mxu0 0.0
        %4582 = vmatpush.msra.mxu0 0.0
        %4583 = vmatpush.msra.mxu0 0.0
        %4584 = vmatpush.msra.mxu0 %v4550
        %4585 = vmatpush.msra.mxu0 %v4546
        %4586 = vmatpush.msra.mxu0 %v4542
        %4587 = vmatpush.msra.mxu0 %v4538
        %4588 = vmatpush.msra.mxu0 %v4534
        %4589 = vmatpush.msra.mxu0 %v4530
        %4590 = vmatpush.msra.mxu0 %v4526
        %4591 = vmatpush.msra.mxu0 %v4522
        %4592 = vmatmul.f32.gmra.mxu0 %v4554
        %v4593 = vpop.f32.mrf.mxu0
        %v4594 = vadd.f32 0.0, %v4593
        %4595 = vdwg.mxu0
        %4596 = vmatpush.msra.mxu0 0.0
        %4597 = vmatpush.msra.mxu0 0.0
        %4598 = vmatpush.msra.mxu0 0.0
        %4599 = vmatpush.msra.mxu0 0.0
        %4600 = vmatpush.msra.mxu0 0.0
        %4601 = vmatpush.msra.mxu0 0.0
        %4602 = vmatpush.msra.mxu0 0.0
        %4603 = vmatpush.msra.mxu0 0.0
        %4604 = vmatpush.msra.mxu0 %v4551
        %4605 = vmatpush.msra.mxu0 %v4547
        %4606 = vmatpush.msra.mxu0 %v4543
        %4607 = vmatpush.msra.mxu0 %v4539
        %4608 = vmatpush.msra.mxu0 %v4535
        %4609 = vmatpush.msra.mxu0 %v4531
        %4610 = vmatpush.msra.mxu0 %v4527
        %4611 = vmatpush.msra.mxu0 %v4523
        %4612 = vmatmul.f32.gmra.mxu0 %v4554
        %v4613 = vpop.f32.mrf.mxu0
        %v4614 = vadd.f32 0.0, %v4613
        %4615 = vdwg.mxu0
        %4616 = vmatpush.msra.mxu0 0.0
        %4617 = vmatpush.msra.mxu0 0.0
        %4618 = vmatpush.msra.mxu0 0.0
        %4619 = vmatpush.msra.mxu0 0.0
        %4620 = vmatpush.msra.mxu0 0.0
        %4621 = vmatpush.msra.mxu0 0.0
        %4622 = vmatpush.msra.mxu0 0.0
        %4623 = vmatpush.msra.mxu0 0.0
        %4624 = vmatpush.msra.mxu0 %v4552
        %4625 = vmatpush.msra.mxu0 %v4548
        %4626 = vmatpush.msra.mxu0 %v4544
        %4627 = vmatpush.msra.mxu0 %v4540
        %4628 = vmatpush.msra.mxu0 %v4536
        %4629 = vmatpush.msra.mxu0 %v4532
        %4630 = vmatpush.msra.mxu0 %v4528
        %4631 = vmatpush.msra.mxu0 %v4524
        %4632 = vmatmul.f32.gmra.mxu0 %v4554
        %v4633 = vpop.f32.mrf.mxu0
        %v4634 = vadd.f32 0.0, %v4633
        %4635 = vdwg.mxu0
        %v4636 = vadd.f32 %v4474, %v4574
        %v4637 = vadd.f32 %v4475, %v4594
        %v4638 = vadd.f32 %v4476, %v4614
        %v4639 = vadd.f32 %v4477, %v4634
        %s4640 = scalar_lea.vmem %s5, 1280
        %v4641 = vld [vmem:[%s4640] sm:$0xff]
        %v4642 = vld [vmem:[%s4640 + $0x8] sm:$0xff]
        %v4643 = vld [vmem:[%s4640 + $0x10] sm:$0xff]
        %v4644 = vld [vmem:[%s4640 + $0x18] sm:$0xff]
        %v4645 = vld [vmem:[%s4640 + $0x20] sm:$0xff]
        %v4646 = vld [vmem:[%s4640 + $0x28] sm:$0xff]
        %v4647 = vld [vmem:[%s4640 + $0x30] sm:$0xff]
        %v4648 = vld [vmem:[%s4640 + $0x38] sm:$0xff]
        %v4649 = vld [vmem:[%s4640 + $0x40] sm:$0xff]
        %v4650 = vld [vmem:[%s4640 + $0x48] sm:$0xff]
        %v4651 = vld [vmem:[%s4640 + $0x50] sm:$0xff]
        %v4652 = vld [vmem:[%s4640 + $0x58] sm:$0xff]
        %v4653 = vld [vmem:[%s4640 + $0x60] sm:$0xff]
        %v4654 = vld [vmem:[%s4640 + $0x68] sm:$0xff]
        %v4655 = vld [vmem:[%s4640 + $0x70] sm:$0xff]
        %v4656 = vld [vmem:[%s4640 + $0x78] sm:$0xff]
        %v4657 = vld [vmem:[%s4640 + $0x80] sm:$0xff]
        %v4658 = vld [vmem:[%s4640 + $0x88] sm:$0xff]
        %v4659 = vld [vmem:[%s4640 + $0x90] sm:$0xff]
        %v4660 = vld [vmem:[%s4640 + $0x98] sm:$0xff]
        %v4661 = vld [vmem:[%s4640 + $0xa0] sm:$0xff]
        %v4662 = vld [vmem:[%s4640 + $0xa8] sm:$0xff]
        %v4663 = vld [vmem:[%s4640 + $0xb0] sm:$0xff]
        %v4664 = vld [vmem:[%s4640 + $0xb8] sm:$0xff]
        %v4665 = vld [vmem:[%s4640 + $0xc0] sm:$0xff]
        %v4666 = vld [vmem:[%s4640 + $0xc8] sm:$0xff]
        %v4667 = vld [vmem:[%s4640 + $0xd0] sm:$0xff]
        %v4668 = vld [vmem:[%s4640 + $0xd8] sm:$0xff]
        %v4669 = vld [vmem:[%s4640 + $0xe0] sm:$0xff]
        %v4670 = vld [vmem:[%s4640 + $0xe8] sm:$0xff]
        %v4671 = vld [vmem:[%s4640 + $0xf0] sm:$0xff]
        %v4672 = vld [vmem:[%s4640 + $0xf8] sm:$0xff]
        %v4673 = vrot.slane %v4519, 1
        %v4674 = vsel %vm4073, %v4673, 0
        %4676 = vmatpush.msra.mxu0 0.0
        %4677 = vmatpush.msra.mxu0 0.0
        %4678 = vmatpush.msra.mxu0 0.0
        %4679 = vmatpush.msra.mxu0 0.0
        %4680 = vmatpush.msra.mxu0 0.0
        %4681 = vmatpush.msra.mxu0 0.0
        %4682 = vmatpush.msra.mxu0 0.0
        %4683 = vmatpush.msra.mxu0 0.0
        %4684 = vmatpush.msra.mxu0 %v4669
        %4685 = vmatpush.msra.mxu0 %v4665
        %4686 = vmatpush.msra.mxu0 %v4661
        %4687 = vmatpush.msra.mxu0 %v4657
        %4688 = vmatpush.msra.mxu0 %v4653
        %4689 = vmatpush.msra.mxu0 %v4649
        %4690 = vmatpush.msra.mxu0 %v4645
        %4691 = vmatpush.msra.mxu0 %v4641
        %4692 = vmatmul.f32.gmra.mxu0 %v4674
        %v4693 = vpop.f32.mrf.mxu0
        %v4694 = vadd.f32 0.0, %v4693
        %4695 = vdwg.mxu0
        %4696 = vmatpush.msra.mxu0 0.0
        %4697 = vmatpush.msra.mxu0 0.0
        %4698 = vmatpush.msra.mxu0 0.0
        %4699 = vmatpush.msra.mxu0 0.0
        %4700 = vmatpush.msra.mxu0 0.0
        %4701 = vmatpush.msra.mxu0 0.0
        %4702 = vmatpush.msra.mxu0 0.0
        %4703 = vmatpush.msra.mxu0 0.0
        %4704 = vmatpush.msra.mxu0 %v4670
        %4705 = vmatpush.msra.mxu0 %v4666
        %4706 = vmatpush.msra.mxu0 %v4662
        %4707 = vmatpush.msra.mxu0 %v4658
        %4708 = vmatpush.msra.mxu0 %v4654
        %4709 = vmatpush.msra.mxu0 %v4650
        %4710 = vmatpush.msra.mxu0 %v4646
        %4711 = vmatpush.msra.mxu0 %v4642
        %4712 = vmatmul.f32.gmra.mxu0 %v4674
        %v4713 = vpop.f32.mrf.mxu0
        %v4714 = vadd.f32 0.0, %v4713
        %4715 = vdwg.mxu0
        %4716 = vmatpush.msra.mxu0 0.0
        %4717 = vmatpush.msra.mxu0 0.0
        %4718 = vmatpush.msra.mxu0 0.0
        %4719 = vmatpush.msra.mxu0 0.0
        %4720 = vmatpush.msra.mxu0 0.0
        %4721 = vmatpush.msra.mxu0 0.0
        %4722 = vmatpush.msra.mxu0 0.0
        %4723 = vmatpush.msra.mxu0 0.0
        %4724 = vmatpush.msra.mxu0 %v4671
        %4725 = vmatpush.msra.mxu0 %v4667
        %4726 = vmatpush.msra.mxu0 %v4663
        %4727 = vmatpush.msra.mxu0 %v4659
        %4728 = vmatpush.msra.mxu0 %v4655
        %4729 = vmatpush.msra.mxu0 %v4651
        %4730 = vmatpush.msra.mxu0 %v4647
        %4731 = vmatpush.msra.mxu0 %v4643
        %4732 = vmatmul.f32.gmra.mxu0 %v4674
        %v4733 = vpop.f32.mrf.mxu0
        %v4734 = vadd.f32 0.0, %v4733
        %4735 = vdwg.mxu0
        %4736 = vmatpush.msra.mxu0 0.0
        %4737 = vmatpush.msra.mxu0 0.0
        %4738 = vmatpush.msra.mxu0 0.0
        %4739 = vmatpush.msra.mxu0 0.0
        %4740 = vmatpush.msra.mxu0 0.0
        %4741 = vmatpush.msra.mxu0 0.0
        %4742 = vmatpush.msra.mxu0 0.0
        %4743 = vmatpush.msra.mxu0 0.0
        %4744 = vmatpush.msra.mxu0 %v4672
        %4745 = vmatpush.msra.mxu0 %v4668
        %4746 = vmatpush.msra.mxu0 %v4664
        %4747 = vmatpush.msra.mxu0 %v4660
        %4748 = vmatpush.msra.mxu0 %v4656
        %4749 = vmatpush.msra.mxu0 %v4652
        %4750 = vmatpush.msra.mxu0 %v4648
        %4751 = vmatpush.msra.mxu0 %v4644
        %4752 = vmatmul.f32.gmra.mxu0 %v4674
        %v4753 = vpop.f32.mrf.mxu0
        %v4754 = vadd.f32 0.0, %v4753
        %4755 = vdwg.mxu0
        %v4756 = vadd.f32 %v4636, %v4694
        %v4757 = vadd.f32 %v4637, %v4714
        %v4758 = vadd.f32 %v4638, %v4734
        %v4759 = vadd.f32 %v4639, %v4754
        %s4760 = scalar_lea.vmem %s5, 1536
        %v4761 = vld [vmem:[%s4760] sm:$0xff]
        %v4762 = vld [vmem:[%s4760 + $0x8] sm:$0xff]
        %v4763 = vld [vmem:[%s4760 + $0x10] sm:$0xff]
        %v4764 = vld [vmem:[%s4760 + $0x18] sm:$0xff]
        %v4765 = vld [vmem:[%s4760 + $0x20] sm:$0xff]
        %v4766 = vld [vmem:[%s4760 + $0x28] sm:$0xff]
        %v4767 = vld [vmem:[%s4760 + $0x30] sm:$0xff]
        %v4768 = vld [vmem:[%s4760 + $0x38] sm:$0xff]
        %v4769 = vld [vmem:[%s4760 + $0x40] sm:$0xff]
        %v4770 = vld [vmem:[%s4760 + $0x48] sm:$0xff]
        %v4771 = vld [vmem:[%s4760 + $0x50] sm:$0xff]
        %v4772 = vld [vmem:[%s4760 + $0x58] sm:$0xff]
        %v4773 = vld [vmem:[%s4760 + $0x60] sm:$0xff]
        %v4774 = vld [vmem:[%s4760 + $0x68] sm:$0xff]
        %v4775 = vld [vmem:[%s4760 + $0x70] sm:$0xff]
        %v4776 = vld [vmem:[%s4760 + $0x78] sm:$0xff]
        %v4777 = vld [vmem:[%s4760 + $0x80] sm:$0xff]
        %v4778 = vld [vmem:[%s4760 + $0x88] sm:$0xff]
        %v4779 = vld [vmem:[%s4760 + $0x90] sm:$0xff]
        %v4780 = vld [vmem:[%s4760 + $0x98] sm:$0xff]
        %v4781 = vld [vmem:[%s4760 + $0xa0] sm:$0xff]
        %v4782 = vld [vmem:[%s4760 + $0xa8] sm:$0xff]
        %v4783 = vld [vmem:[%s4760 + $0xb0] sm:$0xff]
        %v4784 = vld [vmem:[%s4760 + $0xb8] sm:$0xff]
        %v4785 = vld [vmem:[%s4760 + $0xc0] sm:$0xff]
        %v4786 = vld [vmem:[%s4760 + $0xc8] sm:$0xff]
        %v4787 = vld [vmem:[%s4760 + $0xd0] sm:$0xff]
        %v4788 = vld [vmem:[%s4760 + $0xd8] sm:$0xff]
        %v4789 = vld [vmem:[%s4760 + $0xe0] sm:$0xff]
        %v4790 = vld [vmem:[%s4760 + $0xe8] sm:$0xff]
        %v4791 = vld [vmem:[%s4760 + $0xf0] sm:$0xff]
        %v4792 = vld [vmem:[%s4760 + $0xf8] sm:$0xff]
        %v4793 = vrot.slane %v4519, 2
        %v4794 = vsel %vm4073, %v4793, 0
        %4796 = vmatpush.msra.mxu0 0.0
        %4797 = vmatpush.msra.mxu0 0.0
        %4798 = vmatpush.msra.mxu0 0.0
        %4799 = vmatpush.msra.mxu0 0.0
        %4800 = vmatpush.msra.mxu0 0.0
        %4801 = vmatpush.msra.mxu0 0.0
        %4802 = vmatpush.msra.mxu0 0.0
        %4803 = vmatpush.msra.mxu0 0.0
        %4804 = vmatpush.msra.mxu0 %v4789
        %4805 = vmatpush.msra.mxu0 %v4785
        %4806 = vmatpush.msra.mxu0 %v4781
        %4807 = vmatpush.msra.mxu0 %v4777
        %4808 = vmatpush.msra.mxu0 %v4773
        %4809 = vmatpush.msra.mxu0 %v4769
        %4810 = vmatpush.msra.mxu0 %v4765
        %4811 = vmatpush.msra.mxu0 %v4761
        %4812 = vmatmul.f32.gmra.mxu0 %v4794
        %v4813 = vpop.f32.mrf.mxu0
        %v4814 = vadd.f32 0.0, %v4813
        %4815 = vdwg.mxu0
        %4816 = vmatpush.msra.mxu0 0.0
        %4817 = vmatpush.msra.mxu0 0.0
        %4818 = vmatpush.msra.mxu0 0.0
        %4819 = vmatpush.msra.mxu0 0.0
        %4820 = vmatpush.msra.mxu0 0.0
        %4821 = vmatpush.msra.mxu0 0.0
        %4822 = vmatpush.msra.mxu0 0.0
        %4823 = vmatpush.msra.mxu0 0.0
        %4824 = vmatpush.msra.mxu0 %v4790
        %4825 = vmatpush.msra.mxu0 %v4786
        %4826 = vmatpush.msra.mxu0 %v4782
        %4827 = vmatpush.msra.mxu0 %v4778
        %4828 = vmatpush.msra.mxu0 %v4774
        %4829 = vmatpush.msra.mxu0 %v4770
        %4830 = vmatpush.msra.mxu0 %v4766
        %4831 = vmatpush.msra.mxu0 %v4762
        %4832 = vmatmul.f32.gmra.mxu0 %v4794
        %v4833 = vpop.f32.mrf.mxu0
        %v4834 = vadd.f32 0.0, %v4833
        %4835 = vdwg.mxu0
        %4836 = vmatpush.msra.mxu0 0.0
        %4837 = vmatpush.msra.mxu0 0.0
        %4838 = vmatpush.msra.mxu0 0.0
        %4839 = vmatpush.msra.mxu0 0.0
        %4840 = vmatpush.msra.mxu0 0.0
        %4841 = vmatpush.msra.mxu0 0.0
        %4842 = vmatpush.msra.mxu0 0.0
        %4843 = vmatpush.msra.mxu0 0.0
        %4844 = vmatpush.msra.mxu0 %v4791
        %4845 = vmatpush.msra.mxu0 %v4787
        %4846 = vmatpush.msra.mxu0 %v4783
        %4847 = vmatpush.msra.mxu0 %v4779
        %4848 = vmatpush.msra.mxu0 %v4775
        %4849 = vmatpush.msra.mxu0 %v4771
        %4850 = vmatpush.msra.mxu0 %v4767
        %4851 = vmatpush.msra.mxu0 %v4763
        %4852 = vmatmul.f32.gmra.mxu0 %v4794
        %v4853 = vpop.f32.mrf.mxu0
        %v4854 = vadd.f32 0.0, %v4853
        %4855 = vdwg.mxu0
        %4856 = vmatpush.msra.mxu0 0.0
        %4857 = vmatpush.msra.mxu0 0.0
        %4858 = vmatpush.msra.mxu0 0.0
        %4859 = vmatpush.msra.mxu0 0.0
        %4860 = vmatpush.msra.mxu0 0.0
        %4861 = vmatpush.msra.mxu0 0.0
        %4862 = vmatpush.msra.mxu0 0.0
        %4863 = vmatpush.msra.mxu0 0.0
        %4864 = vmatpush.msra.mxu0 %v4792
        %4865 = vmatpush.msra.mxu0 %v4788
        %4866 = vmatpush.msra.mxu0 %v4784
        %4867 = vmatpush.msra.mxu0 %v4780
        %4868 = vmatpush.msra.mxu0 %v4776
        %4869 = vmatpush.msra.mxu0 %v4772
        %4870 = vmatpush.msra.mxu0 %v4768
        %4871 = vmatpush.msra.mxu0 %v4764
        %4872 = vmatmul.f32.gmra.mxu0 %v4794
        %v4873 = vpop.f32.mrf.mxu0
        %v4874 = vadd.f32 0.0, %v4873
        %4875 = vdwg.mxu0
        %v4876 = vadd.f32 %v4756, %v4814
        %v4877 = vadd.f32 %v4757, %v4834
        %v4878 = vadd.f32 %v4758, %v4854
        %v4879 = vadd.f32 %v4759, %v4874
        %s4880 = scalar_lea.vmem %s5, 1792
        %v4881 = vld [vmem:[%s4880] sm:$0xff]
        %v4882 = vld [vmem:[%s4880 + $0x8] sm:$0xff]
        %v4883 = vld [vmem:[%s4880 + $0x10] sm:$0xff]
        %v4884 = vld [vmem:[%s4880 + $0x18] sm:$0xff]
        %v4885 = vld [vmem:[%s4880 + $0x20] sm:$0xff]
        %v4886 = vld [vmem:[%s4880 + $0x28] sm:$0xff]
        %v4887 = vld [vmem:[%s4880 + $0x30] sm:$0xff]
        %v4888 = vld [vmem:[%s4880 + $0x38] sm:$0xff]
        %v4889 = vld [vmem:[%s4880 + $0x40] sm:$0xff]
        %v4890 = vld [vmem:[%s4880 + $0x48] sm:$0xff]
        %v4891 = vld [vmem:[%s4880 + $0x50] sm:$0xff]
        %v4892 = vld [vmem:[%s4880 + $0x58] sm:$0xff]
        %v4893 = vld [vmem:[%s4880 + $0x60] sm:$0xff]
        %v4894 = vld [vmem:[%s4880 + $0x68] sm:$0xff]
        %v4895 = vld [vmem:[%s4880 + $0x70] sm:$0xff]
        %v4896 = vld [vmem:[%s4880 + $0x78] sm:$0xff]
        %v4897 = vld [vmem:[%s4880 + $0x80] sm:$0xff]
        %v4898 = vld [vmem:[%s4880 + $0x88] sm:$0xff]
        %v4899 = vld [vmem:[%s4880 + $0x90] sm:$0xff]
        %v4900 = vld [vmem:[%s4880 + $0x98] sm:$0xff]
        %v4901 = vld [vmem:[%s4880 + $0xa0] sm:$0xff]
        %v4902 = vld [vmem:[%s4880 + $0xa8] sm:$0xff]
        %v4903 = vld [vmem:[%s4880 + $0xb0] sm:$0xff]
        %v4904 = vld [vmem:[%s4880 + $0xb8] sm:$0xff]
        %v4905 = vld [vmem:[%s4880 + $0xc0] sm:$0xff]
        %v4906 = vld [vmem:[%s4880 + $0xc8] sm:$0xff]
        %v4907 = vld [vmem:[%s4880 + $0xd0] sm:$0xff]
        %v4908 = vld [vmem:[%s4880 + $0xd8] sm:$0xff]
        %v4909 = vld [vmem:[%s4880 + $0xe0] sm:$0xff]
        %v4910 = vld [vmem:[%s4880 + $0xe8] sm:$0xff]
        %v4911 = vld [vmem:[%s4880 + $0xf0] sm:$0xff]
        %v4912 = vld [vmem:[%s4880 + $0xf8] sm:$0xff]
        %v4913 = vrot.slane %v4519, 3
        %v4914 = vsel %vm4073, %v4913, 0
        %4916 = vmatpush.msra.mxu0 0.0
        %4917 = vmatpush.msra.mxu0 0.0
        %4918 = vmatpush.msra.mxu0 0.0
        %4919 = vmatpush.msra.mxu0 0.0
        %4920 = vmatpush.msra.mxu0 0.0
        %4921 = vmatpush.msra.mxu0 0.0
        %4922 = vmatpush.msra.mxu0 0.0
        %4923 = vmatpush.msra.mxu0 0.0
        %4924 = vmatpush.msra.mxu0 %v4909
        %4925 = vmatpush.msra.mxu0 %v4905
        %4926 = vmatpush.msra.mxu0 %v4901
        %4927 = vmatpush.msra.mxu0 %v4897
        %4928 = vmatpush.msra.mxu0 %v4893
        %4929 = vmatpush.msra.mxu0 %v4889
        %4930 = vmatpush.msra.mxu0 %v4885
        %4931 = vmatpush.msra.mxu0 %v4881
        %4932 = vmatmul.f32.gmra.mxu0 %v4914
        %v4933 = vpop.f32.mrf.mxu0
        %v4934 = vadd.f32 0.0, %v4933
        %4935 = vdwg.mxu0
        %4936 = vmatpush.msra.mxu0 0.0
        %4937 = vmatpush.msra.mxu0 0.0
        %4938 = vmatpush.msra.mxu0 0.0
        %4939 = vmatpush.msra.mxu0 0.0
        %4940 = vmatpush.msra.mxu0 0.0
        %4941 = vmatpush.msra.mxu0 0.0
        %4942 = vmatpush.msra.mxu0 0.0
        %4943 = vmatpush.msra.mxu0 0.0
        %4944 = vmatpush.msra.mxu0 %v4910
        %4945 = vmatpush.msra.mxu0 %v4906
        %4946 = vmatpush.msra.mxu0 %v4902
        %4947 = vmatpush.msra.mxu0 %v4898
        %4948 = vmatpush.msra.mxu0 %v4894
        %4949 = vmatpush.msra.mxu0 %v4890
        %4950 = vmatpush.msra.mxu0 %v4886
        %4951 = vmatpush.msra.mxu0 %v4882
        %4952 = vmatmul.f32.gmra.mxu0 %v4914
        %v4953 = vpop.f32.mrf.mxu0
        %v4954 = vadd.f32 0.0, %v4953
        %4955 = vdwg.mxu0
        %4956 = vmatpush.msra.mxu0 0.0
        %4957 = vmatpush.msra.mxu0 0.0
        %4958 = vmatpush.msra.mxu0 0.0
        %4959 = vmatpush.msra.mxu0 0.0
        %4960 = vmatpush.msra.mxu0 0.0
        %4961 = vmatpush.msra.mxu0 0.0
        %4962 = vmatpush.msra.mxu0 0.0
        %4963 = vmatpush.msra.mxu0 0.0
        %4964 = vmatpush.msra.mxu0 %v4911
        %4965 = vmatpush.msra.mxu0 %v4907
        %4966 = vmatpush.msra.mxu0 %v4903
        %4967 = vmatpush.msra.mxu0 %v4899
        %4968 = vmatpush.msra.mxu0 %v4895
        %4969 = vmatpush.msra.mxu0 %v4891
        %4970 = vmatpush.msra.mxu0 %v4887
        %4971 = vmatpush.msra.mxu0 %v4883
        %4972 = vmatmul.f32.gmra.mxu0 %v4914
        %v4973 = vpop.f32.mrf.mxu0
        %v4974 = vadd.f32 0.0, %v4973
        %4975 = vdwg.mxu0
        %4976 = vmatpush.msra.mxu0 0.0
        %4977 = vmatpush.msra.mxu0 0.0
        %4978 = vmatpush.msra.mxu0 0.0
        %4979 = vmatpush.msra.mxu0 0.0
        %4980 = vmatpush.msra.mxu0 0.0
        %4981 = vmatpush.msra.mxu0 0.0
        %4982 = vmatpush.msra.mxu0 0.0
        %4983 = vmatpush.msra.mxu0 0.0
        %4984 = vmatpush.msra.mxu0 %v4912
        %4985 = vmatpush.msra.mxu0 %v4908
        %4986 = vmatpush.msra.mxu0 %v4904
        %4987 = vmatpush.msra.mxu0 %v4900
        %4988 = vmatpush.msra.mxu0 %v4896
        %4989 = vmatpush.msra.mxu0 %v4892
        %4990 = vmatpush.msra.mxu0 %v4888
        %4991 = vmatpush.msra.mxu0 %v4884
        %4992 = vmatmul.f32.gmra.mxu0 %v4914
        %v4993 = vpop.f32.mrf.mxu0
        %v4994 = vadd.f32 0.0, %v4993
        %4995 = vdwg.mxu0
        %v4996 = vadd.f32 %v4876, %v4934
        %v4997 = vadd.f32 %v4877, %v4954
        %v4998 = vadd.f32 %v4878, %v4974
        %v4999 = vadd.f32 %v4879, %v4994
        %v5000 = vmax.f32 %v3955, %v3956
        %5001 = vmatpush.msra.mxu0 0.0
        %5002 = vmatpush.msra.mxu0 0.0
        %5003 = vmatpush.msra.mxu0 0.0
        %5004 = vmatpush.msra.mxu0 0.0
        %5005 = vmatpush.msra.mxu0 0.0
        %5006 = vmatpush.msra.mxu0 0.0
        %5007 = vmatpush.msra.mxu0 0.0
        %5008 = vmatpush.msra.mxu0 0.0
        %5009 = vmatpush.msra.mxu0 0.0
        %5010 = vmatpush.msra.mxu0 0.0
        %5011 = vmatpush.msra.mxu0 0.0
        %5012 = vmatpush.msra.mxu0 0.0
        %5013 = vmatpush.msra.mxu0 0.0
        %5014 = vmatpush.msra.mxu0 0.0
        %5015 = vmatpush.msra.mxu0 0.0
        %5016 = vmatpush.msra.mxu0 %v5000
        %5017 = vmatmul.f32.gmra.mxu0 %v3961
        %v5018 = vpop.f32.mrf.mxu0
        %v5019 = vadd.f32 0.0, %v5018
        %5020 = vdwg.mxu0
        %5021 = vmatpush.msra.mxu0 0.0
        %5022 = vmatpush.msra.mxu0 0.0
        %5023 = vmatpush.msra.mxu0 0.0
        %5024 = vmatpush.msra.mxu0 0.0
        %5025 = vmatpush.msra.mxu0 0.0
        %5026 = vmatpush.msra.mxu0 0.0
        %5027 = vmatpush.msra.mxu0 0.0
        %5028 = vmatpush.msra.mxu0 0.0
        %5029 = vmatpush.msra.mxu0 0.0
        %5030 = vmatpush.msra.mxu0 0.0
        %5031 = vmatpush.msra.mxu0 0.0
        %5032 = vmatpush.msra.mxu0 0.0
        %5033 = vmatpush.msra.mxu0 0.0
        %5034 = vmatpush.msra.mxu0 0.0
        %5035 = vmatpush.msra.mxu0 0.0
        %5036 = vmatpush.msra.mxu0 %v5000
        %5037 = vmatmul.f32.gmra.mxu0 %v3983
        %v5038 = vpop.f32.mrf.mxu0
        %v5039 = vadd.f32 0.0, %v5038
        %5040 = vdwg.mxu0
        %v5041 = vmax.f32 %v5019, %v5039
        %s5042 = scalar_lea.vmem %s5, 2048
        %v5043 = vld [vmem:[%s5042] sm:$0xff]
        %v5044 = vld [vmem:[%s5042 + $0x8] sm:$0xff]
        %v5045 = vld [vmem:[%s5042 + $0x10] sm:$0xff]
        %v5046 = vld [vmem:[%s5042 + $0x18] sm:$0xff]
        %v5047 = vld [vmem:[%s5042 + $0x20] sm:$0xff]
        %v5048 = vld [vmem:[%s5042 + $0x28] sm:$0xff]
        %v5049 = vld [vmem:[%s5042 + $0x30] sm:$0xff]
        %v5050 = vld [vmem:[%s5042 + $0x38] sm:$0xff]
        %v5051 = vld [vmem:[%s5042 + $0x40] sm:$0xff]
        %v5052 = vld [vmem:[%s5042 + $0x48] sm:$0xff]
        %v5053 = vld [vmem:[%s5042 + $0x50] sm:$0xff]
        %v5054 = vld [vmem:[%s5042 + $0x58] sm:$0xff]
        %v5055 = vld [vmem:[%s5042 + $0x60] sm:$0xff]
        %v5056 = vld [vmem:[%s5042 + $0x68] sm:$0xff]
        %v5057 = vld [vmem:[%s5042 + $0x70] sm:$0xff]
        %v5058 = vld [vmem:[%s5042 + $0x78] sm:$0xff]
        %v5059 = vld [vmem:[%s5042 + $0x80] sm:$0xff]
        %v5060 = vld [vmem:[%s5042 + $0x88] sm:$0xff]
        %v5061 = vld [vmem:[%s5042 + $0x90] sm:$0xff]
        %v5062 = vld [vmem:[%s5042 + $0x98] sm:$0xff]
        %v5063 = vld [vmem:[%s5042 + $0xa0] sm:$0xff]
        %v5064 = vld [vmem:[%s5042 + $0xa8] sm:$0xff]
        %v5065 = vld [vmem:[%s5042 + $0xb0] sm:$0xff]
        %v5066 = vld [vmem:[%s5042 + $0xb8] sm:$0xff]
        %v5067 = vld [vmem:[%s5042 + $0xc0] sm:$0xff]
        %v5068 = vld [vmem:[%s5042 + $0xc8] sm:$0xff]
        %v5069 = vld [vmem:[%s5042 + $0xd0] sm:$0xff]
        %v5070 = vld [vmem:[%s5042 + $0xd8] sm:$0xff]
        %v5071 = vld [vmem:[%s5042 + $0xe0] sm:$0xff]
        %v5072 = vld [vmem:[%s5042 + $0xe8] sm:$0xff]
        %v5073 = vld [vmem:[%s5042 + $0xf0] sm:$0xff]
        %v5074 = vld [vmem:[%s5042 + $0xf8] sm:$0xff]
        %v5076 = vsel %vm4073, %v5041, 0
        %5078 = vmatpush.msra.mxu0 0.0
        %5079 = vmatpush.msra.mxu0 0.0
        %5080 = vmatpush.msra.mxu0 0.0
        %5081 = vmatpush.msra.mxu0 0.0
        %5082 = vmatpush.msra.mxu0 0.0
        %5083 = vmatpush.msra.mxu0 0.0
        %5084 = vmatpush.msra.mxu0 0.0
        %5085 = vmatpush.msra.mxu0 0.0
        %5086 = vmatpush.msra.mxu0 %v5071
        %5087 = vmatpush.msra.mxu0 %v5067
        %5088 = vmatpush.msra.mxu0 %v5063
        %5089 = vmatpush.msra.mxu0 %v5059
        %5090 = vmatpush.msra.mxu0 %v5055
        %5091 = vmatpush.msra.mxu0 %v5051
        %5092 = vmatpush.msra.mxu0 %v5047
        %5093 = vmatpush.msra.mxu0 %v5043
        %5094 = vmatmul.f32.gmra.mxu0 %v5076
        %v5095 = vpop.f32.mrf.mxu0
        %v5096 = vadd.f32 0.0, %v5095
        %5097 = vdwg.mxu0
        %5098 = vmatpush.msra.mxu0 0.0
        %5099 = vmatpush.msra.mxu0 0.0
        %5100 = vmatpush.msra.mxu0 0.0
        %5101 = vmatpush.msra.mxu0 0.0
        %5102 = vmatpush.msra.mxu0 0.0
        %5103 = vmatpush.msra.mxu0 0.0
        %5104 = vmatpush.msra.mxu0 0.0
        %5105 = vmatpush.msra.mxu0 0.0
        %5106 = vmatpush.msra.mxu0 %v5072
        %5107 = vmatpush.msra.mxu0 %v5068
        %5108 = vmatpush.msra.mxu0 %v5064
        %5109 = vmatpush.msra.mxu0 %v5060
        %5110 = vmatpush.msra.mxu0 %v5056
        %5111 = vmatpush.msra.mxu0 %v5052
        %5112 = vmatpush.msra.mxu0 %v5048
        %5113 = vmatpush.msra.mxu0 %v5044
        %5114 = vmatmul.f32.gmra.mxu0 %v5076
        %v5115 = vpop.f32.mrf.mxu0
        %v5116 = vadd.f32 0.0, %v5115
        %5117 = vdwg.mxu0
        %5118 = vmatpush.msra.mxu0 0.0
        %5119 = vmatpush.msra.mxu0 0.0
        %5120 = vmatpush.msra.mxu0 0.0
        %5121 = vmatpush.msra.mxu0 0.0
        %5122 = vmatpush.msra.mxu0 0.0
        %5123 = vmatpush.msra.mxu0 0.0
        %5124 = vmatpush.msra.mxu0 0.0
        %5125 = vmatpush.msra.mxu0 0.0
        %5126 = vmatpush.msra.mxu0 %v5073
        %5127 = vmatpush.msra.mxu0 %v5069
        %5128 = vmatpush.msra.mxu0 %v5065
        %5129 = vmatpush.msra.mxu0 %v5061
        %5130 = vmatpush.msra.mxu0 %v5057
        %5131 = vmatpush.msra.mxu0 %v5053
        %5132 = vmatpush.msra.mxu0 %v5049
        %5133 = vmatpush.msra.mxu0 %v5045
        %5134 = vmatmul.f32.gmra.mxu0 %v5076
        %v5135 = vpop.f32.mrf.mxu0
        %v5136 = vadd.f32 0.0, %v5135
        %5137 = vdwg.mxu0
        %5138 = vmatpush.msra.mxu0 0.0
        %5139 = vmatpush.msra.mxu0 0.0
        %5140 = vmatpush.msra.mxu0 0.0
        %5141 = vmatpush.msra.mxu0 0.0
        %5142 = vmatpush.msra.mxu0 0.0
        %5143 = vmatpush.msra.mxu0 0.0
        %5144 = vmatpush.msra.mxu0 0.0
        %5145 = vmatpush.msra.mxu0 0.0
        %5146 = vmatpush.msra.mxu0 %v5074
        %5147 = vmatpush.msra.mxu0 %v5070
        %5148 = vmatpush.msra.mxu0 %v5066
        %5149 = vmatpush.msra.mxu0 %v5062
        %5150 = vmatpush.msra.mxu0 %v5058
        %5151 = vmatpush.msra.mxu0 %v5054
        %5152 = vmatpush.msra.mxu0 %v5050
        %5153 = vmatpush.msra.mxu0 %v5046
        %5154 = vmatmul.f32.gmra.mxu0 %v5076
        %v5155 = vpop.f32.mrf.mxu0
        %v5156 = vadd.f32 0.0, %v5155
        %5157 = vdwg.mxu0
        %v5158 = vadd.f32 %v4996, %v5096
        %v5159 = vadd.f32 %v4997, %v5116
        %v5160 = vadd.f32 %v4998, %v5136
        %v5161 = vadd.f32 %v4999, %v5156
        %s5162 = scalar_lea.vmem %s5, 2304
        %v5163 = vld [vmem:[%s5162] sm:$0xff]
        %v5164 = vld [vmem:[%s5162 + $0x8] sm:$0xff]
        %v5165 = vld [vmem:[%s5162 + $0x10] sm:$0xff]
        %v5166 = vld [vmem:[%s5162 + $0x18] sm:$0xff]
        %v5167 = vld [vmem:[%s5162 + $0x20] sm:$0xff]
        %v5168 = vld [vmem:[%s5162 + $0x28] sm:$0xff]
        %v5169 = vld [vmem:[%s5162 + $0x30] sm:$0xff]
        %v5170 = vld [vmem:[%s5162 + $0x38] sm:$0xff]
        %v5171 = vld [vmem:[%s5162 + $0x40] sm:$0xff]
        %v5172 = vld [vmem:[%s5162 + $0x48] sm:$0xff]
        %v5173 = vld [vmem:[%s5162 + $0x50] sm:$0xff]
        %v5174 = vld [vmem:[%s5162 + $0x58] sm:$0xff]
        %v5175 = vld [vmem:[%s5162 + $0x60] sm:$0xff]
        %v5176 = vld [vmem:[%s5162 + $0x68] sm:$0xff]
        %v5177 = vld [vmem:[%s5162 + $0x70] sm:$0xff]
        %v5178 = vld [vmem:[%s5162 + $0x78] sm:$0xff]
        %v5179 = vld [vmem:[%s5162 + $0x80] sm:$0xff]
        %v5180 = vld [vmem:[%s5162 + $0x88] sm:$0xff]
        %v5181 = vld [vmem:[%s5162 + $0x90] sm:$0xff]
        %v5182 = vld [vmem:[%s5162 + $0x98] sm:$0xff]
        %v5183 = vld [vmem:[%s5162 + $0xa0] sm:$0xff]
        %v5184 = vld [vmem:[%s5162 + $0xa8] sm:$0xff]
        %v5185 = vld [vmem:[%s5162 + $0xb0] sm:$0xff]
        %v5186 = vld [vmem:[%s5162 + $0xb8] sm:$0xff]
        %v5187 = vld [vmem:[%s5162 + $0xc0] sm:$0xff]
        %v5188 = vld [vmem:[%s5162 + $0xc8] sm:$0xff]
        %v5189 = vld [vmem:[%s5162 + $0xd0] sm:$0xff]
        %v5190 = vld [vmem:[%s5162 + $0xd8] sm:$0xff]
        %v5191 = vld [vmem:[%s5162 + $0xe0] sm:$0xff]
        %v5192 = vld [vmem:[%s5162 + $0xe8] sm:$0xff]
        %v5193 = vld [vmem:[%s5162 + $0xf0] sm:$0xff]
        %v5194 = vld [vmem:[%s5162 + $0xf8] sm:$0xff]
        %v5195 = vrot.slane %v5041, 1
        %v5196 = vsel %vm4073, %v5195, 0
        %5198 = vmatpush.msra.mxu0 0.0
        %5199 = vmatpush.msra.mxu0 0.0
        %5200 = vmatpush.msra.mxu0 0.0
        %5201 = vmatpush.msra.mxu0 0.0
        %5202 = vmatpush.msra.mxu0 0.0
        %5203 = vmatpush.msra.mxu0 0.0
        %5204 = vmatpush.msra.mxu0 0.0
        %5205 = vmatpush.msra.mxu0 0.0
        %5206 = vmatpush.msra.mxu0 %v5191
        %5207 = vmatpush.msra.mxu0 %v5187
        %5208 = vmatpush.msra.mxu0 %v5183
        %5209 = vmatpush.msra.mxu0 %v5179
        %5210 = vmatpush.msra.mxu0 %v5175
        %5211 = vmatpush.msra.mxu0 %v5171
        %5212 = vmatpush.msra.mxu0 %v5167
        %5213 = vmatpush.msra.mxu0 %v5163
        %5214 = vmatmul.f32.gmra.mxu0 %v5196
        %v5215 = vpop.f32.mrf.mxu0
        %v5216 = vadd.f32 0.0, %v5215
        %5217 = vdwg.mxu0
        %5218 = vmatpush.msra.mxu0 0.0
        %5219 = vmatpush.msra.mxu0 0.0
        %5220 = vmatpush.msra.mxu0 0.0
        %5221 = vmatpush.msra.mxu0 0.0
        %5222 = vmatpush.msra.mxu0 0.0
        %5223 = vmatpush.msra.mxu0 0.0
        %5224 = vmatpush.msra.mxu0 0.0
        %5225 = vmatpush.msra.mxu0 0.0
        %5226 = vmatpush.msra.mxu0 %v5192
        %5227 = vmatpush.msra.mxu0 %v5188
        %5228 = vmatpush.msra.mxu0 %v5184
        %5229 = vmatpush.msra.mxu0 %v5180
        %5230 = vmatpush.msra.mxu0 %v5176
        %5231 = vmatpush.msra.mxu0 %v5172
        %5232 = vmatpush.msra.mxu0 %v5168
        %5233 = vmatpush.msra.mxu0 %v5164
        %5234 = vmatmul.f32.gmra.mxu0 %v5196
        %v5235 = vpop.f32.mrf.mxu0
        %v5236 = vadd.f32 0.0, %v5235
        %5237 = vdwg.mxu0
        %5238 = vmatpush.msra.mxu0 0.0
        %5239 = vmatpush.msra.mxu0 0.0
        %5240 = vmatpush.msra.mxu0 0.0
        %5241 = vmatpush.msra.mxu0 0.0
        %5242 = vmatpush.msra.mxu0 0.0
        %5243 = vmatpush.msra.mxu0 0.0
        %5244 = vmatpush.msra.mxu0 0.0
        %5245 = vmatpush.msra.mxu0 0.0
        %5246 = vmatpush.msra.mxu0 %v5193
        %5247 = vmatpush.msra.mxu0 %v5189
        %5248 = vmatpush.msra.mxu0 %v5185
        %5249 = vmatpush.msra.mxu0 %v5181
        %5250 = vmatpush.msra.mxu0 %v5177
        %5251 = vmatpush.msra.mxu0 %v5173
        %5252 = vmatpush.msra.mxu0 %v5169
        %5253 = vmatpush.msra.mxu0 %v5165
        %5254 = vmatmul.f32.gmra.mxu0 %v5196
        %v5255 = vpop.f32.mrf.mxu0
        %v5256 = vadd.f32 0.0, %v5255
        %5257 = vdwg.mxu0
        %5258 = vmatpush.msra.mxu0 0.0
        %5259 = vmatpush.msra.mxu0 0.0
        %5260 = vmatpush.msra.mxu0 0.0
        %5261 = vmatpush.msra.mxu0 0.0
        %5262 = vmatpush.msra.mxu0 0.0
        %5263 = vmatpush.msra.mxu0 0.0
        %5264 = vmatpush.msra.mxu0 0.0
        %5265 = vmatpush.msra.mxu0 0.0
        %5266 = vmatpush.msra.mxu0 %v5194
        %5267 = vmatpush.msra.mxu0 %v5190
        %5268 = vmatpush.msra.mxu0 %v5186
        %5269 = vmatpush.msra.mxu0 %v5182
        %5270 = vmatpush.msra.mxu0 %v5178
        %5271 = vmatpush.msra.mxu0 %v5174
        %5272 = vmatpush.msra.mxu0 %v5170
        %5273 = vmatpush.msra.mxu0 %v5166
        %5274 = vmatmul.f32.gmra.mxu0 %v5196
        %v5275 = vpop.f32.mrf.mxu0
        %v5276 = vadd.f32 0.0, %v5275
        %5277 = vdwg.mxu0
        %v5278 = vadd.f32 %v5158, %v5216
        %v5279 = vadd.f32 %v5159, %v5236
        %v5280 = vadd.f32 %v5160, %v5256
        %v5281 = vadd.f32 %v5161, %v5276
        %s5282 = scalar_lea.vmem %s5, 2560
        %v5283 = vld [vmem:[%s5282] sm:$0xff]
        %v5284 = vld [vmem:[%s5282 + $0x8] sm:$0xff]
        %v5285 = vld [vmem:[%s5282 + $0x10] sm:$0xff]
        %v5286 = vld [vmem:[%s5282 + $0x18] sm:$0xff]
        %v5287 = vld [vmem:[%s5282 + $0x20] sm:$0xff]
        %v5288 = vld [vmem:[%s5282 + $0x28] sm:$0xff]
        %v5289 = vld [vmem:[%s5282 + $0x30] sm:$0xff]
        %v5290 = vld [vmem:[%s5282 + $0x38] sm:$0xff]
        %v5291 = vld [vmem:[%s5282 + $0x40] sm:$0xff]
        %v5292 = vld [vmem:[%s5282 + $0x48] sm:$0xff]
        %v5293 = vld [vmem:[%s5282 + $0x50] sm:$0xff]
        %v5294 = vld [vmem:[%s5282 + $0x58] sm:$0xff]
        %v5295 = vld [vmem:[%s5282 + $0x60] sm:$0xff]
        %v5296 = vld [vmem:[%s5282 + $0x68] sm:$0xff]
        %v5297 = vld [vmem:[%s5282 + $0x70] sm:$0xff]
        %v5298 = vld [vmem:[%s5282 + $0x78] sm:$0xff]
        %v5299 = vld [vmem:[%s5282 + $0x80] sm:$0xff]
        %v5300 = vld [vmem:[%s5282 + $0x88] sm:$0xff]
        %v5301 = vld [vmem:[%s5282 + $0x90] sm:$0xff]
        %v5302 = vld [vmem:[%s5282 + $0x98] sm:$0xff]
        %v5303 = vld [vmem:[%s5282 + $0xa0] sm:$0xff]
        %v5304 = vld [vmem:[%s5282 + $0xa8] sm:$0xff]
        %v5305 = vld [vmem:[%s5282 + $0xb0] sm:$0xff]
        %v5306 = vld [vmem:[%s5282 + $0xb8] sm:$0xff]
        %v5307 = vld [vmem:[%s5282 + $0xc0] sm:$0xff]
        %v5308 = vld [vmem:[%s5282 + $0xc8] sm:$0xff]
        %v5309 = vld [vmem:[%s5282 + $0xd0] sm:$0xff]
        %v5310 = vld [vmem:[%s5282 + $0xd8] sm:$0xff]
        %v5311 = vld [vmem:[%s5282 + $0xe0] sm:$0xff]
        %v5312 = vld [vmem:[%s5282 + $0xe8] sm:$0xff]
        %v5313 = vld [vmem:[%s5282 + $0xf0] sm:$0xff]
        %v5314 = vld [vmem:[%s5282 + $0xf8] sm:$0xff]
        %v5315 = vrot.slane %v5041, 2
        %v5316 = vsel %vm4073, %v5315, 0
        %5318 = vmatpush.msra.mxu0 0.0
        %5319 = vmatpush.msra.mxu0 0.0
        %5320 = vmatpush.msra.mxu0 0.0
        %5321 = vmatpush.msra.mxu0 0.0
        %5322 = vmatpush.msra.mxu0 0.0
        %5323 = vmatpush.msra.mxu0 0.0
        %5324 = vmatpush.msra.mxu0 0.0
        %5325 = vmatpush.msra.mxu0 0.0
        %5326 = vmatpush.msra.mxu0 %v5311
        %5327 = vmatpush.msra.mxu0 %v5307
        %5328 = vmatpush.msra.mxu0 %v5303
        %5329 = vmatpush.msra.mxu0 %v5299
        %5330 = vmatpush.msra.mxu0 %v5295
        %5331 = vmatpush.msra.mxu0 %v5291
        %5332 = vmatpush.msra.mxu0 %v5287
        %5333 = vmatpush.msra.mxu0 %v5283
        %5334 = vmatmul.f32.gmra.mxu0 %v5316
        %v5335 = vpop.f32.mrf.mxu0
        %v5336 = vadd.f32 0.0, %v5335
        %5337 = vdwg.mxu0
        %5338 = vmatpush.msra.mxu0 0.0
        %5339 = vmatpush.msra.mxu0 0.0
        %5340 = vmatpush.msra.mxu0 0.0
        %5341 = vmatpush.msra.mxu0 0.0
        %5342 = vmatpush.msra.mxu0 0.0
        %5343 = vmatpush.msra.mxu0 0.0
        %5344 = vmatpush.msra.mxu0 0.0
        %5345 = vmatpush.msra.mxu0 0.0
        %5346 = vmatpush.msra.mxu0 %v5312
        %5347 = vmatpush.msra.mxu0 %v5308
        %5348 = vmatpush.msra.mxu0 %v5304
        %5349 = vmatpush.msra.mxu0 %v5300
        %5350 = vmatpush.msra.mxu0 %v5296
        %5351 = vmatpush.msra.mxu0 %v5292
        %5352 = vmatpush.msra.mxu0 %v5288
        %5353 = vmatpush.msra.mxu0 %v5284
        %5354 = vmatmul.f32.gmra.mxu0 %v5316
        %v5355 = vpop.f32.mrf.mxu0
        %v5356 = vadd.f32 0.0, %v5355
        %5357 = vdwg.mxu0
        %5358 = vmatpush.msra.mxu0 0.0
        %5359 = vmatpush.msra.mxu0 0.0
        %5360 = vmatpush.msra.mxu0 0.0
        %5361 = vmatpush.msra.mxu0 0.0
        %5362 = vmatpush.msra.mxu0 0.0
        %5363 = vmatpush.msra.mxu0 0.0
        %5364 = vmatpush.msra.mxu0 0.0
        %5365 = vmatpush.msra.mxu0 0.0
        %5366 = vmatpush.msra.mxu0 %v5313
        %5367 = vmatpush.msra.mxu0 %v5309
        %5368 = vmatpush.msra.mxu0 %v5305
        %5369 = vmatpush.msra.mxu0 %v5301
        %5370 = vmatpush.msra.mxu0 %v5297
        %5371 = vmatpush.msra.mxu0 %v5293
        %5372 = vmatpush.msra.mxu0 %v5289
        %5373 = vmatpush.msra.mxu0 %v5285
        %5374 = vmatmul.f32.gmra.mxu0 %v5316
        %v5375 = vpop.f32.mrf.mxu0
        %v5376 = vadd.f32 0.0, %v5375
        %5377 = vdwg.mxu0
        %5378 = vmatpush.msra.mxu0 0.0
        %5379 = vmatpush.msra.mxu0 0.0
        %5380 = vmatpush.msra.mxu0 0.0
        %5381 = vmatpush.msra.mxu0 0.0
        %5382 = vmatpush.msra.mxu0 0.0
        %5383 = vmatpush.msra.mxu0 0.0
        %5384 = vmatpush.msra.mxu0 0.0
        %5385 = vmatpush.msra.mxu0 0.0
        %5386 = vmatpush.msra.mxu0 %v5314
        %5387 = vmatpush.msra.mxu0 %v5310
        %5388 = vmatpush.msra.mxu0 %v5306
        %5389 = vmatpush.msra.mxu0 %v5302
        %5390 = vmatpush.msra.mxu0 %v5298
        %5391 = vmatpush.msra.mxu0 %v5294
        %5392 = vmatpush.msra.mxu0 %v5290
        %5393 = vmatpush.msra.mxu0 %v5286
        %5394 = vmatmul.f32.gmra.mxu0 %v5316
        %v5395 = vpop.f32.mrf.mxu0
        %v5396 = vadd.f32 0.0, %v5395
        %5397 = vdwg.mxu0
        %v5398 = vadd.f32 %v5278, %v5336
        %v5399 = vadd.f32 %v5279, %v5356
        %v5400 = vadd.f32 %v5280, %v5376
        %v5401 = vadd.f32 %v5281, %v5396
        %s5402 = scalar_lea.vmem %s5, 2816
        %v5403 = vld [vmem:[%s5402] sm:$0xff]
        %v5404 = vld [vmem:[%s5402 + $0x8] sm:$0xff]
        %v5405 = vld [vmem:[%s5402 + $0x10] sm:$0xff]
        %v5406 = vld [vmem:[%s5402 + $0x18] sm:$0xff]
        %v5407 = vld [vmem:[%s5402 + $0x20] sm:$0xff]
        %v5408 = vld [vmem:[%s5402 + $0x28] sm:$0xff]
        %v5409 = vld [vmem:[%s5402 + $0x30] sm:$0xff]
        %v5410 = vld [vmem:[%s5402 + $0x38] sm:$0xff]
        %v5411 = vld [vmem:[%s5402 + $0x40] sm:$0xff]
        %v5412 = vld [vmem:[%s5402 + $0x48] sm:$0xff]
        %v5413 = vld [vmem:[%s5402 + $0x50] sm:$0xff]
        %v5414 = vld [vmem:[%s5402 + $0x58] sm:$0xff]
        %v5415 = vld [vmem:[%s5402 + $0x60] sm:$0xff]
        %v5416 = vld [vmem:[%s5402 + $0x68] sm:$0xff]
        %v5417 = vld [vmem:[%s5402 + $0x70] sm:$0xff]
        %v5418 = vld [vmem:[%s5402 + $0x78] sm:$0xff]
        %v5419 = vld [vmem:[%s5402 + $0x80] sm:$0xff]
        %v5420 = vld [vmem:[%s5402 + $0x88] sm:$0xff]
        %v5421 = vld [vmem:[%s5402 + $0x90] sm:$0xff]
        %v5422 = vld [vmem:[%s5402 + $0x98] sm:$0xff]
        %v5423 = vld [vmem:[%s5402 + $0xa0] sm:$0xff]
        %v5424 = vld [vmem:[%s5402 + $0xa8] sm:$0xff]
        %v5425 = vld [vmem:[%s5402 + $0xb0] sm:$0xff]
        %v5426 = vld [vmem:[%s5402 + $0xb8] sm:$0xff]
        %v5427 = vld [vmem:[%s5402 + $0xc0] sm:$0xff]
        %v5428 = vld [vmem:[%s5402 + $0xc8] sm:$0xff]
        %v5429 = vld [vmem:[%s5402 + $0xd0] sm:$0xff]
        %v5430 = vld [vmem:[%s5402 + $0xd8] sm:$0xff]
        %v5431 = vld [vmem:[%s5402 + $0xe0] sm:$0xff]
        %v5432 = vld [vmem:[%s5402 + $0xe8] sm:$0xff]
        %v5433 = vld [vmem:[%s5402 + $0xf0] sm:$0xff]
        %v5434 = vld [vmem:[%s5402 + $0xf8] sm:$0xff]
        %v5435 = vrot.slane %v5041, 3
        %v5436 = vsel %vm4073, %v5435, 0
        %5438 = vmatpush.msra.mxu0 0.0
        %5439 = vmatpush.msra.mxu0 0.0
        %5440 = vmatpush.msra.mxu0 0.0
        %5441 = vmatpush.msra.mxu0 0.0
        %5442 = vmatpush.msra.mxu0 0.0
        %5443 = vmatpush.msra.mxu0 0.0
        %5444 = vmatpush.msra.mxu0 0.0
        %5445 = vmatpush.msra.mxu0 0.0
        %5446 = vmatpush.msra.mxu0 %v5431
        %5447 = vmatpush.msra.mxu0 %v5427
        %5448 = vmatpush.msra.mxu0 %v5423
        %5449 = vmatpush.msra.mxu0 %v5419
        %5450 = vmatpush.msra.mxu0 %v5415
        %5451 = vmatpush.msra.mxu0 %v5411
        %5452 = vmatpush.msra.mxu0 %v5407
        %5453 = vmatpush.msra.mxu0 %v5403
        %5454 = vmatmul.f32.gmra.mxu0 %v5436
        %v5455 = vpop.f32.mrf.mxu0
        %v5456 = vadd.f32 0.0, %v5455
        %5457 = vdwg.mxu0
        %5458 = vmatpush.msra.mxu0 0.0
        %5459 = vmatpush.msra.mxu0 0.0
        %5460 = vmatpush.msra.mxu0 0.0
        %5461 = vmatpush.msra.mxu0 0.0
        %5462 = vmatpush.msra.mxu0 0.0
        %5463 = vmatpush.msra.mxu0 0.0
        %5464 = vmatpush.msra.mxu0 0.0
        %5465 = vmatpush.msra.mxu0 0.0
        %5466 = vmatpush.msra.mxu0 %v5432
        %5467 = vmatpush.msra.mxu0 %v5428
        %5468 = vmatpush.msra.mxu0 %v5424
        %5469 = vmatpush.msra.mxu0 %v5420
        %5470 = vmatpush.msra.mxu0 %v5416
        %5471 = vmatpush.msra.mxu0 %v5412
        %5472 = vmatpush.msra.mxu0 %v5408
        %5473 = vmatpush.msra.mxu0 %v5404
        %5474 = vmatmul.f32.gmra.mxu0 %v5436
        %v5475 = vpop.f32.mrf.mxu0
        %v5476 = vadd.f32 0.0, %v5475
        %5477 = vdwg.mxu0
        %5478 = vmatpush.msra.mxu0 0.0
        %5479 = vmatpush.msra.mxu0 0.0
        %5480 = vmatpush.msra.mxu0 0.0
        %5481 = vmatpush.msra.mxu0 0.0
        %5482 = vmatpush.msra.mxu0 0.0
        %5483 = vmatpush.msra.mxu0 0.0
        %5484 = vmatpush.msra.mxu0 0.0
        %5485 = vmatpush.msra.mxu0 0.0
        %5486 = vmatpush.msra.mxu0 %v5433
        %5487 = vmatpush.msra.mxu0 %v5429
        %5488 = vmatpush.msra.mxu0 %v5425
        %5489 = vmatpush.msra.mxu0 %v5421
        %5490 = vmatpush.msra.mxu0 %v5417
        %5491 = vmatpush.msra.mxu0 %v5413
        %5492 = vmatpush.msra.mxu0 %v5409
        %5493 = vmatpush.msra.mxu0 %v5405
        %5494 = vmatmul.f32.gmra.mxu0 %v5436
        %v5495 = vpop.f32.mrf.mxu0
        %v5496 = vadd.f32 0.0, %v5495
        %5497 = vdwg.mxu0
        %5498 = vmatpush.msra.mxu0 0.0
        %5499 = vmatpush.msra.mxu0 0.0
        %5500 = vmatpush.msra.mxu0 0.0
        %5501 = vmatpush.msra.mxu0 0.0
        %5502 = vmatpush.msra.mxu0 0.0
        %5503 = vmatpush.msra.mxu0 0.0
        %5504 = vmatpush.msra.mxu0 0.0
        %5505 = vmatpush.msra.mxu0 0.0
        %5506 = vmatpush.msra.mxu0 %v5434
        %5507 = vmatpush.msra.mxu0 %v5430
        %5508 = vmatpush.msra.mxu0 %v5426
        %5509 = vmatpush.msra.mxu0 %v5422
        %5510 = vmatpush.msra.mxu0 %v5418
        %5511 = vmatpush.msra.mxu0 %v5414
        %5512 = vmatpush.msra.mxu0 %v5410
        %5513 = vmatpush.msra.mxu0 %v5406
        %5514 = vmatmul.f32.gmra.mxu0 %v5436
        %v5515 = vpop.f32.mrf.mxu0
        %v5516 = vadd.f32 0.0, %v5515
        %5517 = vdwg.mxu0
        %v5518 = vadd.f32 %v5398, %v5456
        %v5519 = vadd.f32 %v5399, %v5476
        %v5520 = vadd.f32 %v5400, %v5496
        %v5521 = vadd.f32 %v5401, %v5516
        %v5522 = vmax.f32 %v3957, %v3958
        %5523 = vmatpush.msra.mxu0 0.0
        %5524 = vmatpush.msra.mxu0 0.0
        %5525 = vmatpush.msra.mxu0 0.0
        %5526 = vmatpush.msra.mxu0 0.0
        %5527 = vmatpush.msra.mxu0 0.0
        %5528 = vmatpush.msra.mxu0 0.0
        %5529 = vmatpush.msra.mxu0 0.0
        %5530 = vmatpush.msra.mxu0 0.0
        %5531 = vmatpush.msra.mxu0 0.0
        %5532 = vmatpush.msra.mxu0 0.0
        %5533 = vmatpush.msra.mxu0 0.0
        %5534 = vmatpush.msra.mxu0 0.0
        %5535 = vmatpush.msra.mxu0 0.0
        %5536 = vmatpush.msra.mxu0 0.0
        %5537 = vmatpush.msra.mxu0 0.0
        %5538 = vmatpush.msra.mxu0 %v5522
        %5539 = vmatmul.f32.gmra.mxu0 %v3961
        %v5540 = vpop.f32.mrf.mxu0
        %v5541 = vadd.f32 0.0, %v5540
        %5542 = vdwg.mxu0
        %5543 = vmatpush.msra.mxu0 0.0
        %5544 = vmatpush.msra.mxu0 0.0
        %5545 = vmatpush.msra.mxu0 0.0
        %5546 = vmatpush.msra.mxu0 0.0
        %5547 = vmatpush.msra.mxu0 0.0
        %5548 = vmatpush.msra.mxu0 0.0
        %5549 = vmatpush.msra.mxu0 0.0
        %5550 = vmatpush.msra.mxu0 0.0
        %5551 = vmatpush.msra.mxu0 0.0
        %5552 = vmatpush.msra.mxu0 0.0
        %5553 = vmatpush.msra.mxu0 0.0
        %5554 = vmatpush.msra.mxu0 0.0
        %5555 = vmatpush.msra.mxu0 0.0
        %5556 = vmatpush.msra.mxu0 0.0
        %5557 = vmatpush.msra.mxu0 0.0
        %5558 = vmatpush.msra.mxu0 %v5522
        %5559 = vmatmul.f32.gmra.mxu0 %v3983
        %v5560 = vpop.f32.mrf.mxu0
        %v5561 = vadd.f32 0.0, %v5560
        %5562 = vdwg.mxu0
        %v5563 = vmax.f32 %v5541, %v5561
        %s5564 = scalar_lea.vmem %s5, 3072
        %v5565 = vld [vmem:[%s5564] sm:$0xff]
        %v5566 = vld [vmem:[%s5564 + $0x8] sm:$0xff]
        %v5567 = vld [vmem:[%s5564 + $0x10] sm:$0xff]
        %v5568 = vld [vmem:[%s5564 + $0x18] sm:$0xff]
        %v5569 = vld [vmem:[%s5564 + $0x20] sm:$0xff]
        %v5570 = vld [vmem:[%s5564 + $0x28] sm:$0xff]
        %v5571 = vld [vmem:[%s5564 + $0x30] sm:$0xff]
        %v5572 = vld [vmem:[%s5564 + $0x38] sm:$0xff]
        %v5573 = vld [vmem:[%s5564 + $0x40] sm:$0xff]
        %v5574 = vld [vmem:[%s5564 + $0x48] sm:$0xff]
        %v5575 = vld [vmem:[%s5564 + $0x50] sm:$0xff]
        %v5576 = vld [vmem:[%s5564 + $0x58] sm:$0xff]
        %v5577 = vld [vmem:[%s5564 + $0x60] sm:$0xff]
        %v5578 = vld [vmem:[%s5564 + $0x68] sm:$0xff]
        %v5579 = vld [vmem:[%s5564 + $0x70] sm:$0xff]
        %v5580 = vld [vmem:[%s5564 + $0x78] sm:$0xff]
        %v5581 = vld [vmem:[%s5564 + $0x80] sm:$0xff]
        %v5582 = vld [vmem:[%s5564 + $0x88] sm:$0xff]
        %v5583 = vld [vmem:[%s5564 + $0x90] sm:$0xff]
        %v5584 = vld [vmem:[%s5564 + $0x98] sm:$0xff]
        %v5585 = vld [vmem:[%s5564 + $0xa0] sm:$0xff]
        %v5586 = vld [vmem:[%s5564 + $0xa8] sm:$0xff]
        %v5587 = vld [vmem:[%s5564 + $0xb0] sm:$0xff]
        %v5588 = vld [vmem:[%s5564 + $0xb8] sm:$0xff]
        %v5589 = vld [vmem:[%s5564 + $0xc0] sm:$0xff]
        %v5590 = vld [vmem:[%s5564 + $0xc8] sm:$0xff]
        %v5591 = vld [vmem:[%s5564 + $0xd0] sm:$0xff]
        %v5592 = vld [vmem:[%s5564 + $0xd8] sm:$0xff]
        %v5593 = vld [vmem:[%s5564 + $0xe0] sm:$0xff]
        %v5594 = vld [vmem:[%s5564 + $0xe8] sm:$0xff]
        %v5595 = vld [vmem:[%s5564 + $0xf0] sm:$0xff]
        %v5596 = vld [vmem:[%s5564 + $0xf8] sm:$0xff]
        %v5598 = vsel %vm4073, %v5563, 0
        %5600 = vmatpush.msra.mxu0 0.0
        %5601 = vmatpush.msra.mxu0 0.0
        %5602 = vmatpush.msra.mxu0 0.0
        %5603 = vmatpush.msra.mxu0 0.0
        %5604 = vmatpush.msra.mxu0 0.0
        %5605 = vmatpush.msra.mxu0 0.0
        %5606 = vmatpush.msra.mxu0 0.0
        %5607 = vmatpush.msra.mxu0 0.0
        %5608 = vmatpush.msra.mxu0 %v5593
        %5609 = vmatpush.msra.mxu0 %v5589
        %5610 = vmatpush.msra.mxu0 %v5585
        %5611 = vmatpush.msra.mxu0 %v5581
        %5612 = vmatpush.msra.mxu0 %v5577
        %5613 = vmatpush.msra.mxu0 %v5573
        %5614 = vmatpush.msra.mxu0 %v5569
        %5615 = vmatpush.msra.mxu0 %v5565
        %5616 = vmatmul.f32.gmra.mxu0 %v5598
        %v5617 = vpop.f32.mrf.mxu0
        %v5618 = vadd.f32 0.0, %v5617
        %5619 = vdwg.mxu0
        %5620 = vmatpush.msra.mxu0 0.0
        %5621 = vmatpush.msra.mxu0 0.0
        %5622 = vmatpush.msra.mxu0 0.0
        %5623 = vmatpush.msra.mxu0 0.0
        %5624 = vmatpush.msra.mxu0 0.0
        %5625 = vmatpush.msra.mxu0 0.0
        %5626 = vmatpush.msra.mxu0 0.0
        %5627 = vmatpush.msra.mxu0 0.0
        %5628 = vmatpush.msra.mxu0 %v5594
        %5629 = vmatpush.msra.mxu0 %v5590
        %5630 = vmatpush.msra.mxu0 %v5586
        %5631 = vmatpush.msra.mxu0 %v5582
        %5632 = vmatpush.msra.mxu0 %v5578
        %5633 = vmatpush.msra.mxu0 %v5574
        %5634 = vmatpush.msra.mxu0 %v5570
        %5635 = vmatpush.msra.mxu0 %v5566
        %5636 = vmatmul.f32.gmra.mxu0 %v5598
        %v5637 = vpop.f32.mrf.mxu0
        %v5638 = vadd.f32 0.0, %v5637
        %5639 = vdwg.mxu0
        %5640 = vmatpush.msra.mxu0 0.0
        %5641 = vmatpush.msra.mxu0 0.0
        %5642 = vmatpush.msra.mxu0 0.0
        %5643 = vmatpush.msra.mxu0 0.0
        %5644 = vmatpush.msra.mxu0 0.0
        %5645 = vmatpush.msra.mxu0 0.0
        %5646 = vmatpush.msra.mxu0 0.0
        %5647 = vmatpush.msra.mxu0 0.0
        %5648 = vmatpush.msra.mxu0 %v5595
        %5649 = vmatpush.msra.mxu0 %v5591
        %5650 = vmatpush.msra.mxu0 %v5587
        %5651 = vmatpush.msra.mxu0 %v5583
        %5652 = vmatpush.msra.mxu0 %v5579
        %5653 = vmatpush.msra.mxu0 %v5575
        %5654 = vmatpush.msra.mxu0 %v5571
        %5655 = vmatpush.msra.mxu0 %v5567
        %5656 = vmatmul.f32.gmra.mxu0 %v5598
        %v5657 = vpop.f32.mrf.mxu0
        %v5658 = vadd.f32 0.0, %v5657
        %5659 = vdwg.mxu0
        %5660 = vmatpush.msra.mxu0 0.0
        %5661 = vmatpush.msra.mxu0 0.0
        %5662 = vmatpush.msra.mxu0 0.0
        %5663 = vmatpush.msra.mxu0 0.0
        %5664 = vmatpush.msra.mxu0 0.0
        %5665 = vmatpush.msra.mxu0 0.0
        %5666 = vmatpush.msra.mxu0 0.0
        %5667 = vmatpush.msra.mxu0 0.0
        %5668 = vmatpush.msra.mxu0 %v5596
        %5669 = vmatpush.msra.mxu0 %v5592
        %5670 = vmatpush.msra.mxu0 %v5588
        %5671 = vmatpush.msra.mxu0 %v5584
        %5672 = vmatpush.msra.mxu0 %v5580
        %5673 = vmatpush.msra.mxu0 %v5576
        %5674 = vmatpush.msra.mxu0 %v5572
        %5675 = vmatpush.msra.mxu0 %v5568
        %5676 = vmatmul.f32.gmra.mxu0 %v5598
        %v5677 = vpop.f32.mrf.mxu0
        %v5678 = vadd.f32 0.0, %v5677
        %5679 = vdwg.mxu0
        %v5680 = vadd.f32 %v5518, %v5618
        %v5681 = vadd.f32 %v5519, %v5638
        %v5682 = vadd.f32 %v5520, %v5658
        %v5683 = vadd.f32 %v5521, %v5678
        %s5684 = scalar_lea.vmem %s5, 3328
        %v5685 = vld [vmem:[%s5684] sm:$0xff]
        %v5686 = vld [vmem:[%s5684 + $0x8] sm:$0xff]
        %v5687 = vld [vmem:[%s5684 + $0x10] sm:$0xff]
        %v5688 = vld [vmem:[%s5684 + $0x18] sm:$0xff]
        %v5689 = vld [vmem:[%s5684 + $0x20] sm:$0xff]
        %v5690 = vld [vmem:[%s5684 + $0x28] sm:$0xff]
        %v5691 = vld [vmem:[%s5684 + $0x30] sm:$0xff]
        %v5692 = vld [vmem:[%s5684 + $0x38] sm:$0xff]
        %v5693 = vld [vmem:[%s5684 + $0x40] sm:$0xff]
        %v5694 = vld [vmem:[%s5684 + $0x48] sm:$0xff]
        %v5695 = vld [vmem:[%s5684 + $0x50] sm:$0xff]
        %v5696 = vld [vmem:[%s5684 + $0x58] sm:$0xff]
        %v5697 = vld [vmem:[%s5684 + $0x60] sm:$0xff]
        %v5698 = vld [vmem:[%s5684 + $0x68] sm:$0xff]
        %v5699 = vld [vmem:[%s5684 + $0x70] sm:$0xff]
        %v5700 = vld [vmem:[%s5684 + $0x78] sm:$0xff]
        %v5701 = vld [vmem:[%s5684 + $0x80] sm:$0xff]
        %v5702 = vld [vmem:[%s5684 + $0x88] sm:$0xff]
        %v5703 = vld [vmem:[%s5684 + $0x90] sm:$0xff]
        %v5704 = vld [vmem:[%s5684 + $0x98] sm:$0xff]
        %v5705 = vld [vmem:[%s5684 + $0xa0] sm:$0xff]
        %v5706 = vld [vmem:[%s5684 + $0xa8] sm:$0xff]
        %v5707 = vld [vmem:[%s5684 + $0xb0] sm:$0xff]
        %v5708 = vld [vmem:[%s5684 + $0xb8] sm:$0xff]
        %v5709 = vld [vmem:[%s5684 + $0xc0] sm:$0xff]
        %v5710 = vld [vmem:[%s5684 + $0xc8] sm:$0xff]
        %v5711 = vld [vmem:[%s5684 + $0xd0] sm:$0xff]
        %v5712 = vld [vmem:[%s5684 + $0xd8] sm:$0xff]
        %v5713 = vld [vmem:[%s5684 + $0xe0] sm:$0xff]
        %v5714 = vld [vmem:[%s5684 + $0xe8] sm:$0xff]
        %v5715 = vld [vmem:[%s5684 + $0xf0] sm:$0xff]
        %v5716 = vld [vmem:[%s5684 + $0xf8] sm:$0xff]
        %v5717 = vrot.slane %v5563, 1
        %v5718 = vsel %vm4073, %v5717, 0
        %5720 = vmatpush.msra.mxu0 0.0
        %5721 = vmatpush.msra.mxu0 0.0
        %5722 = vmatpush.msra.mxu0 0.0
        %5723 = vmatpush.msra.mxu0 0.0
        %5724 = vmatpush.msra.mxu0 0.0
        %5725 = vmatpush.msra.mxu0 0.0
        %5726 = vmatpush.msra.mxu0 0.0
        %5727 = vmatpush.msra.mxu0 0.0
        %5728 = vmatpush.msra.mxu0 %v5713
        %5729 = vmatpush.msra.mxu0 %v5709
        %5730 = vmatpush.msra.mxu0 %v5705
        %5731 = vmatpush.msra.mxu0 %v5701
        %5732 = vmatpush.msra.mxu0 %v5697
        %5733 = vmatpush.msra.mxu0 %v5693
        %5734 = vmatpush.msra.mxu0 %v5689
        %5735 = vmatpush.msra.mxu0 %v5685
        %5736 = vmatmul.f32.gmra.mxu0 %v5718
        %v5737 = vpop.f32.mrf.mxu0
        %v5738 = vadd.f32 0.0, %v5737
        %5739 = vdwg.mxu0
        %5740 = vmatpush.msra.mxu0 0.0
        %5741 = vmatpush.msra.mxu0 0.0
        %5742 = vmatpush.msra.mxu0 0.0
        %5743 = vmatpush.msra.mxu0 0.0
        %5744 = vmatpush.msra.mxu0 0.0
        %5745 = vmatpush.msra.mxu0 0.0
        %5746 = vmatpush.msra.mxu0 0.0
        %5747 = vmatpush.msra.mxu0 0.0
        %5748 = vmatpush.msra.mxu0 %v5714
        %5749 = vmatpush.msra.mxu0 %v5710
        %5750 = vmatpush.msra.mxu0 %v5706
        %5751 = vmatpush.msra.mxu0 %v5702
        %5752 = vmatpush.msra.mxu0 %v5698
        %5753 = vmatpush.msra.mxu0 %v5694
        %5754 = vmatpush.msra.mxu0 %v5690
        %5755 = vmatpush.msra.mxu0 %v5686
        %5756 = vmatmul.f32.gmra.mxu0 %v5718
        %v5757 = vpop.f32.mrf.mxu0
        %v5758 = vadd.f32 0.0, %v5757
        %5759 = vdwg.mxu0
        %5760 = vmatpush.msra.mxu0 0.0
        %5761 = vmatpush.msra.mxu0 0.0
        %5762 = vmatpush.msra.mxu0 0.0
        %5763 = vmatpush.msra.mxu0 0.0
        %5764 = vmatpush.msra.mxu0 0.0
        %5765 = vmatpush.msra.mxu0 0.0
        %5766 = vmatpush.msra.mxu0 0.0
        %5767 = vmatpush.msra.mxu0 0.0
        %5768 = vmatpush.msra.mxu0 %v5715
        %5769 = vmatpush.msra.mxu0 %v5711
        %5770 = vmatpush.msra.mxu0 %v5707
        %5771 = vmatpush.msra.mxu0 %v5703
        %5772 = vmatpush.msra.mxu0 %v5699
        %5773 = vmatpush.msra.mxu0 %v5695
        %5774 = vmatpush.msra.mxu0 %v5691
        %5775 = vmatpush.msra.mxu0 %v5687
        %5776 = vmatmul.f32.gmra.mxu0 %v5718
        %v5777 = vpop.f32.mrf.mxu0
        %v5778 = vadd.f32 0.0, %v5777
        %5779 = vdwg.mxu0
        %5780 = vmatpush.msra.mxu0 0.0
        %5781 = vmatpush.msra.mxu0 0.0
        %5782 = vmatpush.msra.mxu0 0.0
        %5783 = vmatpush.msra.mxu0 0.0
        %5784 = vmatpush.msra.mxu0 0.0
        %5785 = vmatpush.msra.mxu0 0.0
        %5786 = vmatpush.msra.mxu0 0.0
        %5787 = vmatpush.msra.mxu0 0.0
        %5788 = vmatpush.msra.mxu0 %v5716
        %5789 = vmatpush.msra.mxu0 %v5712
        %5790 = vmatpush.msra.mxu0 %v5708
        %5791 = vmatpush.msra.mxu0 %v5704
        %5792 = vmatpush.msra.mxu0 %v5700
        %5793 = vmatpush.msra.mxu0 %v5696
        %5794 = vmatpush.msra.mxu0 %v5692
        %5795 = vmatpush.msra.mxu0 %v5688
        %5796 = vmatmul.f32.gmra.mxu0 %v5718
        %v5797 = vpop.f32.mrf.mxu0
        %v5798 = vadd.f32 0.0, %v5797
        %5799 = vdwg.mxu0
        %v5800 = vadd.f32 %v5680, %v5738
        %v5801 = vadd.f32 %v5681, %v5758
        %v5802 = vadd.f32 %v5682, %v5778
        %v5803 = vadd.f32 %v5683, %v5798
        %s5804 = scalar_lea.vmem %s5, 3584
        %v5805 = vld [vmem:[%s5804] sm:$0xff]
        %v5806 = vld [vmem:[%s5804 + $0x8] sm:$0xff]
        %v5807 = vld [vmem:[%s5804 + $0x10] sm:$0xff]
        %v5808 = vld [vmem:[%s5804 + $0x18] sm:$0xff]
        %v5809 = vld [vmem:[%s5804 + $0x20] sm:$0xff]
        %v5810 = vld [vmem:[%s5804 + $0x28] sm:$0xff]
        %v5811 = vld [vmem:[%s5804 + $0x30] sm:$0xff]
        %v5812 = vld [vmem:[%s5804 + $0x38] sm:$0xff]
        %v5813 = vld [vmem:[%s5804 + $0x40] sm:$0xff]
        %v5814 = vld [vmem:[%s5804 + $0x48] sm:$0xff]
        %v5815 = vld [vmem:[%s5804 + $0x50] sm:$0xff]
        %v5816 = vld [vmem:[%s5804 + $0x58] sm:$0xff]
        %v5817 = vld [vmem:[%s5804 + $0x60] sm:$0xff]
        %v5818 = vld [vmem:[%s5804 + $0x68] sm:$0xff]
        %v5819 = vld [vmem:[%s5804 + $0x70] sm:$0xff]
        %v5820 = vld [vmem:[%s5804 + $0x78] sm:$0xff]
        %v5821 = vld [vmem:[%s5804 + $0x80] sm:$0xff]
        %v5822 = vld [vmem:[%s5804 + $0x88] sm:$0xff]
        %v5823 = vld [vmem:[%s5804 + $0x90] sm:$0xff]
        %v5824 = vld [vmem:[%s5804 + $0x98] sm:$0xff]
        %v5825 = vld [vmem:[%s5804 + $0xa0] sm:$0xff]
        %v5826 = vld [vmem:[%s5804 + $0xa8] sm:$0xff]
        %v5827 = vld [vmem:[%s5804 + $0xb0] sm:$0xff]
        %v5828 = vld [vmem:[%s5804 + $0xb8] sm:$0xff]
        %v5829 = vld [vmem:[%s5804 + $0xc0] sm:$0xff]
        %v5830 = vld [vmem:[%s5804 + $0xc8] sm:$0xff]
        %v5831 = vld [vmem:[%s5804 + $0xd0] sm:$0xff]
        %v5832 = vld [vmem:[%s5804 + $0xd8] sm:$0xff]
        %v5833 = vld [vmem:[%s5804 + $0xe0] sm:$0xff]
        %v5834 = vld [vmem:[%s5804 + $0xe8] sm:$0xff]
        %v5835 = vld [vmem:[%s5804 + $0xf0] sm:$0xff]
        %v5836 = vld [vmem:[%s5804 + $0xf8] sm:$0xff]
        %v5837 = vrot.slane %v5563, 2
        %v5838 = vsel %vm4073, %v5837, 0
        %5840 = vmatpush.msra.mxu0 0.0
        %5841 = vmatpush.msra.mxu0 0.0
        %5842 = vmatpush.msra.mxu0 0.0
        %5843 = vmatpush.msra.mxu0 0.0
        %5844 = vmatpush.msra.mxu0 0.0
        %5845 = vmatpush.msra.mxu0 0.0
        %5846 = vmatpush.msra.mxu0 0.0
        %5847 = vmatpush.msra.mxu0 0.0
        %5848 = vmatpush.msra.mxu0 %v5833
        %5849 = vmatpush.msra.mxu0 %v5829
        %5850 = vmatpush.msra.mxu0 %v5825
        %5851 = vmatpush.msra.mxu0 %v5821
        %5852 = vmatpush.msra.mxu0 %v5817
        %5853 = vmatpush.msra.mxu0 %v5813
        %5854 = vmatpush.msra.mxu0 %v5809
        %5855 = vmatpush.msra.mxu0 %v5805
        %5856 = vmatmul.f32.gmra.mxu0 %v5838
        %v5857 = vpop.f32.mrf.mxu0
        %v5858 = vadd.f32 0.0, %v5857
        %5859 = vdwg.mxu0
        %5860 = vmatpush.msra.mxu0 0.0
        %5861 = vmatpush.msra.mxu0 0.0
        %5862 = vmatpush.msra.mxu0 0.0
        %5863 = vmatpush.msra.mxu0 0.0
        %5864 = vmatpush.msra.mxu0 0.0
        %5865 = vmatpush.msra.mxu0 0.0
        %5866 = vmatpush.msra.mxu0 0.0
        %5867 = vmatpush.msra.mxu0 0.0
        %5868 = vmatpush.msra.mxu0 %v5834
        %5869 = vmatpush.msra.mxu0 %v5830
        %5870 = vmatpush.msra.mxu0 %v5826
        %5871 = vmatpush.msra.mxu0 %v5822
        %5872 = vmatpush.msra.mxu0 %v5818
        %5873 = vmatpush.msra.mxu0 %v5814
        %5874 = vmatpush.msra.mxu0 %v5810
        %5875 = vmatpush.msra.mxu0 %v5806
        %5876 = vmatmul.f32.gmra.mxu0 %v5838
        %v5877 = vpop.f32.mrf.mxu0
        %v5878 = vadd.f32 0.0, %v5877
        %5879 = vdwg.mxu0
        %5880 = vmatpush.msra.mxu0 0.0
        %5881 = vmatpush.msra.mxu0 0.0
        %5882 = vmatpush.msra.mxu0 0.0
        %5883 = vmatpush.msra.mxu0 0.0
        %5884 = vmatpush.msra.mxu0 0.0
        %5885 = vmatpush.msra.mxu0 0.0
        %5886 = vmatpush.msra.mxu0 0.0
        %5887 = vmatpush.msra.mxu0 0.0
        %5888 = vmatpush.msra.mxu0 %v5835
        %5889 = vmatpush.msra.mxu0 %v5831
        %5890 = vmatpush.msra.mxu0 %v5827
        %5891 = vmatpush.msra.mxu0 %v5823
        %5892 = vmatpush.msra.mxu0 %v5819
        %5893 = vmatpush.msra.mxu0 %v5815
        %5894 = vmatpush.msra.mxu0 %v5811
        %5895 = vmatpush.msra.mxu0 %v5807
        %5896 = vmatmul.f32.gmra.mxu0 %v5838
        %v5897 = vpop.f32.mrf.mxu0
        %v5898 = vadd.f32 0.0, %v5897
        %5899 = vdwg.mxu0
        %5900 = vmatpush.msra.mxu0 0.0
        %5901 = vmatpush.msra.mxu0 0.0
        %5902 = vmatpush.msra.mxu0 0.0
        %5903 = vmatpush.msra.mxu0 0.0
        %5904 = vmatpush.msra.mxu0 0.0
        %5905 = vmatpush.msra.mxu0 0.0
        %5906 = vmatpush.msra.mxu0 0.0
        %5907 = vmatpush.msra.mxu0 0.0
        %5908 = vmatpush.msra.mxu0 %v5836
        %5909 = vmatpush.msra.mxu0 %v5832
        %5910 = vmatpush.msra.mxu0 %v5828
        %5911 = vmatpush.msra.mxu0 %v5824
        %5912 = vmatpush.msra.mxu0 %v5820
        %5913 = vmatpush.msra.mxu0 %v5816
        %5914 = vmatpush.msra.mxu0 %v5812
        %5915 = vmatpush.msra.mxu0 %v5808
        %5916 = vmatmul.f32.gmra.mxu0 %v5838
        %v5917 = vpop.f32.mrf.mxu0
        %v5918 = vadd.f32 0.0, %v5917
        %5919 = vdwg.mxu0
        %v5920 = vadd.f32 %v5800, %v5858
        %v5921 = vadd.f32 %v5801, %v5878
        %v5922 = vadd.f32 %v5802, %v5898
        %v5923 = vadd.f32 %v5803, %v5918
        %s5924 = scalar_lea.vmem %s5, 3840
        %v5925 = vld [vmem:[%s5924] sm:$0xff]
        %v5926 = vld [vmem:[%s5924 + $0x8] sm:$0xff]
        %v5927 = vld [vmem:[%s5924 + $0x10] sm:$0xff]
        %v5928 = vld [vmem:[%s5924 + $0x18] sm:$0xff]
        %v5929 = vld [vmem:[%s5924 + $0x20] sm:$0xff]
        %v5930 = vld [vmem:[%s5924 + $0x28] sm:$0xff]
        %v5931 = vld [vmem:[%s5924 + $0x30] sm:$0xff]
        %v5932 = vld [vmem:[%s5924 + $0x38] sm:$0xff]
        %v5933 = vld [vmem:[%s5924 + $0x40] sm:$0xff]
        %v5934 = vld [vmem:[%s5924 + $0x48] sm:$0xff]
        %v5935 = vld [vmem:[%s5924 + $0x50] sm:$0xff]
        %v5936 = vld [vmem:[%s5924 + $0x58] sm:$0xff]
        %v5937 = vld [vmem:[%s5924 + $0x60] sm:$0xff]
        %v5938 = vld [vmem:[%s5924 + $0x68] sm:$0xff]
        %v5939 = vld [vmem:[%s5924 + $0x70] sm:$0xff]
        %v5940 = vld [vmem:[%s5924 + $0x78] sm:$0xff]
        %v5941 = vld [vmem:[%s5924 + $0x80] sm:$0xff]
        %v5942 = vld [vmem:[%s5924 + $0x88] sm:$0xff]
        %v5943 = vld [vmem:[%s5924 + $0x90] sm:$0xff]
        %v5944 = vld [vmem:[%s5924 + $0x98] sm:$0xff]
        %v5945 = vld [vmem:[%s5924 + $0xa0] sm:$0xff]
        %v5946 = vld [vmem:[%s5924 + $0xa8] sm:$0xff]
        %v5947 = vld [vmem:[%s5924 + $0xb0] sm:$0xff]
        %v5948 = vld [vmem:[%s5924 + $0xb8] sm:$0xff]
        %v5949 = vld [vmem:[%s5924 + $0xc0] sm:$0xff]
        %v5950 = vld [vmem:[%s5924 + $0xc8] sm:$0xff]
        %v5951 = vld [vmem:[%s5924 + $0xd0] sm:$0xff]
        %v5952 = vld [vmem:[%s5924 + $0xd8] sm:$0xff]
        %v5953 = vld [vmem:[%s5924 + $0xe0] sm:$0xff]
        %v5954 = vld [vmem:[%s5924 + $0xe8] sm:$0xff]
        %v5955 = vld [vmem:[%s5924 + $0xf0] sm:$0xff]
        %v5956 = vld [vmem:[%s5924 + $0xf8] sm:$0xff]
        %v5957 = vrot.slane %v5563, 3
        %v5958 = vsel %vm4073, %v5957, 0
        %5960 = vmatpush.msra.mxu0 0.0
        %5961 = vmatpush.msra.mxu0 0.0
        %5962 = vmatpush.msra.mxu0 0.0
        %5963 = vmatpush.msra.mxu0 0.0
        %5964 = vmatpush.msra.mxu0 0.0
        %5965 = vmatpush.msra.mxu0 0.0
        %5966 = vmatpush.msra.mxu0 0.0
        %5967 = vmatpush.msra.mxu0 0.0
        %5968 = vmatpush.msra.mxu0 %v5953
        %5969 = vmatpush.msra.mxu0 %v5949
        %5970 = vmatpush.msra.mxu0 %v5945
        %5971 = vmatpush.msra.mxu0 %v5941
        %5972 = vmatpush.msra.mxu0 %v5937
        %5973 = vmatpush.msra.mxu0 %v5933
        %5974 = vmatpush.msra.mxu0 %v5929
        %5975 = vmatpush.msra.mxu0 %v5925
        %5976 = vmatmul.f32.gmra.mxu0 %v5958
        %v5977 = vpop.f32.mrf.mxu0
        %v5978 = vadd.f32 0.0, %v5977
        %5979 = vdwg.mxu0
        %5980 = vmatpush.msra.mxu0 0.0
        %5981 = vmatpush.msra.mxu0 0.0
        %5982 = vmatpush.msra.mxu0 0.0
        %5983 = vmatpush.msra.mxu0 0.0
        %5984 = vmatpush.msra.mxu0 0.0
        %5985 = vmatpush.msra.mxu0 0.0
        %5986 = vmatpush.msra.mxu0 0.0
        %5987 = vmatpush.msra.mxu0 0.0
        %5988 = vmatpush.msra.mxu0 %v5954
        %5989 = vmatpush.msra.mxu0 %v5950
        %5990 = vmatpush.msra.mxu0 %v5946
        %5991 = vmatpush.msra.mxu0 %v5942
        %5992 = vmatpush.msra.mxu0 %v5938
        %5993 = vmatpush.msra.mxu0 %v5934
        %5994 = vmatpush.msra.mxu0 %v5930
        %5995 = vmatpush.msra.mxu0 %v5926
        %5996 = vmatmul.f32.gmra.mxu0 %v5958
        %v5997 = vpop.f32.mrf.mxu0
        %v5998 = vadd.f32 0.0, %v5997
        %5999 = vdwg.mxu0
        %6000 = vmatpush.msra.mxu0 0.0
        %6001 = vmatpush.msra.mxu0 0.0
        %6002 = vmatpush.msra.mxu0 0.0
        %6003 = vmatpush.msra.mxu0 0.0
        %6004 = vmatpush.msra.mxu0 0.0
        %6005 = vmatpush.msra.mxu0 0.0
        %6006 = vmatpush.msra.mxu0 0.0
        %6007 = vmatpush.msra.mxu0 0.0
        %6008 = vmatpush.msra.mxu0 %v5955
        %6009 = vmatpush.msra.mxu0 %v5951
        %6010 = vmatpush.msra.mxu0 %v5947
        %6011 = vmatpush.msra.mxu0 %v5943
        %6012 = vmatpush.msra.mxu0 %v5939
        %6013 = vmatpush.msra.mxu0 %v5935
        %6014 = vmatpush.msra.mxu0 %v5931
        %6015 = vmatpush.msra.mxu0 %v5927
        %6016 = vmatmul.f32.gmra.mxu0 %v5958
        %v6017 = vpop.f32.mrf.mxu0
        %v6018 = vadd.f32 0.0, %v6017
        %6019 = vdwg.mxu0
        %6020 = vmatpush.msra.mxu0 0.0
        %6021 = vmatpush.msra.mxu0 0.0
        %6022 = vmatpush.msra.mxu0 0.0
        %6023 = vmatpush.msra.mxu0 0.0
        %6024 = vmatpush.msra.mxu0 0.0
        %6025 = vmatpush.msra.mxu0 0.0
        %6026 = vmatpush.msra.mxu0 0.0
        %6027 = vmatpush.msra.mxu0 0.0
        %6028 = vmatpush.msra.mxu0 %v5956
        %6029 = vmatpush.msra.mxu0 %v5952
        %6030 = vmatpush.msra.mxu0 %v5948
        %6031 = vmatpush.msra.mxu0 %v5944
        %6032 = vmatpush.msra.mxu0 %v5940
        %6033 = vmatpush.msra.mxu0 %v5936
        %6034 = vmatpush.msra.mxu0 %v5932
        %6035 = vmatpush.msra.mxu0 %v5928
        %6036 = vmatmul.f32.gmra.mxu0 %v5958
        %v6037 = vpop.f32.mrf.mxu0
        %v6038 = vadd.f32 0.0, %v6037
        %6039 = vdwg.mxu0
        %v6040 = vadd.f32 %v5920, %v5978
        %v6041 = vadd.f32 %v5921, %v5998
        %v6042 = vadd.f32 %v5922, %v6018
        %v6043 = vadd.f32 %v5923, %v6038
        %v6044 = vld [vmem:[%s6] sm:$0xf]
        %v6046 = vperm.slane %v6044, 0
        %v6047 = vperm.slane %v6044, 1
        %v6048 = vperm.slane %v6044, 2
        %v6049 = vperm.slane %v6044, 3
        %v6054 = vadd.f32 %v6040, %v6046
        %v6055 = vadd.f32 %v6041, %v6047
        %v6056 = vadd.f32 %v6042, %v6048
        %v6057 = vadd.f32 %v6043, %v6049
        %v6058 = vmax.f32 %v6054, 0.0
        %v6059 = vmax.f32 %v6055, 0.0
        %v6060 = vmax.f32 %v6056, 0.0
        %v6061 = vmax.f32 %v6057, 0.0
        %v6062 = vld [vmem:[%s7] sm:$0xff]
        %v6063 = vld [vmem:[%s7 + $0x8] sm:$0xff]
        %v6064 = vld [vmem:[%s7 + $0x10] sm:$0xff]
        %v6065 = vld [vmem:[%s7 + $0x18] sm:$0xff]
        %v6066 = vld [vmem:[%s7 + $0x20] sm:$0xff]
        %v6067 = vld [vmem:[%s7 + $0x28] sm:$0xff]
        %v6068 = vld [vmem:[%s7 + $0x30] sm:$0xff]
        %v6069 = vld [vmem:[%s7 + $0x38] sm:$0xff]
        %v6070 = vld [vmem:[%s7 + $0x40] sm:$0xff]
        %v6071 = vld [vmem:[%s7 + $0x48] sm:$0xff]
        %v6072 = vld [vmem:[%s7 + $0x50] sm:$0xff]
        %v6073 = vld [vmem:[%s7 + $0x58] sm:$0xff]
        %v6074 = vld [vmem:[%s7 + $0x60] sm:$0xff]
        %v6075 = vld [vmem:[%s7 + $0x68] sm:$0xff]
        %v6076 = vld [vmem:[%s7 + $0x70] sm:$0xff]
        %v6077 = vld [vmem:[%s7 + $0x78] sm:$0xff]
        %v6078 = vld [vmem:[%s7 + $0x80] sm:$0xff]
        %v6079 = vld [vmem:[%s7 + $0x88] sm:$0xff]
        %v6080 = vld [vmem:[%s7 + $0x90] sm:$0xff]
        %v6081 = vld [vmem:[%s7 + $0x98] sm:$0xff]
        %v6082 = vld [vmem:[%s7 + $0xa0] sm:$0xff]
        %v6083 = vld [vmem:[%s7 + $0xa8] sm:$0xff]
        %v6084 = vld [vmem:[%s7 + $0xb0] sm:$0xff]
        %v6085 = vld [vmem:[%s7 + $0xb8] sm:$0xff]
        %v6086 = vld [vmem:[%s7 + $0xc0] sm:$0xff]
        %v6087 = vld [vmem:[%s7 + $0xc8] sm:$0xff]
        %v6088 = vld [vmem:[%s7 + $0xd0] sm:$0xff]
        %v6089 = vld [vmem:[%s7 + $0xd8] sm:$0xff]
        %v6090 = vld [vmem:[%s7 + $0xe0] sm:$0xff]
        %v6091 = vld [vmem:[%s7 + $0xe8] sm:$0xff]
        %v6092 = vld [vmem:[%s7 + $0xf0] sm:$0xff]
        %v6093 = vld [vmem:[%s7 + $0xf8] sm:$0xff]
        %v6094 = vld [vmem:[%s7 + $0x100] sm:$0xff]
        %v6095 = vld [vmem:[%s7 + $0x108] sm:$0xff]
        %v6096 = vld [vmem:[%s7 + $0x110] sm:$0xff]
        %v6097 = vld [vmem:[%s7 + $0x118] sm:$0xff]
        %v6098 = vld [vmem:[%s7 + $0x120] sm:$0xff]
        %v6099 = vld [vmem:[%s7 + $0x128] sm:$0xff]
        %v6100 = vld [vmem:[%s7 + $0x130] sm:$0xff]
        %v6101 = vld [vmem:[%s7 + $0x138] sm:$0xff]
        %v6102 = vld [vmem:[%s7 + $0x140] sm:$0xff]
        %v6103 = vld [vmem:[%s7 + $0x148] sm:$0xff]
        %v6104 = vld [vmem:[%s7 + $0x150] sm:$0xff]
        %v6105 = vld [vmem:[%s7 + $0x158] sm:$0xff]
        %v6106 = vld [vmem:[%s7 + $0x160] sm:$0xff]
        %v6107 = vld [vmem:[%s7 + $0x168] sm:$0xff]
        %v6108 = vld [vmem:[%s7 + $0x170] sm:$0xff]
        %v6109 = vld [vmem:[%s7 + $0x178] sm:$0xff]
        %v6110 = vld [vmem:[%s7 + $0x180] sm:$0xff]
        %v6111 = vld [vmem:[%s7 + $0x188] sm:$0xff]
        %v6112 = vld [vmem:[%s7 + $0x190] sm:$0xff]
        %v6113 = vld [vmem:[%s7 + $0x198] sm:$0xff]
        %v6114 = vld [vmem:[%s7 + $0x1a0] sm:$0xff]
        %v6115 = vld [vmem:[%s7 + $0x1a8] sm:$0xff]
        %v6116 = vld [vmem:[%s7 + $0x1b0] sm:$0xff]
        %v6117 = vld [vmem:[%s7 + $0x1b8] sm:$0xff]
        %v6118 = vld [vmem:[%s7 + $0x1c0] sm:$0xff]
        %v6119 = vld [vmem:[%s7 + $0x1c8] sm:$0xff]
        %v6120 = vld [vmem:[%s7 + $0x1d0] sm:$0xff]
        %v6121 = vld [vmem:[%s7 + $0x1d8] sm:$0xff]
        %v6122 = vld [vmem:[%s7 + $0x1e0] sm:$0xff]
        %v6123 = vld [vmem:[%s7 + $0x1e8] sm:$0xff]
        %v6124 = vld [vmem:[%s7 + $0x1f0] sm:$0xff]
        %v6125 = vld [vmem:[%s7 + $0x1f8] sm:$0xff]
        %v6126 = vld [vmem:[%s8] sm:$0x1]
        %6127 = vmatpush.msra.mxu0 %v6077
        %6128 = vmatpush.msra.mxu0 %v6076
        %6129 = vmatpush.msra.mxu0 %v6075
        %6130 = vmatpush.msra.mxu0 %v6074
        %6131 = vmatpush.msra.mxu0 %v6073
        %6132 = vmatpush.msra.mxu0 %v6072
        %6133 = vmatpush.msra.mxu0 %v6071
        %6134 = vmatpush.msra.mxu0 %v6070
        %6135 = vmatpush.msra.mxu0 %v6069
        %6136 = vmatpush.msra.mxu0 %v6068
        %6137 = vmatpush.msra.mxu0 %v6067
        %6138 = vmatpush.msra.mxu0 %v6066
        %6139 = vmatpush.msra.mxu0 %v6065
        %6140 = vmatpush.msra.mxu0 %v6064
        %6141 = vmatpush.msra.mxu0 %v6063
        %6142 = vmatpush.msra.mxu0 %v6062
        %6143 = vmatmul.f32.gmra.mxu0 %v6058
        %v6144 = vpop.f32.mrf.mxu0
        %v6145 = vadd.f32 %v6126, %v6144
        %6146 = vdwg.mxu0
        %6147 = vmatpush.msra.mxu0 %v6093
        %6148 = vmatpush.msra.mxu0 %v6092
        %6149 = vmatpush.msra.mxu0 %v6091
        %6150 = vmatpush.msra.mxu0 %v6090
        %6151 = vmatpush.msra.mxu0 %v6089
        %6152 = vmatpush.msra.mxu0 %v6088
        %6153 = vmatpush.msra.mxu0 %v6087
        %6154 = vmatpush.msra.mxu0 %v6086
        %6155 = vmatpush.msra.mxu0 %v6085
        %6156 = vmatpush.msra.mxu0 %v6084
        %6157 = vmatpush.msra.mxu0 %v6083
        %6158 = vmatpush.msra.mxu0 %v6082
        %6159 = vmatpush.msra.mxu0 %v6081
        %6160 = vmatpush.msra.mxu0 %v6080
        %6161 = vmatpush.msra.mxu0 %v6079
        %6162 = vmatpush.msra.mxu0 %v6078
        %6163 = vmatmul.f32.gmra.mxu0 %v6059
        %v6164 = vpop.f32.mrf.mxu0
        %v6165 = vadd.f32 %v6145, %v6164
        %6166 = vdwg.mxu0
        %6167 = vmatpush.msra.mxu0 %v6109
        %6168 = vmatpush.msra.mxu0 %v6108
        %6169 = vmatpush.msra.mxu0 %v6107
        %6170 = vmatpush.msra.mxu0 %v6106
        %6171 = vmatpush.msra.mxu0 %v6105
        %6172 = vmatpush.msra.mxu0 %v6104
        %6173 = vmatpush.msra.mxu0 %v6103
        %6174 = vmatpush.msra.mxu0 %v6102
        %6175 = vmatpush.msra.mxu0 %v6101
        %6176 = vmatpush.msra.mxu0 %v6100
        %6177 = vmatpush.msra.mxu0 %v6099
        %6178 = vmatpush.msra.mxu0 %v6098
        %6179 = vmatpush.msra.mxu0 %v6097
        %6180 = vmatpush.msra.mxu0 %v6096
        %6181 = vmatpush.msra.mxu0 %v6095
        %6182 = vmatpush.msra.mxu0 %v6094
        %6183 = vmatmul.f32.gmra.mxu0 %v6060
        %v6184 = vpop.f32.mrf.mxu0
        %v6185 = vadd.f32 %v6165, %v6184
        %6186 = vdwg.mxu0
        %6187 = vmatpush.msra.mxu0 %v6125
        %6188 = vmatpush.msra.mxu0 %v6124
        %6189 = vmatpush.msra.mxu0 %v6123
        %6190 = vmatpush.msra.mxu0 %v6122
        %6191 = vmatpush.msra.mxu0 %v6121
        %6192 = vmatpush.msra.mxu0 %v6120
        %6193 = vmatpush.msra.mxu0 %v6119
        %6194 = vmatpush.msra.mxu0 %v6118
        %6195 = vmatpush.msra.mxu0 %v6117
        %6196 = vmatpush.msra.mxu0 %v6116
        %6197 = vmatpush.msra.mxu0 %v6115
        %6198 = vmatpush.msra.mxu0 %v6114
        %6199 = vmatpush.msra.mxu0 %v6113
        %6200 = vmatpush.msra.mxu0 %v6112
        %6201 = vmatpush.msra.mxu0 %v6111
        %6202 = vmatpush.msra.mxu0 %v6110
        %6203 = vmatmul.f32.gmra.mxu0 %v6061
        %v6204 = vpop.f32.mrf.mxu0
        %v6205 = vadd.f32 %v6185, %v6204
        %6206 = vdwg.mxu0
        %v6207 = vsel %vm384, %v6205, -inf
        %6208 = vmax.xlane.f32.xlu0 %v6207
        %v6209 = vpop.xlane.xlu0 %6208
        %v6210 = vsub.f32 %v6205, %v6209
        %v6211 = vmul.f32 %v6210, 1.442695
        %v6212 = vpow.pop %v6211
        %v6213 = vsel %vm384, %v6212, 0.0
        %6214 = vadd.xlane.f32.xlu0 %v6213
        %v6215 = vpop.xlane.xlu0 %6214
        %v6216 = vlog2.pop %v6215
        %v6217 = vmul.f32 %v6216, 0.6931472
        %v6218 = vadd.f32 %v6209, %v6217
        %v6219 = vsub.f32 %v6205, %v6218
        %6220 = vst [vmem:[%s324] sm:$0x1] %v6219
        %s6221 = sand.u32 %s225, 1
        %s6222 = scalar_lea.sflag [#allocation4], %s6221
        %s6223 = sand.u32 %s225, 1
        %s6224 = scalar_lea.vmem [#allocation3], %s6223
        // Predicated region
        $region57: #{lenet_forward.1} parent=55 // pred_check
          %p6225 = pneg %p235
        $region58: #{lenet_forward.1} parent=55 // pred_check_branch
          %6227 = sbr.rel (%p6225) target = $region60
        $region59: #{lenet_forward.1} parent=55 // pred_region
          %6229 = vsyncadd %s6222, 0
          %s6230 = scalar_lea.hbm %s9, %s23
          %s6232 = sshll.u32 %s6224, 4
          %s6233 = int_to_ptr.vmem [resolvable:$true] %s6232
          %s6234 = sshll.u32 %s6230, 4
          %s6235 = int_to_ptr.hbm [resolvable:$true] %s6234
          %6237 = dma.vmem_to_hbm [thread:$0]  %s6233, 16, %s6235, %s6222
        $region60: #{lenet_forward.1} parent=55 // pred_fallthru
          _
      $region56: #{lenet_forward.1} parent=5 // pred_fallthru
        _
      %p6238 = scmp.le.s32.totalorder 2, %s18
      // Predicated region
      $region61: #{lenet_forward.1} parent=5 // pred_check
        %p6239 = pneg %p6238
      $region62: #{lenet_forward.1} parent=5 // pred_check_branch
        %6241 = sbr.rel (%p6239) target = $region64
      $region63: #{lenet_forward.1} parent=5 // pred_region
        %s6242 = ssub.s32 %s18, 2
        // Predicated region
        $region65: #{lenet_forward.1} parent=63 // pred_check
          %p6243 = pneg %p241
        $region66: #{lenet_forward.1} parent=63 // pred_check_branch
          %6245 = sbr.rel (%p6243) target = $region68
        $region67: #{lenet_forward.1} parent=63 // pred_region
          %s6246 = sand.u32 %s226, 1
          %s6247 = scalar_lea.sflag [#allocation4], %s6246
          %s6248 = sand.u32 %s226, 1
          %s6249 = scalar_lea.vmem [#allocation3], %s6248
          %6251 = dma.done %s6247, 16
        $region68: #{lenet_forward.1} parent=63 // pred_fallthru
          _
      $region64: #{lenet_forward.1} parent=5 // pred_fallthru
        _
    $region6: #{lenet_forward.1} parent=1 // loop_footer
      %s22 = sadd.s32 1, %s18
    $region7: #{lenet_forward.1} parent=1 // loop_footer_branch
      %17 = sbr.rel target = $region3
    $region8: #{lenet_forward.1} parent=1 // loop_exit
      _
    %6252 = vsyncpa [#allocation4], 1
    %s6253 = scalar_lea.sflag [#allocation4], 1
    %6254 = vsyncpa %s6253, 1

</llo_original>
